<compile_context>
chip_gen: v5e
topology: v5e:2x2
jax: 0.10.0
libtpu: 0.0.40
codegen_flags: <defaults>
</compile_context>

<pallas_src>
import functools

import jax
import jax.numpy as jnp
from jax import lax
from jax.experimental import pallas as pl
from jax.experimental.pallas import tpu as pltpu


# ------------------------------ Pallas kernel --------------------------------
def _conv3x3(xp, w, b_row):
    """3x3 'valid' conv on an already-halo'd tile as one K=9*Cin MXU matmul.

    xp:    (hp, wp, cin)  bf16 value (includes >=1-px halo on each side)
    w:     (9*cin, cout)  bf16 weights with folded BN scale
    b_row: (1, cout)      f32 folded BN bias
    returns (hp-2, wp-2, cout) f32 pre-activation.
    """
    hp, wp, cin = xp.shape
    ho, wo = hp - 2, wp - 2
    # im2col slab built once: 9 shifted views concatenated along channels.
    taps = [xp[dy:dy + ho, dx:dx + wo, :] for dy in range(3) for dx in range(3)]
    slab = jnp.concatenate(taps, axis=-1).reshape(ho * wo, 9 * cin)
    y = jnp.dot(slab, w, preferred_element_type=jnp.float32) + b_row
    return y.reshape(ho, wo, -1)


def _ssh_fused_kernel(x_ref, wA_ref, bA_ref, wB_ref, bB_ref, wC_ref, bC_ref,
                      o_ref, *, tile_h, H, W, C2, C4, leaky):
    T = tile_h
    row0 = pl.multiple_of(pl.program_id(1) * T, T)

    # Padded-input tile with a 3-px halo (covers the 2-deep conv chain).
    xt = x_ref[0, pl.ds(row0, T + 6), :, :]              # (T+6, W+6, Cin) bf16

    def act(y):
        # conv_bn's LeakyReLU; slope is a static Python float.
        if leaky > 0.0:
            return jnp.where(y >= 0, y, leaky * y)
        return jnp.maximum(y, 0.0)

    def zero_outside_image(arr, halo):
        # Recomputed intermediate halos that fall outside the image must be 0
        # to match PyTorch's per-layer zero padding.  Minimal-shape iotas:
        # column mask is tile-invariant; row mask is (rows, 1, 1).
        rows, cols = arr.shape[0], arr.shape[1]
        ci = lax.broadcasted_iota(jnp.int32, (1, cols, 1), 1)
        col_ok = (ci >= halo) & (ci < W + halo)
        ri = lax.broadcasted_iota(jnp.int32, (rows, 1, 1), 0) + (row0 - halo)
        row_ok = (ri >= 0) & (ri < H)
        return jnp.where(col_ok & row_ok, arr, 0.0)

    # --- Fused matmul 1: [conv3X3 | conv5X5_1] over the full input slab -----
    y1 = _conv3x3(xt, wA_ref[...], bA_ref[...])          # (T+4, W+4, C2+C4)
    c3 = y1[2:T + 2, 2:W + 2, :C2]                       # (T, W, C2), no act
    c51 = zero_outside_image(act(y1[:, :, C2:]), 2).astype(jnp.bfloat16)

    # --- Fused matmul 2: [conv5X5_2 | conv7X7_2] over the full c51 slab -----
    y2 = _conv3x3(c51, wB_ref[...], bB_ref[...])         # (T+2, W+2, 2*C4)
    c5 = y2[1:T + 1, 1:W + 1, :C4]                       # (T, W, C4), no act
    c72 = zero_outside_image(act(y2[:, :, C4:]), 1).astype(jnp.bfloat16)

    # --- conv7x7_3 ------------------------------------------------------------
    c7 = _conv3x3(c72, wC_ref[...], bC_ref[...])         # (T, W, C4), no act

    # Final F.relu(concat(...)) -> single store of the full out_channel width.
    out = jnp.maximum(jnp.concatenate([c3, c5, c7], axis=-1), 0.0)
    o_ref[...] = out[None].astype(o_ref.dtype)


# --------------------------------- Wrapper ------------------------------------
def _vmem_capacity_bytes():
    try:
        return int(pltpu.get_tpu_info().vmem_capacity_bytes)
    except Exception:
        return 64 << 20          # conservative fallback: v7x per-TC VMEM


def _pick_tile_h(H, target):
    """Largest divisor of H that is <= target (whole image if H is small/awkward)."""
    if H <= target:
        return H
    best = 1
    for t in range(target, 0, -1):
        if H % t == 0:
            best = t
            break
    return best if best >= 8 else H


def _fold_conv_bn(p):
    """Fold BN scale into the conv weight -> f32 (9*Cin, Cout) W, f32 (Cout,) b."""
    w = p["w"] * p["scale"]                               # (3,3,Cin,Cout)*(Cout,)
    cin, cout = w.shape[2], w.shape[3]
    return w.reshape(9 * cin, cout), p["bias"]


def ssh_forward(x_nchw, params, out_channel, tile_h=None, out_dtype=jnp.bfloat16):
    """Matches SSH.forward; input/output are NCHW like PyTorch (output in out_dtype)."""
    leaky = 0.1 if out_channel <= 64 else 0.0
    N, Cin, H, W = x_nchw.shape
    C2, C4 = out_channel // 2, out_channel // 4
    OC = out_channel

    vmem_cap = _vmem_capacity_bytes()
    vmem_limit = min(vmem_cap * 3 // 4, 100 << 20)        # <=48 MiB v7x, ~96 MiB v5e/v6e
    if tile_h is None:
        tile_h = 64 if vmem_cap >= (96 << 20) else 32     # ~half the tile on v7x
    T = _pick_tile_h(H, tile_h)

    x = jnp.transpose(x_nchw, (0, 2, 3, 1))               # NCHW -> NHWC
    # One 3-px zero halo for the whole fused block (one pad instead of five).
    xp = jnp.pad(x, ((0, 0), (3, 3), (3, 3), (0, 0))).astype(jnp.bfloat16)

    # Branches that share an input get their weight matrices concatenated.
    w3, b3 = _fold_conv_bn(params["conv3X3"])
    w51, b51 = _fold_conv_bn(params["conv5X5_1"])
    w5, b5 = _fold_conv_bn(params["conv5X5_2"])
    w72, b72 = _fold_conv_bn(params["conv7X7_2"])
    w7, b7 = _fold_conv_bn(params["conv7x7_3"])
    wA = jnp.concatenate([w3, w51], axis=1).astype(jnp.bfloat16)     # (9*Cin, C2+C4)
    bA = jnp.concatenate([b3, b51]).reshape(1, C2 + C4).astype(jnp.float32)
    wB = jnp.concatenate([w5, w72], axis=1).astype(jnp.bfloat16)     # (9*C4, 2*C4)
    bB = jnp.concatenate([b5, b72]).reshape(1, 2 * C4).astype(jnp.float32)
    wC = w7.astype(jnp.bfloat16)                                     # (9*C4, C4)
    bC = b7.reshape(1, C4).astype(jnp.float32)

    kernel = functools.partial(_ssh_fused_kernel, tile_h=T, H=H, W=W,
                               C2=C2, C4=C4, leaky=leaky)

    flops = 2 * N * H * W * 9 * (Cin * (C2 + C4) + 3 * C4 * C4)
    bytes_accessed = int(xp.size * 2
                         + 2 * (wA.size + wB.size + wC.size)
                         + 4 * (bA.size + bB.size + bC.size)
                         + N * H * W * OC * jnp.dtype(out_dtype).itemsize)

    def const_spec(arr):
        # Block index never changes -> single-buffer to save VMEM (matters on v7x).
        return pl.BlockSpec(arr.shape, lambda n, h, _nd=arr.ndim: (0,) * _nd,
                            pipeline_mode=pl.Buffered(1))

    # On v7x (2 TCs) shard the batch so the full-image input block is not
    # fetched by both cores; with a single image fall back to row sharding.
    dims = ("parallel", "arbitrary") if N > 1 else ("parallel", "parallel")

    out_nhwc = pl.pallas_call(
        kernel,
        out_shape=jax.ShapeDtypeStruct((N, H, W, OC), out_dtype),
        grid=(N, H // T),
        in_specs=[
            # Full padded image per batch element; constant over the row axis,
            # so it is DMA'd once per n.  The kernel slices its halo'd window.
            pl.BlockSpec((1, H + 6, W + 6, Cin), lambda n, h: (n, 0, 0, 0)),
            const_spec(wA), const_spec(bA),
            const_spec(wB), const_spec(bB),
            const_spec(wC), const_spec(bC),
        ],
        out_specs=pl.BlockSpec((1, T, W, OC), lambda n, h: (n, h, 0, 0)),
        compiler_params=pltpu.CompilerParams(
            dimension_semantics=dims,
            vmem_limit_bytes=int(vmem_limit)),
        cost_estimate=pl.CostEstimate(
            flops=flops, transcendentals=0, bytes_accessed=bytes_accessed),
    )(xp, wA, bA, wB, bB, wC, bC)

    return jnp.transpose(out_nhwc, (0, 3, 1, 2))          # NHWC -> NCHW


# --------------------------- Parameter handling --------------------------------
def fold_bn(gamma, beta, mean, var, eps=1e-5):
    scale = gamma / jnp.sqrt(var + eps)
    bias = beta - mean * scale
    return scale, bias


def init_conv_bn_params(key, cin, cout):
    """Deterministic synthetic params for Conv2d(3x3, no bias) + BatchNorm2d."""
    k_w, k_g, k_b, k_m, k_v = jax.random.split(key, 5)
    fan_in = cin * 9
    w = jax.random.normal(k_w, (3, 3, cin, cout), jnp.float32) / jnp.sqrt(fan_in)
    gamma = jax.random.uniform(k_g, (cout,), jnp.float32, 0.5, 1.5)
    beta = 0.1 * jax.random.normal(k_b, (cout,), jnp.float32)
    mean = 0.1 * jax.random.normal(k_m, (cout,), jnp.float32)
    var = jax.random.uniform(k_v, (cout,), jnp.float32, 0.5, 1.5)
    scale, bias = fold_bn(gamma, beta, mean, var)
    return {"w": w, "scale": scale, "bias": bias}


def init_ssh_params(key, in_channel, out_channel):
    assert out_channel % 4 == 0
    keys = jax.random.split(key, 5)
    return {
        "conv3X3":   init_conv_bn_params(keys[0], in_channel, out_channel // 2),
        "conv5X5_1": init_conv_bn_params(keys[1], in_channel, out_channel // 4),
        "conv5X5_2": init_conv_bn_params(keys[2], out_channel // 4, out_channel // 4),
        "conv7X7_2": init_conv_bn_params(keys[3], out_channel // 4, out_channel // 4),
        "conv7x7_3": init_conv_bn_params(keys[4], out_channel // 4, out_channel // 4),
    }


# ------------------- Pure-JAX reference (precision-matched) --------------------
def _ref_conv(x_bf16, w_bf16, bias_f32, act, slope):
    y = lax.conv_general_dilated(
        x_bf16, w_bf16, window_strides=(1, 1), padding="SAME",
        dimension_numbers=("NHWC", "HWIO", "NHWC"),
        preferred_element_type=jnp.float32)
    y = y + bias_f32
    if act == "leaky":
        y = jnp.where(y >= 0, y, slope * y)
    return y


def ssh_reference(x_nchw, params, out_channel, out_dtype=jnp.bfloat16):
    """Same math as SSH.forward, with the same quantization points as the kernel."""
    leaky = 0.1 if out_channel <= 64 else 0.0
    x = jnp.transpose(x_nchw, (0, 2, 3, 1)).astype(jnp.bfloat16)

    def fw(name):
        p = params[name]
        w = (p["w"] * p["scale"]).astype(jnp.bfloat16)
        b = p["bias"].reshape(1, 1, 1, -1).astype(jnp.float32)
        return w, b

    w3, b3 = fw("conv3X3")
    w51, b51 = fw("conv5X5_1")
    w5, b5 = fw("conv5X5_2")
    w72, b72 = fw("conv7X7_2")
    w7, b7 = fw("conv7x7_3")

    c3 = _ref_conv(x, w3, b3, "none", 0.0)
    c51 = _ref_conv(x, w51, b51, "leaky", leaky).astype(jnp.bfloat16)
    c5 = _ref_conv(c51, w5, b5, "none", 0.0)
    c72 = _ref_conv(c51, w72, b72, "leaky", leaky).astype(jnp.bfloat16)
    c7 = _ref_conv(c72, w7, b7, "none", 0.0)
    out = jnp.maximum(jnp.concatenate([c3, c5, c7], axis=-1), 0.0).astype(out_dtype)
    return jnp.transpose(out, (0, 3, 1, 2))


# ----------------------------------- main --------------------------------------
if __name__ == "__main__":
    N, IN_C, H, W = 2, 8, 16, 16
    OUT_C = 32

    key = jax.random.PRNGKey(0)
    k_x, k_p = jax.random.split(key)
    x = jax.random.normal(k_x, (N, IN_C, H, W), jnp.float32)   # NCHW like PyTorch
    params = init_ssh_params(k_p, IN_C, OUT_C)

    out = jax.block_until_ready(ssh_forward(x, params, OUT_C))
    assert out.shape == (N, OUT_C, H, W), out.shape

    ref = jax.block_until_ready(ssh_reference(x, params, OUT_C))
    o32 = out.astype(jnp.float32)
    r32 = ref.astype(jnp.float32)
    err = float(jnp.max(jnp.abs(o32 - r32)))
    assert jnp.allclose(o32, r32, atol=2e-2, rtol=2e-2), err

    print("KERNEL_OK")
</pallas_src>

<mosaic_0001>
module attributes {stable_mosaic.version = 11 : i64} {
  func.func @_ssh_fused_kernel(%arg0: i32, %arg1: i32, %arg2: memref<1x22x22x8xbf16, #tpu.memory_space<vmem>>, %arg3: memref<72x24xbf16, #tpu.memory_space<vmem>>, %arg4: memref<1x24xf32, #tpu.memory_space<vmem>>, %arg5: memref<72x16xbf16, #tpu.memory_space<vmem>>, %arg6: memref<1x16xf32, #tpu.memory_space<vmem>>, %arg7: memref<72x8xbf16, #tpu.memory_space<vmem>>, %arg8: memref<1x8xf32, #tpu.memory_space<vmem>>, %arg9: memref<1x16x16x32xbf16, #tpu.memory_space<vmem>>) attributes {dimension_semantics = [#tpu.dimension_semantics<parallel>, #tpu.dimension_semantics<arbitrary>], iteration_bounds = array<i64: 2, 1>, scalar_prefetch = 0 : i64, scratch_operands = 0 : i64, tpu.core_type = #tpu.core_type<tc>, window_params = [{transform_indices = @transform_0, window_bounds = array<i64: 1, 22, 22, 8>}, {pipeline_mode = #tpu.pipeline_mode<synchronous>, transform_indices = @transform_1, window_bounds = array<i64: 72, 24>}, {pipeline_mode = #tpu.pipeline_mode<synchronous>, transform_indices = @transform_2, window_bounds = array<i64: 1, 24>}, {pipeline_mode = #tpu.pipeline_mode<synchronous>, transform_indices = @transform_3, window_bounds = array<i64: 72, 16>}, {pipeline_mode = #tpu.pipeline_mode<synchronous>, transform_indices = @transform_4, window_bounds = array<i64: 1, 16>}, {pipeline_mode = #tpu.pipeline_mode<synchronous>, transform_indices = @transform_5, window_bounds = array<i64: 72, 8>}, {pipeline_mode = #tpu.pipeline_mode<synchronous>, transform_indices = @transform_6, window_bounds = array<i64: 1, 8>}, {transform_indices = @transform_7, window_bounds = array<i64: 1, 16, 16, 32>}]} {
    %c16_i32 = arith.constant 16 : i32
    %0 = arith.muli %arg1, %c16_i32 : i32
    %1 = tpu.assume_multiple %0, 16 : i32
    %c0 = arith.constant 0 : index
    %2 = arith.index_cast %1 : i32 to index
    %c0_0 = arith.constant 0 : index
    %c0_1 = arith.constant 0 : index
    %3 = vector.load %arg2[%c0, %2, %c0_0, %c0_1] : memref<1x22x22x8xbf16, #tpu.memory_space<vmem>>, vector<1x22x22x8xbf16>
    %4 = vector.shape_cast %3 : vector<1x22x22x8xbf16> to vector<22x22x8xbf16>
    %c0_2 = arith.constant 0 : index
    %c0_3 = arith.constant 0 : index
    %5 = vector.load %arg3[%c0_2, %c0_3] : memref<72x24xbf16, #tpu.memory_space<vmem>>, vector<72x24xbf16>
    %c0_4 = arith.constant 0 : index
    %c0_5 = arith.constant 0 : index
    %6 = vector.load %arg4[%c0_4, %c0_5] : memref<1x24xf32, #tpu.memory_space<vmem>>, vector<1x24xf32>
    %7 = vector.extract_strided_slice %4 {offsets = [0, 0, 0], sizes = [20, 20, 8], strides = [1, 1, 1]} : vector<22x22x8xbf16> to vector<20x20x8xbf16>
    %8 = vector.extract_strided_slice %4 {offsets = [0, 1, 0], sizes = [20, 20, 8], strides = [1, 1, 1]} : vector<22x22x8xbf16> to vector<20x20x8xbf16>
    %9 = vector.extract_strided_slice %4 {offsets = [0, 2, 0], sizes = [20, 20, 8], strides = [1, 1, 1]} : vector<22x22x8xbf16> to vector<20x20x8xbf16>
    %10 = vector.extract_strided_slice %4 {offsets = [1, 0, 0], sizes = [20, 20, 8], strides = [1, 1, 1]} : vector<22x22x8xbf16> to vector<20x20x8xbf16>
    %11 = vector.extract_strided_slice %4 {offsets = [1, 1, 0], sizes = [20, 20, 8], strides = [1, 1, 1]} : vector<22x22x8xbf16> to vector<20x20x8xbf16>
    %12 = vector.extract_strided_slice %4 {offsets = [1, 2, 0], sizes = [20, 20, 8], strides = [1, 1, 1]} : vector<22x22x8xbf16> to vector<20x20x8xbf16>
    %13 = vector.extract_strided_slice %4 {offsets = [2, 0, 0], sizes = [20, 20, 8], strides = [1, 1, 1]} : vector<22x22x8xbf16> to vector<20x20x8xbf16>
    %14 = vector.extract_strided_slice %4 {offsets = [2, 1, 0], sizes = [20, 20, 8], strides = [1, 1, 1]} : vector<22x22x8xbf16> to vector<20x20x8xbf16>
    %15 = vector.extract_strided_slice %4 {offsets = [2, 2, 0], sizes = [20, 20, 8], strides = [1, 1, 1]} : vector<22x22x8xbf16> to vector<20x20x8xbf16>
    %16 = tpu.concatenate %7, %8, %9, %10, %11, %12, %13, %14, %15 in 2 : vector<20x20x8xbf16>, vector<20x20x8xbf16>, vector<20x20x8xbf16>, vector<20x20x8xbf16>, vector<20x20x8xbf16>, vector<20x20x8xbf16>, vector<20x20x8xbf16>, vector<20x20x8xbf16>, vector<20x20x8xbf16> -> vector<20x20x72xbf16>
    %17 = vector.shape_cast %16 : vector<20x20x72xbf16> to vector<400x72xbf16>
    %cst = arith.constant dense<0.000000e+00> : vector<400x24xf32>
    %18 = tpu.matmul %17, %5, %cst {dimension_numbers = #tpu.dot_dimension_numbers<[1], [0], [0], [1], [0, 0, 1, 1], [], []>} : vector<400x72xbf16>, vector<72x24xbf16>, vector<400x24xf32> -> vector<400x24xf32>
    %19 = vector.broadcast %6 : vector<1x24xf32> to vector<400x24xf32>
    %20 = arith.addf %18, %19 : vector<400x24xf32>
    %21 = vector.shape_cast %20 : vector<400x24xf32> to vector<20x20x24xf32>
    %22 = vector.extract_strided_slice %21 {offsets = [2, 2, 0], sizes = [16, 16, 16], strides = [1, 1, 1]} : vector<20x20x24xf32> to vector<16x16x16xf32>
    %23 = vector.extract_strided_slice %21 {offsets = [0, 0, 16], sizes = [20, 20, 8], strides = [1, 1, 1]} : vector<20x20x24xf32> to vector<20x20x8xf32>
    %cst_6 = arith.constant 0.000000e+00 : f32
    %24 = vector.broadcast %cst_6 : f32 to vector<20x20x8xf32>
    %25 = arith.cmpf oge, %23, %24 : vector<20x20x8xf32>
    %cst_7 = arith.constant 1.000000e-01 : f32
    %26 = vector.broadcast %cst_7 : f32 to vector<20x20x8xf32>
    %27 = arith.mulf %26, %23 : vector<20x20x8xf32>
    %28 = arith.select %25, %23, %27 : vector<20x20x8xi1>, vector<20x20x8xf32>
    %29 = tpu.iota {dimensions = array<i32: 1>} : vector<1x20x1xi32>
    %c2_i32 = arith.constant 2 : i32
    %30 = vector.broadcast %c2_i32 : i32 to vector<1x20x1xi32>
    %31 = arith.cmpi sge, %29, %30 : vector<1x20x1xi32>
    %c18_i32 = arith.constant 18 : i32
    %32 = vector.broadcast %c18_i32 : i32 to vector<1x20x1xi32>
    %33 = arith.cmpi slt, %29, %32 : vector<1x20x1xi32>
    %34 = arith.andi %31, %33 : vector<1x20x1xi1>
    %35 = tpu.iota {dimensions = array<i32: 0>} : vector<20x1x1xi32>
    %c2_i32_8 = arith.constant 2 : i32
    %36 = arith.subi %1, %c2_i32_8 : i32
    %37 = vector.broadcast %36 : i32 to vector<20x1x1xi32>
    %38 = arith.addi %35, %37 : vector<20x1x1xi32>
    %c0_i32 = arith.constant 0 : i32
    %39 = vector.broadcast %c0_i32 : i32 to vector<20x1x1xi32>
    %40 = arith.cmpi sge, %38, %39 : vector<20x1x1xi32>
    %c16_i32_9 = arith.constant 16 : i32
    %41 = vector.broadcast %c16_i32_9 : i32 to vector<20x1x1xi32>
    %42 = arith.cmpi slt, %38, %41 : vector<20x1x1xi32>
    %43 = arith.andi %40, %42 : vector<20x1x1xi1>
    %44 = vector.broadcast %34 : vector<1x20x1xi1> to vector<20x20x1xi1>
    %45 = vector.broadcast %43 : vector<20x1x1xi1> to vector<20x20x1xi1>
    %46 = arith.andi %44, %45 : vector<20x20x1xi1>
    %cst_10 = arith.constant 0.000000e+00 : f32
    %47 = vector.shape_cast %46 : vector<20x20x1xi1> to vector<20x20x1xi1>
    %48 = vector.broadcast %47 : vector<20x20x1xi1> to vector<20x20x8xi1>
    %49 = vector.broadcast %cst_10 : f32 to vector<20x20x8xf32>
    %50 = arith.select %48, %28, %49 : vector<20x20x8xi1>, vector<20x20x8xf32>
    %51 = arith.truncf %50 : vector<20x20x8xf32> to vector<20x20x8xbf16>
    %c0_11 = arith.constant 0 : index
    %c0_12 = arith.constant 0 : index
    %52 = vector.load %arg5[%c0_11, %c0_12] : memref<72x16xbf16, #tpu.memory_space<vmem>>, vector<72x16xbf16>
    %c0_13 = arith.constant 0 : index
    %c0_14 = arith.constant 0 : index
    %53 = vector.load %arg6[%c0_13, %c0_14] : memref<1x16xf32, #tpu.memory_space<vmem>>, vector<1x16xf32>
    %54 = vector.extract_strided_slice %51 {offsets = [0, 0, 0], sizes = [18, 18, 8], strides = [1, 1, 1]} : vector<20x20x8xbf16> to vector<18x18x8xbf16>
    %55 = vector.extract_strided_slice %51 {offsets = [0, 1, 0], sizes = [18, 18, 8], strides = [1, 1, 1]} : vector<20x20x8xbf16> to vector<18x18x8xbf16>
    %56 = vector.extract_strided_slice %51 {offsets = [0, 2, 0], sizes = [18, 18, 8], strides = [1, 1, 1]} : vector<20x20x8xbf16> to vector<18x18x8xbf16>
    %57 = vector.extract_strided_slice %51 {offsets = [1, 0, 0], sizes = [18, 18, 8], strides = [1, 1, 1]} : vector<20x20x8xbf16> to vector<18x18x8xbf16>
    %58 = vector.extract_strided_slice %51 {offsets = [1, 1, 0], sizes = [18, 18, 8], strides = [1, 1, 1]} : vector<20x20x8xbf16> to vector<18x18x8xbf16>
    %59 = vector.extract_strided_slice %51 {offsets = [1, 2, 0], sizes = [18, 18, 8], strides = [1, 1, 1]} : vector<20x20x8xbf16> to vector<18x18x8xbf16>
    %60 = vector.extract_strided_slice %51 {offsets = [2, 0, 0], sizes = [18, 18, 8], strides = [1, 1, 1]} : vector<20x20x8xbf16> to vector<18x18x8xbf16>
    %61 = vector.extract_strided_slice %51 {offsets = [2, 1, 0], sizes = [18, 18, 8], strides = [1, 1, 1]} : vector<20x20x8xbf16> to vector<18x18x8xbf16>
    %62 = vector.extract_strided_slice %51 {offsets = [2, 2, 0], sizes = [18, 18, 8], strides = [1, 1, 1]} : vector<20x20x8xbf16> to vector<18x18x8xbf16>
    %63 = tpu.concatenate %54, %55, %56, %57, %58, %59, %60, %61, %62 in 2 : vector<18x18x8xbf16>, vector<18x18x8xbf16>, vector<18x18x8xbf16>, vector<18x18x8xbf16>, vector<18x18x8xbf16>, vector<18x18x8xbf16>, vector<18x18x8xbf16>, vector<18x18x8xbf16>, vector<18x18x8xbf16> -> vector<18x18x72xbf16>
    %64 = vector.shape_cast %63 : vector<18x18x72xbf16> to vector<324x72xbf16>
    %cst_15 = arith.constant dense<0.000000e+00> : vector<324x16xf32>
    %65 = tpu.matmul %64, %52, %cst_15 {dimension_numbers = #tpu.dot_dimension_numbers<[1], [0], [0], [1], [0, 0, 1, 1], [], []>} : vector<324x72xbf16>, vector<72x16xbf16>, vector<324x16xf32> -> vector<324x16xf32>
    %66 = vector.broadcast %53 : vector<1x16xf32> to vector<324x16xf32>
    %67 = arith.addf %65, %66 : vector<324x16xf32>
    %68 = vector.shape_cast %67 : vector<324x16xf32> to vector<18x18x16xf32>
    %69 = vector.extract_strided_slice %68 {offsets = [1, 1, 0], sizes = [16, 16, 8], strides = [1, 1, 1]} : vector<18x18x16xf32> to vector<16x16x8xf32>
    %70 = vector.extract_strided_slice %68 {offsets = [0, 0, 8], sizes = [18, 18, 8], strides = [1, 1, 1]} : vector<18x18x16xf32> to vector<18x18x8xf32>
    %cst_16 = arith.constant 0.000000e+00 : f32
    %71 = vector.broadcast %cst_16 : f32 to vector<18x18x8xf32>
    %72 = arith.cmpf oge, %70, %71 : vector<18x18x8xf32>
    %cst_17 = arith.constant 1.000000e-01 : f32
    %73 = vector.broadcast %cst_17 : f32 to vector<18x18x8xf32>
    %74 = arith.mulf %73, %70 : vector<18x18x8xf32>
    %75 = arith.select %72, %70, %74 : vector<18x18x8xi1>, vector<18x18x8xf32>
    %76 = tpu.iota {dimensions = array<i32: 1>} : vector<1x18x1xi32>
    %c1_i32 = arith.constant 1 : i32
    %77 = vector.broadcast %c1_i32 : i32 to vector<1x18x1xi32>
    %78 = arith.cmpi sge, %76, %77 : vector<1x18x1xi32>
    %c17_i32 = arith.constant 17 : i32
    %79 = vector.broadcast %c17_i32 : i32 to vector<1x18x1xi32>
    %80 = arith.cmpi slt, %76, %79 : vector<1x18x1xi32>
    %81 = arith.andi %78, %80 : vector<1x18x1xi1>
    %82 = tpu.iota {dimensions = array<i32: 0>} : vector<18x1x1xi32>
    %c1_i32_18 = arith.constant 1 : i32
    %83 = arith.subi %1, %c1_i32_18 : i32
    %84 = vector.broadcast %83 : i32 to vector<18x1x1xi32>
    %85 = arith.addi %82, %84 : vector<18x1x1xi32>
    %c0_i32_19 = arith.constant 0 : i32
    %86 = vector.broadcast %c0_i32_19 : i32 to vector<18x1x1xi32>
    %87 = arith.cmpi sge, %85, %86 : vector<18x1x1xi32>
    %c16_i32_20 = arith.constant 16 : i32
    %88 = vector.broadcast %c16_i32_20 : i32 to vector<18x1x1xi32>
    %89 = arith.cmpi slt, %85, %88 : vector<18x1x1xi32>
    %90 = arith.andi %87, %89 : vector<18x1x1xi1>
    %91 = vector.broadcast %81 : vector<1x18x1xi1> to vector<18x18x1xi1>
    %92 = vector.broadcast %90 : vector<18x1x1xi1> to vector<18x18x1xi1>
    %93 = arith.andi %91, %92 : vector<18x18x1xi1>
    %cst_21 = arith.constant 0.000000e+00 : f32
    %94 = vector.shape_cast %93 : vector<18x18x1xi1> to vector<18x18x1xi1>
    %95 = vector.broadcast %94 : vector<18x18x1xi1> to vector<18x18x8xi1>
    %96 = vector.broadcast %cst_21 : f32 to vector<18x18x8xf32>
    %97 = arith.select %95, %75, %96 : vector<18x18x8xi1>, vector<18x18x8xf32>
    %98 = arith.truncf %97 : vector<18x18x8xf32> to vector<18x18x8xbf16>
    %c0_22 = arith.constant 0 : index
    %c0_23 = arith.constant 0 : index
    %99 = vector.load %arg7[%c0_22, %c0_23] : memref<72x8xbf16, #tpu.memory_space<vmem>>, vector<72x8xbf16>
    %c0_24 = arith.constant 0 : index
    %c0_25 = arith.constant 0 : index
    %100 = vector.load %arg8[%c0_24, %c0_25] : memref<1x8xf32, #tpu.memory_space<vmem>>, vector<1x8xf32>
    %101 = vector.extract_strided_slice %98 {offsets = [0, 0, 0], sizes = [16, 16, 8], strides = [1, 1, 1]} : vector<18x18x8xbf16> to vector<16x16x8xbf16>
    %102 = vector.extract_strided_slice %98 {offsets = [0, 1, 0], sizes = [16, 16, 8], strides = [1, 1, 1]} : vector<18x18x8xbf16> to vector<16x16x8xbf16>
    %103 = vector.extract_strided_slice %98 {offsets = [0, 2, 0], sizes = [16, 16, 8], strides = [1, 1, 1]} : vector<18x18x8xbf16> to vector<16x16x8xbf16>
    %104 = vector.extract_strided_slice %98 {offsets = [1, 0, 0], sizes = [16, 16, 8], strides = [1, 1, 1]} : vector<18x18x8xbf16> to vector<16x16x8xbf16>
    %105 = vector.extract_strided_slice %98 {offsets = [1, 1, 0], sizes = [16, 16, 8], strides = [1, 1, 1]} : vector<18x18x8xbf16> to vector<16x16x8xbf16>
    %106 = vector.extract_strided_slice %98 {offsets = [1, 2, 0], sizes = [16, 16, 8], strides = [1, 1, 1]} : vector<18x18x8xbf16> to vector<16x16x8xbf16>
    %107 = vector.extract_strided_slice %98 {offsets = [2, 0, 0], sizes = [16, 16, 8], strides = [1, 1, 1]} : vector<18x18x8xbf16> to vector<16x16x8xbf16>
    %108 = vector.extract_strided_slice %98 {offsets = [2, 1, 0], sizes = [16, 16, 8], strides = [1, 1, 1]} : vector<18x18x8xbf16> to vector<16x16x8xbf16>
    %109 = vector.extract_strided_slice %98 {offsets = [2, 2, 0], sizes = [16, 16, 8], strides = [1, 1, 1]} : vector<18x18x8xbf16> to vector<16x16x8xbf16>
    %110 = tpu.concatenate %101, %102, %103, %104, %105, %106, %107, %108, %109 in 2 : vector<16x16x8xbf16>, vector<16x16x8xbf16>, vector<16x16x8xbf16>, vector<16x16x8xbf16>, vector<16x16x8xbf16>, vector<16x16x8xbf16>, vector<16x16x8xbf16>, vector<16x16x8xbf16>, vector<16x16x8xbf16> -> vector<16x16x72xbf16>
    %111 = vector.shape_cast %110 : vector<16x16x72xbf16> to vector<256x72xbf16>
    %cst_26 = arith.constant dense<0.000000e+00> : vector<256x8xf32>
    %112 = tpu.matmul %111, %99, %cst_26 {dimension_numbers = #tpu.dot_dimension_numbers<[1], [0], [0], [1], [0, 0, 1, 1], [], []>} : vector<256x72xbf16>, vector<72x8xbf16>, vector<256x8xf32> -> vector<256x8xf32>
    %113 = vector.broadcast %100 : vector<1x8xf32> to vector<256x8xf32>
    %114 = arith.addf %112, %113 : vector<256x8xf32>
    %115 = vector.shape_cast %114 : vector<256x8xf32> to vector<16x16x8xf32>
    %116 = tpu.concatenate %22, %69, %115 in 2 : vector<16x16x16xf32>, vector<16x16x8xf32>, vector<16x16x8xf32> -> vector<16x16x32xf32>
    %cst_27 = arith.constant 0.000000e+00 : f32
    %117 = vector.broadcast %cst_27 : f32 to vector<16x16x32xf32>
    %118 = arith.maximumf %116, %117 : vector<16x16x32xf32>
    %119 = vector.shape_cast %118 : vector<16x16x32xf32> to vector<1x16x16x32xf32>
    %120 = arith.truncf %119 : vector<1x16x16x32xf32> to vector<1x16x16x32xbf16>
    %c0_28 = arith.constant 0 : index
    %c0_29 = arith.constant 0 : index
    %c0_30 = arith.constant 0 : index
    %c0_31 = arith.constant 0 : index
    %121 = vector.load %arg9[%c0_28, %c0_29, %c0_30, %c0_31] : memref<1x16x16x32xbf16, #tpu.memory_space<vmem>>, vector<1x16x16x32xbf16>
    tpu.vector_store %arg9[%c0_28, %c0_29, %c0_30, %c0_31], %120 {strides = array<i32>} : memref<1x16x16x32xbf16, #tpu.memory_space<vmem>>, vector<1x16x16x32xbf16>,
    return
  }
  func.func @transform_0(%arg0: i32, %arg1: i32) -> (i32, i32, i32, i32) {
    %c0_i32 = arith.constant 0 : i32
    %c0_i32_0 = arith.constant 0 : i32
    %c0_i32_1 = arith.constant 0 : i32
    %c0_i32_2 = arith.constant 0 : i32
    return %arg0, %c0_i32, %c0_i32_0, %c0_i32_1 : i32, i32, i32, i32
  }
  func.func @transform_1(%arg0: i32, %arg1: i32) -> (i32, i32) {
    %c0_i32 = arith.constant 0 : i32
    %c0_i32_0 = arith.constant 0 : i32
    %c0_i32_1 = arith.constant 0 : i32
    return %c0_i32, %c0_i32_0 : i32, i32
  }
  func.func @transform_2(%arg0: i32, %arg1: i32) -> (i32, i32) {
    %c0_i32 = arith.constant 0 : i32
    %c0_i32_0 = arith.constant 0 : i32
    %c0_i32_1 = arith.constant 0 : i32
    return %c0_i32, %c0_i32_0 : i32, i32
  }
  func.func @transform_3(%arg0: i32, %arg1: i32) -> (i32, i32) {
    %c0_i32 = arith.constant 0 : i32
    %c0_i32_0 = arith.constant 0 : i32
    %c0_i32_1 = arith.constant 0 : i32
    return %c0_i32, %c0_i32_0 : i32, i32
  }
  func.func @transform_4(%arg0: i32, %arg1: i32) -> (i32, i32) {
    %c0_i32 = arith.constant 0 : i32
    %c0_i32_0 = arith.constant 0 : i32
    %c0_i32_1 = arith.constant 0 : i32
    return %c0_i32, %c0_i32_0 : i32, i32
  }
  func.func @transform_5(%arg0: i32, %arg1: i32) -> (i32, i32) {
    %c0_i32 = arith.constant 0 : i32
    %c0_i32_0 = arith.constant 0 : i32
    %c0_i32_1 = arith.constant 0 : i32
    return %c0_i32, %c0_i32_0 : i32, i32
  }
  func.func @transform_6(%arg0: i32, %arg1: i32) -> (i32, i32) {
    %c0_i32 = arith.constant 0 : i32
    %c0_i32_0 = arith.constant 0 : i32
    %c0_i32_1 = arith.constant 0 : i32
    return %c0_i32, %c0_i32_0 : i32, i32
  }
  func.func @transform_7(%arg0: i32, %arg1: i32) -> (i32, i32, i32, i32) {
    %c0_i32 = arith.constant 0 : i32
    %c0_i32_0 = arith.constant 0 : i32
    %c0_i32_1 = arith.constant 0 : i32
    return %arg0, %arg1, %c0_i32, %c0_i32_0 : i32, i32, i32, i32
  }
}

</mosaic_0001>

<llo_original>
// kernel: tpu_custom_call.1
$region0: #{tpu_custom_call.1}
  #allocation0 [shape = 'u32[]', space=smem, size = 0x4, offset = 0x4, fixed_abs, tag = 'smem constant byte address 0x4 - core index']
  #allocation1 [shape = 'u32[72,128]{1,0:T(1,128)}', space=vmem, size = 0x9000, scoped, tag = 'internal scratch']
  %s0 = inlined_call_operand.vmem [shape: bf16[2,22,22,8], index: 0, kind: input, shape index: {}]
  %s1 = inlined_call_operand.vmem [shape: bf16[72,24], index: 1, kind: input, shape index: {}]
  %s2 = inlined_call_operand.vmem [shape: f32[1,24], index: 2, kind: input, shape index: {}]
  %s3 = inlined_call_operand.vmem [shape: bf16[72,16], index: 3, kind: input, shape index: {}]
  %s4 = inlined_call_operand.vmem [shape: f32[1,16], index: 4, kind: input, shape index: {}]
  %s5 = inlined_call_operand.vmem [shape: bf16[72,8], index: 5, kind: input, shape index: {}]
  %s6 = inlined_call_operand.vmem [shape: f32[1,8], index: 6, kind: input, shape index: {}]
  %s7 = inlined_call_operand.hbm [shape: bf16[2,16,16,32], index: 7, kind: output, shape index: {}]
  %s8 = sld [smem:[#allocation0]]
  $region61: #{tpu_custom_call.1} parent=0
    _
  %s10 = ssub.s32 1, %s8
  %s11 = scalar_select 0, %s10, %s8
  $region1: #{tpu_custom_call.1} parent=0
    #allocation2 [shape = 'u8[131072]{0}', space=vmem, size = 0x20000, scoped, tag = 'output window, operand 0']
    #allocation3 [shape = 's32[2]{0}', space=sflag, size = 0x8, scoped, tag = 'scoped memory for tpu_custom_call.1']
    %12 = vsyncpa [#allocation3], 0
    %s13 = scalar_lea.sflag [#allocation3], 1
    %14 = vsyncpa %s13, 0
    loop: start=0, step=1, limit=4
    $region2: #{tpu_custom_call.1} parent=1 // loop_pre_header
      _
    $region3: #{tpu_custom_call.1} parent=1 // loop_header
      %s16 = sphi 0, %s20
      %p17 = scmp.ge.s32.totalorder %s16, 4
      %s23 = sphi 0, %s35
      %s24 = sphi 0, %s31
      %s25 = sphi 0, %s23
      %s26 = sphi 0, %s24
      %s27 = sphi 0, %s25
      %s28 = sphi 0, %s26
      %s38 = sphi 0, %s40
      %s41 = sphi 0, %s38
      %s42 = sphi 0, %s41
      %s58 = sphi 0, %s42
      %s62 = sphi 0, %s62
      %s64 = sphi 0, %s62
      %s65 = sphi 0, %s64
      %s79 = sphi 0, %s65
      %s83 = sphi 0, %s83
      %s85 = sphi 0, %s83
      %s86 = sphi 0, %s85
      %s100 = sphi 0, %s86
      %s104 = sphi 0, %s104
      %s106 = sphi 0, %s104
      %s107 = sphi 0, %s106
      %s121 = sphi 0, %s107
      %s125 = sphi 0, %s125
      %s127 = sphi 0, %s125
      %s128 = sphi 0, %s127
      %s142 = sphi 0, %s128
      %s146 = sphi 0, %s146
      %s148 = sphi 0, %s146
      %s149 = sphi 0, %s148
      %s163 = sphi 0, %s149
      %s167 = sphi 0, %s167
      %s169 = sphi 0, %s167
      %s170 = sphi 0, %s169
      %s184 = sphi 0, %s170
      %s192 = sphi 0, %s194
      %s195 = sphi 0, %s192
      %s196 = sphi 0, %s195
      %s212 = sphi 0, %s196
    $region4: #{tpu_custom_call.1} parent=1 // loop_header_branch
      %19 = sbr.rel (%p17) target = $region8
    $region5: #{tpu_custom_call.1} parent=1 // loop_body
      %s21 = ssub.s32 %s16, 1
      %s22 = ssub.s32 %s16, 2
      %s29 = sadd.s32 1, %s24
      %p30 = scmp.ge.s32.totalorder %s29, 1
      %s31 = scalar_select %p30, 0, %s29
      %s32 = sadd.s32 1, %s23
      %s33 = scalar_select %p30, %s32, %s23
      %p34 = scmp.ge.s32.totalorder %s33, 2
      %s35 = scalar_select %p34, 0, %s33
      %s36 = ssub.s32 %s23, %s35
      %p37 = scmp.eq.s32.totalorder %s36, 0
      %s39 = sadd.s32 %s38, 1
      %s40 = scalar_select %p37, %s38, %s39
      %p43 = pneg %p37
      %p44 = scmp.eq.s32.totalorder %s16, 1
      %p45 = por %p43, %p44
      %p46 = scmp.ne.s32.totalorder %s38, %s41
      %p47 = scmp.eq.s32.totalorder %s16, 0
      %p48 = por %p46, %p47
      %p49 = scmp.ne.s32.totalorder %s38, %s41
      %p50 = scmp.eq.s32.totalorder %s21, 1
      %p51 = por %p49, %p50
      %p52 = scmp.ne.s32.totalorder %s41, %s42
      %p53 = scmp.eq.s32.totalorder %s21, 0
      %p54 = por %p52, %p53
      %p55 = scmp.ne.s32.totalorder %s41, %s42
      %p56 = scmp.eq.s32.totalorder %s22, 1
      %p57 = por %p55, %p56
      %p59 = scmp.ne.s32.totalorder %s42, %s58
      %p60 = scmp.eq.s32.totalorder %s22, 0
      %p61 = por %p59, %p60
      %s63 = sadd.s32 %s62, 1
      %p66 = scmp.eq.s32.totalorder %s16, 1
      %p67 = scmp.ne.s32.totalorder %s62, %s64
      %p68 = scmp.eq.s32.totalorder %s16, 0
      %p69 = por %p67, %p68
      %p70 = scmp.ne.s32.totalorder %s62, %s64
      %p71 = scmp.eq.s32.totalorder %s21, 1
      %p72 = por %p70, %p71
      %p73 = scmp.ne.s32.totalorder %s64, %s65
      %p74 = scmp.eq.s32.totalorder %s21, 0
      %p75 = por %p73, %p74
      %p76 = scmp.ne.s32.totalorder %s64, %s65
      %p77 = scmp.eq.s32.totalorder %s22, 1
      %p78 = por %p76, %p77
      %p80 = scmp.ne.s32.totalorder %s65, %s79
      %p81 = scmp.eq.s32.totalorder %s22, 0
      %p82 = por %p80, %p81
      %s84 = sadd.s32 %s83, 1
      %p87 = scmp.eq.s32.totalorder %s16, 1
      %p88 = scmp.ne.s32.totalorder %s83, %s85
      %p89 = scmp.eq.s32.totalorder %s16, 0
      %p90 = por %p88, %p89
      %p91 = scmp.ne.s32.totalorder %s83, %s85
      %p92 = scmp.eq.s32.totalorder %s21, 1
      %p93 = por %p91, %p92
      %p94 = scmp.ne.s32.totalorder %s85, %s86
      %p95 = scmp.eq.s32.totalorder %s21, 0
      %p96 = por %p94, %p95
      %p97 = scmp.ne.s32.totalorder %s85, %s86
      %p98 = scmp.eq.s32.totalorder %s22, 1
      %p99 = por %p97, %p98
      %p101 = scmp.ne.s32.totalorder %s86, %s100
      %p102 = scmp.eq.s32.totalorder %s22, 0
      %p103 = por %p101, %p102
      %s105 = sadd.s32 %s104, 1
      %p108 = scmp.eq.s32.totalorder %s16, 1
      %p109 = scmp.ne.s32.totalorder %s104, %s106
      %p110 = scmp.eq.s32.totalorder %s16, 0
      %p111 = por %p109, %p110
      %p112 = scmp.ne.s32.totalorder %s104, %s106
      %p113 = scmp.eq.s32.totalorder %s21, 1
      %p114 = por %p112, %p113
      %p115 = scmp.ne.s32.totalorder %s106, %s107
      %p116 = scmp.eq.s32.totalorder %s21, 0
      %p117 = por %p115, %p116
      %p118 = scmp.ne.s32.totalorder %s106, %s107
      %p119 = scmp.eq.s32.totalorder %s22, 1
      %p120 = por %p118, %p119
      %p122 = scmp.ne.s32.totalorder %s107, %s121
      %p123 = scmp.eq.s32.totalorder %s22, 0
      %p124 = por %p122, %p123
      %s126 = sadd.s32 %s125, 1
      %p129 = scmp.eq.s32.totalorder %s16, 1
      %p130 = scmp.ne.s32.totalorder %s125, %s127
      %p131 = scmp.eq.s32.totalorder %s16, 0
      %p132 = por %p130, %p131
      %p133 = scmp.ne.s32.totalorder %s125, %s127
      %p134 = scmp.eq.s32.totalorder %s21, 1
      %p135 = por %p133, %p134
      %p136 = scmp.ne.s32.totalorder %s127, %s128
      %p137 = scmp.eq.s32.totalorder %s21, 0
      %p138 = por %p136, %p137
      %p139 = scmp.ne.s32.totalorder %s127, %s128
      %p140 = scmp.eq.s32.totalorder %s22, 1
      %p141 = por %p139, %p140
      %p143 = scmp.ne.s32.totalorder %s128, %s142
      %p144 = scmp.eq.s32.totalorder %s22, 0
      %p145 = por %p143, %p144
      %s147 = sadd.s32 %s146, 1
      %p150 = scmp.eq.s32.totalorder %s16, 1
      %p151 = scmp.ne.s32.totalorder %s146, %s148
      %p152 = scmp.eq.s32.totalorder %s16, 0
      %p153 = por %p151, %p152
      %p154 = scmp.ne.s32.totalorder %s146, %s148
      %p155 = scmp.eq.s32.totalorder %s21, 1
      %p156 = por %p154, %p155
      %p157 = scmp.ne.s32.totalorder %s148, %s149
      %p158 = scmp.eq.s32.totalorder %s21, 0
      %p159 = por %p157, %p158
      %p160 = scmp.ne.s32.totalorder %s148, %s149
      %p161 = scmp.eq.s32.totalorder %s22, 1
      %p162 = por %p160, %p161
      %p164 = scmp.ne.s32.totalorder %s149, %s163
      %p165 = scmp.eq.s32.totalorder %s22, 0
      %p166 = por %p164, %p165
      %s168 = sadd.s32 %s167, 1
      %p171 = scmp.eq.s32.totalorder %s16, 1
      %p172 = scmp.ne.s32.totalorder %s167, %s169
      %p173 = scmp.eq.s32.totalorder %s16, 0
      %p174 = por %p172, %p173
      %p175 = scmp.ne.s32.totalorder %s167, %s169
      %p176 = scmp.eq.s32.totalorder %s21, 1
      %p177 = por %p175, %p176
      %p178 = scmp.ne.s32.totalorder %s169, %s170
      %p179 = scmp.eq.s32.totalorder %s21, 0
      %p180 = por %p178, %p179
      %p181 = scmp.ne.s32.totalorder %s169, %s170
      %p182 = scmp.eq.s32.totalorder %s22, 1
      %p183 = por %p181, %p182
      %p185 = scmp.ne.s32.totalorder %s170, %s184
      %p186 = scmp.eq.s32.totalorder %s22, 0
      %p187 = por %p185, %p186
      %s188 = ssub.s32 %s23, %s35
      %s189 = ssub.s32 %s24, %s31
      %s190 = sor.u32 %s188, %s189
      %p191 = scmp.eq.s32.totalorder %s190, 0
      %s193 = sadd.s32 %s192, 1
      %s194 = scalar_select %p191, %s192, %s193
      %p197 = pneg %p191
      %p198 = scmp.eq.s32.totalorder %s16, 1
      %p199 = por %p197, %p198
      %p200 = scmp.ne.s32.totalorder %s192, %s195
      %p201 = scmp.eq.s32.totalorder %s16, 0
      %p202 = por %p200, %p201
      %p203 = scmp.ne.s32.totalorder %s192, %s195
      %p204 = scmp.eq.s32.totalorder %s21, 1
      %p205 = por %p203, %p204
      %p206 = scmp.ne.s32.totalorder %s195, %s196
      %p207 = scmp.eq.s32.totalorder %s21, 0
      %p208 = por %p206, %p207
      %p209 = scmp.ne.s32.totalorder %s195, %s196
      %p210 = scmp.eq.s32.totalorder %s22, 1
      %p211 = por %p209, %p210
      %p213 = scmp.ne.s32.totalorder %s196, %s212
      %p214 = scmp.eq.s32.totalorder %s22, 0
      %p215 = por %p213, %p214
      %p216 = scmp.le.s32.totalorder 1, %s16
      %p217 = scmp.lt.s32.totalorder %s16, 3
      %p218 = pnand %p216, %p217
      %p219 = pneg %p218
      // Predicated region
      $region9: #{tpu_custom_call.1} parent=5 // pred_check
        _
      $region10: #{tpu_custom_call.1} parent=5 // pred_check_branch
        %221 = sbr.rel (%p218) target = $region12
      $region11: #{tpu_custom_call.1} parent=5 // pred_region
        %s222 = ssub.s32 %s16, 1
        // Predicated region
        $region13: #{tpu_custom_call.1} parent=11 // pred_check
          %p223 = pneg %p75
        $region14: #{tpu_custom_call.1} parent=11 // pred_check_branch
          %225 = sbr.rel (%p223) target = $region16
        $region15: #{tpu_custom_call.1} parent=11 // pred_region
          _
        $region16: #{tpu_custom_call.1} parent=11 // pred_fallthru
          _
        // Predicated region
        $region17: #{tpu_custom_call.1} parent=11 // pred_check
          %p226 = pneg %p96
        $region18: #{tpu_custom_call.1} parent=11 // pred_check_branch
          %228 = sbr.rel (%p226) target = $region20
        $region19: #{tpu_custom_call.1} parent=11 // pred_region
          _
        $region20: #{tpu_custom_call.1} parent=11 // pred_fallthru
          _
        // Predicated region
        $region21: #{tpu_custom_call.1} parent=11 // pred_check
          %p229 = pneg %p117
        $region22: #{tpu_custom_call.1} parent=11 // pred_check_branch
          %231 = sbr.rel (%p229) target = $region24
        $region23: #{tpu_custom_call.1} parent=11 // pred_region
          _
        $region24: #{tpu_custom_call.1} parent=11 // pred_fallthru
          _
        // Predicated region
        $region25: #{tpu_custom_call.1} parent=11 // pred_check
          %p232 = pneg %p138
        $region26: #{tpu_custom_call.1} parent=11 // pred_check_branch
          %234 = sbr.rel (%p232) target = $region28
        $region27: #{tpu_custom_call.1} parent=11 // pred_region
          _
        $region28: #{tpu_custom_call.1} parent=11 // pred_fallthru
          _
        // Predicated region
        $region29: #{tpu_custom_call.1} parent=11 // pred_check
          %p235 = pneg %p159
        $region30: #{tpu_custom_call.1} parent=11 // pred_check_branch
          %237 = sbr.rel (%p235) target = $region32
        $region31: #{tpu_custom_call.1} parent=11 // pred_region
          _
        $region32: #{tpu_custom_call.1} parent=11 // pred_fallthru
          _
        // Predicated region
        $region33: #{tpu_custom_call.1} parent=11 // pred_check
          %p238 = pneg %p180
        $region34: #{tpu_custom_call.1} parent=11 // pred_check_branch
          %240 = sbr.rel (%p238) target = $region36
        $region35: #{tpu_custom_call.1} parent=11 // pred_region
          _
        $region36: #{tpu_custom_call.1} parent=11 // pred_fallthru
          _
      $region12: #{tpu_custom_call.1} parent=5 // pred_fallthru
        _
      %p241 = scmp.lt.s32.totalorder %s16, 2
      // Predicated region
      $region37: #{tpu_custom_call.1} parent=5 // pred_check
        %p242 = pneg %p241
      $region38: #{tpu_custom_call.1} parent=5 // pred_check_branch
        %244 = sbr.rel (%p242) target = $region40
      $region39: #{tpu_custom_call.1} parent=5 // pred_region
        // Predicated region
        $region41: #{tpu_custom_call.1} parent=39 // pred_check
          %p245 = pneg %p48
        $region42: #{tpu_custom_call.1} parent=39 // pred_check_branch
          %247 = sbr.rel (%p245) target = $region44
        $region43: #{tpu_custom_call.1} parent=39 // pred_region
          %p248 = scmp.lt.s32.totalorder %s23, 1
          %s249 = scalar_select %p248, %s23, 1
          %s250 = smul.addr %s249, 66
          %s251 = smul.addr %s250, 4
          %s252 = scalar_lea.vmem %s0, %s251
        $region44: #{tpu_custom_call.1} parent=39 // pred_fallthru
          _
      $region40: #{tpu_custom_call.1} parent=5 // pred_fallthru
        _
      %p253 = scmp.le.s32.totalorder 1, %s16
      %p254 = scmp.lt.s32.totalorder %s16, 3
      %p255 = pnand %p253, %p254
      %p256 = pneg %p255
      // Predicated region
      $region45: #{tpu_custom_call.1} parent=5 // pred_check
        _
      $region46: #{tpu_custom_call.1} parent=5 // pred_check_branch
        %258 = sbr.rel (%p255) target = $region48
      $region47: #{tpu_custom_call.1} parent=5 // pred_region
        %s259 = ssub.s32 %s16, 1
        %p260 = scmp.lt.s32.totalorder %s25, 1
        %s261 = scalar_select %p260, %s25, 1
        %s262 = smul.addr %s261, 66
        %s263 = smul.addr %s262, 4
        %s264 = scalar_lea.vmem %s0, %s263
        %p265 = pneg %p54
        %p266 = pneg %p51
        %p267 = pneg %p75
        %p268 = pneg %p72
        %p269 = pneg %p96
        %p270 = pneg %p93
        %p271 = pneg %p117
        %p272 = pneg %p114
        %p273 = pneg %p138
        %p274 = pneg %p135
        %p275 = pneg %p159
        %p276 = pneg %p156
        %p277 = pneg %p180
        %p278 = pneg %p177
        %p279 = pneg %p208
        %p280 = pneg %p205
        %s281 = sand.u32 %s195, 1
        %s282 = scalar_lea.sflag [#allocation3], %s281
        %s283 = sand.u32 %s195, 1
        %s284 = smul.addr %s283, 128
        %s285 = scalar_lea.vmem [#allocation2], %s284
        %p286 = scmp.lt.s32.totalorder %s25, 1
        %s287 = scalar_select %p286, %s25, 1
        %s288 = smul.addr %s287, 66
        %s289 = smul.addr %s288, 4
        %s290 = scalar_lea.vmem %s0, %s289
        %s291 = smul.u32 16, %s26
        %s293 = smul.u32 %s26, 16
        %s294 = smul.u32 %s293, 3
        %s295 = smul.addr %s294, 4
        %s296 = scalar_lea.vmem %s290, %s295
        %v297 = vld [vmem:[%s296] sm:$0xf]
        %v298 = vld [vmem:[%s296 + $0x4] sm:$0xf]
        %v299 = vld [vmem:[%s296 + $0x8] sm:$0x7]
        %v300 = vld [vmem:[%s296 + $0xc] sm:$0xf]
        %v301 = vld [vmem:[%s296 + $0x10] sm:$0xf]
        %v302 = vld [vmem:[%s296 + $0x14] sm:$0x7]
        %v303 = vld [vmem:[%s296 + $0x18] sm:$0xf]
        %v304 = vld [vmem:[%s296 + $0x1c] sm:$0xf]
        %v305 = vld [vmem:[%s296 + $0x20] sm:$0x7]
        %v306 = vld [vmem:[%s296 + $0x24] sm:$0xf]
        %v307 = vld [vmem:[%s296 + $0x28] sm:$0xf]
        %v308 = vld [vmem:[%s296 + $0x2c] sm:$0x7]
        %v309 = vld [vmem:[%s296 + $0x30] sm:$0xf]
        %v310 = vld [vmem:[%s296 + $0x34] sm:$0xf]
        %v311 = vld [vmem:[%s296 + $0x38] sm:$0x7]
        %v312 = vld [vmem:[%s296 + $0x3c] sm:$0xf]
        %v313 = vld [vmem:[%s296 + $0x40] sm:$0xf]
        %v314 = vld [vmem:[%s296 + $0x44] sm:$0x7]
        %v315 = vld [vmem:[%s296 + $0x48] sm:$0xf]
        %v316 = vld [vmem:[%s296 + $0x4c] sm:$0xf]
        %v317 = vld [vmem:[%s296 + $0x50] sm:$0x7]
        %v318 = vld [vmem:[%s296 + $0x54] sm:$0xf]
        %v319 = vld [vmem:[%s296 + $0x58] sm:$0xf]
        %v320 = vld [vmem:[%s296 + $0x5c] sm:$0x7]
        %v321 = vld [vmem:[%s296 + $0x60] sm:$0xf]
        %v322 = vld [vmem:[%s296 + $0x64] sm:$0xf]
        %v323 = vld [vmem:[%s296 + $0x68] sm:$0x7]
        %v324 = vld [vmem:[%s296 + $0x6c] sm:$0xf]
        %v325 = vld [vmem:[%s296 + $0x70] sm:$0xf]
        %v326 = vld [vmem:[%s296 + $0x74] sm:$0x7]
        %v327 = vld [vmem:[%s296 + $0x78] sm:$0xf]
        %v328 = vld [vmem:[%s296 + $0x7c] sm:$0xf]
        %v329 = vld [vmem:[%s296 + $0x80] sm:$0x7]
        %v330 = vld [vmem:[%s296 + $0x84] sm:$0xf]
        %v331 = vld [vmem:[%s296 + $0x88] sm:$0xf]
        %v332 = vld [vmem:[%s296 + $0x8c] sm:$0x7]
        %v333 = vld [vmem:[%s296 + $0x90] sm:$0xf]
        %v334 = vld [vmem:[%s296 + $0x94] sm:$0xf]
        %v335 = vld [vmem:[%s296 + $0x98] sm:$0x7]
        %v336 = vld [vmem:[%s296 + $0x9c] sm:$0xf]
        %v337 = vld [vmem:[%s296 + $0xa0] sm:$0xf]
        %v338 = vld [vmem:[%s296 + $0xa4] sm:$0x7]
        %v339 = vld [vmem:[%s296 + $0xa8] sm:$0xf]
        %v340 = vld [vmem:[%s296 + $0xac] sm:$0xf]
        %v341 = vld [vmem:[%s296 + $0xb0] sm:$0x7]
        %v342 = vld [vmem:[%s296 + $0xb4] sm:$0xf]
        %v343 = vld [vmem:[%s296 + $0xb8] sm:$0xf]
        %v344 = vld [vmem:[%s296 + $0xbc] sm:$0x7]
        %v345 = vld [vmem:[%s296 + $0xc0] sm:$0xf]
        %v346 = vld [vmem:[%s296 + $0xc4] sm:$0xf]
        %v347 = vld [vmem:[%s296 + $0xc8] sm:$0x7]
        %v348 = vld [vmem:[%s296 + $0xcc] sm:$0xf]
        %v349 = vld [vmem:[%s296 + $0xd0] sm:$0xf]
        %v350 = vld [vmem:[%s296 + $0xd4] sm:$0x7]
        %v351 = vld [vmem:[%s296 + $0xd8] sm:$0xf]
        %v352 = vld [vmem:[%s296 + $0xdc] sm:$0xf]
        %v353 = vld [vmem:[%s296 + $0xe0] sm:$0x7]
        %v354 = vld [vmem:[%s296 + $0xe4] sm:$0xf]
        %v355 = vld [vmem:[%s296 + $0xe8] sm:$0xf]
        %v356 = vld [vmem:[%s296 + $0xec] sm:$0x7]
        %v357 = vld [vmem:[%s296 + $0xf0] sm:$0xf]
        %v358 = vld [vmem:[%s296 + $0xf4] sm:$0xf]
        %v359 = vld [vmem:[%s296 + $0xf8] sm:$0x7]
        %v360 = vld [vmem:[%s296 + $0xfc] sm:$0xf]
        %v361 = vld [vmem:[%s296 + $0x100] sm:$0xf]
        %v362 = vld [vmem:[%s296 + $0x104] sm:$0x7]
        %v363 = vld [vmem:[%s1] sm:$0xf]
        %v364 = vld [vmem:[%s1 + $0x4] sm:$0xf]
        %v365 = vld [vmem:[%s1 + $0x8] sm:$0xf]
        %v366 = vld [vmem:[%s1 + $0xc] sm:$0xf]
        %v367 = vld [vmem:[%s1 + $0x10] sm:$0xf]
        %v368 = vld [vmem:[%s1 + $0x14] sm:$0xf]
        %v369 = vld [vmem:[%s1 + $0x18] sm:$0xf]
        %v370 = vld [vmem:[%s1 + $0x1c] sm:$0xf]
        %v371 = vld [vmem:[%s1 + $0x20] sm:$0xf]
        %v372 = vld [vmem:[%s2] sm:$0x1]
        %v433 = vunpack.c.l.b16 %v297
        %v434 = vunpack.c.l.b16 %v298
        %v435 = vunpack.c.l.b16 %v299
        %v436 = vunpack.c.l.b16 %v300
        %v437 = vunpack.c.l.b16 %v301
        %v438 = vunpack.c.l.b16 %v302
        %v439 = vunpack.c.l.b16 %v303
        %v440 = vunpack.c.l.b16 %v304
        %v441 = vunpack.c.l.b16 %v305
        %v442 = vunpack.c.l.b16 %v306
        %v443 = vunpack.c.l.b16 %v307
        %v444 = vunpack.c.l.b16 %v308
        %v445 = vunpack.c.l.b16 %v309
        %v446 = vunpack.c.l.b16 %v310
        %v447 = vunpack.c.l.b16 %v311
        %v448 = vunpack.c.l.b16 %v312
        %v449 = vunpack.c.l.b16 %v313
        %v450 = vunpack.c.l.b16 %v314
        %v451 = vunpack.c.l.b16 %v315
        %v452 = vunpack.c.l.b16 %v316
        %v453 = vunpack.c.l.b16 %v317
        %v454 = vunpack.c.l.b16 %v318
        %v455 = vunpack.c.l.b16 %v319
        %v456 = vunpack.c.l.b16 %v320
        %v457 = vunpack.c.l.b16 %v321
        %v458 = vunpack.c.l.b16 %v322
        %v459 = vunpack.c.l.b16 %v323
        %v460 = vunpack.c.l.b16 %v324
        %v461 = vunpack.c.l.b16 %v325
        %v462 = vunpack.c.l.b16 %v326
        %v463 = vunpack.c.l.b16 %v327
        %v464 = vunpack.c.l.b16 %v328
        %v465 = vunpack.c.l.b16 %v329
        %v466 = vunpack.c.l.b16 %v330
        %v467 = vunpack.c.l.b16 %v331
        %v468 = vunpack.c.l.b16 %v332
        %v469 = vunpack.c.l.b16 %v333
        %v470 = vunpack.c.l.b16 %v334
        %v471 = vunpack.c.l.b16 %v335
        %v472 = vunpack.c.l.b16 %v336
        %v473 = vunpack.c.l.b16 %v337
        %v474 = vunpack.c.l.b16 %v338
        %v475 = vunpack.c.l.b16 %v339
        %v476 = vunpack.c.l.b16 %v340
        %v477 = vunpack.c.l.b16 %v341
        %v478 = vunpack.c.l.b16 %v342
        %v479 = vunpack.c.l.b16 %v343
        %v480 = vunpack.c.l.b16 %v344
        %v481 = vunpack.c.l.b16 %v345
        %v482 = vunpack.c.l.b16 %v346
        %v483 = vunpack.c.l.b16 %v347
        %v484 = vunpack.c.l.b16 %v348
        %v485 = vunpack.c.l.b16 %v349
        %v486 = vunpack.c.l.b16 %v350
        %v487 = vunpack.c.l.b16 %v351
        %v488 = vunpack.c.l.b16 %v352
        %v489 = vunpack.c.l.b16 %v353
        %v490 = vunpack.c.l.b16 %v354
        %v491 = vunpack.c.l.b16 %v355
        %v492 = vunpack.c.l.b16 %v356
        %v493 = vpack.c.b16 %v434, %v433
        %v494 = vpack.c.b16 %v435, %v435
        %v495 = vpack.c.b16 %v437, %v436
        %v496 = vpack.c.b16 %v438, %v438
        %v497 = vpack.c.b16 %v440, %v439
        %v498 = vpack.c.b16 %v441, %v441
        %v499 = vpack.c.b16 %v443, %v442
        %v500 = vpack.c.b16 %v444, %v444
        %v501 = vpack.c.b16 %v446, %v445
        %v502 = vpack.c.b16 %v447, %v447
        %v503 = vpack.c.b16 %v449, %v448
        %v504 = vpack.c.b16 %v450, %v450
        %v505 = vpack.c.b16 %v452, %v451
        %v506 = vpack.c.b16 %v453, %v453
        %v507 = vpack.c.b16 %v455, %v454
        %v508 = vpack.c.b16 %v456, %v456
        %v509 = vpack.c.b16 %v458, %v457
        %v510 = vpack.c.b16 %v459, %v459
        %v511 = vpack.c.b16 %v461, %v460
        %v512 = vpack.c.b16 %v462, %v462
        %v513 = vpack.c.b16 %v464, %v463
        %v514 = vpack.c.b16 %v465, %v465
        %v515 = vpack.c.b16 %v467, %v466
        %v516 = vpack.c.b16 %v468, %v468
        %v517 = vpack.c.b16 %v470, %v469
        %v518 = vpack.c.b16 %v471, %v471
        %v519 = vpack.c.b16 %v473, %v472
        %v520 = vpack.c.b16 %v474, %v474
        %v521 = vpack.c.b16 %v476, %v475
        %v522 = vpack.c.b16 %v477, %v477
        %v523 = vpack.c.b16 %v479, %v478
        %v524 = vpack.c.b16 %v480, %v480
        %v525 = vpack.c.b16 %v482, %v481
        %v526 = vpack.c.b16 %v483, %v483
        %v527 = vpack.c.b16 %v485, %v484
        %v528 = vpack.c.b16 %v486, %v486
        %v529 = vpack.c.b16 %v488, %v487
        %v530 = vpack.c.b16 %v489, %v489
        %v531 = vpack.c.b16 %v491, %v490
        %v532 = vpack.c.b16 %v492, %v492
        %vm533 = vsmask.f32 7424
        %v535 = vshrl.u32 %v493, 16
        %v537 = vshll.u32 %v493, 16
        %v539 = vrot.slane %v537, 1
        %v540 = vor.u32 %v535, %v539
        %v542 = vshll.u32 %v494, 16
        %v544 = vrot.slane %v542, 1
        %v545 = vsel %vm533, %v540, %v544
        %v546 = vshrl.u32 %v494, 16
        %v548 = vor.u32 %v546, %v544
        %v550 = vshrl.u32 %v495, 16
        %v552 = vshll.u32 %v495, 16
        %v554 = vrot.slane %v552, 1
        %v555 = vor.u32 %v550, %v554
        %v557 = vshll.u32 %v496, 16
        %v559 = vrot.slane %v557, 1
        %v560 = vsel %vm533, %v555, %v559
        %v561 = vshrl.u32 %v496, 16
        %v563 = vor.u32 %v561, %v559
        %v565 = vshrl.u32 %v497, 16
        %v567 = vshll.u32 %v497, 16
        %v569 = vrot.slane %v567, 1
        %v570 = vor.u32 %v565, %v569
        %v572 = vshll.u32 %v498, 16
        %v574 = vrot.slane %v572, 1
        %v575 = vsel %vm533, %v570, %v574
        %v576 = vshrl.u32 %v498, 16
        %v578 = vor.u32 %v576, %v574
        %v580 = vshrl.u32 %v499, 16
        %v582 = vshll.u32 %v499, 16
        %v584 = vrot.slane %v582, 1
        %v585 = vor.u32 %v580, %v584
        %v587 = vshll.u32 %v500, 16
        %v589 = vrot.slane %v587, 1
        %v590 = vsel %vm533, %v585, %v589
        %v591 = vshrl.u32 %v500, 16
        %v593 = vor.u32 %v591, %v589
        %v595 = vshrl.u32 %v501, 16
        %v597 = vshll.u32 %v501, 16
        %v599 = vrot.slane %v597, 1
        %v600 = vor.u32 %v595, %v599
        %v602 = vshll.u32 %v502, 16
        %v604 = vrot.slane %v602, 1
        %v605 = vsel %vm533, %v600, %v604
        %v606 = vshrl.u32 %v502, 16
        %v608 = vor.u32 %v606, %v604
        %v610 = vshrl.u32 %v503, 16
        %v612 = vshll.u32 %v503, 16
        %v614 = vrot.slane %v612, 1
        %v615 = vor.u32 %v610, %v614
        %v617 = vshll.u32 %v504, 16
        %v619 = vrot.slane %v617, 1
        %v620 = vsel %vm533, %v615, %v619
        %v621 = vshrl.u32 %v504, 16
        %v623 = vor.u32 %v621, %v619
        %v625 = vshrl.u32 %v505, 16
        %v627 = vshll.u32 %v505, 16
        %v629 = vrot.slane %v627, 1
        %v630 = vor.u32 %v625, %v629
        %v632 = vshll.u32 %v506, 16
        %v634 = vrot.slane %v632, 1
        %v635 = vsel %vm533, %v630, %v634
        %v636 = vshrl.u32 %v506, 16
        %v638 = vor.u32 %v636, %v634
        %v640 = vshrl.u32 %v507, 16
        %v642 = vshll.u32 %v507, 16
        %v644 = vrot.slane %v642, 1
        %v645 = vor.u32 %v640, %v644
        %v647 = vshll.u32 %v508, 16
        %v649 = vrot.slane %v647, 1
        %v650 = vsel %vm533, %v645, %v649
        %v651 = vshrl.u32 %v508, 16
        %v653 = vor.u32 %v651, %v649
        %v655 = vshrl.u32 %v509, 16
        %v657 = vshll.u32 %v509, 16
        %v659 = vrot.slane %v657, 1
        %v660 = vor.u32 %v655, %v659
        %v662 = vshll.u32 %v510, 16
        %v664 = vrot.slane %v662, 1
        %v665 = vsel %vm533, %v660, %v664
        %v666 = vshrl.u32 %v510, 16
        %v668 = vor.u32 %v666, %v664
        %v670 = vshrl.u32 %v511, 16
        %v672 = vshll.u32 %v511, 16
        %v674 = vrot.slane %v672, 1
        %v675 = vor.u32 %v670, %v674
        %v677 = vshll.u32 %v512, 16
        %v679 = vrot.slane %v677, 1
        %v680 = vsel %vm533, %v675, %v679
        %v681 = vshrl.u32 %v512, 16
        %v683 = vor.u32 %v681, %v679
        %v685 = vshrl.u32 %v513, 16
        %v687 = vshll.u32 %v513, 16
        %v689 = vrot.slane %v687, 1
        %v690 = vor.u32 %v685, %v689
        %v692 = vshll.u32 %v514, 16
        %v694 = vrot.slane %v692, 1
        %v695 = vsel %vm533, %v690, %v694
        %v696 = vshrl.u32 %v514, 16
        %v698 = vor.u32 %v696, %v694
        %v700 = vshrl.u32 %v515, 16
        %v702 = vshll.u32 %v515, 16
        %v704 = vrot.slane %v702, 1
        %v705 = vor.u32 %v700, %v704
        %v707 = vshll.u32 %v516, 16
        %v709 = vrot.slane %v707, 1
        %v710 = vsel %vm533, %v705, %v709
        %v711 = vshrl.u32 %v516, 16
        %v713 = vor.u32 %v711, %v709
        %v715 = vshrl.u32 %v517, 16
        %v717 = vshll.u32 %v517, 16
        %v719 = vrot.slane %v717, 1
        %v720 = vor.u32 %v715, %v719
        %v722 = vshll.u32 %v518, 16
        %v724 = vrot.slane %v722, 1
        %v725 = vsel %vm533, %v720, %v724
        %v726 = vshrl.u32 %v518, 16
        %v728 = vor.u32 %v726, %v724
        %v730 = vshrl.u32 %v519, 16
        %v732 = vshll.u32 %v519, 16
        %v734 = vrot.slane %v732, 1
        %v735 = vor.u32 %v730, %v734
        %v737 = vshll.u32 %v520, 16
        %v739 = vrot.slane %v737, 1
        %v740 = vsel %vm533, %v735, %v739
        %v741 = vshrl.u32 %v520, 16
        %v743 = vor.u32 %v741, %v739
        %v745 = vshrl.u32 %v521, 16
        %v747 = vshll.u32 %v521, 16
        %v749 = vrot.slane %v747, 1
        %v750 = vor.u32 %v745, %v749
        %v752 = vshll.u32 %v522, 16
        %v754 = vrot.slane %v752, 1
        %v755 = vsel %vm533, %v750, %v754
        %v756 = vshrl.u32 %v522, 16
        %v758 = vor.u32 %v756, %v754
        %v760 = vshrl.u32 %v523, 16
        %v762 = vshll.u32 %v523, 16
        %v764 = vrot.slane %v762, 1
        %v765 = vor.u32 %v760, %v764
        %v767 = vshll.u32 %v524, 16
        %v769 = vrot.slane %v767, 1
        %v770 = vsel %vm533, %v765, %v769
        %v771 = vshrl.u32 %v524, 16
        %v773 = vor.u32 %v771, %v769
        %v775 = vshrl.u32 %v525, 16
        %v777 = vshll.u32 %v525, 16
        %v779 = vrot.slane %v777, 1
        %v780 = vor.u32 %v775, %v779
        %v782 = vshll.u32 %v526, 16
        %v784 = vrot.slane %v782, 1
        %v785 = vsel %vm533, %v780, %v784
        %v786 = vshrl.u32 %v526, 16
        %v788 = vor.u32 %v786, %v784
        %v790 = vshrl.u32 %v527, 16
        %v792 = vshll.u32 %v527, 16
        %v794 = vrot.slane %v792, 1
        %v795 = vor.u32 %v790, %v794
        %v797 = vshll.u32 %v528, 16
        %v799 = vrot.slane %v797, 1
        %v800 = vsel %vm533, %v795, %v799
        %v801 = vshrl.u32 %v528, 16
        %v803 = vor.u32 %v801, %v799
        %v805 = vshrl.u32 %v529, 16
        %v807 = vshll.u32 %v529, 16
        %v809 = vrot.slane %v807, 1
        %v810 = vor.u32 %v805, %v809
        %v812 = vshll.u32 %v530, 16
        %v814 = vrot.slane %v812, 1
        %v815 = vsel %vm533, %v810, %v814
        %v816 = vshrl.u32 %v530, 16
        %v818 = vor.u32 %v816, %v814
        %v820 = vshrl.u32 %v531, 16
        %v822 = vshll.u32 %v531, 16
        %v824 = vrot.slane %v822, 1
        %v825 = vor.u32 %v820, %v824
        %v827 = vshll.u32 %v532, 16
        %v829 = vrot.slane %v827, 1
        %v830 = vsel %vm533, %v825, %v829
        %v831 = vshrl.u32 %v532, 16
        %v833 = vor.u32 %v831, %v829
        %834 = vrot.lane.b32.xlu0 %v545, 8
        %v835 = vpop.permute.xlu0 %834
        %836 = vrot.lane.b32.xlu0 %v548, 8
        %v837 = vpop.permute.xlu0 %836
        %838 = vrot.lane.b32.xlu0 %v560, 8
        %v839 = vpop.permute.xlu0 %838
        %840 = vrot.lane.b32.xlu0 %v563, 8
        %v841 = vpop.permute.xlu0 %840
        %842 = vrot.lane.b32.xlu0 %v575, 8
        %v843 = vpop.permute.xlu0 %842
        %844 = vrot.lane.b32.xlu0 %v578, 8
        %v845 = vpop.permute.xlu0 %844
        %846 = vrot.lane.b32.xlu0 %v590, 8
        %v847 = vpop.permute.xlu0 %846
        %848 = vrot.lane.b32.xlu0 %v593, 8
        %v849 = vpop.permute.xlu0 %848
        %850 = vrot.lane.b32.xlu0 %v605, 8
        %v851 = vpop.permute.xlu0 %850
        %852 = vrot.lane.b32.xlu0 %v608, 8
        %v853 = vpop.permute.xlu0 %852
        %854 = vrot.lane.b32.xlu0 %v620, 8
        %v855 = vpop.permute.xlu0 %854
        %856 = vrot.lane.b32.xlu0 %v623, 8
        %v857 = vpop.permute.xlu0 %856
        %858 = vrot.lane.b32.xlu0 %v635, 8
        %v859 = vpop.permute.xlu0 %858
        %860 = vrot.lane.b32.xlu0 %v638, 8
        %v861 = vpop.permute.xlu0 %860
        %862 = vrot.lane.b32.xlu0 %v650, 8
        %v863 = vpop.permute.xlu0 %862
        %864 = vrot.lane.b32.xlu0 %v653, 8
        %v865 = vpop.permute.xlu0 %864
        %866 = vrot.lane.b32.xlu0 %v665, 8
        %v867 = vpop.permute.xlu0 %866
        %868 = vrot.lane.b32.xlu0 %v668, 8
        %v869 = vpop.permute.xlu0 %868
        %870 = vrot.lane.b32.xlu0 %v680, 8
        %v871 = vpop.permute.xlu0 %870
        %872 = vrot.lane.b32.xlu0 %v683, 8
        %v873 = vpop.permute.xlu0 %872
        %874 = vrot.lane.b32.xlu0 %v695, 8
        %v875 = vpop.permute.xlu0 %874
        %876 = vrot.lane.b32.xlu0 %v698, 8
        %v877 = vpop.permute.xlu0 %876
        %878 = vrot.lane.b32.xlu0 %v710, 8
        %v879 = vpop.permute.xlu0 %878
        %880 = vrot.lane.b32.xlu0 %v713, 8
        %v881 = vpop.permute.xlu0 %880
        %882 = vrot.lane.b32.xlu0 %v725, 8
        %v883 = vpop.permute.xlu0 %882
        %884 = vrot.lane.b32.xlu0 %v728, 8
        %v885 = vpop.permute.xlu0 %884
        %886 = vrot.lane.b32.xlu0 %v740, 8
        %v887 = vpop.permute.xlu0 %886
        %888 = vrot.lane.b32.xlu0 %v743, 8
        %v889 = vpop.permute.xlu0 %888
        %890 = vrot.lane.b32.xlu0 %v755, 8
        %v891 = vpop.permute.xlu0 %890
        %892 = vrot.lane.b32.xlu0 %v758, 8
        %v893 = vpop.permute.xlu0 %892
        %894 = vrot.lane.b32.xlu0 %v770, 8
        %v895 = vpop.permute.xlu0 %894
        %896 = vrot.lane.b32.xlu0 %v773, 8
        %v897 = vpop.permute.xlu0 %896
        %898 = vrot.lane.b32.xlu0 %v785, 8
        %v899 = vpop.permute.xlu0 %898
        %900 = vrot.lane.b32.xlu0 %v788, 8
        %v901 = vpop.permute.xlu0 %900
        %902 = vrot.lane.b32.xlu0 %v800, 8
        %v903 = vpop.permute.xlu0 %902
        %904 = vrot.lane.b32.xlu0 %v803, 8
        %v905 = vpop.permute.xlu0 %904
        %906 = vrot.lane.b32.xlu0 %v815, 8
        %v907 = vpop.permute.xlu0 %906
        %908 = vrot.lane.b32.xlu0 %v818, 8
        %v909 = vpop.permute.xlu0 %908
        %910 = vrot.lane.b32.xlu0 %v830, 8
        %v911 = vpop.permute.xlu0 %910
        %912 = vrot.lane.b32.xlu0 %v833, 8
        %v913 = vpop.permute.xlu0 %912
        %vm914 = vcmask 1046528
        %v915 = vrot.slane %v493, 1
        %v916 = vrot.slane %v494, 1
        %v917 = vsel %vm914, %v915, %v916
        %v918 = vrot.slane %v495, 1
        %v919 = vrot.slane %v496, 1
        %v920 = vsel %vm914, %v918, %v919
        %v921 = vrot.slane %v497, 1
        %v922 = vrot.slane %v498, 1
        %v923 = vsel %vm914, %v921, %v922
        %v924 = vrot.slane %v499, 1
        %v925 = vrot.slane %v500, 1
        %v926 = vsel %vm914, %v924, %v925
        %v927 = vrot.slane %v501, 1
        %v928 = vrot.slane %v502, 1
        %v929 = vsel %vm914, %v927, %v928
        %v930 = vrot.slane %v503, 1
        %v931 = vrot.slane %v504, 1
        %v932 = vsel %vm914, %v930, %v931
        %v933 = vrot.slane %v505, 1
        %v934 = vrot.slane %v506, 1
        %v935 = vsel %vm914, %v933, %v934
        %v936 = vrot.slane %v507, 1
        %v937 = vrot.slane %v508, 1
        %v938 = vsel %vm914, %v936, %v937
        %v939 = vrot.slane %v509, 1
        %v940 = vrot.slane %v510, 1
        %v941 = vsel %vm914, %v939, %v940
        %v942 = vrot.slane %v511, 1
        %v943 = vrot.slane %v512, 1
        %v944 = vsel %vm914, %v942, %v943
        %v945 = vrot.slane %v513, 1
        %v946 = vrot.slane %v514, 1
        %v947 = vsel %vm914, %v945, %v946
        %v948 = vrot.slane %v515, 1
        %v949 = vrot.slane %v516, 1
        %v950 = vsel %vm914, %v948, %v949
        %v951 = vrot.slane %v517, 1
        %v952 = vrot.slane %v518, 1
        %v953 = vsel %vm914, %v951, %v952
        %v954 = vrot.slane %v519, 1
        %v955 = vrot.slane %v520, 1
        %v956 = vsel %vm914, %v954, %v955
        %v957 = vrot.slane %v521, 1
        %v958 = vrot.slane %v522, 1
        %v959 = vsel %vm914, %v957, %v958
        %v960 = vrot.slane %v523, 1
        %v961 = vrot.slane %v524, 1
        %v962 = vsel %vm914, %v960, %v961
        %v963 = vrot.slane %v525, 1
        %v964 = vrot.slane %v526, 1
        %v965 = vsel %vm914, %v963, %v964
        %v966 = vrot.slane %v527, 1
        %v967 = vrot.slane %v528, 1
        %v968 = vsel %vm914, %v966, %v967
        %v969 = vrot.slane %v529, 1
        %v970 = vrot.slane %v530, 1
        %v971 = vsel %vm914, %v969, %v970
        %v972 = vrot.slane %v531, 1
        %v973 = vrot.slane %v532, 1
        %v974 = vsel %vm914, %v972, %v973
        %975 = vrot.lane.b32.xlu0 %v917, 16
        %v976 = vpop.permute.xlu0 %975
        %977 = vrot.lane.b32.xlu0 %v916, 16
        %v978 = vpop.permute.xlu0 %977
        %979 = vrot.lane.b32.xlu0 %v920, 16
        %v980 = vpop.permute.xlu0 %979
        %981 = vrot.lane.b32.xlu0 %v919, 16
        %v982 = vpop.permute.xlu0 %981
        %983 = vrot.lane.b32.xlu0 %v923, 16
        %v984 = vpop.permute.xlu0 %983
        %985 = vrot.lane.b32.xlu0 %v922, 16
        %v986 = vpop.permute.xlu0 %985
        %987 = vrot.lane.b32.xlu0 %v926, 16
        %v988 = vpop.permute.xlu0 %987
        %989 = vrot.lane.b32.xlu0 %v925, 16
        %v990 = vpop.permute.xlu0 %989
        %991 = vrot.lane.b32.xlu0 %v929, 16
        %v992 = vpop.permute.xlu0 %991
        %993 = vrot.lane.b32.xlu0 %v928, 16
        %v994 = vpop.permute.xlu0 %993
        %995 = vrot.lane.b32.xlu0 %v932, 16
        %v996 = vpop.permute.xlu0 %995
        %997 = vrot.lane.b32.xlu0 %v931, 16
        %v998 = vpop.permute.xlu0 %997
        %999 = vrot.lane.b32.xlu0 %v935, 16
        %v1000 = vpop.permute.xlu0 %999
        %1001 = vrot.lane.b32.xlu0 %v934, 16
        %v1002 = vpop.permute.xlu0 %1001
        %1003 = vrot.lane.b32.xlu0 %v938, 16
        %v1004 = vpop.permute.xlu0 %1003
        %1005 = vrot.lane.b32.xlu0 %v937, 16
        %v1006 = vpop.permute.xlu0 %1005
        %1007 = vrot.lane.b32.xlu0 %v941, 16
        %v1008 = vpop.permute.xlu0 %1007
        %1009 = vrot.lane.b32.xlu0 %v940, 16
        %v1010 = vpop.permute.xlu0 %1009
        %1011 = vrot.lane.b32.xlu0 %v944, 16
        %v1012 = vpop.permute.xlu0 %1011
        %1013 = vrot.lane.b32.xlu0 %v943, 16
        %v1014 = vpop.permute.xlu0 %1013
        %1015 = vrot.lane.b32.xlu0 %v947, 16
        %v1016 = vpop.permute.xlu0 %1015
        %1017 = vrot.lane.b32.xlu0 %v946, 16
        %v1018 = vpop.permute.xlu0 %1017
        %1019 = vrot.lane.b32.xlu0 %v950, 16
        %v1020 = vpop.permute.xlu0 %1019
        %1021 = vrot.lane.b32.xlu0 %v949, 16
        %v1022 = vpop.permute.xlu0 %1021
        %1023 = vrot.lane.b32.xlu0 %v953, 16
        %v1024 = vpop.permute.xlu0 %1023
        %1025 = vrot.lane.b32.xlu0 %v952, 16
        %v1026 = vpop.permute.xlu0 %1025
        %1027 = vrot.lane.b32.xlu0 %v956, 16
        %v1028 = vpop.permute.xlu0 %1027
        %1029 = vrot.lane.b32.xlu0 %v955, 16
        %v1030 = vpop.permute.xlu0 %1029
        %1031 = vrot.lane.b32.xlu0 %v959, 16
        %v1032 = vpop.permute.xlu0 %1031
        %1033 = vrot.lane.b32.xlu0 %v958, 16
        %v1034 = vpop.permute.xlu0 %1033
        %1035 = vrot.lane.b32.xlu0 %v962, 16
        %v1036 = vpop.permute.xlu0 %1035
        %1037 = vrot.lane.b32.xlu0 %v961, 16
        %v1038 = vpop.permute.xlu0 %1037
        %1039 = vrot.lane.b32.xlu0 %v965, 16
        %v1040 = vpop.permute.xlu0 %1039
        %1041 = vrot.lane.b32.xlu0 %v964, 16
        %v1042 = vpop.permute.xlu0 %1041
        %1043 = vrot.lane.b32.xlu0 %v968, 16
        %v1044 = vpop.permute.xlu0 %1043
        %1045 = vrot.lane.b32.xlu0 %v967, 16
        %v1046 = vpop.permute.xlu0 %1045
        %1047 = vrot.lane.b32.xlu0 %v971, 16
        %v1048 = vpop.permute.xlu0 %1047
        %1049 = vrot.lane.b32.xlu0 %v970, 16
        %v1050 = vpop.permute.xlu0 %1049
        %1051 = vrot.lane.b32.xlu0 %v974, 16
        %v1052 = vpop.permute.xlu0 %1051
        %1053 = vrot.lane.b32.xlu0 %v973, 16
        %v1054 = vpop.permute.xlu0 %1053
        %v1058 = vunpack.c.l.b16 %v357
        %v1059 = vunpack.c.l.b16 %v358
        %v1060 = vunpack.c.l.b16 %v359
        %v1061 = vpack.c.b16 %v1059, %v1058
        %v1062 = vpack.c.b16 %v1060, %v1060
        %1063 = vrot.lane.b32.xlu0 %v495, 24
        %v1064 = vpop.permute.xlu0 %1063
        %1065 = vrot.lane.b32.xlu0 %v496, 24
        %v1066 = vpop.permute.xlu0 %1065
        %1067 = vrot.lane.b32.xlu0 %v497, 24
        %v1068 = vpop.permute.xlu0 %1067
        %1069 = vrot.lane.b32.xlu0 %v498, 24
        %v1070 = vpop.permute.xlu0 %1069
        %1071 = vrot.lane.b32.xlu0 %v499, 24
        %v1072 = vpop.permute.xlu0 %1071
        %1073 = vrot.lane.b32.xlu0 %v500, 24
        %v1074 = vpop.permute.xlu0 %1073
        %1075 = vrot.lane.b32.xlu0 %v501, 24
        %v1076 = vpop.permute.xlu0 %1075
        %1077 = vrot.lane.b32.xlu0 %v502, 24
        %v1078 = vpop.permute.xlu0 %1077
        %1079 = vrot.lane.b32.xlu0 %v503, 24
        %v1080 = vpop.permute.xlu0 %1079
        %1081 = vrot.lane.b32.xlu0 %v504, 24
        %v1082 = vpop.permute.xlu0 %1081
        %1083 = vrot.lane.b32.xlu0 %v505, 24
        %v1084 = vpop.permute.xlu0 %1083
        %1085 = vrot.lane.b32.xlu0 %v506, 24
        %v1086 = vpop.permute.xlu0 %1085
        %1087 = vrot.lane.b32.xlu0 %v507, 24
        %v1088 = vpop.permute.xlu0 %1087
        %1089 = vrot.lane.b32.xlu0 %v508, 24
        %v1090 = vpop.permute.xlu0 %1089
        %1091 = vrot.lane.b32.xlu0 %v509, 24
        %v1092 = vpop.permute.xlu0 %1091
        %1093 = vrot.lane.b32.xlu0 %v510, 24
        %v1094 = vpop.permute.xlu0 %1093
        %1095 = vrot.lane.b32.xlu0 %v511, 24
        %v1096 = vpop.permute.xlu0 %1095
        %1097 = vrot.lane.b32.xlu0 %v512, 24
        %v1098 = vpop.permute.xlu0 %1097
        %1099 = vrot.lane.b32.xlu0 %v513, 24
        %v1100 = vpop.permute.xlu0 %1099
        %1101 = vrot.lane.b32.xlu0 %v514, 24
        %v1102 = vpop.permute.xlu0 %1101
        %1103 = vrot.lane.b32.xlu0 %v515, 24
        %v1104 = vpop.permute.xlu0 %1103
        %1105 = vrot.lane.b32.xlu0 %v516, 24
        %v1106 = vpop.permute.xlu0 %1105
        %1107 = vrot.lane.b32.xlu0 %v517, 24
        %v1108 = vpop.permute.xlu0 %1107
        %1109 = vrot.lane.b32.xlu0 %v518, 24
        %v1110 = vpop.permute.xlu0 %1109
        %1111 = vrot.lane.b32.xlu0 %v519, 24
        %v1112 = vpop.permute.xlu0 %1111
        %1113 = vrot.lane.b32.xlu0 %v520, 24
        %v1114 = vpop.permute.xlu0 %1113
        %1115 = vrot.lane.b32.xlu0 %v521, 24
        %v1116 = vpop.permute.xlu0 %1115
        %1117 = vrot.lane.b32.xlu0 %v522, 24
        %v1118 = vpop.permute.xlu0 %1117
        %1119 = vrot.lane.b32.xlu0 %v523, 24
        %v1120 = vpop.permute.xlu0 %1119
        %1121 = vrot.lane.b32.xlu0 %v524, 24
        %v1122 = vpop.permute.xlu0 %1121
        %1123 = vrot.lane.b32.xlu0 %v525, 24
        %v1124 = vpop.permute.xlu0 %1123
        %1125 = vrot.lane.b32.xlu0 %v526, 24
        %v1126 = vpop.permute.xlu0 %1125
        %1127 = vrot.lane.b32.xlu0 %v527, 24
        %v1128 = vpop.permute.xlu0 %1127
        %1129 = vrot.lane.b32.xlu0 %v528, 24
        %v1130 = vpop.permute.xlu0 %1129
        %1131 = vrot.lane.b32.xlu0 %v529, 24
        %v1132 = vpop.permute.xlu0 %1131
        %1133 = vrot.lane.b32.xlu0 %v530, 24
        %v1134 = vpop.permute.xlu0 %1133
        %1135 = vrot.lane.b32.xlu0 %v531, 24
        %v1136 = vpop.permute.xlu0 %1135
        %1137 = vrot.lane.b32.xlu0 %v532, 24
        %v1138 = vpop.permute.xlu0 %1137
        %1139 = vrot.lane.b32.xlu0 %v1061, 24
        %v1140 = vpop.permute.xlu0 %1139
        %1141 = vrot.lane.b32.xlu0 %v1062, 24
        %v1142 = vpop.permute.xlu0 %1141
        %v1144 = vshrl.u32 %v1061, 16
        %v1146 = vshll.u32 %v1061, 16
        %v1148 = vrot.slane %v1146, 1
        %v1149 = vor.u32 %v1144, %v1148
        %v1151 = vshll.u32 %v1062, 16
        %v1153 = vrot.slane %v1151, 1
        %v1154 = vsel %vm533, %v1149, %v1153
        %v1155 = vshrl.u32 %v1062, 16
        %v1157 = vor.u32 %v1155, %v1153
        %1158 = vrot.lane.b32.xlu0 %v560, 32
        %v1159 = vpop.permute.xlu0 %1158
        %1160 = vrot.lane.b32.xlu0 %v563, 32
        %v1161 = vpop.permute.xlu0 %1160
        %1162 = vrot.lane.b32.xlu0 %v575, 32
        %v1163 = vpop.permute.xlu0 %1162
        %1164 = vrot.lane.b32.xlu0 %v578, 32
        %v1165 = vpop.permute.xlu0 %1164
        %1166 = vrot.lane.b32.xlu0 %v590, 32
        %v1167 = vpop.permute.xlu0 %1166
        %1168 = vrot.lane.b32.xlu0 %v593, 32
        %v1169 = vpop.permute.xlu0 %1168
        %1170 = vrot.lane.b32.xlu0 %v605, 32
        %v1171 = vpop.permute.xlu0 %1170
        %1172 = vrot.lane.b32.xlu0 %v608, 32
        %v1173 = vpop.permute.xlu0 %1172
        %1174 = vrot.lane.b32.xlu0 %v620, 32
        %v1175 = vpop.permute.xlu0 %1174
        %1176 = vrot.lane.b32.xlu0 %v623, 32
        %v1177 = vpop.permute.xlu0 %1176
        %1178 = vrot.lane.b32.xlu0 %v635, 32
        %v1179 = vpop.permute.xlu0 %1178
        %1180 = vrot.lane.b32.xlu0 %v638, 32
        %v1181 = vpop.permute.xlu0 %1180
        %1182 = vrot.lane.b32.xlu0 %v650, 32
        %v1183 = vpop.permute.xlu0 %1182
        %1184 = vrot.lane.b32.xlu0 %v653, 32
        %v1185 = vpop.permute.xlu0 %1184
        %1186 = vrot.lane.b32.xlu0 %v665, 32
        %v1187 = vpop.permute.xlu0 %1186
        %1188 = vrot.lane.b32.xlu0 %v668, 32
        %v1189 = vpop.permute.xlu0 %1188
        %1190 = vrot.lane.b32.xlu0 %v680, 32
        %v1191 = vpop.permute.xlu0 %1190
        %1192 = vrot.lane.b32.xlu0 %v683, 32
        %v1193 = vpop.permute.xlu0 %1192
        %1194 = vrot.lane.b32.xlu0 %v695, 32
        %v1195 = vpop.permute.xlu0 %1194
        %1196 = vrot.lane.b32.xlu0 %v698, 32
        %v1197 = vpop.permute.xlu0 %1196
        %1198 = vrot.lane.b32.xlu0 %v710, 32
        %v1199 = vpop.permute.xlu0 %1198
        %1200 = vrot.lane.b32.xlu0 %v713, 32
        %v1201 = vpop.permute.xlu0 %1200
        %1202 = vrot.lane.b32.xlu0 %v725, 32
        %v1203 = vpop.permute.xlu0 %1202
        %1204 = vrot.lane.b32.xlu0 %v728, 32
        %v1205 = vpop.permute.xlu0 %1204
        %1206 = vrot.lane.b32.xlu0 %v740, 32
        %v1207 = vpop.permute.xlu0 %1206
        %1208 = vrot.lane.b32.xlu0 %v743, 32
        %v1209 = vpop.permute.xlu0 %1208
        %1210 = vrot.lane.b32.xlu0 %v755, 32
        %v1211 = vpop.permute.xlu0 %1210
        %1212 = vrot.lane.b32.xlu0 %v758, 32
        %v1213 = vpop.permute.xlu0 %1212
        %1214 = vrot.lane.b32.xlu0 %v770, 32
        %v1215 = vpop.permute.xlu0 %1214
        %1216 = vrot.lane.b32.xlu0 %v773, 32
        %v1217 = vpop.permute.xlu0 %1216
        %1218 = vrot.lane.b32.xlu0 %v785, 32
        %v1219 = vpop.permute.xlu0 %1218
        %1220 = vrot.lane.b32.xlu0 %v788, 32
        %v1221 = vpop.permute.xlu0 %1220
        %1222 = vrot.lane.b32.xlu0 %v800, 32
        %v1223 = vpop.permute.xlu0 %1222
        %1224 = vrot.lane.b32.xlu0 %v803, 32
        %v1225 = vpop.permute.xlu0 %1224
        %1226 = vrot.lane.b32.xlu0 %v815, 32
        %v1227 = vpop.permute.xlu0 %1226
        %1228 = vrot.lane.b32.xlu0 %v818, 32
        %v1229 = vpop.permute.xlu0 %1228
        %1230 = vrot.lane.b32.xlu0 %v830, 32
        %v1231 = vpop.permute.xlu0 %1230
        %1232 = vrot.lane.b32.xlu0 %v833, 32
        %v1233 = vpop.permute.xlu0 %1232
        %1234 = vrot.lane.b32.xlu0 %v1154, 32
        %v1235 = vpop.permute.xlu0 %1234
        %1236 = vrot.lane.b32.xlu0 %v1157, 32
        %v1237 = vpop.permute.xlu0 %1236
        %v1238 = vrot.slane %v1061, 1
        %v1239 = vrot.slane %v1062, 1
        %v1240 = vsel %vm914, %v1238, %v1239
        %1241 = vrot.lane.b32.xlu0 %v920, 40
        %v1242 = vpop.permute.xlu0 %1241
        %1243 = vrot.lane.b32.xlu0 %v919, 40
        %v1244 = vpop.permute.xlu0 %1243
        %1245 = vrot.lane.b32.xlu0 %v923, 40
        %v1246 = vpop.permute.xlu0 %1245
        %1247 = vrot.lane.b32.xlu0 %v922, 40
        %v1248 = vpop.permute.xlu0 %1247
        %1249 = vrot.lane.b32.xlu0 %v926, 40
        %v1250 = vpop.permute.xlu0 %1249
        %1251 = vrot.lane.b32.xlu0 %v925, 40
        %v1252 = vpop.permute.xlu0 %1251
        %1253 = vrot.lane.b32.xlu0 %v929, 40
        %v1254 = vpop.permute.xlu0 %1253
        %1255 = vrot.lane.b32.xlu0 %v928, 40
        %v1256 = vpop.permute.xlu0 %1255
        %1257 = vrot.lane.b32.xlu0 %v932, 40
        %v1258 = vpop.permute.xlu0 %1257
        %1259 = vrot.lane.b32.xlu0 %v931, 40
        %v1260 = vpop.permute.xlu0 %1259
        %1261 = vrot.lane.b32.xlu0 %v935, 40
        %v1262 = vpop.permute.xlu0 %1261
        %1263 = vrot.lane.b32.xlu0 %v934, 40
        %v1264 = vpop.permute.xlu0 %1263
        %1265 = vrot.lane.b32.xlu0 %v938, 40
        %v1266 = vpop.permute.xlu0 %1265
        %1267 = vrot.lane.b32.xlu0 %v937, 40
        %v1268 = vpop.permute.xlu0 %1267
        %1269 = vrot.lane.b32.xlu0 %v941, 40
        %v1270 = vpop.permute.xlu0 %1269
        %1271 = vrot.lane.b32.xlu0 %v940, 40
        %v1272 = vpop.permute.xlu0 %1271
        %1273 = vrot.lane.b32.xlu0 %v944, 40
        %v1274 = vpop.permute.xlu0 %1273
        %1275 = vrot.lane.b32.xlu0 %v943, 40
        %v1276 = vpop.permute.xlu0 %1275
        %1277 = vrot.lane.b32.xlu0 %v947, 40
        %v1278 = vpop.permute.xlu0 %1277
        %1279 = vrot.lane.b32.xlu0 %v946, 40
        %v1280 = vpop.permute.xlu0 %1279
        %1281 = vrot.lane.b32.xlu0 %v950, 40
        %v1282 = vpop.permute.xlu0 %1281
        %1283 = vrot.lane.b32.xlu0 %v949, 40
        %v1284 = vpop.permute.xlu0 %1283
        %1285 = vrot.lane.b32.xlu0 %v953, 40
        %v1286 = vpop.permute.xlu0 %1285
        %1287 = vrot.lane.b32.xlu0 %v952, 40
        %v1288 = vpop.permute.xlu0 %1287
        %1289 = vrot.lane.b32.xlu0 %v956, 40
        %v1290 = vpop.permute.xlu0 %1289
        %1291 = vrot.lane.b32.xlu0 %v955, 40
        %v1292 = vpop.permute.xlu0 %1291
        %1293 = vrot.lane.b32.xlu0 %v959, 40
        %v1294 = vpop.permute.xlu0 %1293
        %1295 = vrot.lane.b32.xlu0 %v958, 40
        %v1296 = vpop.permute.xlu0 %1295
        %1297 = vrot.lane.b32.xlu0 %v962, 40
        %v1298 = vpop.permute.xlu0 %1297
        %1299 = vrot.lane.b32.xlu0 %v961, 40
        %v1300 = vpop.permute.xlu0 %1299
        %1301 = vrot.lane.b32.xlu0 %v965, 40
        %v1302 = vpop.permute.xlu0 %1301
        %1303 = vrot.lane.b32.xlu0 %v964, 40
        %v1304 = vpop.permute.xlu0 %1303
        %1305 = vrot.lane.b32.xlu0 %v968, 40
        %v1306 = vpop.permute.xlu0 %1305
        %1307 = vrot.lane.b32.xlu0 %v967, 40
        %v1308 = vpop.permute.xlu0 %1307
        %1309 = vrot.lane.b32.xlu0 %v971, 40
        %v1310 = vpop.permute.xlu0 %1309
        %1311 = vrot.lane.b32.xlu0 %v970, 40
        %v1312 = vpop.permute.xlu0 %1311
        %1313 = vrot.lane.b32.xlu0 %v974, 40
        %v1314 = vpop.permute.xlu0 %1313
        %1315 = vrot.lane.b32.xlu0 %v973, 40
        %v1316 = vpop.permute.xlu0 %1315
        %1317 = vrot.lane.b32.xlu0 %v1240, 40
        %v1318 = vpop.permute.xlu0 %1317
        %1319 = vrot.lane.b32.xlu0 %v1239, 40
        %v1320 = vpop.permute.xlu0 %1319
        %v1324 = vunpack.c.l.b16 %v360
        %v1325 = vunpack.c.l.b16 %v361
        %v1326 = vunpack.c.l.b16 %v362
        %v1327 = vpack.c.b16 %v1325, %v1324
        %v1328 = vpack.c.b16 %v1326, %v1326
        %1329 = vrot.lane.b32.xlu0 %v497, 48
        %v1330 = vpop.permute.xlu0 %1329
        %1331 = vrot.lane.b32.xlu0 %v498, 48
        %v1332 = vpop.permute.xlu0 %1331
        %1333 = vrot.lane.b32.xlu0 %v499, 48
        %v1334 = vpop.permute.xlu0 %1333
        %1335 = vrot.lane.b32.xlu0 %v500, 48
        %v1336 = vpop.permute.xlu0 %1335
        %1337 = vrot.lane.b32.xlu0 %v501, 48
        %v1338 = vpop.permute.xlu0 %1337
        %1339 = vrot.lane.b32.xlu0 %v502, 48
        %v1340 = vpop.permute.xlu0 %1339
        %1341 = vrot.lane.b32.xlu0 %v503, 48
        %v1342 = vpop.permute.xlu0 %1341
        %1343 = vrot.lane.b32.xlu0 %v504, 48
        %v1344 = vpop.permute.xlu0 %1343
        %1345 = vrot.lane.b32.xlu0 %v505, 48
        %v1346 = vpop.permute.xlu0 %1345
        %1347 = vrot.lane.b32.xlu0 %v506, 48
        %v1348 = vpop.permute.xlu0 %1347
        %1349 = vrot.lane.b32.xlu0 %v507, 48
        %v1350 = vpop.permute.xlu0 %1349
        %1351 = vrot.lane.b32.xlu0 %v508, 48
        %v1352 = vpop.permute.xlu0 %1351
        %1353 = vrot.lane.b32.xlu0 %v509, 48
        %v1354 = vpop.permute.xlu0 %1353
        %1355 = vrot.lane.b32.xlu0 %v510, 48
        %v1356 = vpop.permute.xlu0 %1355
        %1357 = vrot.lane.b32.xlu0 %v511, 48
        %v1358 = vpop.permute.xlu0 %1357
        %1359 = vrot.lane.b32.xlu0 %v512, 48
        %v1360 = vpop.permute.xlu0 %1359
        %1361 = vrot.lane.b32.xlu0 %v513, 48
        %v1362 = vpop.permute.xlu0 %1361
        %1363 = vrot.lane.b32.xlu0 %v514, 48
        %v1364 = vpop.permute.xlu0 %1363
        %1365 = vrot.lane.b32.xlu0 %v515, 48
        %v1366 = vpop.permute.xlu0 %1365
        %1367 = vrot.lane.b32.xlu0 %v516, 48
        %v1368 = vpop.permute.xlu0 %1367
        %1369 = vrot.lane.b32.xlu0 %v517, 48
        %v1370 = vpop.permute.xlu0 %1369
        %1371 = vrot.lane.b32.xlu0 %v518, 48
        %v1372 = vpop.permute.xlu0 %1371
        %1373 = vrot.lane.b32.xlu0 %v519, 48
        %v1374 = vpop.permute.xlu0 %1373
        %1375 = vrot.lane.b32.xlu0 %v520, 48
        %v1376 = vpop.permute.xlu0 %1375
        %1377 = vrot.lane.b32.xlu0 %v521, 48
        %v1378 = vpop.permute.xlu0 %1377
        %1379 = vrot.lane.b32.xlu0 %v522, 48
        %v1380 = vpop.permute.xlu0 %1379
        %1381 = vrot.lane.b32.xlu0 %v523, 48
        %v1382 = vpop.permute.xlu0 %1381
        %1383 = vrot.lane.b32.xlu0 %v524, 48
        %v1384 = vpop.permute.xlu0 %1383
        %1385 = vrot.lane.b32.xlu0 %v525, 48
        %v1386 = vpop.permute.xlu0 %1385
        %1387 = vrot.lane.b32.xlu0 %v526, 48
        %v1388 = vpop.permute.xlu0 %1387
        %1389 = vrot.lane.b32.xlu0 %v527, 48
        %v1390 = vpop.permute.xlu0 %1389
        %1391 = vrot.lane.b32.xlu0 %v528, 48
        %v1392 = vpop.permute.xlu0 %1391
        %1393 = vrot.lane.b32.xlu0 %v529, 48
        %v1394 = vpop.permute.xlu0 %1393
        %1395 = vrot.lane.b32.xlu0 %v530, 48
        %v1396 = vpop.permute.xlu0 %1395
        %1397 = vrot.lane.b32.xlu0 %v531, 48
        %v1398 = vpop.permute.xlu0 %1397
        %1399 = vrot.lane.b32.xlu0 %v532, 48
        %v1400 = vpop.permute.xlu0 %1399
        %1401 = vrot.lane.b32.xlu0 %v1061, 48
        %v1402 = vpop.permute.xlu0 %1401
        %1403 = vrot.lane.b32.xlu0 %v1062, 48
        %v1404 = vpop.permute.xlu0 %1403
        %1405 = vrot.lane.b32.xlu0 %v1327, 48
        %v1406 = vpop.permute.xlu0 %1405
        %1407 = vrot.lane.b32.xlu0 %v1328, 48
        %v1408 = vpop.permute.xlu0 %1407
        %v1410 = vshrl.u32 %v1327, 16
        %v1412 = vshll.u32 %v1327, 16
        %v1414 = vrot.slane %v1412, 1
        %v1415 = vor.u32 %v1410, %v1414
        %v1417 = vshll.u32 %v1328, 16
        %v1419 = vrot.slane %v1417, 1
        %v1420 = vsel %vm533, %v1415, %v1419
        %v1421 = vshrl.u32 %v1328, 16
        %v1423 = vor.u32 %v1421, %v1419
        %1424 = vrot.lane.b32.xlu0 %v575, 56
        %v1425 = vpop.permute.xlu0 %1424
        %1426 = vrot.lane.b32.xlu0 %v578, 56
        %v1427 = vpop.permute.xlu0 %1426
        %1428 = vrot.lane.b32.xlu0 %v590, 56
        %v1429 = vpop.permute.xlu0 %1428
        %1430 = vrot.lane.b32.xlu0 %v593, 56
        %v1431 = vpop.permute.xlu0 %1430
        %1432 = vrot.lane.b32.xlu0 %v605, 56
        %v1433 = vpop.permute.xlu0 %1432
        %1434 = vrot.lane.b32.xlu0 %v608, 56
        %v1435 = vpop.permute.xlu0 %1434
        %1436 = vrot.lane.b32.xlu0 %v620, 56
        %v1437 = vpop.permute.xlu0 %1436
        %1438 = vrot.lane.b32.xlu0 %v623, 56
        %v1439 = vpop.permute.xlu0 %1438
        %1440 = vrot.lane.b32.xlu0 %v635, 56
        %v1441 = vpop.permute.xlu0 %1440
        %1442 = vrot.lane.b32.xlu0 %v638, 56
        %v1443 = vpop.permute.xlu0 %1442
        %1444 = vrot.lane.b32.xlu0 %v650, 56
        %v1445 = vpop.permute.xlu0 %1444
        %1446 = vrot.lane.b32.xlu0 %v653, 56
        %v1447 = vpop.permute.xlu0 %1446
        %1448 = vrot.lane.b32.xlu0 %v665, 56
        %v1449 = vpop.permute.xlu0 %1448
        %1450 = vrot.lane.b32.xlu0 %v668, 56
        %v1451 = vpop.permute.xlu0 %1450
        %1452 = vrot.lane.b32.xlu0 %v680, 56
        %v1453 = vpop.permute.xlu0 %1452
        %1454 = vrot.lane.b32.xlu0 %v683, 56
        %v1455 = vpop.permute.xlu0 %1454
        %1456 = vrot.lane.b32.xlu0 %v695, 56
        %v1457 = vpop.permute.xlu0 %1456
        %1458 = vrot.lane.b32.xlu0 %v698, 56
        %v1459 = vpop.permute.xlu0 %1458
        %1460 = vrot.lane.b32.xlu0 %v710, 56
        %v1461 = vpop.permute.xlu0 %1460
        %1462 = vrot.lane.b32.xlu0 %v713, 56
        %v1463 = vpop.permute.xlu0 %1462
        %1464 = vrot.lane.b32.xlu0 %v725, 56
        %v1465 = vpop.permute.xlu0 %1464
        %1466 = vrot.lane.b32.xlu0 %v728, 56
        %v1467 = vpop.permute.xlu0 %1466
        %1468 = vrot.lane.b32.xlu0 %v740, 56
        %v1469 = vpop.permute.xlu0 %1468
        %1470 = vrot.lane.b32.xlu0 %v743, 56
        %v1471 = vpop.permute.xlu0 %1470
        %1472 = vrot.lane.b32.xlu0 %v755, 56
        %v1473 = vpop.permute.xlu0 %1472
        %1474 = vrot.lane.b32.xlu0 %v758, 56
        %v1475 = vpop.permute.xlu0 %1474
        %1476 = vrot.lane.b32.xlu0 %v770, 56
        %v1477 = vpop.permute.xlu0 %1476
        %1478 = vrot.lane.b32.xlu0 %v773, 56
        %v1479 = vpop.permute.xlu0 %1478
        %1480 = vrot.lane.b32.xlu0 %v785, 56
        %v1481 = vpop.permute.xlu0 %1480
        %1482 = vrot.lane.b32.xlu0 %v788, 56
        %v1483 = vpop.permute.xlu0 %1482
        %1484 = vrot.lane.b32.xlu0 %v800, 56
        %v1485 = vpop.permute.xlu0 %1484
        %1486 = vrot.lane.b32.xlu0 %v803, 56
        %v1487 = vpop.permute.xlu0 %1486
        %1488 = vrot.lane.b32.xlu0 %v815, 56
        %v1489 = vpop.permute.xlu0 %1488
        %1490 = vrot.lane.b32.xlu0 %v818, 56
        %v1491 = vpop.permute.xlu0 %1490
        %1492 = vrot.lane.b32.xlu0 %v830, 56
        %v1493 = vpop.permute.xlu0 %1492
        %1494 = vrot.lane.b32.xlu0 %v833, 56
        %v1495 = vpop.permute.xlu0 %1494
        %1496 = vrot.lane.b32.xlu0 %v1154, 56
        %v1497 = vpop.permute.xlu0 %1496
        %1498 = vrot.lane.b32.xlu0 %v1157, 56
        %v1499 = vpop.permute.xlu0 %1498
        %1500 = vrot.lane.b32.xlu0 %v1420, 56
        %v1501 = vpop.permute.xlu0 %1500
        %1502 = vrot.lane.b32.xlu0 %v1423, 56
        %v1503 = vpop.permute.xlu0 %1502
        %v1504 = vrot.slane %v1327, 1
        %v1505 = vrot.slane %v1328, 1
        %v1506 = vsel %vm914, %v1504, %v1505
        %1507 = vrot.lane.b32.xlu0 %v923, 64
        %v1508 = vpop.permute.xlu0 %1507
        %1509 = vrot.lane.b32.xlu0 %v922, 64
        %v1510 = vpop.permute.xlu0 %1509
        %1511 = vrot.lane.b32.xlu0 %v926, 64
        %v1512 = vpop.permute.xlu0 %1511
        %1513 = vrot.lane.b32.xlu0 %v925, 64
        %v1514 = vpop.permute.xlu0 %1513
        %1515 = vrot.lane.b32.xlu0 %v929, 64
        %v1516 = vpop.permute.xlu0 %1515
        %1517 = vrot.lane.b32.xlu0 %v928, 64
        %v1518 = vpop.permute.xlu0 %1517
        %1519 = vrot.lane.b32.xlu0 %v932, 64
        %v1520 = vpop.permute.xlu0 %1519
        %1521 = vrot.lane.b32.xlu0 %v931, 64
        %v1522 = vpop.permute.xlu0 %1521
        %1523 = vrot.lane.b32.xlu0 %v935, 64
        %v1524 = vpop.permute.xlu0 %1523
        %1525 = vrot.lane.b32.xlu0 %v934, 64
        %v1526 = vpop.permute.xlu0 %1525
        %1527 = vrot.lane.b32.xlu0 %v938, 64
        %v1528 = vpop.permute.xlu0 %1527
        %1529 = vrot.lane.b32.xlu0 %v937, 64
        %v1530 = vpop.permute.xlu0 %1529
        %1531 = vrot.lane.b32.xlu0 %v941, 64
        %v1532 = vpop.permute.xlu0 %1531
        %1533 = vrot.lane.b32.xlu0 %v940, 64
        %v1534 = vpop.permute.xlu0 %1533
        %1535 = vrot.lane.b32.xlu0 %v944, 64
        %v1536 = vpop.permute.xlu0 %1535
        %1537 = vrot.lane.b32.xlu0 %v943, 64
        %v1538 = vpop.permute.xlu0 %1537
        %1539 = vrot.lane.b32.xlu0 %v947, 64
        %v1540 = vpop.permute.xlu0 %1539
        %1541 = vrot.lane.b32.xlu0 %v946, 64
        %v1542 = vpop.permute.xlu0 %1541
        %1543 = vrot.lane.b32.xlu0 %v950, 64
        %v1544 = vpop.permute.xlu0 %1543
        %1545 = vrot.lane.b32.xlu0 %v949, 64
        %v1546 = vpop.permute.xlu0 %1545
        %1547 = vrot.lane.b32.xlu0 %v953, 64
        %v1548 = vpop.permute.xlu0 %1547
        %1549 = vrot.lane.b32.xlu0 %v952, 64
        %v1550 = vpop.permute.xlu0 %1549
        %1551 = vrot.lane.b32.xlu0 %v956, 64
        %v1552 = vpop.permute.xlu0 %1551
        %1553 = vrot.lane.b32.xlu0 %v955, 64
        %v1554 = vpop.permute.xlu0 %1553
        %1555 = vrot.lane.b32.xlu0 %v959, 64
        %v1556 = vpop.permute.xlu0 %1555
        %1557 = vrot.lane.b32.xlu0 %v958, 64
        %v1558 = vpop.permute.xlu0 %1557
        %1559 = vrot.lane.b32.xlu0 %v962, 64
        %v1560 = vpop.permute.xlu0 %1559
        %1561 = vrot.lane.b32.xlu0 %v961, 64
        %v1562 = vpop.permute.xlu0 %1561
        %1563 = vrot.lane.b32.xlu0 %v965, 64
        %v1564 = vpop.permute.xlu0 %1563
        %1565 = vrot.lane.b32.xlu0 %v964, 64
        %v1566 = vpop.permute.xlu0 %1565
        %1567 = vrot.lane.b32.xlu0 %v968, 64
        %v1568 = vpop.permute.xlu0 %1567
        %1569 = vrot.lane.b32.xlu0 %v967, 64
        %v1570 = vpop.permute.xlu0 %1569
        %1571 = vrot.lane.b32.xlu0 %v971, 64
        %v1572 = vpop.permute.xlu0 %1571
        %1573 = vrot.lane.b32.xlu0 %v970, 64
        %v1574 = vpop.permute.xlu0 %1573
        %1575 = vrot.lane.b32.xlu0 %v974, 64
        %v1576 = vpop.permute.xlu0 %1575
        %1577 = vrot.lane.b32.xlu0 %v973, 64
        %v1578 = vpop.permute.xlu0 %1577
        %1579 = vrot.lane.b32.xlu0 %v1240, 64
        %v1580 = vpop.permute.xlu0 %1579
        %1581 = vrot.lane.b32.xlu0 %v1239, 64
        %v1582 = vpop.permute.xlu0 %1581
        %1583 = vrot.lane.b32.xlu0 %v1506, 64
        %v1584 = vpop.permute.xlu0 %1583
        %1585 = vrot.lane.b32.xlu0 %v1505, 64
        %v1586 = vpop.permute.xlu0 %1585
        %vm1587 = vcmask 64512
        %v1589 = vsel %vm1587, %v493, %v835
        %v1591 = vsel %vm1587, %v494, %v837
        %v1593 = vsel %vm1587, %v495, %v839
        %v1595 = vsel %vm1587, %v496, %v841
        %v1597 = vsel %vm1587, %v497, %v843
        %v1599 = vsel %vm1587, %v498, %v845
        %v1601 = vsel %vm1587, %v499, %v847
        %v1603 = vsel %vm1587, %v500, %v849
        %v1605 = vsel %vm1587, %v501, %v851
        %v1607 = vsel %vm1587, %v502, %v853
        %v1609 = vsel %vm1587, %v503, %v855
        %v1611 = vsel %vm1587, %v504, %v857
        %v1613 = vsel %vm1587, %v505, %v859
        %v1615 = vsel %vm1587, %v506, %v861
        %v1617 = vsel %vm1587, %v507, %v863
        %v1619 = vsel %vm1587, %v508, %v865
        %v1621 = vsel %vm1587, %v509, %v867
        %v1623 = vsel %vm1587, %v510, %v869
        %v1625 = vsel %vm1587, %v511, %v871
        %v1627 = vsel %vm1587, %v512, %v873
        %v1629 = vsel %vm1587, %v513, %v875
        %v1631 = vsel %vm1587, %v514, %v877
        %v1633 = vsel %vm1587, %v515, %v879
        %v1635 = vsel %vm1587, %v516, %v881
        %v1637 = vsel %vm1587, %v517, %v883
        %v1639 = vsel %vm1587, %v518, %v885
        %v1641 = vsel %vm1587, %v519, %v887
        %v1643 = vsel %vm1587, %v520, %v889
        %v1645 = vsel %vm1587, %v521, %v891
        %v1647 = vsel %vm1587, %v522, %v893
        %v1649 = vsel %vm1587, %v523, %v895
        %v1651 = vsel %vm1587, %v524, %v897
        %v1653 = vsel %vm1587, %v525, %v899
        %v1655 = vsel %vm1587, %v526, %v901
        %v1657 = vsel %vm1587, %v527, %v903
        %v1659 = vsel %vm1587, %v528, %v905
        %v1661 = vsel %vm1587, %v529, %v907
        %v1663 = vsel %vm1587, %v530, %v909
        %v1665 = vsel %vm1587, %v531, %v911
        %v1667 = vsel %vm1587, %v532, %v913
        %vm1668 = vcmask 130048
        %v1670 = vsel %vm1668, %v1589, %v976
        %v1672 = vsel %vm1668, %v1591, %v978
        %v1674 = vsel %vm1668, %v1593, %v980
        %v1676 = vsel %vm1668, %v1595, %v982
        %v1678 = vsel %vm1668, %v1597, %v984
        %v1680 = vsel %vm1668, %v1599, %v986
        %v1682 = vsel %vm1668, %v1601, %v988
        %v1684 = vsel %vm1668, %v1603, %v990
        %v1686 = vsel %vm1668, %v1605, %v992
        %v1688 = vsel %vm1668, %v1607, %v994
        %v1690 = vsel %vm1668, %v1609, %v996
        %v1692 = vsel %vm1668, %v1611, %v998
        %v1694 = vsel %vm1668, %v1613, %v1000
        %v1696 = vsel %vm1668, %v1615, %v1002
        %v1698 = vsel %vm1668, %v1617, %v1004
        %v1700 = vsel %vm1668, %v1619, %v1006
        %v1702 = vsel %vm1668, %v1621, %v1008
        %v1704 = vsel %vm1668, %v1623, %v1010
        %v1706 = vsel %vm1668, %v1625, %v1012
        %v1708 = vsel %vm1668, %v1627, %v1014
        %v1710 = vsel %vm1668, %v1629, %v1016
        %v1712 = vsel %vm1668, %v1631, %v1018
        %v1714 = vsel %vm1668, %v1633, %v1020
        %v1716 = vsel %vm1668, %v1635, %v1022
        %v1718 = vsel %vm1668, %v1637, %v1024
        %v1720 = vsel %vm1668, %v1639, %v1026
        %v1722 = vsel %vm1668, %v1641, %v1028
        %v1724 = vsel %vm1668, %v1643, %v1030
        %v1726 = vsel %vm1668, %v1645, %v1032
        %v1728 = vsel %vm1668, %v1647, %v1034
        %v1730 = vsel %vm1668, %v1649, %v1036
        %v1732 = vsel %vm1668, %v1651, %v1038
        %v1734 = vsel %vm1668, %v1653, %v1040
        %v1736 = vsel %vm1668, %v1655, %v1042
        %v1738 = vsel %vm1668, %v1657, %v1044
        %v1740 = vsel %vm1668, %v1659, %v1046
        %v1742 = vsel %vm1668, %v1661, %v1048
        %v1744 = vsel %vm1668, %v1663, %v1050
        %v1746 = vsel %vm1668, %v1665, %v1052
        %v1748 = vsel %vm1668, %v1667, %v1054
        %vm1749 = vcmask 195584
        %v1751 = vsel %vm1749, %v1670, %v1064
        %v1753 = vsel %vm1749, %v1672, %v1066
        %v1755 = vsel %vm1749, %v1674, %v1068
        %v1757 = vsel %vm1749, %v1676, %v1070
        %v1759 = vsel %vm1749, %v1678, %v1072
        %v1761 = vsel %vm1749, %v1680, %v1074
        %v1763 = vsel %vm1749, %v1682, %v1076
        %v1765 = vsel %vm1749, %v1684, %v1078
        %v1767 = vsel %vm1749, %v1686, %v1080
        %v1769 = vsel %vm1749, %v1688, %v1082
        %v1771 = vsel %vm1749, %v1690, %v1084
        %v1773 = vsel %vm1749, %v1692, %v1086
        %v1775 = vsel %vm1749, %v1694, %v1088
        %v1777 = vsel %vm1749, %v1696, %v1090
        %v1779 = vsel %vm1749, %v1698, %v1092
        %v1781 = vsel %vm1749, %v1700, %v1094
        %v1783 = vsel %vm1749, %v1702, %v1096
        %v1785 = vsel %vm1749, %v1704, %v1098
        %v1787 = vsel %vm1749, %v1706, %v1100
        %v1789 = vsel %vm1749, %v1708, %v1102
        %v1791 = vsel %vm1749, %v1710, %v1104
        %v1793 = vsel %vm1749, %v1712, %v1106
        %v1795 = vsel %vm1749, %v1714, %v1108
        %v1797 = vsel %vm1749, %v1716, %v1110
        %v1799 = vsel %vm1749, %v1718, %v1112
        %v1801 = vsel %vm1749, %v1720, %v1114
        %v1803 = vsel %vm1749, %v1722, %v1116
        %v1805 = vsel %vm1749, %v1724, %v1118
        %v1807 = vsel %vm1749, %v1726, %v1120
        %v1809 = vsel %vm1749, %v1728, %v1122
        %v1811 = vsel %vm1749, %v1730, %v1124
        %v1813 = vsel %vm1749, %v1732, %v1126
        %v1815 = vsel %vm1749, %v1734, %v1128
        %v1817 = vsel %vm1749, %v1736, %v1130
        %v1819 = vsel %vm1749, %v1738, %v1132
        %v1821 = vsel %vm1749, %v1740, %v1134
        %v1823 = vsel %vm1749, %v1742, %v1136
        %v1825 = vsel %vm1749, %v1744, %v1138
        %v1827 = vsel %vm1749, %v1746, %v1140
        %v1829 = vsel %vm1749, %v1748, %v1142
        %vm1830 = vcmask 261120
        %v1832 = vsel %vm1830, %v1751, %v1159
        %v1834 = vsel %vm1830, %v1753, %v1161
        %v1836 = vsel %vm1830, %v1755, %v1163
        %v1838 = vsel %vm1830, %v1757, %v1165
        %v1840 = vsel %vm1830, %v1759, %v1167
        %v1842 = vsel %vm1830, %v1761, %v1169
        %v1844 = vsel %vm1830, %v1763, %v1171
        %v1846 = vsel %vm1830, %v1765, %v1173
        %v1848 = vsel %vm1830, %v1767, %v1175
        %v1850 = vsel %vm1830, %v1769, %v1177
        %v1852 = vsel %vm1830, %v1771, %v1179
        %v1854 = vsel %vm1830, %v1773, %v1181
        %v1856 = vsel %vm1830, %v1775, %v1183
        %v1858 = vsel %vm1830, %v1777, %v1185
        %v1860 = vsel %vm1830, %v1779, %v1187
        %v1862 = vsel %vm1830, %v1781, %v1189
        %v1864 = vsel %vm1830, %v1783, %v1191
        %v1866 = vsel %vm1830, %v1785, %v1193
        %v1868 = vsel %vm1830, %v1787, %v1195
        %v1870 = vsel %vm1830, %v1789, %v1197
        %v1872 = vsel %vm1830, %v1791, %v1199
        %v1874 = vsel %vm1830, %v1793, %v1201
        %v1876 = vsel %vm1830, %v1795, %v1203
        %v1878 = vsel %vm1830, %v1797, %v1205
        %v1880 = vsel %vm1830, %v1799, %v1207
        %v1882 = vsel %vm1830, %v1801, %v1209
        %v1884 = vsel %vm1830, %v1803, %v1211
        %v1886 = vsel %vm1830, %v1805, %v1213
        %v1888 = vsel %vm1830, %v1807, %v1215
        %v1890 = vsel %vm1830, %v1809, %v1217
        %v1892 = vsel %vm1830, %v1811, %v1219
        %v1894 = vsel %vm1830, %v1813, %v1221
        %v1896 = vsel %vm1830, %v1815, %v1223
        %v1898 = vsel %vm1830, %v1817, %v1225
        %v1900 = vsel %vm1830, %v1819, %v1227
        %v1902 = vsel %vm1830, %v1821, %v1229
        %v1904 = vsel %vm1830, %v1823, %v1231
        %v1906 = vsel %vm1830, %v1825, %v1233
        %v1908 = vsel %vm1830, %v1827, %v1235
        %v1910 = vsel %vm1830, %v1829, %v1237
        %vm1911 = vcmask 326656
        %v1913 = vsel %vm1911, %v1832, %v1242
        %v1915 = vsel %vm1911, %v1834, %v1244
        %v1917 = vsel %vm1911, %v1836, %v1246
        %v1919 = vsel %vm1911, %v1838, %v1248
        %v1921 = vsel %vm1911, %v1840, %v1250
        %v1923 = vsel %vm1911, %v1842, %v1252
        %v1925 = vsel %vm1911, %v1844, %v1254
        %v1927 = vsel %vm1911, %v1846, %v1256
        %v1929 = vsel %vm1911, %v1848, %v1258
        %v1931 = vsel %vm1911, %v1850, %v1260
        %v1933 = vsel %vm1911, %v1852, %v1262
        %v1935 = vsel %vm1911, %v1854, %v1264
        %v1937 = vsel %vm1911, %v1856, %v1266
        %v1939 = vsel %vm1911, %v1858, %v1268
        %v1941 = vsel %vm1911, %v1860, %v1270
        %v1943 = vsel %vm1911, %v1862, %v1272
        %v1945 = vsel %vm1911, %v1864, %v1274
        %v1947 = vsel %vm1911, %v1866, %v1276
        %v1949 = vsel %vm1911, %v1868, %v1278
        %v1951 = vsel %vm1911, %v1870, %v1280
        %v1953 = vsel %vm1911, %v1872, %v1282
        %v1955 = vsel %vm1911, %v1874, %v1284
        %v1957 = vsel %vm1911, %v1876, %v1286
        %v1959 = vsel %vm1911, %v1878, %v1288
        %v1961 = vsel %vm1911, %v1880, %v1290
        %v1963 = vsel %vm1911, %v1882, %v1292
        %v1965 = vsel %vm1911, %v1884, %v1294
        %v1967 = vsel %vm1911, %v1886, %v1296
        %v1969 = vsel %vm1911, %v1888, %v1298
        %v1971 = vsel %vm1911, %v1890, %v1300
        %v1973 = vsel %vm1911, %v1892, %v1302
        %v1975 = vsel %vm1911, %v1894, %v1304
        %v1977 = vsel %vm1911, %v1896, %v1306
        %v1979 = vsel %vm1911, %v1898, %v1308
        %v1981 = vsel %vm1911, %v1900, %v1310
        %v1983 = vsel %vm1911, %v1902, %v1312
        %v1985 = vsel %vm1911, %v1904, %v1314
        %v1987 = vsel %vm1911, %v1906, %v1316
        %v1989 = vsel %vm1911, %v1908, %v1318
        %v1991 = vsel %vm1911, %v1910, %v1320
        %vm1992 = vcmask 392192
        %v1994 = vsel %vm1992, %v1913, %v1330
        %v1996 = vsel %vm1992, %v1915, %v1332
        %v1998 = vsel %vm1992, %v1917, %v1334
        %v2000 = vsel %vm1992, %v1919, %v1336
        %v2002 = vsel %vm1992, %v1921, %v1338
        %v2004 = vsel %vm1992, %v1923, %v1340
        %v2006 = vsel %vm1992, %v1925, %v1342
        %v2008 = vsel %vm1992, %v1927, %v1344
        %v2010 = vsel %vm1992, %v1929, %v1346
        %v2012 = vsel %vm1992, %v1931, %v1348
        %v2014 = vsel %vm1992, %v1933, %v1350
        %v2016 = vsel %vm1992, %v1935, %v1352
        %v2018 = vsel %vm1992, %v1937, %v1354
        %v2020 = vsel %vm1992, %v1939, %v1356
        %v2022 = vsel %vm1992, %v1941, %v1358
        %v2024 = vsel %vm1992, %v1943, %v1360
        %v2026 = vsel %vm1992, %v1945, %v1362
        %v2028 = vsel %vm1992, %v1947, %v1364
        %v2030 = vsel %vm1992, %v1949, %v1366
        %v2032 = vsel %vm1992, %v1951, %v1368
        %v2034 = vsel %vm1992, %v1953, %v1370
        %v2036 = vsel %vm1992, %v1955, %v1372
        %v2038 = vsel %vm1992, %v1957, %v1374
        %v2040 = vsel %vm1992, %v1959, %v1376
        %v2042 = vsel %vm1992, %v1961, %v1378
        %v2044 = vsel %vm1992, %v1963, %v1380
        %v2046 = vsel %vm1992, %v1965, %v1382
        %v2048 = vsel %vm1992, %v1967, %v1384
        %v2050 = vsel %vm1992, %v1969, %v1386
        %v2052 = vsel %vm1992, %v1971, %v1388
        %v2054 = vsel %vm1992, %v1973, %v1390
        %v2056 = vsel %vm1992, %v1975, %v1392
        %v2058 = vsel %vm1992, %v1977, %v1394
        %v2060 = vsel %vm1992, %v1979, %v1396
        %v2062 = vsel %vm1992, %v1981, %v1398
        %v2064 = vsel %vm1992, %v1983, %v1400
        %v2066 = vsel %vm1992, %v1985, %v1402
        %v2068 = vsel %vm1992, %v1987, %v1404
        %v2070 = vsel %vm1992, %v1989, %v1406
        %v2072 = vsel %vm1992, %v1991, %v1408
        %vm2073 = vcmask 457728
        %v2075 = vsel %vm2073, %v1994, %v1425
        %v2077 = vsel %vm2073, %v1996, %v1427
        %v2079 = vsel %vm2073, %v1998, %v1429
        %v2081 = vsel %vm2073, %v2000, %v1431
        %v2083 = vsel %vm2073, %v2002, %v1433
        %v2085 = vsel %vm2073, %v2004, %v1435
        %v2087 = vsel %vm2073, %v2006, %v1437
        %v2089 = vsel %vm2073, %v2008, %v1439
        %v2091 = vsel %vm2073, %v2010, %v1441
        %v2093 = vsel %vm2073, %v2012, %v1443
        %v2095 = vsel %vm2073, %v2014, %v1445
        %v2097 = vsel %vm2073, %v2016, %v1447
        %v2099 = vsel %vm2073, %v2018, %v1449
        %v2101 = vsel %vm2073, %v2020, %v1451
        %v2103 = vsel %vm2073, %v2022, %v1453
        %v2105 = vsel %vm2073, %v2024, %v1455
        %v2107 = vsel %vm2073, %v2026, %v1457
        %v2109 = vsel %vm2073, %v2028, %v1459
        %v2111 = vsel %vm2073, %v2030, %v1461
        %v2113 = vsel %vm2073, %v2032, %v1463
        %v2115 = vsel %vm2073, %v2034, %v1465
        %v2117 = vsel %vm2073, %v2036, %v1467
        %v2119 = vsel %vm2073, %v2038, %v1469
        %v2121 = vsel %vm2073, %v2040, %v1471
        %v2123 = vsel %vm2073, %v2042, %v1473
        %v2125 = vsel %vm2073, %v2044, %v1475
        %v2127 = vsel %vm2073, %v2046, %v1477
        %v2129 = vsel %vm2073, %v2048, %v1479
        %v2131 = vsel %vm2073, %v2050, %v1481
        %v2133 = vsel %vm2073, %v2052, %v1483
        %v2135 = vsel %vm2073, %v2054, %v1485
        %v2137 = vsel %vm2073, %v2056, %v1487
        %v2139 = vsel %vm2073, %v2058, %v1489
        %v2141 = vsel %vm2073, %v2060, %v1491
        %v2143 = vsel %vm2073, %v2062, %v1493
        %v2145 = vsel %vm2073, %v2064, %v1495
        %v2147 = vsel %vm2073, %v2066, %v1497
        %v2149 = vsel %vm2073, %v2068, %v1499
        %v2151 = vsel %vm2073, %v2070, %v1501
        %v2153 = vsel %vm2073, %v2072, %v1503
        %vm2154 = vcmask 523264
        %v2156 = vsel %vm2154, %v2075, %v1508
        %v2158 = vsel %vm2154, %v2077, %v1510
        %v2160 = vsel %vm2154, %v2079, %v1512
        %v2162 = vsel %vm2154, %v2081, %v1514
        %v2164 = vsel %vm2154, %v2083, %v1516
        %v2166 = vsel %vm2154, %v2085, %v1518
        %v2168 = vsel %vm2154, %v2087, %v1520
        %v2170 = vsel %vm2154, %v2089, %v1522
        %v2172 = vsel %vm2154, %v2091, %v1524
        %v2174 = vsel %vm2154, %v2093, %v1526
        %v2176 = vsel %vm2154, %v2095, %v1528
        %v2178 = vsel %vm2154, %v2097, %v1530
        %v2180 = vsel %vm2154, %v2099, %v1532
        %v2182 = vsel %vm2154, %v2101, %v1534
        %v2184 = vsel %vm2154, %v2103, %v1536
        %v2186 = vsel %vm2154, %v2105, %v1538
        %v2188 = vsel %vm2154, %v2107, %v1540
        %v2190 = vsel %vm2154, %v2109, %v1542
        %v2192 = vsel %vm2154, %v2111, %v1544
        %v2194 = vsel %vm2154, %v2113, %v1546
        %v2196 = vsel %vm2154, %v2115, %v1548
        %v2198 = vsel %vm2154, %v2117, %v1550
        %v2200 = vsel %vm2154, %v2119, %v1552
        %v2202 = vsel %vm2154, %v2121, %v1554
        %v2204 = vsel %vm2154, %v2123, %v1556
        %v2206 = vsel %vm2154, %v2125, %v1558
        %v2208 = vsel %vm2154, %v2127, %v1560
        %v2210 = vsel %vm2154, %v2129, %v1562
        %v2212 = vsel %vm2154, %v2131, %v1564
        %v2214 = vsel %vm2154, %v2133, %v1566
        %v2216 = vsel %vm2154, %v2135, %v1568
        %v2218 = vsel %vm2154, %v2137, %v1570
        %v2220 = vsel %vm2154, %v2139, %v1572
        %v2222 = vsel %vm2154, %v2141, %v1574
        %v2224 = vsel %vm2154, %v2143, %v1576
        %v2226 = vsel %vm2154, %v2145, %v1578
        %v2228 = vsel %vm2154, %v2147, %v1580
        %v2230 = vsel %vm2154, %v2149, %v1582
        %v2232 = vsel %vm2154, %v2151, %v1584
        %v2234 = vsel %vm2154, %v2153, %v1586
        %v2255 = vrot.slane %v2156, 2
        %v2256 = vrot.slane %v2156, 4
        %v2257 = vrot.slane %v2156, 6
        %v2258 = vrot.slane %v2160, 2
        %v2259 = vrot.slane %v2160, 4
        %v2260 = vrot.slane %v2160, 6
        %v2261 = vrot.slane %v2164, 2
        %v2262 = vrot.slane %v2164, 4
        %v2263 = vrot.slane %v2164, 6
        %v2264 = vrot.slane %v2168, 2
        %v2265 = vrot.slane %v2168, 4
        %v2266 = vrot.slane %v2168, 6
        %v2267 = vrot.slane %v2172, 2
        %v2268 = vrot.slane %v2172, 4
        %v2269 = vrot.slane %v2172, 6
        %v2270 = vrot.slane %v2176, 2
        %v2271 = vrot.slane %v2176, 4
        %v2272 = vrot.slane %v2176, 6
        %v2273 = vrot.slane %v2180, 2
        %v2274 = vrot.slane %v2180, 4
        %v2275 = vrot.slane %v2180, 6
        %v2276 = vrot.slane %v2184, 2
        %v2277 = vrot.slane %v2184, 4
        %v2278 = vrot.slane %v2184, 6
        %v2279 = vrot.slane %v2188, 2
        %v2280 = vrot.slane %v2188, 4
        %v2281 = vrot.slane %v2188, 6
        %v2282 = vrot.slane %v2192, 2
        %v2283 = vrot.slane %v2192, 4
        %v2284 = vrot.slane %v2192, 6
        %v2285 = vrot.slane %v2196, 2
        %v2286 = vrot.slane %v2196, 4
        %v2287 = vrot.slane %v2196, 6
        %v2288 = vrot.slane %v2200, 2
        %v2289 = vrot.slane %v2200, 4
        %v2290 = vrot.slane %v2200, 6
        %v2291 = vrot.slane %v2204, 2
        %v2292 = vrot.slane %v2204, 4
        %v2293 = vrot.slane %v2204, 6
        %v2294 = vrot.slane %v2208, 2
        %v2295 = vrot.slane %v2208, 4
        %v2296 = vrot.slane %v2208, 6
        %v2297 = vrot.slane %v2212, 2
        %v2298 = vrot.slane %v2212, 4
        %v2299 = vrot.slane %v2212, 6
        %v2300 = vrot.slane %v2216, 2
        %v2301 = vrot.slane %v2216, 4
        %v2302 = vrot.slane %v2216, 6
        %v2303 = vrot.slane %v2220, 2
        %v2304 = vrot.slane %v2220, 4
        %v2305 = vrot.slane %v2220, 6
        %v2306 = vrot.slane %v2224, 2
        %v2307 = vrot.slane %v2224, 4
        %v2308 = vrot.slane %v2224, 6
        %v2309 = vrot.slane %v2228, 2
        %v2310 = vrot.slane %v2228, 4
        %v2311 = vrot.slane %v2228, 6
        %v2312 = vrot.slane %v2232, 2
        %v2313 = vrot.slane %v2232, 4
        %v2314 = vrot.slane %v2232, 6
        %v2316 = vperm.slane %v372, 0
        %2318 = vst [vmem:[#allocation1] ss:$4 sm:$0xff] %v2156
        %s2320 = scalar_lea.vmem [#allocation1], 1
        %2321 = vst [vmem:[%s2320] ss:$4 sm:$0xff] %v2255
        %s2323 = scalar_lea.vmem [#allocation1], 2
        %2324 = vst [vmem:[%s2323] ss:$4 sm:$0xff] %v2256
        %s2326 = scalar_lea.vmem [#allocation1], 3
        %2327 = vst [vmem:[%s2326] ss:$4 sm:$0xff] %v2257
        %s2328 = scalar_lea.vmem [#allocation1], 32
        %2329 = vst [vmem:[%s2328] ss:$4 sm:$0xff] %v2158
        %s2330 = scalar_lea.vmem [#allocation1], 33
        %2331 = vst [vmem:[%s2330] ss:$4 sm:$0xff] %v2160
        %s2333 = scalar_lea.vmem [#allocation1], 34
        %2334 = vst [vmem:[%s2333] ss:$4 sm:$0xff] %v2258
        %s2336 = scalar_lea.vmem [#allocation1], 35
        %2337 = vst [vmem:[%s2336] ss:$4 sm:$0xff] %v2259
        %v2338 = vld.sshfl [vmem:[#allocation1] sm:$0xff pattern:$0x73625140]
        %v2339 = vld.sshfl [vmem:[#allocation1 + $0x20] sm:$0xff pattern:$0x73625140]
        %2341 = vst [vmem:[#allocation1] ss:$4 sm:$0xff] %v2260
        %2342 = vst [vmem:[%s2320] ss:$4 sm:$0xff] %v2162
        %2343 = vst [vmem:[%s2323] ss:$4 sm:$0xff] %v2164
        %2345 = vst [vmem:[%s2326] ss:$4 sm:$0xff] %v2261
        %2347 = vst [vmem:[%s2328] ss:$4 sm:$0xff] %v2262
        %2349 = vst [vmem:[%s2330] ss:$4 sm:$0xff] %v2263
        %2350 = vst [vmem:[%s2333] ss:$4 sm:$0xff] %v2166
        %2351 = vst [vmem:[%s2336] ss:$4 sm:$0xff] %v2168
        %v2352 = vld.sshfl [vmem:[#allocation1] sm:$0xff pattern:$0x73625140]
        %v2353 = vld.sshfl [vmem:[#allocation1 + $0x20] sm:$0xff pattern:$0x73625140]
        %2355 = vst [vmem:[#allocation1] ss:$4 sm:$0xff] %v2264
        %2357 = vst [vmem:[%s2320] ss:$4 sm:$0xff] %v2265
        %2359 = vst [vmem:[%s2323] ss:$4 sm:$0xff] %v2266
        %2360 = vst [vmem:[%s2326] ss:$4 sm:$0xff] %v2170
        %2361 = vst [vmem:[%s2328] ss:$4 sm:$0xff] %v2172
        %2363 = vst [vmem:[%s2330] ss:$4 sm:$0xff] %v2267
        %2365 = vst [vmem:[%s2333] ss:$4 sm:$0xff] %v2268
        %2367 = vst [vmem:[%s2336] ss:$4 sm:$0xff] %v2269
        %v2368 = vld.sshfl [vmem:[#allocation1] sm:$0xff pattern:$0x73625140]
        %v2369 = vld.sshfl [vmem:[#allocation1 + $0x20] sm:$0xff pattern:$0x73625140]
        %2370 = vst [vmem:[#allocation1] ss:$4 sm:$0xff] %v2174
        %2371 = vst [vmem:[%s2320] ss:$4 sm:$0xff] %v2176
        %2373 = vst [vmem:[%s2323] ss:$4 sm:$0xff] %v2270
        %2375 = vst [vmem:[%s2326] ss:$4 sm:$0xff] %v2271
        %2377 = vst [vmem:[%s2328] ss:$4 sm:$0xff] %v2272
        %2378 = vst [vmem:[%s2330] ss:$4 sm:$0xff] %v2178
        %2379 = vst [vmem:[%s2333] ss:$4 sm:$0xff] %v2180
        %2381 = vst [vmem:[%s2336] ss:$4 sm:$0xff] %v2273
        %v2382 = vld.sshfl [vmem:[#allocation1] sm:$0xff pattern:$0x73625140]
        %v2383 = vld.sshfl [vmem:[#allocation1 + $0x20] sm:$0xff pattern:$0x73625140]
        %2385 = vst [vmem:[#allocation1] ss:$4 sm:$0xff] %v2274
        %2387 = vst [vmem:[%s2320] ss:$4 sm:$0xff] %v2275
        %2388 = vst [vmem:[%s2323] ss:$4 sm:$0xff] %v2182
        %2389 = vst [vmem:[%s2326] ss:$4 sm:$0xff] %v2184
        %2391 = vst [vmem:[%s2328] ss:$4 sm:$0xff] %v2276
        %2393 = vst [vmem:[%s2330] ss:$4 sm:$0xff] %v2277
        %2395 = vst [vmem:[%s2333] ss:$4 sm:$0xff] %v2278
        %2396 = vst [vmem:[%s2336] ss:$4 sm:$0xff] %v2186
        %v2397 = vld.sshfl [vmem:[#allocation1] sm:$0xff pattern:$0x73625140]
        %v2398 = vld.sshfl [vmem:[#allocation1 + $0x20] sm:$0xff pattern:$0x73625140]
        %2399 = vst [vmem:[#allocation1] ss:$4 sm:$0xff] %v2188
        %2401 = vst [vmem:[%s2320] ss:$4 sm:$0xff] %v2279
        %2403 = vst [vmem:[%s2323] ss:$4 sm:$0xff] %v2280
        %2405 = vst [vmem:[%s2326] ss:$4 sm:$0xff] %v2281
        %2406 = vst [vmem:[%s2328] ss:$4 sm:$0xff] %v2190
        %2407 = vst [vmem:[%s2330] ss:$4 sm:$0xff] %v2192
        %2409 = vst [vmem:[%s2333] ss:$4 sm:$0xff] %v2282
        %2411 = vst [vmem:[%s2336] ss:$4 sm:$0xff] %v2283
        %v2412 = vld.sshfl [vmem:[#allocation1] sm:$0xff pattern:$0x73625140]
        %v2413 = vld.sshfl [vmem:[#allocation1 + $0x20] sm:$0xff pattern:$0x73625140]
        %2415 = vst [vmem:[#allocation1] ss:$4 sm:$0xff] %v2284
        %2416 = vst [vmem:[%s2320] ss:$4 sm:$0xff] %v2194
        %2417 = vst [vmem:[%s2323] ss:$4 sm:$0xff] %v2196
        %2419 = vst [vmem:[%s2326] ss:$4 sm:$0xff] %v2285
        %2421 = vst [vmem:[%s2328] ss:$4 sm:$0xff] %v2286
        %2423 = vst [vmem:[%s2330] ss:$4 sm:$0xff] %v2287
        %2424 = vst [vmem:[%s2333] ss:$4 sm:$0xff] %v2198
        %2425 = vst [vmem:[%s2336] ss:$4 sm:$0xff] %v2200
        %v2426 = vld.sshfl [vmem:[#allocation1] sm:$0xff pattern:$0x73625140]
        %v2427 = vld.sshfl [vmem:[#allocation1 + $0x20] sm:$0xff pattern:$0x73625140]
        %2429 = vst [vmem:[#allocation1] ss:$4 sm:$0xff] %v2288
        %2431 = vst [vmem:[%s2320] ss:$4 sm:$0xff] %v2289
        %2433 = vst [vmem:[%s2323] ss:$4 sm:$0xff] %v2290
        %2434 = vst [vmem:[%s2326] ss:$4 sm:$0xff] %v2202
        %2435 = vst [vmem:[%s2328] ss:$4 sm:$0xff] %v2204
        %2437 = vst [vmem:[%s2330] ss:$4 sm:$0xff] %v2291
        %2439 = vst [vmem:[%s2333] ss:$4 sm:$0xff] %v2292
        %2441 = vst [vmem:[%s2336] ss:$4 sm:$0xff] %v2293
        %v2442 = vld.sshfl [vmem:[#allocation1] sm:$0xff pattern:$0x73625140]
        %v2443 = vld.sshfl [vmem:[#allocation1 + $0x20] sm:$0xff pattern:$0x73625140]
        %2444 = vst [vmem:[#allocation1] ss:$4 sm:$0xff] %v2206
        %2445 = vst [vmem:[%s2320] ss:$4 sm:$0xff] %v2208
        %2447 = vst [vmem:[%s2323] ss:$4 sm:$0xff] %v2294
        %2449 = vst [vmem:[%s2326] ss:$4 sm:$0xff] %v2295
        %2451 = vst [vmem:[%s2328] ss:$4 sm:$0xff] %v2296
        %2452 = vst [vmem:[%s2330] ss:$4 sm:$0xff] %v2210
        %2453 = vst [vmem:[%s2333] ss:$4 sm:$0xff] %v2212
        %2455 = vst [vmem:[%s2336] ss:$4 sm:$0xff] %v2297
        %v2456 = vld.sshfl [vmem:[#allocation1] sm:$0xff pattern:$0x73625140]
        %v2457 = vld.sshfl [vmem:[#allocation1 + $0x20] sm:$0xff pattern:$0x73625140]
        %2459 = vst [vmem:[#allocation1] ss:$4 sm:$0xff] %v2298
        %2461 = vst [vmem:[%s2320] ss:$4 sm:$0xff] %v2299
        %2462 = vst [vmem:[%s2323] ss:$4 sm:$0xff] %v2214
        %2463 = vst [vmem:[%s2326] ss:$4 sm:$0xff] %v2216
        %2465 = vst [vmem:[%s2328] ss:$4 sm:$0xff] %v2300
        %2467 = vst [vmem:[%s2330] ss:$4 sm:$0xff] %v2301
        %2469 = vst [vmem:[%s2333] ss:$4 sm:$0xff] %v2302
        %2470 = vst [vmem:[%s2336] ss:$4 sm:$0xff] %v2218
        %v2471 = vld.sshfl [vmem:[#allocation1] sm:$0xff pattern:$0x73625140]
        %v2472 = vld.sshfl [vmem:[#allocation1 + $0x20] sm:$0xff pattern:$0x73625140]
        %2473 = vst [vmem:[#allocation1] ss:$4 sm:$0xff] %v2220
        %2475 = vst [vmem:[%s2320] ss:$4 sm:$0xff] %v2303
        %2477 = vst [vmem:[%s2323] ss:$4 sm:$0xff] %v2304
        %2479 = vst [vmem:[%s2326] ss:$4 sm:$0xff] %v2305
        %2480 = vst [vmem:[%s2328] ss:$4 sm:$0xff] %v2222
        %2481 = vst [vmem:[%s2330] ss:$4 sm:$0xff] %v2224
        %2483 = vst [vmem:[%s2333] ss:$4 sm:$0xff] %v2306
        %2485 = vst [vmem:[%s2336] ss:$4 sm:$0xff] %v2307
        %v2486 = vld.sshfl [vmem:[#allocation1] sm:$0xff pattern:$0x73625140]
        %v2487 = vld.sshfl [vmem:[#allocation1 + $0x20] sm:$0xff pattern:$0x73625140]
        %2489 = vst [vmem:[#allocation1] ss:$4 sm:$0xff] %v2308
        %2490 = vst [vmem:[%s2320] ss:$4 sm:$0xff] %v2226
        %2491 = vst [vmem:[%s2323] ss:$4 sm:$0xff] %v2228
        %2493 = vst [vmem:[%s2326] ss:$4 sm:$0xff] %v2309
        %2495 = vst [vmem:[%s2328] ss:$4 sm:$0xff] %v2310
        %2497 = vst [vmem:[%s2330] ss:$4 sm:$0xff] %v2311
        %2498 = vst [vmem:[%s2333] ss:$4 sm:$0xff] %v2230
        %2499 = vst [vmem:[%s2336] ss:$4 sm:$0xff] %v2232
        %v2500 = vld.sshfl [vmem:[#allocation1] sm:$0xff pattern:$0x73625140]
        %v2501 = vld.sshfl [vmem:[#allocation1 + $0x20] sm:$0xff pattern:$0x73625140]
        %2503 = vst [vmem:[#allocation1] ss:$4 sm:$0xff] %v2312
        %2505 = vst [vmem:[%s2320] ss:$4 sm:$0xff] %v2313
        %2507 = vst [vmem:[%s2323] ss:$4 sm:$0xff] %v2314
        %2508 = vst [vmem:[%s2326] ss:$4 sm:$0xff] %v2234
        %v2509 = vld.sshfl [vmem:[#allocation1] sm:$0xff pattern:$0x73625140]
        %v2519 = vunpack.c.l.b16 %v363
        %v2520 = vunpack.c.l.b16 %v364
        %v2521 = vunpack.c.l.b16 %v365
        %v2522 = vunpack.c.l.b16 %v366
        %v2523 = vunpack.c.l.b16 %v367
        %v2524 = vunpack.c.l.b16 %v368
        %v2525 = vunpack.c.l.b16 %v369
        %v2526 = vunpack.c.l.b16 %v370
        %v2527 = vunpack.c.l.b16 %v371
        %v2528 = vpack.c.b16 %v2520, %v2519
        %v2529 = vpack.c.b16 %v2522, %v2521
        %v2530 = vpack.c.b16 %v2524, %v2523
        %v2531 = vpack.c.b16 %v2526, %v2525
        %v2532 = vpack.c.b16 %v2527, %v2527
        %vm2537 = vcmask 588800
        %v2538 = vsel %vm2537, %v2338, 0
        %v2540 = vsel %vm2537, %v2339, 0
        %v2542 = vsel %vm2537, %v2352, 0
        %v2544 = vsel %vm2537, %v2353, 0
        %v2546 = vsel %vm2537, %v2368, 0
        %v2548 = vsel %vm2537, %v2369, 0
        %v2550 = vsel %vm2537, %v2382, 0
        %v2552 = vsel %vm2537, %v2383, 0
        %v2554 = vsel %vm2537, %v2397, 0
        %v2556 = vsel %vm2537, %v2398, 0
        %v2558 = vsel %vm2537, %v2412, 0
        %v2560 = vsel %vm2537, %v2413, 0
        %v2562 = vsel %vm2537, %v2426, 0
        %v2564 = vsel %vm2537, %v2427, 0
        %v2566 = vsel %vm2537, %v2442, 0
        %v2568 = vsel %vm2537, %v2443, 0
        %v2570 = vsel %vm2537, %v2456, 0
        %v2572 = vsel %vm2537, %v2457, 0
        %v2574 = vsel %vm2537, %v2471, 0
        %v2576 = vsel %vm2537, %v2472, 0
        %v2578 = vsel %vm2537, %v2486, 0
        %v2580 = vsel %vm2537, %v2487, 0
        %v2582 = vsel %vm2537, %v2500, 0
        %v2584 = vsel %vm2537, %v2501, 0
        %v2586 = vsel %vm2537, %v2509, 0
        %vm2588 = vcmask 1043456
        %v2590 = vsel %vm2588, %v2532, 0
        %2592 = vmatpush.bf16.msra.mxu0 0
        %2593 = vmatpush.bf16.msra.mxu0 0
        %2594 = vmatpush.bf16.msra.mxu0 0
        %2595 = vmatpush.bf16.msra.mxu0 %v2590
        %2596 = vmatpush.bf16.msra.mxu0 %v2531
        %2597 = vmatpush.bf16.msra.mxu0 %v2530
        %2598 = vmatpush.bf16.msra.mxu0 %v2529
        %2599 = vmatpush.bf16.msra.mxu0 %v2528
        %2600 = vmatmul.bf16.gmra.mxu0 %v2538
        %v2601 = vpop.f32.mrf.mxu0
        %v2602 = vadd.f32 %v2316, %v2601
        %v2603 = vpop.f32.mrf.mxu0
        %v2604 = vadd.f32 %v2316, %v2603
        %2605 = vmatmul.bf16.gmra.mxu0 %v2540
        %v2606 = vpop.f32.mrf.mxu0
        %v2607 = vadd.f32 %v2316, %v2606
        %v2608 = vpop.f32.mrf.mxu0
        %v2609 = vadd.f32 %v2316, %v2608
        %2610 = vmatmul.bf16.gmra.mxu0 %v2542
        %v2611 = vpop.f32.mrf.mxu0
        %v2612 = vadd.f32 %v2316, %v2611
        %v2613 = vpop.f32.mrf.mxu0
        %v2614 = vadd.f32 %v2316, %v2613
        %2615 = vmatmul.bf16.gmra.mxu0 %v2544
        %v2616 = vpop.f32.mrf.mxu0
        %v2617 = vadd.f32 %v2316, %v2616
        %v2618 = vpop.f32.mrf.mxu0
        %v2619 = vadd.f32 %v2316, %v2618
        %2620 = vmatmul.bf16.gmra.mxu0 %v2546
        %v2621 = vpop.f32.mrf.mxu0
        %v2622 = vadd.f32 %v2316, %v2621
        %v2623 = vpop.f32.mrf.mxu0
        %v2624 = vadd.f32 %v2316, %v2623
        %2625 = vmatmul.bf16.gmra.mxu0 %v2548
        %v2626 = vpop.f32.mrf.mxu0
        %v2627 = vadd.f32 %v2316, %v2626
        %v2628 = vpop.f32.mrf.mxu0
        %v2629 = vadd.f32 %v2316, %v2628
        %2630 = vmatmul.bf16.gmra.mxu0 %v2550
        %v2631 = vpop.f32.mrf.mxu0
        %v2632 = vadd.f32 %v2316, %v2631
        %v2633 = vpop.f32.mrf.mxu0
        %v2634 = vadd.f32 %v2316, %v2633
        %2635 = vmatmul.bf16.gmra.mxu0 %v2552
        %v2636 = vpop.f32.mrf.mxu0
        %v2637 = vadd.f32 %v2316, %v2636
        %v2638 = vpop.f32.mrf.mxu0
        %v2639 = vadd.f32 %v2316, %v2638
        %2640 = vmatmul.bf16.gmra.mxu0 %v2554
        %v2641 = vpop.f32.mrf.mxu0
        %v2642 = vadd.f32 %v2316, %v2641
        %v2643 = vpop.f32.mrf.mxu0
        %v2644 = vadd.f32 %v2316, %v2643
        %2645 = vmatmul.bf16.gmra.mxu0 %v2556
        %v2646 = vpop.f32.mrf.mxu0
        %v2647 = vadd.f32 %v2316, %v2646
        %v2648 = vpop.f32.mrf.mxu0
        %v2649 = vadd.f32 %v2316, %v2648
        %2650 = vmatmul.bf16.gmra.mxu0 %v2558
        %v2651 = vpop.f32.mrf.mxu0
        %v2652 = vadd.f32 %v2316, %v2651
        %v2653 = vpop.f32.mrf.mxu0
        %v2654 = vadd.f32 %v2316, %v2653
        %2655 = vmatmul.bf16.gmra.mxu0 %v2560
        %v2656 = vpop.f32.mrf.mxu0
        %v2657 = vadd.f32 %v2316, %v2656
        %v2658 = vpop.f32.mrf.mxu0
        %v2659 = vadd.f32 %v2316, %v2658
        %2660 = vmatmul.bf16.gmra.mxu0 %v2562
        %v2661 = vpop.f32.mrf.mxu0
        %v2662 = vadd.f32 %v2316, %v2661
        %v2663 = vpop.f32.mrf.mxu0
        %v2664 = vadd.f32 %v2316, %v2663
        %2665 = vmatmul.bf16.gmra.mxu0 %v2564
        %v2666 = vpop.f32.mrf.mxu0
        %v2667 = vadd.f32 %v2316, %v2666
        %v2668 = vpop.f32.mrf.mxu0
        %v2669 = vadd.f32 %v2316, %v2668
        %2670 = vmatmul.bf16.gmra.mxu0 %v2566
        %v2671 = vpop.f32.mrf.mxu0
        %v2672 = vadd.f32 %v2316, %v2671
        %v2673 = vpop.f32.mrf.mxu0
        %v2674 = vadd.f32 %v2316, %v2673
        %2675 = vmatmul.bf16.gmra.mxu0 %v2568
        %v2676 = vpop.f32.mrf.mxu0
        %v2677 = vadd.f32 %v2316, %v2676
        %v2678 = vpop.f32.mrf.mxu0
        %v2679 = vadd.f32 %v2316, %v2678
        %2680 = vmatmul.bf16.gmra.mxu0 %v2570
        %v2681 = vpop.f32.mrf.mxu0
        %v2682 = vadd.f32 %v2316, %v2681
        %v2683 = vpop.f32.mrf.mxu0
        %v2684 = vadd.f32 %v2316, %v2683
        %2685 = vmatmul.bf16.gmra.mxu0 %v2572
        %v2686 = vpop.f32.mrf.mxu0
        %v2687 = vadd.f32 %v2316, %v2686
        %v2688 = vpop.f32.mrf.mxu0
        %v2689 = vadd.f32 %v2316, %v2688
        %2690 = vmatmul.bf16.gmra.mxu0 %v2574
        %v2691 = vpop.f32.mrf.mxu0
        %v2692 = vadd.f32 %v2316, %v2691
        %v2693 = vpop.f32.mrf.mxu0
        %v2694 = vadd.f32 %v2316, %v2693
        %2695 = vmatmul.bf16.gmra.mxu0 %v2576
        %v2696 = vpop.f32.mrf.mxu0
        %v2697 = vadd.f32 %v2316, %v2696
        %v2698 = vpop.f32.mrf.mxu0
        %v2699 = vadd.f32 %v2316, %v2698
        %2700 = vmatmul.bf16.gmra.mxu0 %v2578
        %v2701 = vpop.f32.mrf.mxu0
        %v2702 = vadd.f32 %v2316, %v2701
        %v2703 = vpop.f32.mrf.mxu0
        %v2704 = vadd.f32 %v2316, %v2703
        %2705 = vmatmul.bf16.gmra.mxu0 %v2580
        %v2706 = vpop.f32.mrf.mxu0
        %v2707 = vadd.f32 %v2316, %v2706
        %v2708 = vpop.f32.mrf.mxu0
        %v2709 = vadd.f32 %v2316, %v2708
        %2710 = vmatmul.bf16.gmra.mxu0 %v2582
        %v2711 = vpop.f32.mrf.mxu0
        %v2712 = vadd.f32 %v2316, %v2711
        %v2713 = vpop.f32.mrf.mxu0
        %v2714 = vadd.f32 %v2316, %v2713
        %2715 = vmatmul.bf16.gmra.mxu0 %v2584
        %v2716 = vpop.f32.mrf.mxu0
        %v2717 = vadd.f32 %v2316, %v2716
        %v2718 = vpop.f32.mrf.mxu0
        %v2719 = vadd.f32 %v2316, %v2718
        %2720 = vmatmul.bf16.gmra.mxu0 %v2586
        %v2721 = vpop.f32.mrf.mxu0
        %v2722 = vadd.f32 %v2316, %v2721
        %v2723 = vpop.f32.mrf.mxu0
        %v2724 = vadd.f32 %v2316, %v2723
        %2725 = vdwg.mxu0
        %v2776 = vrot.slane %v2602, 4
        %v2777 = vrot.slane %v2604, 4
        %v2778 = vrot.slane %v2607, 4
        %v2779 = vrot.slane %v2609, 4
        %v2780 = vrot.slane %v2612, 4
        %v2781 = vrot.slane %v2614, 4
        %v2782 = vrot.slane %v2617, 4
        %v2783 = vrot.slane %v2619, 4
        %v2784 = vrot.slane %v2622, 4
        %v2785 = vrot.slane %v2624, 4
        %v2786 = vrot.slane %v2627, 4
        %v2787 = vrot.slane %v2629, 4
        %v2788 = vrot.slane %v2632, 4
        %v2789 = vrot.slane %v2634, 4
        %v2790 = vrot.slane %v2637, 4
        %v2791 = vrot.slane %v2639, 4
        %v2792 = vrot.slane %v2642, 4
        %v2793 = vrot.slane %v2644, 4
        %v2794 = vrot.slane %v2647, 4
        %v2795 = vrot.slane %v2649, 4
        %v2796 = vrot.slane %v2652, 4
        %v2797 = vrot.slane %v2654, 4
        %v2798 = vrot.slane %v2657, 4
        %v2799 = vrot.slane %v2659, 4
        %v2800 = vrot.slane %v2662, 4
        %v2801 = vrot.slane %v2664, 4
        %v2802 = vrot.slane %v2667, 4
        %v2803 = vrot.slane %v2669, 4
        %v2804 = vrot.slane %v2672, 4
        %v2805 = vrot.slane %v2674, 4
        %v2806 = vrot.slane %v2677, 4
        %v2807 = vrot.slane %v2679, 4
        %v2808 = vrot.slane %v2682, 4
        %v2809 = vrot.slane %v2684, 4
        %v2810 = vrot.slane %v2687, 4
        %v2811 = vrot.slane %v2689, 4
        %v2812 = vrot.slane %v2692, 4
        %v2813 = vrot.slane %v2694, 4
        %v2814 = vrot.slane %v2697, 4
        %v2815 = vrot.slane %v2699, 4
        %v2816 = vrot.slane %v2702, 4
        %v2817 = vrot.slane %v2704, 4
        %v2818 = vrot.slane %v2707, 4
        %v2819 = vrot.slane %v2709, 4
        %v2820 = vrot.slane %v2712, 4
        %v2821 = vrot.slane %v2714, 4
        %v2822 = vrot.slane %v2717, 4
        %v2823 = vrot.slane %v2719, 4
        %v2824 = vrot.slane %v2722, 4
        %v2825 = vrot.slane %v2724, 4
        %vm2876 = vcmp.ge.f32.partialorder %v2602, 0.0
        %vm2877 = vcmp.ge.f32.partialorder %v2776, 0.0
        %vm2878 = vcmp.ge.f32.partialorder %v2604, 0.0
        %vm2879 = vcmp.ge.f32.partialorder %v2777, 0.0
        %vm2880 = vcmp.ge.f32.partialorder %v2607, 0.0
        %vm2881 = vcmp.ge.f32.partialorder %v2778, 0.0
        %vm2882 = vcmp.ge.f32.partialorder %v2609, 0.0
        %vm2883 = vcmp.ge.f32.partialorder %v2779, 0.0
        %vm2884 = vcmp.ge.f32.partialorder %v2612, 0.0
        %vm2885 = vcmp.ge.f32.partialorder %v2780, 0.0
        %vm2886 = vcmp.ge.f32.partialorder %v2614, 0.0
        %vm2887 = vcmp.ge.f32.partialorder %v2781, 0.0
        %vm2888 = vcmp.ge.f32.partialorder %v2617, 0.0
        %vm2889 = vcmp.ge.f32.partialorder %v2782, 0.0
        %vm2890 = vcmp.ge.f32.partialorder %v2619, 0.0
        %vm2891 = vcmp.ge.f32.partialorder %v2783, 0.0
        %vm2892 = vcmp.ge.f32.partialorder %v2622, 0.0
        %vm2893 = vcmp.ge.f32.partialorder %v2784, 0.0
        %vm2894 = vcmp.ge.f32.partialorder %v2624, 0.0
        %vm2895 = vcmp.ge.f32.partialorder %v2785, 0.0
        %vm2896 = vcmp.ge.f32.partialorder %v2627, 0.0
        %vm2897 = vcmp.ge.f32.partialorder %v2786, 0.0
        %vm2898 = vcmp.ge.f32.partialorder %v2629, 0.0
        %vm2899 = vcmp.ge.f32.partialorder %v2787, 0.0
        %vm2900 = vcmp.ge.f32.partialorder %v2632, 0.0
        %vm2901 = vcmp.ge.f32.partialorder %v2788, 0.0
        %vm2902 = vcmp.ge.f32.partialorder %v2634, 0.0
        %vm2903 = vcmp.ge.f32.partialorder %v2789, 0.0
        %vm2904 = vcmp.ge.f32.partialorder %v2637, 0.0
        %vm2905 = vcmp.ge.f32.partialorder %v2790, 0.0
        %vm2906 = vcmp.ge.f32.partialorder %v2639, 0.0
        %vm2907 = vcmp.ge.f32.partialorder %v2791, 0.0
        %vm2908 = vcmp.ge.f32.partialorder %v2642, 0.0
        %vm2909 = vcmp.ge.f32.partialorder %v2792, 0.0
        %vm2910 = vcmp.ge.f32.partialorder %v2644, 0.0
        %vm2911 = vcmp.ge.f32.partialorder %v2793, 0.0
        %vm2912 = vcmp.ge.f32.partialorder %v2647, 0.0
        %vm2913 = vcmp.ge.f32.partialorder %v2794, 0.0
        %vm2914 = vcmp.ge.f32.partialorder %v2649, 0.0
        %vm2915 = vcmp.ge.f32.partialorder %v2795, 0.0
        %vm2916 = vcmp.ge.f32.partialorder %v2652, 0.0
        %vm2917 = vcmp.ge.f32.partialorder %v2796, 0.0
        %vm2918 = vcmp.ge.f32.partialorder %v2654, 0.0
        %vm2919 = vcmp.ge.f32.partialorder %v2797, 0.0
        %vm2920 = vcmp.ge.f32.partialorder %v2657, 0.0
        %vm2921 = vcmp.ge.f32.partialorder %v2798, 0.0
        %vm2922 = vcmp.ge.f32.partialorder %v2659, 0.0
        %vm2923 = vcmp.ge.f32.partialorder %v2799, 0.0
        %vm2924 = vcmp.ge.f32.partialorder %v2662, 0.0
        %vm2925 = vcmp.ge.f32.partialorder %v2800, 0.0
        %vm2926 = vcmp.ge.f32.partialorder %v2664, 0.0
        %vm2927 = vcmp.ge.f32.partialorder %v2801, 0.0
        %vm2928 = vcmp.ge.f32.partialorder %v2667, 0.0
        %vm2929 = vcmp.ge.f32.partialorder %v2802, 0.0
        %vm2930 = vcmp.ge.f32.partialorder %v2669, 0.0
        %vm2931 = vcmp.ge.f32.partialorder %v2803, 0.0
        %vm2932 = vcmp.ge.f32.partialorder %v2672, 0.0
        %vm2933 = vcmp.ge.f32.partialorder %v2804, 0.0
        %vm2934 = vcmp.ge.f32.partialorder %v2674, 0.0
        %vm2935 = vcmp.ge.f32.partialorder %v2805, 0.0
        %vm2936 = vcmp.ge.f32.partialorder %v2677, 0.0
        %vm2937 = vcmp.ge.f32.partialorder %v2806, 0.0
        %vm2938 = vcmp.ge.f32.partialorder %v2679, 0.0
        %vm2939 = vcmp.ge.f32.partialorder %v2807, 0.0
        %vm2940 = vcmp.ge.f32.partialorder %v2682, 0.0
        %vm2941 = vcmp.ge.f32.partialorder %v2808, 0.0
        %vm2942 = vcmp.ge.f32.partialorder %v2684, 0.0
        %vm2943 = vcmp.ge.f32.partialorder %v2809, 0.0
        %vm2944 = vcmp.ge.f32.partialorder %v2687, 0.0
        %vm2945 = vcmp.ge.f32.partialorder %v2810, 0.0
        %vm2946 = vcmp.ge.f32.partialorder %v2689, 0.0
        %vm2947 = vcmp.ge.f32.partialorder %v2811, 0.0
        %vm2948 = vcmp.ge.f32.partialorder %v2692, 0.0
        %vm2949 = vcmp.ge.f32.partialorder %v2812, 0.0
        %vm2950 = vcmp.ge.f32.partialorder %v2694, 0.0
        %vm2951 = vcmp.ge.f32.partialorder %v2813, 0.0
        %vm2952 = vcmp.ge.f32.partialorder %v2697, 0.0
        %vm2953 = vcmp.ge.f32.partialorder %v2814, 0.0
        %vm2954 = vcmp.ge.f32.partialorder %v2699, 0.0
        %vm2955 = vcmp.ge.f32.partialorder %v2815, 0.0
        %vm2956 = vcmp.ge.f32.partialorder %v2702, 0.0
        %vm2957 = vcmp.ge.f32.partialorder %v2816, 0.0
        %vm2958 = vcmp.ge.f32.partialorder %v2704, 0.0
        %vm2959 = vcmp.ge.f32.partialorder %v2817, 0.0
        %vm2960 = vcmp.ge.f32.partialorder %v2707, 0.0
        %vm2961 = vcmp.ge.f32.partialorder %v2818, 0.0
        %vm2962 = vcmp.ge.f32.partialorder %v2709, 0.0
        %vm2963 = vcmp.ge.f32.partialorder %v2819, 0.0
        %vm2964 = vcmp.ge.f32.partialorder %v2712, 0.0
        %vm2965 = vcmp.ge.f32.partialorder %v2820, 0.0
        %vm2966 = vcmp.ge.f32.partialorder %v2714, 0.0
        %vm2967 = vcmp.ge.f32.partialorder %v2821, 0.0
        %vm2968 = vcmp.ge.f32.partialorder %v2717, 0.0
        %vm2969 = vcmp.ge.f32.partialorder %v2822, 0.0
        %vm2970 = vcmp.ge.f32.partialorder %v2719, 0.0
        %vm2971 = vcmp.ge.f32.partialorder %v2823, 0.0
        %vm2972 = vcmp.ge.f32.partialorder %v2722, 0.0
        %vm2973 = vcmp.ge.f32.partialorder %v2824, 0.0
        %vm2974 = vcmp.ge.f32.partialorder %v2724, 0.0
        %vm2975 = vcmp.ge.f32.partialorder %v2825, 0.0
        %v2976 = vmul.f32 %v2602, 0.1
        %v2977 = vmul.f32 %v2776, 0.1
        %v2978 = vmul.f32 %v2604, 0.1
        %v2979 = vmul.f32 %v2777, 0.1
        %v2980 = vmul.f32 %v2607, 0.1
        %v2981 = vmul.f32 %v2778, 0.1
        %v2982 = vmul.f32 %v2609, 0.1
        %v2983 = vmul.f32 %v2779, 0.1
        %v2984 = vmul.f32 %v2612, 0.1
        %v2985 = vmul.f32 %v2780, 0.1
        %v2986 = vmul.f32 %v2614, 0.1
        %v2987 = vmul.f32 %v2781, 0.1
        %v2988 = vmul.f32 %v2617, 0.1
        %v2989 = vmul.f32 %v2782, 0.1
        %v2990 = vmul.f32 %v2619, 0.1
        %v2991 = vmul.f32 %v2783, 0.1
        %v2992 = vmul.f32 %v2622, 0.1
        %v2993 = vmul.f32 %v2784, 0.1
        %v2994 = vmul.f32 %v2624, 0.1
        %v2995 = vmul.f32 %v2785, 0.1
        %v2996 = vmul.f32 %v2627, 0.1
        %v2997 = vmul.f32 %v2786, 0.1
        %v2998 = vmul.f32 %v2629, 0.1
        %v2999 = vmul.f32 %v2787, 0.1
        %v3000 = vmul.f32 %v2632, 0.1
        %v3001 = vmul.f32 %v2788, 0.1
        %v3002 = vmul.f32 %v2634, 0.1
        %v3003 = vmul.f32 %v2789, 0.1
        %v3004 = vmul.f32 %v2637, 0.1
        %v3005 = vmul.f32 %v2790, 0.1
        %v3006 = vmul.f32 %v2639, 0.1
        %v3007 = vmul.f32 %v2791, 0.1
        %v3008 = vmul.f32 %v2642, 0.1
        %v3009 = vmul.f32 %v2792, 0.1
        %v3010 = vmul.f32 %v2644, 0.1
        %v3011 = vmul.f32 %v2793, 0.1
        %v3012 = vmul.f32 %v2647, 0.1
        %v3013 = vmul.f32 %v2794, 0.1
        %v3014 = vmul.f32 %v2649, 0.1
        %v3015 = vmul.f32 %v2795, 0.1
        %v3016 = vmul.f32 %v2652, 0.1
        %v3017 = vmul.f32 %v2796, 0.1
        %v3018 = vmul.f32 %v2654, 0.1
        %v3019 = vmul.f32 %v2797, 0.1
        %v3020 = vmul.f32 %v2657, 0.1
        %v3021 = vmul.f32 %v2798, 0.1
        %v3022 = vmul.f32 %v2659, 0.1
        %v3023 = vmul.f32 %v2799, 0.1
        %v3024 = vmul.f32 %v2662, 0.1
        %v3025 = vmul.f32 %v2800, 0.1
        %v3026 = vmul.f32 %v2664, 0.1
        %v3027 = vmul.f32 %v2801, 0.1
        %v3028 = vmul.f32 %v2667, 0.1
        %v3029 = vmul.f32 %v2802, 0.1
        %v3030 = vmul.f32 %v2669, 0.1
        %v3031 = vmul.f32 %v2803, 0.1
        %v3032 = vmul.f32 %v2672, 0.1
        %v3033 = vmul.f32 %v2804, 0.1
        %v3034 = vmul.f32 %v2674, 0.1
        %v3035 = vmul.f32 %v2805, 0.1
        %v3036 = vmul.f32 %v2677, 0.1
        %v3037 = vmul.f32 %v2806, 0.1
        %v3038 = vmul.f32 %v2679, 0.1
        %v3039 = vmul.f32 %v2807, 0.1
        %v3040 = vmul.f32 %v2682, 0.1
        %v3041 = vmul.f32 %v2808, 0.1
        %v3042 = vmul.f32 %v2684, 0.1
        %v3043 = vmul.f32 %v2809, 0.1
        %v3044 = vmul.f32 %v2687, 0.1
        %v3045 = vmul.f32 %v2810, 0.1
        %v3046 = vmul.f32 %v2689, 0.1
        %v3047 = vmul.f32 %v2811, 0.1
        %v3048 = vmul.f32 %v2692, 0.1
        %v3049 = vmul.f32 %v2812, 0.1
        %v3050 = vmul.f32 %v2694, 0.1
        %v3051 = vmul.f32 %v2813, 0.1
        %v3052 = vmul.f32 %v2697, 0.1
        %v3053 = vmul.f32 %v2814, 0.1
        %v3054 = vmul.f32 %v2699, 0.1
        %v3055 = vmul.f32 %v2815, 0.1
        %v3056 = vmul.f32 %v2702, 0.1
        %v3057 = vmul.f32 %v2816, 0.1
        %v3058 = vmul.f32 %v2704, 0.1
        %v3059 = vmul.f32 %v2817, 0.1
        %v3060 = vmul.f32 %v2707, 0.1
        %v3061 = vmul.f32 %v2818, 0.1
        %v3062 = vmul.f32 %v2709, 0.1
        %v3063 = vmul.f32 %v2819, 0.1
        %v3064 = vmul.f32 %v2712, 0.1
        %v3065 = vmul.f32 %v2820, 0.1
        %v3066 = vmul.f32 %v2714, 0.1
        %v3067 = vmul.f32 %v2821, 0.1
        %v3068 = vmul.f32 %v2717, 0.1
        %v3069 = vmul.f32 %v2822, 0.1
        %v3070 = vmul.f32 %v2719, 0.1
        %v3071 = vmul.f32 %v2823, 0.1
        %v3072 = vmul.f32 %v2722, 0.1
        %v3073 = vmul.f32 %v2824, 0.1
        %v3074 = vmul.f32 %v2724, 0.1
        %v3075 = vmul.f32 %v2825, 0.1
        %v3076 = vsel %vm2876, %v2602, %v2976
        %v3077 = vsel %vm2877, %v2776, %v2977
        %v3078 = vsel %vm2878, %v2604, %v2978
        %v3079 = vsel %vm2879, %v2777, %v2979
        %v3080 = vsel %vm2880, %v2607, %v2980
        %v3081 = vsel %vm2881, %v2778, %v2981
        %v3082 = vsel %vm2882, %v2609, %v2982
        %v3083 = vsel %vm2883, %v2779, %v2983
        %v3084 = vsel %vm2884, %v2612, %v2984
        %v3085 = vsel %vm2885, %v2780, %v2985
        %v3086 = vsel %vm2886, %v2614, %v2986
        %v3087 = vsel %vm2887, %v2781, %v2987
        %v3088 = vsel %vm2888, %v2617, %v2988
        %v3089 = vsel %vm2889, %v2782, %v2989
        %v3090 = vsel %vm2890, %v2619, %v2990
        %v3091 = vsel %vm2891, %v2783, %v2991
        %v3092 = vsel %vm2892, %v2622, %v2992
        %v3093 = vsel %vm2893, %v2784, %v2993
        %v3094 = vsel %vm2894, %v2624, %v2994
        %v3095 = vsel %vm2895, %v2785, %v2995
        %v3096 = vsel %vm2896, %v2627, %v2996
        %v3097 = vsel %vm2897, %v2786, %v2997
        %v3098 = vsel %vm2898, %v2629, %v2998
        %v3099 = vsel %vm2899, %v2787, %v2999
        %v3100 = vsel %vm2900, %v2632, %v3000
        %v3101 = vsel %vm2901, %v2788, %v3001
        %v3102 = vsel %vm2902, %v2634, %v3002
        %v3103 = vsel %vm2903, %v2789, %v3003
        %v3104 = vsel %vm2904, %v2637, %v3004
        %v3105 = vsel %vm2905, %v2790, %v3005
        %v3106 = vsel %vm2906, %v2639, %v3006
        %v3107 = vsel %vm2907, %v2791, %v3007
        %v3108 = vsel %vm2908, %v2642, %v3008
        %v3109 = vsel %vm2909, %v2792, %v3009
        %v3110 = vsel %vm2910, %v2644, %v3010
        %v3111 = vsel %vm2911, %v2793, %v3011
        %v3112 = vsel %vm2912, %v2647, %v3012
        %v3113 = vsel %vm2913, %v2794, %v3013
        %v3114 = vsel %vm2914, %v2649, %v3014
        %v3115 = vsel %vm2915, %v2795, %v3015
        %v3116 = vsel %vm2916, %v2652, %v3016
        %v3117 = vsel %vm2917, %v2796, %v3017
        %v3118 = vsel %vm2918, %v2654, %v3018
        %v3119 = vsel %vm2919, %v2797, %v3019
        %v3120 = vsel %vm2920, %v2657, %v3020
        %v3121 = vsel %vm2921, %v2798, %v3021
        %v3122 = vsel %vm2922, %v2659, %v3022
        %v3123 = vsel %vm2923, %v2799, %v3023
        %v3124 = vsel %vm2924, %v2662, %v3024
        %v3125 = vsel %vm2925, %v2800, %v3025
        %v3126 = vsel %vm2926, %v2664, %v3026
        %v3127 = vsel %vm2927, %v2801, %v3027
        %v3128 = vsel %vm2928, %v2667, %v3028
        %v3129 = vsel %vm2929, %v2802, %v3029
        %v3130 = vsel %vm2930, %v2669, %v3030
        %v3131 = vsel %vm2931, %v2803, %v3031
        %v3132 = vsel %vm2932, %v2672, %v3032
        %v3133 = vsel %vm2933, %v2804, %v3033
        %v3134 = vsel %vm2934, %v2674, %v3034
        %v3135 = vsel %vm2935, %v2805, %v3035
        %v3136 = vsel %vm2936, %v2677, %v3036
        %v3137 = vsel %vm2937, %v2806, %v3037
        %v3138 = vsel %vm2938, %v2679, %v3038
        %v3139 = vsel %vm2939, %v2807, %v3039
        %v3140 = vsel %vm2940, %v2682, %v3040
        %v3141 = vsel %vm2941, %v2808, %v3041
        %v3142 = vsel %vm2942, %v2684, %v3042
        %v3143 = vsel %vm2943, %v2809, %v3043
        %v3144 = vsel %vm2944, %v2687, %v3044
        %v3145 = vsel %vm2945, %v2810, %v3045
        %v3146 = vsel %vm2946, %v2689, %v3046
        %v3147 = vsel %vm2947, %v2811, %v3047
        %v3148 = vsel %vm2948, %v2692, %v3048
        %v3149 = vsel %vm2949, %v2812, %v3049
        %v3150 = vsel %vm2950, %v2694, %v3050
        %v3151 = vsel %vm2951, %v2813, %v3051
        %v3152 = vsel %vm2952, %v2697, %v3052
        %v3153 = vsel %vm2953, %v2814, %v3053
        %v3154 = vsel %vm2954, %v2699, %v3054
        %v3155 = vsel %vm2955, %v2815, %v3055
        %v3156 = vsel %vm2956, %v2702, %v3056
        %v3157 = vsel %vm2957, %v2816, %v3057
        %v3158 = vsel %vm2958, %v2704, %v3058
        %v3159 = vsel %vm2959, %v2817, %v3059
        %v3160 = vsel %vm2960, %v2707, %v3060
        %v3161 = vsel %vm2961, %v2818, %v3061
        %v3162 = vsel %vm2962, %v2709, %v3062
        %v3163 = vsel %vm2963, %v2819, %v3063
        %v3164 = vsel %vm2964, %v2712, %v3064
        %v3165 = vsel %vm2965, %v2820, %v3065
        %v3166 = vsel %vm2966, %v2714, %v3066
        %v3167 = vsel %vm2967, %v2821, %v3067
        %v3168 = vsel %vm2968, %v2717, %v3068
        %v3169 = vsel %vm2969, %v2822, %v3069
        %v3170 = vsel %vm2970, %v2719, %v3070
        %v3171 = vsel %vm2971, %v2823, %v3071
        %v3172 = vsel %vm2972, %v2722, %v3072
        %v3173 = vsel %vm2973, %v2824, %v3073
        %v3174 = vsel %vm2974, %v2724, %v3074
        %v3175 = vsel %vm2975, %v2825, %v3075
        %v3176 = vlaneseq
        %v3177 = vshrl.u32 %v3176, 7
        %v3178 = vadd.s32 %v3177, 8
        %v3179 = vadd.s32 %v3177, 16
        %vm3180 = vcmp.ge.s32.totalorder %v3177, 2
        %vm3181 = vcmp.ge.s32.totalorder %v3178, 2
        %vm3182 = vcmp.ge.s32.totalorder %v3179, 2
        %vm3183 = vcmp.lt.s32.totalorder %v3177, 18
        %vm3184 = vcmp.lt.s32.totalorder %v3178, 18
        %vm3185 = vcmp.lt.s32.totalorder %v3179, 18
        %vm3186 = vmand %vm3180, %vm3183
        %vm3187 = vmand %vm3181, %vm3184
        %vm3188 = vmand %vm3182, %vm3185
        %s3189 = ssub.s32 %s293, 2
        %v3190 = vstv %s3189
        %v3191 = vadd.s32 %v3190, 1
        %v3192 = vadd.s32 %v3190, 2
        %v3193 = vadd.s32 %v3190, 3
        %v3194 = vadd.s32 %v3190, 4
        %v3195 = vadd.s32 %v3190, 5
        %v3196 = vadd.s32 %v3190, 6
        %v3197 = vadd.s32 %v3190, 7
        %v3198 = vadd.s32 %v3190, 8
        %v3199 = vadd.s32 %v3190, 9
        %v3200 = vadd.s32 %v3190, 10
        %v3201 = vadd.s32 %v3190, 11
        %v3202 = vadd.s32 %v3190, 12
        %v3203 = vadd.s32 %v3190, 13
        %v3204 = vadd.s32 %v3190, 14
        %v3205 = vadd.s32 %v3190, 15
        %v3206 = vadd.s32 %v3190, 16
        %v3207 = vadd.s32 %v3190, 17
        %v3208 = vadd.s32 %v3190, 18
        %v3209 = vadd.s32 %v3190, 19
        %vm3210 = vcmp.ge.s32.totalorder %v3190, 0
        %vm3211 = vcmp.ge.s32.totalorder %v3191, 0
        %vm3212 = vcmp.ge.s32.totalorder %v3192, 0
        %vm3213 = vcmp.ge.s32.totalorder %v3193, 0
        %vm3214 = vcmp.ge.s32.totalorder %v3194, 0
        %vm3215 = vcmp.ge.s32.totalorder %v3195, 0
        %vm3216 = vcmp.ge.s32.totalorder %v3196, 0
        %vm3217 = vcmp.ge.s32.totalorder %v3197, 0
        %vm3218 = vcmp.ge.s32.totalorder %v3198, 0
        %vm3219 = vcmp.ge.s32.totalorder %v3199, 0
        %vm3220 = vcmp.ge.s32.totalorder %v3200, 0
        %vm3221 = vcmp.ge.s32.totalorder %v3201, 0
        %vm3222 = vcmp.ge.s32.totalorder %v3202, 0
        %vm3223 = vcmp.ge.s32.totalorder %v3203, 0
        %vm3224 = vcmp.ge.s32.totalorder %v3204, 0
        %vm3225 = vcmp.ge.s32.totalorder %v3205, 0
        %vm3226 = vcmp.ge.s32.totalorder %v3206, 0
        %vm3227 = vcmp.ge.s32.totalorder %v3207, 0
        %vm3228 = vcmp.ge.s32.totalorder %v3208, 0
        %vm3229 = vcmp.ge.s32.totalorder %v3209, 0
        %vm3230 = vcmp.lt.s32.totalorder %v3190, 16
        %vm3231 = vcmp.lt.s32.totalorder %v3191, 16
        %vm3232 = vcmp.lt.s32.totalorder %v3192, 16
        %vm3233 = vcmp.lt.s32.totalorder %v3193, 16
        %vm3234 = vcmp.lt.s32.totalorder %v3194, 16
        %vm3235 = vcmp.lt.s32.totalorder %v3195, 16
        %vm3236 = vcmp.lt.s32.totalorder %v3196, 16
        %vm3237 = vcmp.lt.s32.totalorder %v3197, 16
        %vm3238 = vcmp.lt.s32.totalorder %v3198, 16
        %vm3239 = vcmp.lt.s32.totalorder %v3199, 16
        %vm3240 = vcmp.lt.s32.totalorder %v3200, 16
        %vm3241 = vcmp.lt.s32.totalorder %v3201, 16
        %vm3242 = vcmp.lt.s32.totalorder %v3202, 16
        %vm3243 = vcmp.lt.s32.totalorder %v3203, 16
        %vm3244 = vcmp.lt.s32.totalorder %v3204, 16
        %vm3245 = vcmp.lt.s32.totalorder %v3205, 16
        %vm3246 = vcmp.lt.s32.totalorder %v3206, 16
        %vm3247 = vcmp.lt.s32.totalorder %v3207, 16
        %vm3248 = vcmp.lt.s32.totalorder %v3208, 16
        %vm3249 = vcmp.lt.s32.totalorder %v3209, 16
        %vm3250 = vmand %vm3210, %vm3230
        %vm3251 = vmand %vm3211, %vm3231
        %vm3252 = vmand %vm3212, %vm3232
        %vm3253 = vmand %vm3213, %vm3233
        %vm3254 = vmand %vm3214, %vm3234
        %vm3255 = vmand %vm3215, %vm3235
        %vm3256 = vmand %vm3216, %vm3236
        %vm3257 = vmand %vm3217, %vm3237
        %vm3258 = vmand %vm3218, %vm3238
        %vm3259 = vmand %vm3219, %vm3239
        %vm3260 = vmand %vm3220, %vm3240
        %vm3261 = vmand %vm3221, %vm3241
        %vm3262 = vmand %vm3222, %vm3242
        %vm3263 = vmand %vm3223, %vm3243
        %vm3264 = vmand %vm3224, %vm3244
        %vm3265 = vmand %vm3225, %vm3245
        %vm3266 = vmand %vm3226, %vm3246
        %vm3267 = vmand %vm3227, %vm3247
        %vm3268 = vmand %vm3228, %vm3248
        %vm3269 = vmand %vm3229, %vm3249
        %v3270 = vsel %vm3186, 1, 0
        %v3271 = vsel %vm3187, 1, 0
        %v3272 = vsel %vm3188, 1, 0
        %vm3273 = vcmp.eq.s32.totalorder %v3270, 1
        %vm3274 = vcmp.eq.s32.totalorder %v3271, 1
        %vm3275 = vcmp.eq.s32.totalorder %v3272, 1
        %v3276 = vsel %vm3250, 1, 0
        %v3277 = vsel %vm3251, 1, 0
        %v3278 = vsel %vm3252, 1, 0
        %v3279 = vsel %vm3253, 1, 0
        %v3280 = vsel %vm3254, 1, 0
        %v3281 = vsel %vm3255, 1, 0
        %v3282 = vsel %vm3256, 1, 0
        %v3283 = vsel %vm3257, 1, 0
        %v3284 = vsel %vm3258, 1, 0
        %v3285 = vsel %vm3259, 1, 0
        %v3286 = vsel %vm3260, 1, 0
        %v3287 = vsel %vm3261, 1, 0
        %v3288 = vsel %vm3262, 1, 0
        %v3289 = vsel %vm3263, 1, 0
        %v3290 = vsel %vm3264, 1, 0
        %v3291 = vsel %vm3265, 1, 0
        %v3292 = vsel %vm3266, 1, 0
        %v3293 = vsel %vm3267, 1, 0
        %v3294 = vsel %vm3268, 1, 0
        %v3295 = vsel %vm3269, 1, 0
        %vm3296 = vcmp.eq.s32.totalorder %v3276, 1
        %vm3297 = vcmp.eq.s32.totalorder %v3277, 1
        %vm3298 = vcmp.eq.s32.totalorder %v3278, 1
        %vm3299 = vcmp.eq.s32.totalorder %v3279, 1
        %vm3300 = vcmp.eq.s32.totalorder %v3280, 1
        %vm3301 = vcmp.eq.s32.totalorder %v3281, 1
        %vm3302 = vcmp.eq.s32.totalorder %v3282, 1
        %vm3303 = vcmp.eq.s32.totalorder %v3283, 1
        %vm3304 = vcmp.eq.s32.totalorder %v3284, 1
        %vm3305 = vcmp.eq.s32.totalorder %v3285, 1
        %vm3306 = vcmp.eq.s32.totalorder %v3286, 1
        %vm3307 = vcmp.eq.s32.totalorder %v3287, 1
        %vm3308 = vcmp.eq.s32.totalorder %v3288, 1
        %vm3309 = vcmp.eq.s32.totalorder %v3289, 1
        %vm3310 = vcmp.eq.s32.totalorder %v3290, 1
        %vm3311 = vcmp.eq.s32.totalorder %v3291, 1
        %vm3312 = vcmp.eq.s32.totalorder %v3292, 1
        %vm3313 = vcmp.eq.s32.totalorder %v3293, 1
        %vm3314 = vcmp.eq.s32.totalorder %v3294, 1
        %vm3315 = vcmp.eq.s32.totalorder %v3295, 1
        %vm3316 = vmand %vm3273, %vm3296
        %vm3317 = vmand %vm3274, %vm3296
        %vm3318 = vmand %vm3275, %vm3296
        %vm3319 = vmand %vm3273, %vm3297
        %vm3320 = vmand %vm3274, %vm3297
        %vm3321 = vmand %vm3275, %vm3297
        %vm3322 = vmand %vm3273, %vm3298
        %vm3323 = vmand %vm3274, %vm3298
        %vm3324 = vmand %vm3275, %vm3298
        %vm3325 = vmand %vm3273, %vm3299
        %vm3326 = vmand %vm3274, %vm3299
        %vm3327 = vmand %vm3275, %vm3299
        %vm3328 = vmand %vm3273, %vm3300
        %vm3329 = vmand %vm3274, %vm3300
        %vm3330 = vmand %vm3275, %vm3300
        %vm3331 = vmand %vm3273, %vm3301
        %vm3332 = vmand %vm3274, %vm3301
        %vm3333 = vmand %vm3275, %vm3301
        %vm3334 = vmand %vm3273, %vm3302
        %vm3335 = vmand %vm3274, %vm3302
        %vm3336 = vmand %vm3275, %vm3302
        %vm3337 = vmand %vm3273, %vm3303
        %vm3338 = vmand %vm3274, %vm3303
        %vm3339 = vmand %vm3275, %vm3303
        %vm3340 = vmand %vm3273, %vm3304
        %vm3341 = vmand %vm3274, %vm3304
        %vm3342 = vmand %vm3275, %vm3304
        %vm3343 = vmand %vm3273, %vm3305
        %vm3344 = vmand %vm3274, %vm3305
        %vm3345 = vmand %vm3275, %vm3305
        %vm3346 = vmand %vm3273, %vm3306
        %vm3347 = vmand %vm3274, %vm3306
        %vm3348 = vmand %vm3275, %vm3306
        %vm3349 = vmand %vm3273, %vm3307
        %vm3350 = vmand %vm3274, %vm3307
        %vm3351 = vmand %vm3275, %vm3307
        %vm3352 = vmand %vm3273, %vm3308
        %vm3353 = vmand %vm3274, %vm3308
        %vm3354 = vmand %vm3275, %vm3308
        %vm3355 = vmand %vm3273, %vm3309
        %vm3356 = vmand %vm3274, %vm3309
        %vm3357 = vmand %vm3275, %vm3309
        %vm3358 = vmand %vm3273, %vm3310
        %vm3359 = vmand %vm3274, %vm3310
        %vm3360 = vmand %vm3275, %vm3310
        %vm3361 = vmand %vm3273, %vm3311
        %vm3362 = vmand %vm3274, %vm3311
        %vm3363 = vmand %vm3275, %vm3311
        %vm3364 = vmand %vm3273, %vm3312
        %vm3365 = vmand %vm3274, %vm3312
        %vm3366 = vmand %vm3275, %vm3312
        %vm3367 = vmand %vm3273, %vm3313
        %vm3368 = vmand %vm3274, %vm3313
        %vm3369 = vmand %vm3275, %vm3313
        %vm3370 = vmand %vm3273, %vm3314
        %vm3371 = vmand %vm3274, %vm3314
        %vm3372 = vmand %vm3275, %vm3314
        %vm3373 = vmand %vm3273, %vm3315
        %vm3374 = vmand %vm3274, %vm3315
        %vm3375 = vmand %vm3275, %vm3315
        %v3376 = vsel %vm3316, 1, 0
        %v3377 = vsel %vm3317, 1, 0
        %v3378 = vsel %vm3318, 1, 0
        %v3379 = vsel %vm3319, 1, 0
        %v3380 = vsel %vm3320, 1, 0
        %v3381 = vsel %vm3321, 1, 0
        %v3382 = vsel %vm3322, 1, 0
        %v3383 = vsel %vm3323, 1, 0
        %v3384 = vsel %vm3324, 1, 0
        %v3385 = vsel %vm3325, 1, 0
        %v3386 = vsel %vm3326, 1, 0
        %v3387 = vsel %vm3327, 1, 0
        %v3388 = vsel %vm3328, 1, 0
        %v3389 = vsel %vm3329, 1, 0
        %v3390 = vsel %vm3330, 1, 0
        %v3391 = vsel %vm3331, 1, 0
        %v3392 = vsel %vm3332, 1, 0
        %v3393 = vsel %vm3333, 1, 0
        %v3394 = vsel %vm3334, 1, 0
        %v3395 = vsel %vm3335, 1, 0
        %v3396 = vsel %vm3336, 1, 0
        %v3397 = vsel %vm3337, 1, 0
        %v3398 = vsel %vm3338, 1, 0
        %v3399 = vsel %vm3339, 1, 0
        %v3400 = vsel %vm3340, 1, 0
        %v3401 = vsel %vm3341, 1, 0
        %v3402 = vsel %vm3342, 1, 0
        %v3403 = vsel %vm3343, 1, 0
        %v3404 = vsel %vm3344, 1, 0
        %v3405 = vsel %vm3345, 1, 0
        %v3406 = vsel %vm3346, 1, 0
        %v3407 = vsel %vm3347, 1, 0
        %v3408 = vsel %vm3348, 1, 0
        %v3409 = vsel %vm3349, 1, 0
        %v3410 = vsel %vm3350, 1, 0
        %v3411 = vsel %vm3351, 1, 0
        %v3412 = vsel %vm3352, 1, 0
        %v3413 = vsel %vm3353, 1, 0
        %v3414 = vsel %vm3354, 1, 0
        %v3415 = vsel %vm3355, 1, 0
        %v3416 = vsel %vm3356, 1, 0
        %v3417 = vsel %vm3357, 1, 0
        %v3418 = vsel %vm3358, 1, 0
        %v3419 = vsel %vm3359, 1, 0
        %v3420 = vsel %vm3360, 1, 0
        %v3421 = vsel %vm3361, 1, 0
        %v3422 = vsel %vm3362, 1, 0
        %v3423 = vsel %vm3363, 1, 0
        %v3424 = vsel %vm3364, 1, 0
        %v3425 = vsel %vm3365, 1, 0
        %v3426 = vsel %vm3366, 1, 0
        %v3427 = vsel %vm3367, 1, 0
        %v3428 = vsel %vm3368, 1, 0
        %v3429 = vsel %vm3369, 1, 0
        %v3430 = vsel %vm3370, 1, 0
        %v3431 = vsel %vm3371, 1, 0
        %v3432 = vsel %vm3372, 1, 0
        %v3433 = vsel %vm3373, 1, 0
        %v3434 = vsel %vm3374, 1, 0
        %v3435 = vsel %vm3375, 1, 0
        %vm3436 = vcmp.eq.s32.totalorder %v3376, 1
        %vm3437 = vcmp.eq.s32.totalorder %v3377, 1
        %vm3438 = vcmp.eq.s32.totalorder %v3378, 1
        %vm3439 = vcmp.eq.s32.totalorder %v3379, 1
        %vm3440 = vcmp.eq.s32.totalorder %v3380, 1
        %vm3441 = vcmp.eq.s32.totalorder %v3381, 1
        %vm3442 = vcmp.eq.s32.totalorder %v3382, 1
        %vm3443 = vcmp.eq.s32.totalorder %v3383, 1
        %vm3444 = vcmp.eq.s32.totalorder %v3384, 1
        %vm3445 = vcmp.eq.s32.totalorder %v3385, 1
        %vm3446 = vcmp.eq.s32.totalorder %v3386, 1
        %vm3447 = vcmp.eq.s32.totalorder %v3387, 1
        %vm3448 = vcmp.eq.s32.totalorder %v3388, 1
        %vm3449 = vcmp.eq.s32.totalorder %v3389, 1
        %vm3450 = vcmp.eq.s32.totalorder %v3390, 1
        %vm3451 = vcmp.eq.s32.totalorder %v3391, 1
        %vm3452 = vcmp.eq.s32.totalorder %v3392, 1
        %vm3453 = vcmp.eq.s32.totalorder %v3393, 1
        %vm3454 = vcmp.eq.s32.totalorder %v3394, 1
        %vm3455 = vcmp.eq.s32.totalorder %v3395, 1
        %vm3456 = vcmp.eq.s32.totalorder %v3396, 1
        %vm3457 = vcmp.eq.s32.totalorder %v3397, 1
        %vm3458 = vcmp.eq.s32.totalorder %v3398, 1
        %vm3459 = vcmp.eq.s32.totalorder %v3399, 1
        %vm3460 = vcmp.eq.s32.totalorder %v3400, 1
        %vm3461 = vcmp.eq.s32.totalorder %v3401, 1
        %vm3462 = vcmp.eq.s32.totalorder %v3402, 1
        %vm3463 = vcmp.eq.s32.totalorder %v3403, 1
        %vm3464 = vcmp.eq.s32.totalorder %v3404, 1
        %vm3465 = vcmp.eq.s32.totalorder %v3405, 1
        %vm3466 = vcmp.eq.s32.totalorder %v3406, 1
        %vm3467 = vcmp.eq.s32.totalorder %v3407, 1
        %vm3468 = vcmp.eq.s32.totalorder %v3408, 1
        %vm3469 = vcmp.eq.s32.totalorder %v3409, 1
        %vm3470 = vcmp.eq.s32.totalorder %v3410, 1
        %vm3471 = vcmp.eq.s32.totalorder %v3411, 1
        %vm3472 = vcmp.eq.s32.totalorder %v3412, 1
        %vm3473 = vcmp.eq.s32.totalorder %v3413, 1
        %vm3474 = vcmp.eq.s32.totalorder %v3414, 1
        %vm3475 = vcmp.eq.s32.totalorder %v3415, 1
        %vm3476 = vcmp.eq.s32.totalorder %v3416, 1
        %vm3477 = vcmp.eq.s32.totalorder %v3417, 1
        %vm3478 = vcmp.eq.s32.totalorder %v3418, 1
        %vm3479 = vcmp.eq.s32.totalorder %v3419, 1
        %vm3480 = vcmp.eq.s32.totalorder %v3420, 1
        %vm3481 = vcmp.eq.s32.totalorder %v3421, 1
        %vm3482 = vcmp.eq.s32.totalorder %v3422, 1
        %vm3483 = vcmp.eq.s32.totalorder %v3423, 1
        %vm3484 = vcmp.eq.s32.totalorder %v3424, 1
        %vm3485 = vcmp.eq.s32.totalorder %v3425, 1
        %vm3486 = vcmp.eq.s32.totalorder %v3426, 1
        %vm3487 = vcmp.eq.s32.totalorder %v3427, 1
        %vm3488 = vcmp.eq.s32.totalorder %v3428, 1
        %vm3489 = vcmp.eq.s32.totalorder %v3429, 1
        %vm3490 = vcmp.eq.s32.totalorder %v3430, 1
        %vm3491 = vcmp.eq.s32.totalorder %v3431, 1
        %vm3492 = vcmp.eq.s32.totalorder %v3432, 1
        %vm3493 = vcmp.eq.s32.totalorder %v3433, 1
        %vm3494 = vcmp.eq.s32.totalorder %v3434, 1
        %vm3495 = vcmp.eq.s32.totalorder %v3435, 1
        %3596 = vst [vmem:[#allocation1] ss:$2 sm:$0xff] %v3076
        %s3597 = scalar_lea.vmem [#allocation1], 1
        %3598 = vst [vmem:[%s3597] ss:$2 sm:$0xff] %v3077
        %s3599 = scalar_lea.vmem [#allocation1], 16
        %3600 = vst [vmem:[%s3599] ss:$2 sm:$0xff] %v3078
        %s3601 = scalar_lea.vmem [#allocation1], 17
        %3602 = vst [vmem:[%s3601] ss:$2 sm:$0xff] %v3079
        %s3603 = scalar_lea.vmem [#allocation1], 32
        %3604 = vst [vmem:[%s3603] ss:$2 sm:$0xff] %v3080
        %v3605 = vld.sshfl [vmem:[#allocation1] sm:$0xff pattern:$0x75316420]
        %v3606 = vld.sshfl [vmem:[#allocation1 + $0x10] sm:$0xff pattern:$0x75316420]
        %v3607 = vld.sshfl [vmem:[#allocation1 + $0x20] sm:$0xff pattern:$0x75316420]
        %s3608 = scalar_lea.vmem [#allocation1], 48
        %3609 = vst [vmem:[%s3608] ss:$2 sm:$0xff] %v3081
        %s3610 = scalar_lea.vmem [#allocation1], 49
        %3611 = vst [vmem:[%s3610] ss:$2 sm:$0xff] %v3082
        %v3612 = vld.sshfl [vmem:[#allocation1 + $0x30] sm:$0xff pattern:$0x75316420]
        %3613 = vst [vmem:[#allocation1] ss:$2 sm:$0xff] %v3083
        %3614 = vst [vmem:[%s3597] ss:$2 sm:$0xff] %v3084
        %3615 = vst [vmem:[%s3599] ss:$2 sm:$0xff] %v3085
        %v3616 = vld.sshfl [vmem:[#allocation1] sm:$0xff pattern:$0x75316420]
        %v3617 = vld.sshfl [vmem:[#allocation1 + $0x10] sm:$0xff pattern:$0x75316420]
        %3618 = vst [vmem:[%s3603] ss:$2 sm:$0xff] %v3086
        %s3619 = scalar_lea.vmem [#allocation1], 33
        %3620 = vst [vmem:[%s3619] ss:$2 sm:$0xff] %v3087
        %3621 = vst [vmem:[%s3608] ss:$2 sm:$0xff] %v3088
        %3622 = vst [vmem:[%s3610] ss:$2 sm:$0xff] %v3089
        %v3623 = vld.sshfl [vmem:[#allocation1 + $0x20] sm:$0xff pattern:$0x75316420]
        %v3624 = vld.sshfl [vmem:[#allocation1 + $0x30] sm:$0xff pattern:$0x75316420]
        %3625 = vst [vmem:[#allocation1] ss:$2 sm:$0xff] %v3090
        %v3626 = vld.sshfl [vmem:[#allocation1] sm:$0xff pattern:$0x75316420]
        %3627 = vst [vmem:[%s3599] ss:$2 sm:$0xff] %v3091
        %3628 = vst [vmem:[%s3601] ss:$2 sm:$0xff] %v3092
        %3629 = vst [vmem:[%s3603] ss:$2 sm:$0xff] %v3093
        %3630 = vst [vmem:[%s3619] ss:$2 sm:$0xff] %v3094
        %3631 = vst [vmem:[%s3608] ss:$2 sm:$0xff] %v3095
        %v3632 = vld.sshfl [vmem:[#allocation1 + $0x10] sm:$0xff pattern:$0x75316420]
        %v3633 = vld.sshfl [vmem:[#allocation1 + $0x20] sm:$0xff pattern:$0x75316420]
        %v3634 = vld.sshfl [vmem:[#allocation1 + $0x30] sm:$0xff pattern:$0x75316420]
        %3635 = vst [vmem:[#allocation1] ss:$2 sm:$0xff] %v3096
        %3636 = vst [vmem:[%s3597] ss:$2 sm:$0xff] %v3097
        %3637 = vst [vmem:[%s3599] ss:$2 sm:$0xff] %v3098
        %3638 = vst [vmem:[%s3601] ss:$2 sm:$0xff] %v3099
        %3639 = vst [vmem:[%s3603] ss:$2 sm:$0xff] %v3100
        %v3640 = vld.sshfl [vmem:[#allocation1] sm:$0xff pattern:$0x75316420]
        %v3641 = vld.sshfl [vmem:[#allocation1 + $0x10] sm:$0xff pattern:$0x75316420]
        %v3642 = vld.sshfl [vmem:[#allocation1 + $0x20] sm:$0xff pattern:$0x75316420]
        %3643 = vst [vmem:[%s3608] ss:$2 sm:$0xff] %v3101
        %3644 = vst [vmem:[%s3610] ss:$2 sm:$0xff] %v3102
        %v3645 = vld.sshfl [vmem:[#allocation1 + $0x30] sm:$0xff pattern:$0x75316420]
        %3646 = vst [vmem:[#allocation1] ss:$2 sm:$0xff] %v3103
        %3647 = vst [vmem:[%s3597] ss:$2 sm:$0xff] %v3104
        %3648 = vst [vmem:[%s3599] ss:$2 sm:$0xff] %v3105
        %v3649 = vld.sshfl [vmem:[#allocation1] sm:$0xff pattern:$0x75316420]
        %v3650 = vld.sshfl [vmem:[#allocation1 + $0x10] sm:$0xff pattern:$0x75316420]
        %3651 = vst [vmem:[%s3603] ss:$2 sm:$0xff] %v3106
        %3652 = vst [vmem:[%s3619] ss:$2 sm:$0xff] %v3107
        %3653 = vst [vmem:[%s3608] ss:$2 sm:$0xff] %v3108
        %3654 = vst [vmem:[%s3610] ss:$2 sm:$0xff] %v3109
        %v3655 = vld.sshfl [vmem:[#allocation1 + $0x20] sm:$0xff pattern:$0x75316420]
        %v3656 = vld.sshfl [vmem:[#allocation1 + $0x30] sm:$0xff pattern:$0x75316420]
        %3657 = vst [vmem:[#allocation1] ss:$2 sm:$0xff] %v3110
        %v3658 = vld.sshfl [vmem:[#allocation1] sm:$0xff pattern:$0x75316420]
        %3659 = vst [vmem:[%s3599] ss:$2 sm:$0xff] %v3111
        %3660 = vst [vmem:[%s3601] ss:$2 sm:$0xff] %v3112
        %3661 = vst [vmem:[%s3603] ss:$2 sm:$0xff] %v3113
        %3662 = vst [vmem:[%s3619] ss:$2 sm:$0xff] %v3114
        %3663 = vst [vmem:[%s3608] ss:$2 sm:$0xff] %v3115
        %v3664 = vld.sshfl [vmem:[#allocation1 + $0x10] sm:$0xff pattern:$0x75316420]
        %v3665 = vld.sshfl [vmem:[#allocation1 + $0x20] sm:$0xff pattern:$0x75316420]
        %v3666 = vld.sshfl [vmem:[#allocation1 + $0x30] sm:$0xff pattern:$0x75316420]
        %3667 = vst [vmem:[#allocation1] ss:$2 sm:$0xff] %v3116
        %3668 = vst [vmem:[%s3597] ss:$2 sm:$0xff] %v3117
        %3669 = vst [vmem:[%s3599] ss:$2 sm:$0xff] %v3118
        %3670 = vst [vmem:[%s3601] ss:$2 sm:$0xff] %v3119
        %3671 = vst [vmem:[%s3603] ss:$2 sm:$0xff] %v3120
        %v3672 = vld.sshfl [vmem:[#allocation1] sm:$0xff pattern:$0x75316420]
        %v3673 = vld.sshfl [vmem:[#allocation1 + $0x10] sm:$0xff pattern:$0x75316420]
        %v3674 = vld.sshfl [vmem:[#allocation1 + $0x20] sm:$0xff pattern:$0x75316420]
        %3675 = vst [vmem:[%s3608] ss:$2 sm:$0xff] %v3121
        %3676 = vst [vmem:[%s3610] ss:$2 sm:$0xff] %v3122
        %v3677 = vld.sshfl [vmem:[#allocation1 + $0x30] sm:$0xff pattern:$0x75316420]
        %3678 = vst [vmem:[#allocation1] ss:$2 sm:$0xff] %v3123
        %3679 = vst [vmem:[%s3597] ss:$2 sm:$0xff] %v3124
        %3680 = vst [vmem:[%s3599] ss:$2 sm:$0xff] %v3125
        %v3681 = vld.sshfl [vmem:[#allocation1] sm:$0xff pattern:$0x75316420]
        %v3682 = vld.sshfl [vmem:[#allocation1 + $0x10] sm:$0xff pattern:$0x75316420]
        %3683 = vst [vmem:[%s3603] ss:$2 sm:$0xff] %v3126
        %3684 = vst [vmem:[%s3619] ss:$2 sm:$0xff] %v3127
        %3685 = vst [vmem:[%s3608] ss:$2 sm:$0xff] %v3128
        %3686 = vst [vmem:[%s3610] ss:$2 sm:$0xff] %v3129
        %v3687 = vld.sshfl [vmem:[#allocation1 + $0x20] sm:$0xff pattern:$0x75316420]
        %v3688 = vld.sshfl [vmem:[#allocation1 + $0x30] sm:$0xff pattern:$0x75316420]
        %3689 = vst [vmem:[#allocation1] ss:$2 sm:$0xff] %v3130
        %v3690 = vld.sshfl [vmem:[#allocation1] sm:$0xff pattern:$0x75316420]
        %3691 = vst [vmem:[%s3599] ss:$2 sm:$0xff] %v3131
        %3692 = vst [vmem:[%s3601] ss:$2 sm:$0xff] %v3132
        %3693 = vst [vmem:[%s3603] ss:$2 sm:$0xff] %v3133
        %3694 = vst [vmem:[%s3619] ss:$2 sm:$0xff] %v3134
        %3695 = vst [vmem:[%s3608] ss:$2 sm:$0xff] %v3135
        %v3696 = vld.sshfl [vmem:[#allocation1 + $0x10] sm:$0xff pattern:$0x75316420]
        %v3697 = vld.sshfl [vmem:[#allocation1 + $0x20] sm:$0xff pattern:$0x75316420]
        %v3698 = vld.sshfl [vmem:[#allocation1 + $0x30] sm:$0xff pattern:$0x75316420]
        %3699 = vst [vmem:[#allocation1] ss:$2 sm:$0xff] %v3136
        %3700 = vst [vmem:[%s3597] ss:$2 sm:$0xff] %v3137
        %3701 = vst [vmem:[%s3599] ss:$2 sm:$0xff] %v3138
        %3702 = vst [vmem:[%s3601] ss:$2 sm:$0xff] %v3139
        %3703 = vst [vmem:[%s3603] ss:$2 sm:$0xff] %v3140
        %v3704 = vld.sshfl [vmem:[#allocation1] sm:$0xff pattern:$0x75316420]
        %v3705 = vld.sshfl [vmem:[#allocation1 + $0x10] sm:$0xff pattern:$0x75316420]
        %v3706 = vld.sshfl [vmem:[#allocation1 + $0x20] sm:$0xff pattern:$0x75316420]
        %3707 = vst [vmem:[%s3608] ss:$2 sm:$0xff] %v3141
        %3708 = vst [vmem:[%s3610] ss:$2 sm:$0xff] %v3142
        %v3709 = vld.sshfl [vmem:[#allocation1 + $0x30] sm:$0xff pattern:$0x75316420]
        %3710 = vst [vmem:[#allocation1] ss:$2 sm:$0xff] %v3143
        %3711 = vst [vmem:[%s3597] ss:$2 sm:$0xff] %v3144
        %3712 = vst [vmem:[%s3599] ss:$2 sm:$0xff] %v3145
        %v3713 = vld.sshfl [vmem:[#allocation1] sm:$0xff pattern:$0x75316420]
        %v3714 = vld.sshfl [vmem:[#allocation1 + $0x10] sm:$0xff pattern:$0x75316420]
        %3715 = vst [vmem:[%s3603] ss:$2 sm:$0xff] %v3146
        %3716 = vst [vmem:[%s3619] ss:$2 sm:$0xff] %v3147
        %3717 = vst [vmem:[%s3608] ss:$2 sm:$0xff] %v3148
        %3718 = vst [vmem:[%s3610] ss:$2 sm:$0xff] %v3149
        %v3719 = vld.sshfl [vmem:[#allocation1 + $0x20] sm:$0xff pattern:$0x75316420]
        %v3720 = vld.sshfl [vmem:[#allocation1 + $0x30] sm:$0xff pattern:$0x75316420]
        %3721 = vst [vmem:[#allocation1] ss:$2 sm:$0xff] %v3150
        %v3722 = vld.sshfl [vmem:[#allocation1] sm:$0xff pattern:$0x75316420]
        %3723 = vst [vmem:[%s3599] ss:$2 sm:$0xff] %v3151
        %3724 = vst [vmem:[%s3601] ss:$2 sm:$0xff] %v3152
        %3725 = vst [vmem:[%s3603] ss:$2 sm:$0xff] %v3153
        %3726 = vst [vmem:[%s3619] ss:$2 sm:$0xff] %v3154
        %3727 = vst [vmem:[%s3608] ss:$2 sm:$0xff] %v3155
        %v3728 = vld.sshfl [vmem:[#allocation1 + $0x10] sm:$0xff pattern:$0x75316420]
        %v3729 = vld.sshfl [vmem:[#allocation1 + $0x20] sm:$0xff pattern:$0x75316420]
        %v3730 = vld.sshfl [vmem:[#allocation1 + $0x30] sm:$0xff pattern:$0x75316420]
        %3731 = vst [vmem:[#allocation1] ss:$2 sm:$0xff] %v3156
        %3732 = vst [vmem:[%s3597] ss:$2 sm:$0xff] %v3157
        %3733 = vst [vmem:[%s3599] ss:$2 sm:$0xff] %v3158
        %3734 = vst [vmem:[%s3601] ss:$2 sm:$0xff] %v3159
        %3735 = vst [vmem:[%s3603] ss:$2 sm:$0xff] %v3160
        %v3736 = vld.sshfl [vmem:[#allocation1] sm:$0xff pattern:$0x75316420]
        %v3737 = vld.sshfl [vmem:[#allocation1 + $0x10] sm:$0xff pattern:$0x75316420]
        %v3738 = vld.sshfl [vmem:[#allocation1 + $0x20] sm:$0xff pattern:$0x75316420]
        %3739 = vst [vmem:[%s3608] ss:$2 sm:$0xff] %v3161
        %3740 = vst [vmem:[%s3610] ss:$2 sm:$0xff] %v3162
        %v3741 = vld.sshfl [vmem:[#allocation1 + $0x30] sm:$0xff pattern:$0x75316420]
        %3742 = vst [vmem:[#allocation1] ss:$2 sm:$0xff] %v3163
        %3743 = vst [vmem:[%s3597] ss:$2 sm:$0xff] %v3164
        %3744 = vst [vmem:[%s3599] ss:$2 sm:$0xff] %v3165
        %v3745 = vld.sshfl [vmem:[#allocation1] sm:$0xff pattern:$0x75316420]
        %v3746 = vld.sshfl [vmem:[#allocation1 + $0x10] sm:$0xff pattern:$0x75316420]
        %3747 = vst [vmem:[%s3603] ss:$2 sm:$0xff] %v3166
        %3748 = vst [vmem:[%s3619] ss:$2 sm:$0xff] %v3167
        %3749 = vst [vmem:[%s3608] ss:$2 sm:$0xff] %v3168
        %3750 = vst [vmem:[%s3610] ss:$2 sm:$0xff] %v3169
        %v3751 = vld.sshfl [vmem:[#allocation1 + $0x20] sm:$0xff pattern:$0x75316420]
        %v3752 = vld.sshfl [vmem:[#allocation1 + $0x30] sm:$0xff pattern:$0x75316420]
        %3753 = vst [vmem:[#allocation1] ss:$2 sm:$0xff] %v3170
        %v3754 = vld.sshfl [vmem:[#allocation1] sm:$0xff pattern:$0x75316420]
        %3755 = vst [vmem:[%s3599] ss:$2 sm:$0xff] %v3171
        %3756 = vst [vmem:[%s3601] ss:$2 sm:$0xff] %v3172
        %3757 = vst [vmem:[%s3603] ss:$2 sm:$0xff] %v3173
        %3758 = vst [vmem:[%s3619] ss:$2 sm:$0xff] %v3174
        %3759 = vst [vmem:[%s3608] ss:$2 sm:$0xff] %v3175
        %v3760 = vld.sshfl [vmem:[#allocation1 + $0x10] sm:$0xff pattern:$0x75316420]
        %v3761 = vld.sshfl [vmem:[#allocation1 + $0x20] sm:$0xff pattern:$0x75316420]
        %v3762 = vld.sshfl [vmem:[#allocation1 + $0x30] sm:$0xff pattern:$0x75316420]
        %3763 = vrot.lane.b32.xlu0 %v3605, 112
        %v3764 = vpop.permute.xlu0 %3763
        %3765 = vrot.lane.b32.xlu0 %v3606, 112
        %v3766 = vpop.permute.xlu0 %3765
        %3767 = vrot.lane.b32.xlu0 %v3607, 112
        %v3768 = vpop.permute.xlu0 %3767
        %3769 = vrot.lane.b32.xlu0 %v3612, 112
        %v3770 = vpop.permute.xlu0 %3769
        %3771 = vrot.lane.b32.xlu0 %v3616, 112
        %v3772 = vpop.permute.xlu0 %3771
        %3773 = vrot.lane.b32.xlu0 %v3617, 112
        %v3774 = vpop.permute.xlu0 %3773
        %3775 = vrot.lane.b32.xlu0 %v3623, 112
        %v3776 = vpop.permute.xlu0 %3775
        %3777 = vrot.lane.b32.xlu0 %v3624, 112
        %v3778 = vpop.permute.xlu0 %3777
        %3779 = vrot.lane.b32.xlu0 %v3626, 112
        %v3780 = vpop.permute.xlu0 %3779
        %3781 = vrot.lane.b32.xlu0 %v3632, 112
        %v3782 = vpop.permute.xlu0 %3781
        %3783 = vrot.lane.b32.xlu0 %v3633, 112
        %v3784 = vpop.permute.xlu0 %3783
        %3785 = vrot.lane.b32.xlu0 %v3634, 112
        %v3786 = vpop.permute.xlu0 %3785
        %3787 = vrot.lane.b32.xlu0 %v3640, 112
        %v3788 = vpop.permute.xlu0 %3787
        %3789 = vrot.lane.b32.xlu0 %v3641, 112
        %v3790 = vpop.permute.xlu0 %3789
        %3791 = vrot.lane.b32.xlu0 %v3642, 112
        %v3792 = vpop.permute.xlu0 %3791
        %3793 = vrot.lane.b32.xlu0 %v3645, 112
        %v3794 = vpop.permute.xlu0 %3793
        %3795 = vrot.lane.b32.xlu0 %v3649, 112
        %v3796 = vpop.permute.xlu0 %3795
        %3797 = vrot.lane.b32.xlu0 %v3650, 112
        %v3798 = vpop.permute.xlu0 %3797
        %3799 = vrot.lane.b32.xlu0 %v3655, 112
        %v3800 = vpop.permute.xlu0 %3799
        %3801 = vrot.lane.b32.xlu0 %v3656, 112
        %v3802 = vpop.permute.xlu0 %3801
        %3803 = vrot.lane.b32.xlu0 %v3658, 112
        %v3804 = vpop.permute.xlu0 %3803
        %3805 = vrot.lane.b32.xlu0 %v3664, 112
        %v3806 = vpop.permute.xlu0 %3805
        %3807 = vrot.lane.b32.xlu0 %v3665, 112
        %v3808 = vpop.permute.xlu0 %3807
        %3809 = vrot.lane.b32.xlu0 %v3666, 112
        %v3810 = vpop.permute.xlu0 %3809
        %3811 = vrot.lane.b32.xlu0 %v3672, 112
        %v3812 = vpop.permute.xlu0 %3811
        %3813 = vrot.lane.b32.xlu0 %v3673, 112
        %v3814 = vpop.permute.xlu0 %3813
        %3815 = vrot.lane.b32.xlu0 %v3674, 112
        %v3816 = vpop.permute.xlu0 %3815
        %3817 = vrot.lane.b32.xlu0 %v3677, 112
        %v3818 = vpop.permute.xlu0 %3817
        %3819 = vrot.lane.b32.xlu0 %v3681, 112
        %v3820 = vpop.permute.xlu0 %3819
        %3821 = vrot.lane.b32.xlu0 %v3682, 112
        %v3822 = vpop.permute.xlu0 %3821
        %3823 = vrot.lane.b32.xlu0 %v3687, 112
        %v3824 = vpop.permute.xlu0 %3823
        %3825 = vrot.lane.b32.xlu0 %v3688, 112
        %v3826 = vpop.permute.xlu0 %3825
        %3827 = vrot.lane.b32.xlu0 %v3690, 112
        %v3828 = vpop.permute.xlu0 %3827
        %3829 = vrot.lane.b32.xlu0 %v3696, 112
        %v3830 = vpop.permute.xlu0 %3829
        %3831 = vrot.lane.b32.xlu0 %v3697, 112
        %v3832 = vpop.permute.xlu0 %3831
        %3833 = vrot.lane.b32.xlu0 %v3698, 112
        %v3834 = vpop.permute.xlu0 %3833
        %3835 = vrot.lane.b32.xlu0 %v3704, 112
        %v3836 = vpop.permute.xlu0 %3835
        %3837 = vrot.lane.b32.xlu0 %v3705, 112
        %v3838 = vpop.permute.xlu0 %3837
        %3839 = vrot.lane.b32.xlu0 %v3706, 112
        %v3840 = vpop.permute.xlu0 %3839
        %3841 = vrot.lane.b32.xlu0 %v3709, 112
        %v3842 = vpop.permute.xlu0 %3841
        %3843 = vrot.lane.b32.xlu0 %v3713, 112
        %v3844 = vpop.permute.xlu0 %3843
        %3845 = vrot.lane.b32.xlu0 %v3714, 112
        %v3846 = vpop.permute.xlu0 %3845
        %3847 = vrot.lane.b32.xlu0 %v3719, 112
        %v3848 = vpop.permute.xlu0 %3847
        %3849 = vrot.lane.b32.xlu0 %v3720, 112
        %v3850 = vpop.permute.xlu0 %3849
        %3851 = vrot.lane.b32.xlu0 %v3722, 112
        %v3852 = vpop.permute.xlu0 %3851
        %3853 = vrot.lane.b32.xlu0 %v3728, 112
        %v3854 = vpop.permute.xlu0 %3853
        %3855 = vrot.lane.b32.xlu0 %v3729, 112
        %v3856 = vpop.permute.xlu0 %3855
        %3857 = vrot.lane.b32.xlu0 %v3730, 112
        %v3858 = vpop.permute.xlu0 %3857
        %3859 = vrot.lane.b32.xlu0 %v3736, 112
        %v3860 = vpop.permute.xlu0 %3859
        %3861 = vrot.lane.b32.xlu0 %v3737, 112
        %v3862 = vpop.permute.xlu0 %3861
        %3863 = vrot.lane.b32.xlu0 %v3738, 112
        %v3864 = vpop.permute.xlu0 %3863
        %3865 = vrot.lane.b32.xlu0 %v3741, 112
        %v3866 = vpop.permute.xlu0 %3865
        %3867 = vrot.lane.b32.xlu0 %v3745, 112
        %v3868 = vpop.permute.xlu0 %3867
        %3869 = vrot.lane.b32.xlu0 %v3746, 112
        %v3870 = vpop.permute.xlu0 %3869
        %3871 = vrot.lane.b32.xlu0 %v3751, 112
        %v3872 = vpop.permute.xlu0 %3871
        %3873 = vrot.lane.b32.xlu0 %v3752, 112
        %v3874 = vpop.permute.xlu0 %3873
        %3875 = vrot.lane.b32.xlu0 %v3754, 112
        %v3876 = vpop.permute.xlu0 %3875
        %3877 = vrot.lane.b32.xlu0 %v3760, 112
        %v3878 = vpop.permute.xlu0 %3877
        %3879 = vrot.lane.b32.xlu0 %v3761, 112
        %v3880 = vpop.permute.xlu0 %3879
        %3881 = vrot.lane.b32.xlu0 %v3762, 112
        %v3882 = vpop.permute.xlu0 %3881
        %v3943 = vsel %vm3436, %v3764, 0.0
        %v3944 = vsel %vm3437, %v3766, 0.0
        %v3945 = vsel %vm3438, %v3768, 0.0
        %v3946 = vsel %vm3439, %v3770, 0.0
        %v3947 = vsel %vm3440, %v3772, 0.0
        %v3948 = vsel %vm3441, %v3774, 0.0
        %v3949 = vsel %vm3442, %v3776, 0.0
        %v3950 = vsel %vm3443, %v3778, 0.0
        %v3951 = vsel %vm3444, %v3780, 0.0
        %v3952 = vsel %vm3445, %v3782, 0.0
        %v3953 = vsel %vm3446, %v3784, 0.0
        %v3954 = vsel %vm3447, %v3786, 0.0
        %v3955 = vsel %vm3448, %v3788, 0.0
        %v3956 = vsel %vm3449, %v3790, 0.0
        %v3957 = vsel %vm3450, %v3792, 0.0
        %v3958 = vsel %vm3451, %v3794, 0.0
        %v3959 = vsel %vm3452, %v3796, 0.0
        %v3960 = vsel %vm3453, %v3798, 0.0
        %v3961 = vsel %vm3454, %v3800, 0.0
        %v3962 = vsel %vm3455, %v3802, 0.0
        %v3963 = vsel %vm3456, %v3804, 0.0
        %v3964 = vsel %vm3457, %v3806, 0.0
        %v3965 = vsel %vm3458, %v3808, 0.0
        %v3966 = vsel %vm3459, %v3810, 0.0
        %v3967 = vsel %vm3460, %v3812, 0.0
        %v3968 = vsel %vm3461, %v3814, 0.0
        %v3969 = vsel %vm3462, %v3816, 0.0
        %v3970 = vsel %vm3463, %v3818, 0.0
        %v3971 = vsel %vm3464, %v3820, 0.0
        %v3972 = vsel %vm3465, %v3822, 0.0
        %v3973 = vsel %vm3466, %v3824, 0.0
        %v3974 = vsel %vm3467, %v3826, 0.0
        %v3975 = vsel %vm3468, %v3828, 0.0
        %v3976 = vsel %vm3469, %v3830, 0.0
        %v3977 = vsel %vm3470, %v3832, 0.0
        %v3978 = vsel %vm3471, %v3834, 0.0
        %v3979 = vsel %vm3472, %v3836, 0.0
        %v3980 = vsel %vm3473, %v3838, 0.0
        %v3981 = vsel %vm3474, %v3840, 0.0
        %v3982 = vsel %vm3475, %v3842, 0.0
        %v3983 = vsel %vm3476, %v3844, 0.0
        %v3984 = vsel %vm3477, %v3846, 0.0
        %v3985 = vsel %vm3478, %v3848, 0.0
        %v3986 = vsel %vm3479, %v3850, 0.0
        %v3987 = vsel %vm3480, %v3852, 0.0
        %v3988 = vsel %vm3481, %v3854, 0.0
        %v3989 = vsel %vm3482, %v3856, 0.0
        %v3990 = vsel %vm3483, %v3858, 0.0
        %v3991 = vsel %vm3484, %v3860, 0.0
        %v3992 = vsel %vm3485, %v3862, 0.0
        %v3993 = vsel %vm3486, %v3864, 0.0
        %v3994 = vsel %vm3487, %v3866, 0.0
        %v3995 = vsel %vm3488, %v3868, 0.0
        %v3996 = vsel %vm3489, %v3870, 0.0
        %v3997 = vsel %vm3490, %v3872, 0.0
        %v3998 = vsel %vm3491, %v3874, 0.0
        %v3999 = vsel %vm3492, %v3876, 0.0
        %v4000 = vsel %vm3493, %v3878, 0.0
        %v4001 = vsel %vm3494, %v3880, 0.0
        %v4002 = vsel %vm3495, %v3882, 0.0
        %v4003 = vpack.c.bf16 %v3943, %v3943
        %v4004 = vpack.c.bf16 %v3944, %v3944
        %v4005 = vpack.c.bf16 %v3945, %v3945
        %v4006 = vpack.c.bf16 %v3946, %v3946
        %v4007 = vpack.c.bf16 %v3947, %v3947
        %v4008 = vpack.c.bf16 %v3948, %v3948
        %v4009 = vpack.c.bf16 %v3949, %v3949
        %v4010 = vpack.c.bf16 %v3950, %v3950
        %v4011 = vpack.c.bf16 %v3951, %v3951
        %v4012 = vpack.c.bf16 %v3952, %v3952
        %v4013 = vpack.c.bf16 %v3953, %v3953
        %v4014 = vpack.c.bf16 %v3954, %v3954
        %v4015 = vpack.c.bf16 %v3955, %v3955
        %v4016 = vpack.c.bf16 %v3956, %v3956
        %v4017 = vpack.c.bf16 %v3957, %v3957
        %v4018 = vpack.c.bf16 %v3958, %v3958
        %v4019 = vpack.c.bf16 %v3959, %v3959
        %v4020 = vpack.c.bf16 %v3960, %v3960
        %v4021 = vpack.c.bf16 %v3961, %v3961
        %v4022 = vpack.c.bf16 %v3962, %v3962
        %v4023 = vpack.c.bf16 %v3963, %v3963
        %v4024 = vpack.c.bf16 %v3964, %v3964
        %v4025 = vpack.c.bf16 %v3965, %v3965
        %v4026 = vpack.c.bf16 %v3966, %v3966
        %v4027 = vpack.c.bf16 %v3967, %v3967
        %v4028 = vpack.c.bf16 %v3968, %v3968
        %v4029 = vpack.c.bf16 %v3969, %v3969
        %v4030 = vpack.c.bf16 %v3970, %v3970
        %v4031 = vpack.c.bf16 %v3971, %v3971
        %v4032 = vpack.c.bf16 %v3972, %v3972
        %v4033 = vpack.c.bf16 %v3973, %v3973
        %v4034 = vpack.c.bf16 %v3974, %v3974
        %v4035 = vpack.c.bf16 %v3975, %v3975
        %v4036 = vpack.c.bf16 %v3976, %v3976
        %v4037 = vpack.c.bf16 %v3977, %v3977
        %v4038 = vpack.c.bf16 %v3978, %v3978
        %v4039 = vpack.c.bf16 %v3979, %v3979
        %v4040 = vpack.c.bf16 %v3980, %v3980
        %v4041 = vpack.c.bf16 %v3981, %v3981
        %v4042 = vpack.c.bf16 %v3982, %v3982
        %v4043 = vpack.c.bf16 %v3983, %v3983
        %v4044 = vpack.c.bf16 %v3984, %v3984
        %v4045 = vpack.c.bf16 %v3985, %v3985
        %v4046 = vpack.c.bf16 %v3986, %v3986
        %v4047 = vpack.c.bf16 %v3987, %v3987
        %v4048 = vpack.c.bf16 %v3988, %v3988
        %v4049 = vpack.c.bf16 %v3989, %v3989
        %v4050 = vpack.c.bf16 %v3990, %v3990
        %v4051 = vpack.c.bf16 %v3991, %v3991
        %v4052 = vpack.c.bf16 %v3992, %v3992
        %v4053 = vpack.c.bf16 %v3993, %v3993
        %v4054 = vpack.c.bf16 %v3994, %v3994
        %v4055 = vpack.c.bf16 %v3995, %v3995
        %v4056 = vpack.c.bf16 %v3996, %v3996
        %v4057 = vpack.c.bf16 %v3997, %v3997
        %v4058 = vpack.c.bf16 %v3998, %v3998
        %v4059 = vpack.c.bf16 %v3999, %v3999
        %v4060 = vpack.c.bf16 %v4000, %v4000
        %v4061 = vpack.c.bf16 %v4001, %v4001
        %v4062 = vpack.c.bf16 %v4002, %v4002
        %v4063 = vld [vmem:[%s3] sm:$0xf]
        %v4064 = vld [vmem:[%s3 + $0x4] sm:$0xf]
        %v4065 = vld [vmem:[%s3 + $0x8] sm:$0xf]
        %v4066 = vld [vmem:[%s3 + $0xc] sm:$0xf]
        %v4067 = vld [vmem:[%s3 + $0x10] sm:$0xf]
        %v4068 = vld [vmem:[%s3 + $0x14] sm:$0xf]
        %v4069 = vld [vmem:[%s3 + $0x18] sm:$0xf]
        %v4070 = vld [vmem:[%s3 + $0x1c] sm:$0xf]
        %v4071 = vld [vmem:[%s3 + $0x20] sm:$0xf]
        %v4072 = vld [vmem:[%s4] sm:$0x1]
        %v4127 = vunpack.c.l.b16 %v4003
        %v4128 = vunpack.c.l.b16 %v4004
        %v4129 = vunpack.c.l.b16 %v4005
        %v4130 = vunpack.c.l.b16 %v4006
        %v4131 = vunpack.c.l.b16 %v4007
        %v4132 = vunpack.c.l.b16 %v4008
        %v4133 = vunpack.c.l.b16 %v4009
        %v4134 = vunpack.c.l.b16 %v4010
        %v4135 = vunpack.c.l.b16 %v4011
        %v4136 = vunpack.c.l.b16 %v4012
        %v4137 = vunpack.c.l.b16 %v4013
        %v4138 = vunpack.c.l.b16 %v4014
        %v4139 = vunpack.c.l.b16 %v4015
        %v4140 = vunpack.c.l.b16 %v4016
        %v4141 = vunpack.c.l.b16 %v4017
        %v4142 = vunpack.c.l.b16 %v4018
        %v4143 = vunpack.c.l.b16 %v4019
        %v4144 = vunpack.c.l.b16 %v4020
        %v4145 = vunpack.c.l.b16 %v4021
        %v4146 = vunpack.c.l.b16 %v4022
        %v4147 = vunpack.c.l.b16 %v4023
        %v4148 = vunpack.c.l.b16 %v4024
        %v4149 = vunpack.c.l.b16 %v4025
        %v4150 = vunpack.c.l.b16 %v4026
        %v4151 = vunpack.c.l.b16 %v4027
        %v4152 = vunpack.c.l.b16 %v4028
        %v4153 = vunpack.c.l.b16 %v4029
        %v4154 = vunpack.c.l.b16 %v4030
        %v4155 = vunpack.c.l.b16 %v4031
        %v4156 = vunpack.c.l.b16 %v4032
        %v4157 = vunpack.c.l.b16 %v4033
        %v4158 = vunpack.c.l.b16 %v4034
        %v4159 = vunpack.c.l.b16 %v4035
        %v4160 = vunpack.c.l.b16 %v4036
        %v4161 = vunpack.c.l.b16 %v4037
        %v4162 = vunpack.c.l.b16 %v4038
        %v4163 = vunpack.c.l.b16 %v4039
        %v4164 = vunpack.c.l.b16 %v4040
        %v4165 = vunpack.c.l.b16 %v4041
        %v4166 = vunpack.c.l.b16 %v4042
        %v4167 = vunpack.c.l.b16 %v4043
        %v4168 = vunpack.c.l.b16 %v4044
        %v4169 = vunpack.c.l.b16 %v4045
        %v4170 = vunpack.c.l.b16 %v4046
        %v4171 = vunpack.c.l.b16 %v4047
        %v4172 = vunpack.c.l.b16 %v4048
        %v4173 = vunpack.c.l.b16 %v4049
        %v4174 = vunpack.c.l.b16 %v4050
        %v4175 = vunpack.c.l.b16 %v4051
        %v4176 = vunpack.c.l.b16 %v4052
        %v4177 = vunpack.c.l.b16 %v4053
        %v4178 = vunpack.c.l.b16 %v4054
        %v4179 = vunpack.c.l.b16 %v4055
        %v4180 = vunpack.c.l.b16 %v4056
        %v4181 = vpack.c.b16 %v4128, %v4127
        %v4182 = vpack.c.b16 %v4129, %v4129
        %v4183 = vpack.c.b16 %v4131, %v4130
        %v4184 = vpack.c.b16 %v4132, %v4132
        %v4185 = vpack.c.b16 %v4134, %v4133
        %v4186 = vpack.c.b16 %v4135, %v4135
        %v4187 = vpack.c.b16 %v4137, %v4136
        %v4188 = vpack.c.b16 %v4138, %v4138
        %v4189 = vpack.c.b16 %v4140, %v4139
        %v4190 = vpack.c.b16 %v4141, %v4141
        %v4191 = vpack.c.b16 %v4143, %v4142
        %v4192 = vpack.c.b16 %v4144, %v4144
        %v4193 = vpack.c.b16 %v4146, %v4145
        %v4194 = vpack.c.b16 %v4147, %v4147
        %v4195 = vpack.c.b16 %v4149, %v4148
        %v4196 = vpack.c.b16 %v4150, %v4150
        %v4197 = vpack.c.b16 %v4152, %v4151
        %v4198 = vpack.c.b16 %v4153, %v4153
        %v4199 = vpack.c.b16 %v4155, %v4154
        %v4200 = vpack.c.b16 %v4156, %v4156
        %v4201 = vpack.c.b16 %v4158, %v4157
        %v4202 = vpack.c.b16 %v4159, %v4159
        %v4203 = vpack.c.b16 %v4161, %v4160
        %v4204 = vpack.c.b16 %v4162, %v4162
        %v4205 = vpack.c.b16 %v4164, %v4163
        %v4206 = vpack.c.b16 %v4165, %v4165
        %v4207 = vpack.c.b16 %v4167, %v4166
        %v4208 = vpack.c.b16 %v4168, %v4168
        %v4209 = vpack.c.b16 %v4170, %v4169
        %v4210 = vpack.c.b16 %v4171, %v4171
        %v4211 = vpack.c.b16 %v4173, %v4172
        %v4212 = vpack.c.b16 %v4174, %v4174
        %v4213 = vpack.c.b16 %v4176, %v4175
        %v4214 = vpack.c.b16 %v4177, %v4177
        %v4215 = vpack.c.b16 %v4179, %v4178
        %v4216 = vpack.c.b16 %v4180, %v4180
        %v4218 = vshrl.u32 %v4181, 16
        %v4220 = vshll.u32 %v4181, 16
        %v4222 = vrot.slane %v4220, 1
        %v4223 = vor.u32 %v4218, %v4222
        %v4225 = vshll.u32 %v4182, 16
        %v4227 = vrot.slane %v4225, 1
        %v4228 = vsel %vm533, %v4223, %v4227
        %v4229 = vshrl.u32 %v4182, 16
        %v4231 = vor.u32 %v4229, %v4227
        %v4233 = vshrl.u32 %v4183, 16
        %v4235 = vshll.u32 %v4183, 16
        %v4237 = vrot.slane %v4235, 1
        %v4238 = vor.u32 %v4233, %v4237
        %v4240 = vshll.u32 %v4184, 16
        %v4242 = vrot.slane %v4240, 1
        %v4243 = vsel %vm533, %v4238, %v4242
        %v4244 = vshrl.u32 %v4184, 16
        %v4246 = vor.u32 %v4244, %v4242
        %v4248 = vshrl.u32 %v4185, 16
        %v4250 = vshll.u32 %v4185, 16
        %v4252 = vrot.slane %v4250, 1
        %v4253 = vor.u32 %v4248, %v4252
        %v4255 = vshll.u32 %v4186, 16
        %v4257 = vrot.slane %v4255, 1
        %v4258 = vsel %vm533, %v4253, %v4257
        %v4259 = vshrl.u32 %v4186, 16
        %v4261 = vor.u32 %v4259, %v4257
        %v4263 = vshrl.u32 %v4187, 16
        %v4265 = vshll.u32 %v4187, 16
        %v4267 = vrot.slane %v4265, 1
        %v4268 = vor.u32 %v4263, %v4267
        %v4270 = vshll.u32 %v4188, 16
        %v4272 = vrot.slane %v4270, 1
        %v4273 = vsel %vm533, %v4268, %v4272
        %v4274 = vshrl.u32 %v4188, 16
        %v4276 = vor.u32 %v4274, %v4272
        %v4278 = vshrl.u32 %v4189, 16
        %v4280 = vshll.u32 %v4189, 16
        %v4282 = vrot.slane %v4280, 1
        %v4283 = vor.u32 %v4278, %v4282
        %v4285 = vshll.u32 %v4190, 16
        %v4287 = vrot.slane %v4285, 1
        %v4288 = vsel %vm533, %v4283, %v4287
        %v4289 = vshrl.u32 %v4190, 16
        %v4291 = vor.u32 %v4289, %v4287
        %v4293 = vshrl.u32 %v4191, 16
        %v4295 = vshll.u32 %v4191, 16
        %v4297 = vrot.slane %v4295, 1
        %v4298 = vor.u32 %v4293, %v4297
        %v4300 = vshll.u32 %v4192, 16
        %v4302 = vrot.slane %v4300, 1
        %v4303 = vsel %vm533, %v4298, %v4302
        %v4304 = vshrl.u32 %v4192, 16
        %v4306 = vor.u32 %v4304, %v4302
        %v4308 = vshrl.u32 %v4193, 16
        %v4310 = vshll.u32 %v4193, 16
        %v4312 = vrot.slane %v4310, 1
        %v4313 = vor.u32 %v4308, %v4312
        %v4315 = vshll.u32 %v4194, 16
        %v4317 = vrot.slane %v4315, 1
        %v4318 = vsel %vm533, %v4313, %v4317
        %v4319 = vshrl.u32 %v4194, 16
        %v4321 = vor.u32 %v4319, %v4317
        %v4323 = vshrl.u32 %v4195, 16
        %v4325 = vshll.u32 %v4195, 16
        %v4327 = vrot.slane %v4325, 1
        %v4328 = vor.u32 %v4323, %v4327
        %v4330 = vshll.u32 %v4196, 16
        %v4332 = vrot.slane %v4330, 1
        %v4333 = vsel %vm533, %v4328, %v4332
        %v4334 = vshrl.u32 %v4196, 16
        %v4336 = vor.u32 %v4334, %v4332
        %v4338 = vshrl.u32 %v4197, 16
        %v4340 = vshll.u32 %v4197, 16
        %v4342 = vrot.slane %v4340, 1
        %v4343 = vor.u32 %v4338, %v4342
        %v4345 = vshll.u32 %v4198, 16
        %v4347 = vrot.slane %v4345, 1
        %v4348 = vsel %vm533, %v4343, %v4347
        %v4349 = vshrl.u32 %v4198, 16
        %v4351 = vor.u32 %v4349, %v4347
        %v4353 = vshrl.u32 %v4199, 16
        %v4355 = vshll.u32 %v4199, 16
        %v4357 = vrot.slane %v4355, 1
        %v4358 = vor.u32 %v4353, %v4357
        %v4360 = vshll.u32 %v4200, 16
        %v4362 = vrot.slane %v4360, 1
        %v4363 = vsel %vm533, %v4358, %v4362
        %v4364 = vshrl.u32 %v4200, 16
        %v4366 = vor.u32 %v4364, %v4362
        %v4368 = vshrl.u32 %v4201, 16
        %v4370 = vshll.u32 %v4201, 16
        %v4372 = vrot.slane %v4370, 1
        %v4373 = vor.u32 %v4368, %v4372
        %v4375 = vshll.u32 %v4202, 16
        %v4377 = vrot.slane %v4375, 1
        %v4378 = vsel %vm533, %v4373, %v4377
        %v4379 = vshrl.u32 %v4202, 16
        %v4381 = vor.u32 %v4379, %v4377
        %v4383 = vshrl.u32 %v4203, 16
        %v4385 = vshll.u32 %v4203, 16
        %v4387 = vrot.slane %v4385, 1
        %v4388 = vor.u32 %v4383, %v4387
        %v4390 = vshll.u32 %v4204, 16
        %v4392 = vrot.slane %v4390, 1
        %v4393 = vsel %vm533, %v4388, %v4392
        %v4394 = vshrl.u32 %v4204, 16
        %v4396 = vor.u32 %v4394, %v4392
        %v4398 = vshrl.u32 %v4205, 16
        %v4400 = vshll.u32 %v4205, 16
        %v4402 = vrot.slane %v4400, 1
        %v4403 = vor.u32 %v4398, %v4402
        %v4405 = vshll.u32 %v4206, 16
        %v4407 = vrot.slane %v4405, 1
        %v4408 = vsel %vm533, %v4403, %v4407
        %v4409 = vshrl.u32 %v4206, 16
        %v4411 = vor.u32 %v4409, %v4407
        %v4413 = vshrl.u32 %v4207, 16
        %v4415 = vshll.u32 %v4207, 16
        %v4417 = vrot.slane %v4415, 1
        %v4418 = vor.u32 %v4413, %v4417
        %v4420 = vshll.u32 %v4208, 16
        %v4422 = vrot.slane %v4420, 1
        %v4423 = vsel %vm533, %v4418, %v4422
        %v4424 = vshrl.u32 %v4208, 16
        %v4426 = vor.u32 %v4424, %v4422
        %v4428 = vshrl.u32 %v4209, 16
        %v4430 = vshll.u32 %v4209, 16
        %v4432 = vrot.slane %v4430, 1
        %v4433 = vor.u32 %v4428, %v4432
        %v4435 = vshll.u32 %v4210, 16
        %v4437 = vrot.slane %v4435, 1
        %v4438 = vsel %vm533, %v4433, %v4437
        %v4439 = vshrl.u32 %v4210, 16
        %v4441 = vor.u32 %v4439, %v4437
        %v4443 = vshrl.u32 %v4211, 16
        %v4445 = vshll.u32 %v4211, 16
        %v4447 = vrot.slane %v4445, 1
        %v4448 = vor.u32 %v4443, %v4447
        %v4450 = vshll.u32 %v4212, 16
        %v4452 = vrot.slane %v4450, 1
        %v4453 = vsel %vm533, %v4448, %v4452
        %v4454 = vshrl.u32 %v4212, 16
        %v4456 = vor.u32 %v4454, %v4452
        %v4458 = vshrl.u32 %v4213, 16
        %v4460 = vshll.u32 %v4213, 16
        %v4462 = vrot.slane %v4460, 1
        %v4463 = vor.u32 %v4458, %v4462
        %v4465 = vshll.u32 %v4214, 16
        %v4467 = vrot.slane %v4465, 1
        %v4468 = vsel %vm533, %v4463, %v4467
        %v4469 = vshrl.u32 %v4214, 16
        %v4471 = vor.u32 %v4469, %v4467
        %v4473 = vshrl.u32 %v4215, 16
        %v4475 = vshll.u32 %v4215, 16
        %v4477 = vrot.slane %v4475, 1
        %v4478 = vor.u32 %v4473, %v4477
        %v4480 = vshll.u32 %v4216, 16
        %v4482 = vrot.slane %v4480, 1
        %v4483 = vsel %vm533, %v4478, %v4482
        %v4484 = vshrl.u32 %v4216, 16
        %v4486 = vor.u32 %v4484, %v4482
        %4487 = vrot.lane.b32.xlu0 %v4228, 8
        %v4488 = vpop.permute.xlu0 %4487
        %4489 = vrot.lane.b32.xlu0 %v4231, 8
        %v4490 = vpop.permute.xlu0 %4489
        %4491 = vrot.lane.b32.xlu0 %v4243, 8
        %v4492 = vpop.permute.xlu0 %4491
        %4493 = vrot.lane.b32.xlu0 %v4246, 8
        %v4494 = vpop.permute.xlu0 %4493
        %4495 = vrot.lane.b32.xlu0 %v4258, 8
        %v4496 = vpop.permute.xlu0 %4495
        %4497 = vrot.lane.b32.xlu0 %v4261, 8
        %v4498 = vpop.permute.xlu0 %4497
        %4499 = vrot.lane.b32.xlu0 %v4273, 8
        %v4500 = vpop.permute.xlu0 %4499
        %4501 = vrot.lane.b32.xlu0 %v4276, 8
        %v4502 = vpop.permute.xlu0 %4501
        %4503 = vrot.lane.b32.xlu0 %v4288, 8
        %v4504 = vpop.permute.xlu0 %4503
        %4505 = vrot.lane.b32.xlu0 %v4291, 8
        %v4506 = vpop.permute.xlu0 %4505
        %4507 = vrot.lane.b32.xlu0 %v4303, 8
        %v4508 = vpop.permute.xlu0 %4507
        %4509 = vrot.lane.b32.xlu0 %v4306, 8
        %v4510 = vpop.permute.xlu0 %4509
        %4511 = vrot.lane.b32.xlu0 %v4318, 8
        %v4512 = vpop.permute.xlu0 %4511
        %4513 = vrot.lane.b32.xlu0 %v4321, 8
        %v4514 = vpop.permute.xlu0 %4513
        %4515 = vrot.lane.b32.xlu0 %v4333, 8
        %v4516 = vpop.permute.xlu0 %4515
        %4517 = vrot.lane.b32.xlu0 %v4336, 8
        %v4518 = vpop.permute.xlu0 %4517
        %4519 = vrot.lane.b32.xlu0 %v4348, 8
        %v4520 = vpop.permute.xlu0 %4519
        %4521 = vrot.lane.b32.xlu0 %v4351, 8
        %v4522 = vpop.permute.xlu0 %4521
        %4523 = vrot.lane.b32.xlu0 %v4363, 8
        %v4524 = vpop.permute.xlu0 %4523
        %4525 = vrot.lane.b32.xlu0 %v4366, 8
        %v4526 = vpop.permute.xlu0 %4525
        %4527 = vrot.lane.b32.xlu0 %v4378, 8
        %v4528 = vpop.permute.xlu0 %4527
        %4529 = vrot.lane.b32.xlu0 %v4381, 8
        %v4530 = vpop.permute.xlu0 %4529
        %4531 = vrot.lane.b32.xlu0 %v4393, 8
        %v4532 = vpop.permute.xlu0 %4531
        %4533 = vrot.lane.b32.xlu0 %v4396, 8
        %v4534 = vpop.permute.xlu0 %4533
        %4535 = vrot.lane.b32.xlu0 %v4408, 8
        %v4536 = vpop.permute.xlu0 %4535
        %4537 = vrot.lane.b32.xlu0 %v4411, 8
        %v4538 = vpop.permute.xlu0 %4537
        %4539 = vrot.lane.b32.xlu0 %v4423, 8
        %v4540 = vpop.permute.xlu0 %4539
        %4541 = vrot.lane.b32.xlu0 %v4426, 8
        %v4542 = vpop.permute.xlu0 %4541
        %4543 = vrot.lane.b32.xlu0 %v4438, 8
        %v4544 = vpop.permute.xlu0 %4543
        %4545 = vrot.lane.b32.xlu0 %v4441, 8
        %v4546 = vpop.permute.xlu0 %4545
        %4547 = vrot.lane.b32.xlu0 %v4453, 8
        %v4548 = vpop.permute.xlu0 %4547
        %4549 = vrot.lane.b32.xlu0 %v4456, 8
        %v4550 = vpop.permute.xlu0 %4549
        %4551 = vrot.lane.b32.xlu0 %v4468, 8
        %v4552 = vpop.permute.xlu0 %4551
        %4553 = vrot.lane.b32.xlu0 %v4471, 8
        %v4554 = vpop.permute.xlu0 %4553
        %4555 = vrot.lane.b32.xlu0 %v4483, 8
        %v4556 = vpop.permute.xlu0 %4555
        %4557 = vrot.lane.b32.xlu0 %v4486, 8
        %v4558 = vpop.permute.xlu0 %4557
        %v4559 = vrot.slane %v4181, 1
        %v4560 = vrot.slane %v4182, 1
        %v4561 = vsel %vm914, %v4559, %v4560
        %v4562 = vrot.slane %v4183, 1
        %v4563 = vrot.slane %v4184, 1
        %v4564 = vsel %vm914, %v4562, %v4563
        %v4565 = vrot.slane %v4185, 1
        %v4566 = vrot.slane %v4186, 1
        %v4567 = vsel %vm914, %v4565, %v4566
        %v4568 = vrot.slane %v4187, 1
        %v4569 = vrot.slane %v4188, 1
        %v4570 = vsel %vm914, %v4568, %v4569
        %v4571 = vrot.slane %v4189, 1
        %v4572 = vrot.slane %v4190, 1
        %v4573 = vsel %vm914, %v4571, %v4572
        %v4574 = vrot.slane %v4191, 1
        %v4575 = vrot.slane %v4192, 1
        %v4576 = vsel %vm914, %v4574, %v4575
        %v4577 = vrot.slane %v4193, 1
        %v4578 = vrot.slane %v4194, 1
        %v4579 = vsel %vm914, %v4577, %v4578
        %v4580 = vrot.slane %v4195, 1
        %v4581 = vrot.slane %v4196, 1
        %v4582 = vsel %vm914, %v4580, %v4581
        %v4583 = vrot.slane %v4197, 1
        %v4584 = vrot.slane %v4198, 1
        %v4585 = vsel %vm914, %v4583, %v4584
        %v4586 = vrot.slane %v4199, 1
        %v4587 = vrot.slane %v4200, 1
        %v4588 = vsel %vm914, %v4586, %v4587
        %v4589 = vrot.slane %v4201, 1
        %v4590 = vrot.slane %v4202, 1
        %v4591 = vsel %vm914, %v4589, %v4590
        %v4592 = vrot.slane %v4203, 1
        %v4593 = vrot.slane %v4204, 1
        %v4594 = vsel %vm914, %v4592, %v4593
        %v4595 = vrot.slane %v4205, 1
        %v4596 = vrot.slane %v4206, 1
        %v4597 = vsel %vm914, %v4595, %v4596
        %v4598 = vrot.slane %v4207, 1
        %v4599 = vrot.slane %v4208, 1
        %v4600 = vsel %vm914, %v4598, %v4599
        %v4601 = vrot.slane %v4209, 1
        %v4602 = vrot.slane %v4210, 1
        %v4603 = vsel %vm914, %v4601, %v4602
        %v4604 = vrot.slane %v4211, 1
        %v4605 = vrot.slane %v4212, 1
        %v4606 = vsel %vm914, %v4604, %v4605
        %v4607 = vrot.slane %v4213, 1
        %v4608 = vrot.slane %v4214, 1
        %v4609 = vsel %vm914, %v4607, %v4608
        %v4610 = vrot.slane %v4215, 1
        %v4611 = vrot.slane %v4216, 1
        %v4612 = vsel %vm914, %v4610, %v4611
        %4613 = vrot.lane.b32.xlu0 %v4561, 16
        %v4614 = vpop.permute.xlu0 %4613
        %4615 = vrot.lane.b32.xlu0 %v4560, 16
        %v4616 = vpop.permute.xlu0 %4615
        %4617 = vrot.lane.b32.xlu0 %v4564, 16
        %v4618 = vpop.permute.xlu0 %4617
        %4619 = vrot.lane.b32.xlu0 %v4563, 16
        %v4620 = vpop.permute.xlu0 %4619
        %4621 = vrot.lane.b32.xlu0 %v4567, 16
        %v4622 = vpop.permute.xlu0 %4621
        %4623 = vrot.lane.b32.xlu0 %v4566, 16
        %v4624 = vpop.permute.xlu0 %4623
        %4625 = vrot.lane.b32.xlu0 %v4570, 16
        %v4626 = vpop.permute.xlu0 %4625
        %4627 = vrot.lane.b32.xlu0 %v4569, 16
        %v4628 = vpop.permute.xlu0 %4627
        %4629 = vrot.lane.b32.xlu0 %v4573, 16
        %v4630 = vpop.permute.xlu0 %4629
        %4631 = vrot.lane.b32.xlu0 %v4572, 16
        %v4632 = vpop.permute.xlu0 %4631
        %4633 = vrot.lane.b32.xlu0 %v4576, 16
        %v4634 = vpop.permute.xlu0 %4633
        %4635 = vrot.lane.b32.xlu0 %v4575, 16
        %v4636 = vpop.permute.xlu0 %4635
        %4637 = vrot.lane.b32.xlu0 %v4579, 16
        %v4638 = vpop.permute.xlu0 %4637
        %4639 = vrot.lane.b32.xlu0 %v4578, 16
        %v4640 = vpop.permute.xlu0 %4639
        %4641 = vrot.lane.b32.xlu0 %v4582, 16
        %v4642 = vpop.permute.xlu0 %4641
        %4643 = vrot.lane.b32.xlu0 %v4581, 16
        %v4644 = vpop.permute.xlu0 %4643
        %4645 = vrot.lane.b32.xlu0 %v4585, 16
        %v4646 = vpop.permute.xlu0 %4645
        %4647 = vrot.lane.b32.xlu0 %v4584, 16
        %v4648 = vpop.permute.xlu0 %4647
        %4649 = vrot.lane.b32.xlu0 %v4588, 16
        %v4650 = vpop.permute.xlu0 %4649
        %4651 = vrot.lane.b32.xlu0 %v4587, 16
        %v4652 = vpop.permute.xlu0 %4651
        %4653 = vrot.lane.b32.xlu0 %v4591, 16
        %v4654 = vpop.permute.xlu0 %4653
        %4655 = vrot.lane.b32.xlu0 %v4590, 16
        %v4656 = vpop.permute.xlu0 %4655
        %4657 = vrot.lane.b32.xlu0 %v4594, 16
        %v4658 = vpop.permute.xlu0 %4657
        %4659 = vrot.lane.b32.xlu0 %v4593, 16
        %v4660 = vpop.permute.xlu0 %4659
        %4661 = vrot.lane.b32.xlu0 %v4597, 16
        %v4662 = vpop.permute.xlu0 %4661
        %4663 = vrot.lane.b32.xlu0 %v4596, 16
        %v4664 = vpop.permute.xlu0 %4663
        %4665 = vrot.lane.b32.xlu0 %v4600, 16
        %v4666 = vpop.permute.xlu0 %4665
        %4667 = vrot.lane.b32.xlu0 %v4599, 16
        %v4668 = vpop.permute.xlu0 %4667
        %4669 = vrot.lane.b32.xlu0 %v4603, 16
        %v4670 = vpop.permute.xlu0 %4669
        %4671 = vrot.lane.b32.xlu0 %v4602, 16
        %v4672 = vpop.permute.xlu0 %4671
        %4673 = vrot.lane.b32.xlu0 %v4606, 16
        %v4674 = vpop.permute.xlu0 %4673
        %4675 = vrot.lane.b32.xlu0 %v4605, 16
        %v4676 = vpop.permute.xlu0 %4675
        %4677 = vrot.lane.b32.xlu0 %v4609, 16
        %v4678 = vpop.permute.xlu0 %4677
        %4679 = vrot.lane.b32.xlu0 %v4608, 16
        %v4680 = vpop.permute.xlu0 %4679
        %4681 = vrot.lane.b32.xlu0 %v4612, 16
        %v4682 = vpop.permute.xlu0 %4681
        %4683 = vrot.lane.b32.xlu0 %v4611, 16
        %v4684 = vpop.permute.xlu0 %4683
        %v4688 = vunpack.c.l.b16 %v4057
        %v4689 = vunpack.c.l.b16 %v4058
        %v4690 = vunpack.c.l.b16 %v4059
        %v4691 = vpack.c.b16 %v4689, %v4688
        %v4692 = vpack.c.b16 %v4690, %v4690
        %4693 = vrot.lane.b32.xlu0 %v4183, 24
        %v4694 = vpop.permute.xlu0 %4693
        %4695 = vrot.lane.b32.xlu0 %v4184, 24
        %v4696 = vpop.permute.xlu0 %4695
        %4697 = vrot.lane.b32.xlu0 %v4185, 24
        %v4698 = vpop.permute.xlu0 %4697
        %4699 = vrot.lane.b32.xlu0 %v4186, 24
        %v4700 = vpop.permute.xlu0 %4699
        %4701 = vrot.lane.b32.xlu0 %v4187, 24
        %v4702 = vpop.permute.xlu0 %4701
        %4703 = vrot.lane.b32.xlu0 %v4188, 24
        %v4704 = vpop.permute.xlu0 %4703
        %4705 = vrot.lane.b32.xlu0 %v4189, 24
        %v4706 = vpop.permute.xlu0 %4705
        %4707 = vrot.lane.b32.xlu0 %v4190, 24
        %v4708 = vpop.permute.xlu0 %4707
        %4709 = vrot.lane.b32.xlu0 %v4191, 24
        %v4710 = vpop.permute.xlu0 %4709
        %4711 = vrot.lane.b32.xlu0 %v4192, 24
        %v4712 = vpop.permute.xlu0 %4711
        %4713 = vrot.lane.b32.xlu0 %v4193, 24
        %v4714 = vpop.permute.xlu0 %4713
        %4715 = vrot.lane.b32.xlu0 %v4194, 24
        %v4716 = vpop.permute.xlu0 %4715
        %4717 = vrot.lane.b32.xlu0 %v4195, 24
        %v4718 = vpop.permute.xlu0 %4717
        %4719 = vrot.lane.b32.xlu0 %v4196, 24
        %v4720 = vpop.permute.xlu0 %4719
        %4721 = vrot.lane.b32.xlu0 %v4197, 24
        %v4722 = vpop.permute.xlu0 %4721
        %4723 = vrot.lane.b32.xlu0 %v4198, 24
        %v4724 = vpop.permute.xlu0 %4723
        %4725 = vrot.lane.b32.xlu0 %v4199, 24
        %v4726 = vpop.permute.xlu0 %4725
        %4727 = vrot.lane.b32.xlu0 %v4200, 24
        %v4728 = vpop.permute.xlu0 %4727
        %4729 = vrot.lane.b32.xlu0 %v4201, 24
        %v4730 = vpop.permute.xlu0 %4729
        %4731 = vrot.lane.b32.xlu0 %v4202, 24
        %v4732 = vpop.permute.xlu0 %4731
        %4733 = vrot.lane.b32.xlu0 %v4203, 24
        %v4734 = vpop.permute.xlu0 %4733
        %4735 = vrot.lane.b32.xlu0 %v4204, 24
        %v4736 = vpop.permute.xlu0 %4735
        %4737 = vrot.lane.b32.xlu0 %v4205, 24
        %v4738 = vpop.permute.xlu0 %4737
        %4739 = vrot.lane.b32.xlu0 %v4206, 24
        %v4740 = vpop.permute.xlu0 %4739
        %4741 = vrot.lane.b32.xlu0 %v4207, 24
        %v4742 = vpop.permute.xlu0 %4741
        %4743 = vrot.lane.b32.xlu0 %v4208, 24
        %v4744 = vpop.permute.xlu0 %4743
        %4745 = vrot.lane.b32.xlu0 %v4209, 24
        %v4746 = vpop.permute.xlu0 %4745
        %4747 = vrot.lane.b32.xlu0 %v4210, 24
        %v4748 = vpop.permute.xlu0 %4747
        %4749 = vrot.lane.b32.xlu0 %v4211, 24
        %v4750 = vpop.permute.xlu0 %4749
        %4751 = vrot.lane.b32.xlu0 %v4212, 24
        %v4752 = vpop.permute.xlu0 %4751
        %4753 = vrot.lane.b32.xlu0 %v4213, 24
        %v4754 = vpop.permute.xlu0 %4753
        %4755 = vrot.lane.b32.xlu0 %v4214, 24
        %v4756 = vpop.permute.xlu0 %4755
        %4757 = vrot.lane.b32.xlu0 %v4215, 24
        %v4758 = vpop.permute.xlu0 %4757
        %4759 = vrot.lane.b32.xlu0 %v4216, 24
        %v4760 = vpop.permute.xlu0 %4759
        %4761 = vrot.lane.b32.xlu0 %v4691, 24
        %v4762 = vpop.permute.xlu0 %4761
        %4763 = vrot.lane.b32.xlu0 %v4692, 24
        %v4764 = vpop.permute.xlu0 %4763
        %v4766 = vshrl.u32 %v4691, 16
        %v4768 = vshll.u32 %v4691, 16
        %v4770 = vrot.slane %v4768, 1
        %v4771 = vor.u32 %v4766, %v4770
        %v4773 = vshll.u32 %v4692, 16
        %v4775 = vrot.slane %v4773, 1
        %v4776 = vsel %vm533, %v4771, %v4775
        %v4777 = vshrl.u32 %v4692, 16
        %v4779 = vor.u32 %v4777, %v4775
        %4780 = vrot.lane.b32.xlu0 %v4243, 32
        %v4781 = vpop.permute.xlu0 %4780
        %4782 = vrot.lane.b32.xlu0 %v4246, 32
        %v4783 = vpop.permute.xlu0 %4782
        %4784 = vrot.lane.b32.xlu0 %v4258, 32
        %v4785 = vpop.permute.xlu0 %4784
        %4786 = vrot.lane.b32.xlu0 %v4261, 32
        %v4787 = vpop.permute.xlu0 %4786
        %4788 = vrot.lane.b32.xlu0 %v4273, 32
        %v4789 = vpop.permute.xlu0 %4788
        %4790 = vrot.lane.b32.xlu0 %v4276, 32
        %v4791 = vpop.permute.xlu0 %4790
        %4792 = vrot.lane.b32.xlu0 %v4288, 32
        %v4793 = vpop.permute.xlu0 %4792
        %4794 = vrot.lane.b32.xlu0 %v4291, 32
        %v4795 = vpop.permute.xlu0 %4794
        %4796 = vrot.lane.b32.xlu0 %v4303, 32
        %v4797 = vpop.permute.xlu0 %4796
        %4798 = vrot.lane.b32.xlu0 %v4306, 32
        %v4799 = vpop.permute.xlu0 %4798
        %4800 = vrot.lane.b32.xlu0 %v4318, 32
        %v4801 = vpop.permute.xlu0 %4800
        %4802 = vrot.lane.b32.xlu0 %v4321, 32
        %v4803 = vpop.permute.xlu0 %4802
        %4804 = vrot.lane.b32.xlu0 %v4333, 32
        %v4805 = vpop.permute.xlu0 %4804
        %4806 = vrot.lane.b32.xlu0 %v4336, 32
        %v4807 = vpop.permute.xlu0 %4806
        %4808 = vrot.lane.b32.xlu0 %v4348, 32
        %v4809 = vpop.permute.xlu0 %4808
        %4810 = vrot.lane.b32.xlu0 %v4351, 32
        %v4811 = vpop.permute.xlu0 %4810
        %4812 = vrot.lane.b32.xlu0 %v4363, 32
        %v4813 = vpop.permute.xlu0 %4812
        %4814 = vrot.lane.b32.xlu0 %v4366, 32
        %v4815 = vpop.permute.xlu0 %4814
        %4816 = vrot.lane.b32.xlu0 %v4378, 32
        %v4817 = vpop.permute.xlu0 %4816
        %4818 = vrot.lane.b32.xlu0 %v4381, 32
        %v4819 = vpop.permute.xlu0 %4818
        %4820 = vrot.lane.b32.xlu0 %v4393, 32
        %v4821 = vpop.permute.xlu0 %4820
        %4822 = vrot.lane.b32.xlu0 %v4396, 32
        %v4823 = vpop.permute.xlu0 %4822
        %4824 = vrot.lane.b32.xlu0 %v4408, 32
        %v4825 = vpop.permute.xlu0 %4824
        %4826 = vrot.lane.b32.xlu0 %v4411, 32
        %v4827 = vpop.permute.xlu0 %4826
        %4828 = vrot.lane.b32.xlu0 %v4423, 32
        %v4829 = vpop.permute.xlu0 %4828
        %4830 = vrot.lane.b32.xlu0 %v4426, 32
        %v4831 = vpop.permute.xlu0 %4830
        %4832 = vrot.lane.b32.xlu0 %v4438, 32
        %v4833 = vpop.permute.xlu0 %4832
        %4834 = vrot.lane.b32.xlu0 %v4441, 32
        %v4835 = vpop.permute.xlu0 %4834
        %4836 = vrot.lane.b32.xlu0 %v4453, 32
        %v4837 = vpop.permute.xlu0 %4836
        %4838 = vrot.lane.b32.xlu0 %v4456, 32
        %v4839 = vpop.permute.xlu0 %4838
        %4840 = vrot.lane.b32.xlu0 %v4468, 32
        %v4841 = vpop.permute.xlu0 %4840
        %4842 = vrot.lane.b32.xlu0 %v4471, 32
        %v4843 = vpop.permute.xlu0 %4842
        %4844 = vrot.lane.b32.xlu0 %v4483, 32
        %v4845 = vpop.permute.xlu0 %4844
        %4846 = vrot.lane.b32.xlu0 %v4486, 32
        %v4847 = vpop.permute.xlu0 %4846
        %4848 = vrot.lane.b32.xlu0 %v4776, 32
        %v4849 = vpop.permute.xlu0 %4848
        %4850 = vrot.lane.b32.xlu0 %v4779, 32
        %v4851 = vpop.permute.xlu0 %4850
        %v4852 = vrot.slane %v4691, 1
        %v4853 = vrot.slane %v4692, 1
        %v4854 = vsel %vm914, %v4852, %v4853
        %4855 = vrot.lane.b32.xlu0 %v4564, 40
        %v4856 = vpop.permute.xlu0 %4855
        %4857 = vrot.lane.b32.xlu0 %v4563, 40
        %v4858 = vpop.permute.xlu0 %4857
        %4859 = vrot.lane.b32.xlu0 %v4567, 40
        %v4860 = vpop.permute.xlu0 %4859
        %4861 = vrot.lane.b32.xlu0 %v4566, 40
        %v4862 = vpop.permute.xlu0 %4861
        %4863 = vrot.lane.b32.xlu0 %v4570, 40
        %v4864 = vpop.permute.xlu0 %4863
        %4865 = vrot.lane.b32.xlu0 %v4569, 40
        %v4866 = vpop.permute.xlu0 %4865
        %4867 = vrot.lane.b32.xlu0 %v4573, 40
        %v4868 = vpop.permute.xlu0 %4867
        %4869 = vrot.lane.b32.xlu0 %v4572, 40
        %v4870 = vpop.permute.xlu0 %4869
        %4871 = vrot.lane.b32.xlu0 %v4576, 40
        %v4872 = vpop.permute.xlu0 %4871
        %4873 = vrot.lane.b32.xlu0 %v4575, 40
        %v4874 = vpop.permute.xlu0 %4873
        %4875 = vrot.lane.b32.xlu0 %v4579, 40
        %v4876 = vpop.permute.xlu0 %4875
        %4877 = vrot.lane.b32.xlu0 %v4578, 40
        %v4878 = vpop.permute.xlu0 %4877
        %4879 = vrot.lane.b32.xlu0 %v4582, 40
        %v4880 = vpop.permute.xlu0 %4879
        %4881 = vrot.lane.b32.xlu0 %v4581, 40
        %v4882 = vpop.permute.xlu0 %4881
        %4883 = vrot.lane.b32.xlu0 %v4585, 40
        %v4884 = vpop.permute.xlu0 %4883
        %4885 = vrot.lane.b32.xlu0 %v4584, 40
        %v4886 = vpop.permute.xlu0 %4885
        %4887 = vrot.lane.b32.xlu0 %v4588, 40
        %v4888 = vpop.permute.xlu0 %4887
        %4889 = vrot.lane.b32.xlu0 %v4587, 40
        %v4890 = vpop.permute.xlu0 %4889
        %4891 = vrot.lane.b32.xlu0 %v4591, 40
        %v4892 = vpop.permute.xlu0 %4891
        %4893 = vrot.lane.b32.xlu0 %v4590, 40
        %v4894 = vpop.permute.xlu0 %4893
        %4895 = vrot.lane.b32.xlu0 %v4594, 40
        %v4896 = vpop.permute.xlu0 %4895
        %4897 = vrot.lane.b32.xlu0 %v4593, 40
        %v4898 = vpop.permute.xlu0 %4897
        %4899 = vrot.lane.b32.xlu0 %v4597, 40
        %v4900 = vpop.permute.xlu0 %4899
        %4901 = vrot.lane.b32.xlu0 %v4596, 40
        %v4902 = vpop.permute.xlu0 %4901
        %4903 = vrot.lane.b32.xlu0 %v4600, 40
        %v4904 = vpop.permute.xlu0 %4903
        %4905 = vrot.lane.b32.xlu0 %v4599, 40
        %v4906 = vpop.permute.xlu0 %4905
        %4907 = vrot.lane.b32.xlu0 %v4603, 40
        %v4908 = vpop.permute.xlu0 %4907
        %4909 = vrot.lane.b32.xlu0 %v4602, 40
        %v4910 = vpop.permute.xlu0 %4909
        %4911 = vrot.lane.b32.xlu0 %v4606, 40
        %v4912 = vpop.permute.xlu0 %4911
        %4913 = vrot.lane.b32.xlu0 %v4605, 40
        %v4914 = vpop.permute.xlu0 %4913
        %4915 = vrot.lane.b32.xlu0 %v4609, 40
        %v4916 = vpop.permute.xlu0 %4915
        %4917 = vrot.lane.b32.xlu0 %v4608, 40
        %v4918 = vpop.permute.xlu0 %4917
        %4919 = vrot.lane.b32.xlu0 %v4612, 40
        %v4920 = vpop.permute.xlu0 %4919
        %4921 = vrot.lane.b32.xlu0 %v4611, 40
        %v4922 = vpop.permute.xlu0 %4921
        %4923 = vrot.lane.b32.xlu0 %v4854, 40
        %v4924 = vpop.permute.xlu0 %4923
        %4925 = vrot.lane.b32.xlu0 %v4853, 40
        %v4926 = vpop.permute.xlu0 %4925
        %v4930 = vunpack.c.l.b16 %v4060
        %v4931 = vunpack.c.l.b16 %v4061
        %v4932 = vunpack.c.l.b16 %v4062
        %v4933 = vpack.c.b16 %v4931, %v4930
        %v4934 = vpack.c.b16 %v4932, %v4932
        %4935 = vrot.lane.b32.xlu0 %v4185, 48
        %v4936 = vpop.permute.xlu0 %4935
        %4937 = vrot.lane.b32.xlu0 %v4186, 48
        %v4938 = vpop.permute.xlu0 %4937
        %4939 = vrot.lane.b32.xlu0 %v4187, 48
        %v4940 = vpop.permute.xlu0 %4939
        %4941 = vrot.lane.b32.xlu0 %v4188, 48
        %v4942 = vpop.permute.xlu0 %4941
        %4943 = vrot.lane.b32.xlu0 %v4189, 48
        %v4944 = vpop.permute.xlu0 %4943
        %4945 = vrot.lane.b32.xlu0 %v4190, 48
        %v4946 = vpop.permute.xlu0 %4945
        %4947 = vrot.lane.b32.xlu0 %v4191, 48
        %v4948 = vpop.permute.xlu0 %4947
        %4949 = vrot.lane.b32.xlu0 %v4192, 48
        %v4950 = vpop.permute.xlu0 %4949
        %4951 = vrot.lane.b32.xlu0 %v4193, 48
        %v4952 = vpop.permute.xlu0 %4951
        %4953 = vrot.lane.b32.xlu0 %v4194, 48
        %v4954 = vpop.permute.xlu0 %4953
        %4955 = vrot.lane.b32.xlu0 %v4195, 48
        %v4956 = vpop.permute.xlu0 %4955
        %4957 = vrot.lane.b32.xlu0 %v4196, 48
        %v4958 = vpop.permute.xlu0 %4957
        %4959 = vrot.lane.b32.xlu0 %v4197, 48
        %v4960 = vpop.permute.xlu0 %4959
        %4961 = vrot.lane.b32.xlu0 %v4198, 48
        %v4962 = vpop.permute.xlu0 %4961
        %4963 = vrot.lane.b32.xlu0 %v4199, 48
        %v4964 = vpop.permute.xlu0 %4963
        %4965 = vrot.lane.b32.xlu0 %v4200, 48
        %v4966 = vpop.permute.xlu0 %4965
        %4967 = vrot.lane.b32.xlu0 %v4201, 48
        %v4968 = vpop.permute.xlu0 %4967
        %4969 = vrot.lane.b32.xlu0 %v4202, 48
        %v4970 = vpop.permute.xlu0 %4969
        %4971 = vrot.lane.b32.xlu0 %v4203, 48
        %v4972 = vpop.permute.xlu0 %4971
        %4973 = vrot.lane.b32.xlu0 %v4204, 48
        %v4974 = vpop.permute.xlu0 %4973
        %4975 = vrot.lane.b32.xlu0 %v4205, 48
        %v4976 = vpop.permute.xlu0 %4975
        %4977 = vrot.lane.b32.xlu0 %v4206, 48
        %v4978 = vpop.permute.xlu0 %4977
        %4979 = vrot.lane.b32.xlu0 %v4207, 48
        %v4980 = vpop.permute.xlu0 %4979
        %4981 = vrot.lane.b32.xlu0 %v4208, 48
        %v4982 = vpop.permute.xlu0 %4981
        %4983 = vrot.lane.b32.xlu0 %v4209, 48
        %v4984 = vpop.permute.xlu0 %4983
        %4985 = vrot.lane.b32.xlu0 %v4210, 48
        %v4986 = vpop.permute.xlu0 %4985
        %4987 = vrot.lane.b32.xlu0 %v4211, 48
        %v4988 = vpop.permute.xlu0 %4987
        %4989 = vrot.lane.b32.xlu0 %v4212, 48
        %v4990 = vpop.permute.xlu0 %4989
        %4991 = vrot.lane.b32.xlu0 %v4213, 48
        %v4992 = vpop.permute.xlu0 %4991
        %4993 = vrot.lane.b32.xlu0 %v4214, 48
        %v4994 = vpop.permute.xlu0 %4993
        %4995 = vrot.lane.b32.xlu0 %v4215, 48
        %v4996 = vpop.permute.xlu0 %4995
        %4997 = vrot.lane.b32.xlu0 %v4216, 48
        %v4998 = vpop.permute.xlu0 %4997
        %4999 = vrot.lane.b32.xlu0 %v4691, 48
        %v5000 = vpop.permute.xlu0 %4999
        %5001 = vrot.lane.b32.xlu0 %v4692, 48
        %v5002 = vpop.permute.xlu0 %5001
        %5003 = vrot.lane.b32.xlu0 %v4933, 48
        %v5004 = vpop.permute.xlu0 %5003
        %5005 = vrot.lane.b32.xlu0 %v4934, 48
        %v5006 = vpop.permute.xlu0 %5005
        %v5008 = vshrl.u32 %v4933, 16
        %v5010 = vshll.u32 %v4933, 16
        %v5012 = vrot.slane %v5010, 1
        %v5013 = vor.u32 %v5008, %v5012
        %v5015 = vshll.u32 %v4934, 16
        %v5017 = vrot.slane %v5015, 1
        %v5018 = vsel %vm533, %v5013, %v5017
        %v5019 = vshrl.u32 %v4934, 16
        %v5021 = vor.u32 %v5019, %v5017
        %5022 = vrot.lane.b32.xlu0 %v4258, 56
        %v5023 = vpop.permute.xlu0 %5022
        %5024 = vrot.lane.b32.xlu0 %v4261, 56
        %v5025 = vpop.permute.xlu0 %5024
        %5026 = vrot.lane.b32.xlu0 %v4273, 56
        %v5027 = vpop.permute.xlu0 %5026
        %5028 = vrot.lane.b32.xlu0 %v4276, 56
        %v5029 = vpop.permute.xlu0 %5028
        %5030 = vrot.lane.b32.xlu0 %v4288, 56
        %v5031 = vpop.permute.xlu0 %5030
        %5032 = vrot.lane.b32.xlu0 %v4291, 56
        %v5033 = vpop.permute.xlu0 %5032
        %5034 = vrot.lane.b32.xlu0 %v4303, 56
        %v5035 = vpop.permute.xlu0 %5034
        %5036 = vrot.lane.b32.xlu0 %v4306, 56
        %v5037 = vpop.permute.xlu0 %5036
        %5038 = vrot.lane.b32.xlu0 %v4318, 56
        %v5039 = vpop.permute.xlu0 %5038
        %5040 = vrot.lane.b32.xlu0 %v4321, 56
        %v5041 = vpop.permute.xlu0 %5040
        %5042 = vrot.lane.b32.xlu0 %v4333, 56
        %v5043 = vpop.permute.xlu0 %5042
        %5044 = vrot.lane.b32.xlu0 %v4336, 56
        %v5045 = vpop.permute.xlu0 %5044
        %5046 = vrot.lane.b32.xlu0 %v4348, 56
        %v5047 = vpop.permute.xlu0 %5046
        %5048 = vrot.lane.b32.xlu0 %v4351, 56
        %v5049 = vpop.permute.xlu0 %5048
        %5050 = vrot.lane.b32.xlu0 %v4363, 56
        %v5051 = vpop.permute.xlu0 %5050
        %5052 = vrot.lane.b32.xlu0 %v4366, 56
        %v5053 = vpop.permute.xlu0 %5052
        %5054 = vrot.lane.b32.xlu0 %v4378, 56
        %v5055 = vpop.permute.xlu0 %5054
        %5056 = vrot.lane.b32.xlu0 %v4381, 56
        %v5057 = vpop.permute.xlu0 %5056
        %5058 = vrot.lane.b32.xlu0 %v4393, 56
        %v5059 = vpop.permute.xlu0 %5058
        %5060 = vrot.lane.b32.xlu0 %v4396, 56
        %v5061 = vpop.permute.xlu0 %5060
        %5062 = vrot.lane.b32.xlu0 %v4408, 56
        %v5063 = vpop.permute.xlu0 %5062
        %5064 = vrot.lane.b32.xlu0 %v4411, 56
        %v5065 = vpop.permute.xlu0 %5064
        %5066 = vrot.lane.b32.xlu0 %v4423, 56
        %v5067 = vpop.permute.xlu0 %5066
        %5068 = vrot.lane.b32.xlu0 %v4426, 56
        %v5069 = vpop.permute.xlu0 %5068
        %5070 = vrot.lane.b32.xlu0 %v4438, 56
        %v5071 = vpop.permute.xlu0 %5070
        %5072 = vrot.lane.b32.xlu0 %v4441, 56
        %v5073 = vpop.permute.xlu0 %5072
        %5074 = vrot.lane.b32.xlu0 %v4453, 56
        %v5075 = vpop.permute.xlu0 %5074
        %5076 = vrot.lane.b32.xlu0 %v4456, 56
        %v5077 = vpop.permute.xlu0 %5076
        %5078 = vrot.lane.b32.xlu0 %v4468, 56
        %v5079 = vpop.permute.xlu0 %5078
        %5080 = vrot.lane.b32.xlu0 %v4471, 56
        %v5081 = vpop.permute.xlu0 %5080
        %5082 = vrot.lane.b32.xlu0 %v4483, 56
        %v5083 = vpop.permute.xlu0 %5082
        %5084 = vrot.lane.b32.xlu0 %v4486, 56
        %v5085 = vpop.permute.xlu0 %5084
        %5086 = vrot.lane.b32.xlu0 %v4776, 56
        %v5087 = vpop.permute.xlu0 %5086
        %5088 = vrot.lane.b32.xlu0 %v4779, 56
        %v5089 = vpop.permute.xlu0 %5088
        %5090 = vrot.lane.b32.xlu0 %v5018, 56
        %v5091 = vpop.permute.xlu0 %5090
        %5092 = vrot.lane.b32.xlu0 %v5021, 56
        %v5093 = vpop.permute.xlu0 %5092
        %v5094 = vrot.slane %v4933, 1
        %v5095 = vrot.slane %v4934, 1
        %v5096 = vsel %vm914, %v5094, %v5095
        %5097 = vrot.lane.b32.xlu0 %v4567, 64
        %v5098 = vpop.permute.xlu0 %5097
        %5099 = vrot.lane.b32.xlu0 %v4566, 64
        %v5100 = vpop.permute.xlu0 %5099
        %5101 = vrot.lane.b32.xlu0 %v4570, 64
        %v5102 = vpop.permute.xlu0 %5101
        %5103 = vrot.lane.b32.xlu0 %v4569, 64
        %v5104 = vpop.permute.xlu0 %5103
        %5105 = vrot.lane.b32.xlu0 %v4573, 64
        %v5106 = vpop.permute.xlu0 %5105
        %5107 = vrot.lane.b32.xlu0 %v4572, 64
        %v5108 = vpop.permute.xlu0 %5107
        %5109 = vrot.lane.b32.xlu0 %v4576, 64
        %v5110 = vpop.permute.xlu0 %5109
        %5111 = vrot.lane.b32.xlu0 %v4575, 64
        %v5112 = vpop.permute.xlu0 %5111
        %5113 = vrot.lane.b32.xlu0 %v4579, 64
        %v5114 = vpop.permute.xlu0 %5113
        %5115 = vrot.lane.b32.xlu0 %v4578, 64
        %v5116 = vpop.permute.xlu0 %5115
        %5117 = vrot.lane.b32.xlu0 %v4582, 64
        %v5118 = vpop.permute.xlu0 %5117
        %5119 = vrot.lane.b32.xlu0 %v4581, 64
        %v5120 = vpop.permute.xlu0 %5119
        %5121 = vrot.lane.b32.xlu0 %v4585, 64
        %v5122 = vpop.permute.xlu0 %5121
        %5123 = vrot.lane.b32.xlu0 %v4584, 64
        %v5124 = vpop.permute.xlu0 %5123
        %5125 = vrot.lane.b32.xlu0 %v4588, 64
        %v5126 = vpop.permute.xlu0 %5125
        %5127 = vrot.lane.b32.xlu0 %v4587, 64
        %v5128 = vpop.permute.xlu0 %5127
        %5129 = vrot.lane.b32.xlu0 %v4591, 64
        %v5130 = vpop.permute.xlu0 %5129
        %5131 = vrot.lane.b32.xlu0 %v4590, 64
        %v5132 = vpop.permute.xlu0 %5131
        %5133 = vrot.lane.b32.xlu0 %v4594, 64
        %v5134 = vpop.permute.xlu0 %5133
        %5135 = vrot.lane.b32.xlu0 %v4593, 64
        %v5136 = vpop.permute.xlu0 %5135
        %5137 = vrot.lane.b32.xlu0 %v4597, 64
        %v5138 = vpop.permute.xlu0 %5137
        %5139 = vrot.lane.b32.xlu0 %v4596, 64
        %v5140 = vpop.permute.xlu0 %5139
        %5141 = vrot.lane.b32.xlu0 %v4600, 64
        %v5142 = vpop.permute.xlu0 %5141
        %5143 = vrot.lane.b32.xlu0 %v4599, 64
        %v5144 = vpop.permute.xlu0 %5143
        %5145 = vrot.lane.b32.xlu0 %v4603, 64
        %v5146 = vpop.permute.xlu0 %5145
        %5147 = vrot.lane.b32.xlu0 %v4602, 64
        %v5148 = vpop.permute.xlu0 %5147
        %5149 = vrot.lane.b32.xlu0 %v4606, 64
        %v5150 = vpop.permute.xlu0 %5149
        %5151 = vrot.lane.b32.xlu0 %v4605, 64
        %v5152 = vpop.permute.xlu0 %5151
        %5153 = vrot.lane.b32.xlu0 %v4609, 64
        %v5154 = vpop.permute.xlu0 %5153
        %5155 = vrot.lane.b32.xlu0 %v4608, 64
        %v5156 = vpop.permute.xlu0 %5155
        %5157 = vrot.lane.b32.xlu0 %v4612, 64
        %v5158 = vpop.permute.xlu0 %5157
        %5159 = vrot.lane.b32.xlu0 %v4611, 64
        %v5160 = vpop.permute.xlu0 %5159
        %5161 = vrot.lane.b32.xlu0 %v4854, 64
        %v5162 = vpop.permute.xlu0 %5161
        %5163 = vrot.lane.b32.xlu0 %v4853, 64
        %v5164 = vpop.permute.xlu0 %5163
        %5165 = vrot.lane.b32.xlu0 %v5096, 64
        %v5166 = vpop.permute.xlu0 %5165
        %5167 = vrot.lane.b32.xlu0 %v5095, 64
        %v5168 = vpop.permute.xlu0 %5167
        %v5170 = vsel %vm1587, %v4181, %v4488
        %v5172 = vsel %vm1587, %v4182, %v4490
        %v5174 = vsel %vm1587, %v4183, %v4492
        %v5176 = vsel %vm1587, %v4184, %v4494
        %v5178 = vsel %vm1587, %v4185, %v4496
        %v5180 = vsel %vm1587, %v4186, %v4498
        %v5182 = vsel %vm1587, %v4187, %v4500
        %v5184 = vsel %vm1587, %v4188, %v4502
        %v5186 = vsel %vm1587, %v4189, %v4504
        %v5188 = vsel %vm1587, %v4190, %v4506
        %v5190 = vsel %vm1587, %v4191, %v4508
        %v5192 = vsel %vm1587, %v4192, %v4510
        %v5194 = vsel %vm1587, %v4193, %v4512
        %v5196 = vsel %vm1587, %v4194, %v4514
        %v5198 = vsel %vm1587, %v4195, %v4516
        %v5200 = vsel %vm1587, %v4196, %v4518
        %v5202 = vsel %vm1587, %v4197, %v4520
        %v5204 = vsel %vm1587, %v4198, %v4522
        %v5206 = vsel %vm1587, %v4199, %v4524
        %v5208 = vsel %vm1587, %v4200, %v4526
        %v5210 = vsel %vm1587, %v4201, %v4528
        %v5212 = vsel %vm1587, %v4202, %v4530
        %v5214 = vsel %vm1587, %v4203, %v4532
        %v5216 = vsel %vm1587, %v4204, %v4534
        %v5218 = vsel %vm1587, %v4205, %v4536
        %v5220 = vsel %vm1587, %v4206, %v4538
        %v5222 = vsel %vm1587, %v4207, %v4540
        %v5224 = vsel %vm1587, %v4208, %v4542
        %v5226 = vsel %vm1587, %v4209, %v4544
        %v5228 = vsel %vm1587, %v4210, %v4546
        %v5230 = vsel %vm1587, %v4211, %v4548
        %v5232 = vsel %vm1587, %v4212, %v4550
        %v5234 = vsel %vm1587, %v4213, %v4552
        %v5236 = vsel %vm1587, %v4214, %v4554
        %v5238 = vsel %vm1587, %v4215, %v4556
        %v5240 = vsel %vm1587, %v4216, %v4558
        %v5242 = vsel %vm1668, %v5170, %v4614
        %v5244 = vsel %vm1668, %v5172, %v4616
        %v5246 = vsel %vm1668, %v5174, %v4618
        %v5248 = vsel %vm1668, %v5176, %v4620
        %v5250 = vsel %vm1668, %v5178, %v4622
        %v5252 = vsel %vm1668, %v5180, %v4624
        %v5254 = vsel %vm1668, %v5182, %v4626
        %v5256 = vsel %vm1668, %v5184, %v4628
        %v5258 = vsel %vm1668, %v5186, %v4630
        %v5260 = vsel %vm1668, %v5188, %v4632
        %v5262 = vsel %vm1668, %v5190, %v4634
        %v5264 = vsel %vm1668, %v5192, %v4636
        %v5266 = vsel %vm1668, %v5194, %v4638
        %v5268 = vsel %vm1668, %v5196, %v4640
        %v5270 = vsel %vm1668, %v5198, %v4642
        %v5272 = vsel %vm1668, %v5200, %v4644
        %v5274 = vsel %vm1668, %v5202, %v4646
        %v5276 = vsel %vm1668, %v5204, %v4648
        %v5278 = vsel %vm1668, %v5206, %v4650
        %v5280 = vsel %vm1668, %v5208, %v4652
        %v5282 = vsel %vm1668, %v5210, %v4654
        %v5284 = vsel %vm1668, %v5212, %v4656
        %v5286 = vsel %vm1668, %v5214, %v4658
        %v5288 = vsel %vm1668, %v5216, %v4660
        %v5290 = vsel %vm1668, %v5218, %v4662
        %v5292 = vsel %vm1668, %v5220, %v4664
        %v5294 = vsel %vm1668, %v5222, %v4666
        %v5296 = vsel %vm1668, %v5224, %v4668
        %v5298 = vsel %vm1668, %v5226, %v4670
        %v5300 = vsel %vm1668, %v5228, %v4672
        %v5302 = vsel %vm1668, %v5230, %v4674
        %v5304 = vsel %vm1668, %v5232, %v4676
        %v5306 = vsel %vm1668, %v5234, %v4678
        %v5308 = vsel %vm1668, %v5236, %v4680
        %v5310 = vsel %vm1668, %v5238, %v4682
        %v5312 = vsel %vm1668, %v5240, %v4684
        %v5314 = vsel %vm1749, %v5242, %v4694
        %v5316 = vsel %vm1749, %v5244, %v4696
        %v5318 = vsel %vm1749, %v5246, %v4698
        %v5320 = vsel %vm1749, %v5248, %v4700
        %v5322 = vsel %vm1749, %v5250, %v4702
        %v5324 = vsel %vm1749, %v5252, %v4704
        %v5326 = vsel %vm1749, %v5254, %v4706
        %v5328 = vsel %vm1749, %v5256, %v4708
        %v5330 = vsel %vm1749, %v5258, %v4710
        %v5332 = vsel %vm1749, %v5260, %v4712
        %v5334 = vsel %vm1749, %v5262, %v4714
        %v5336 = vsel %vm1749, %v5264, %v4716
        %v5338 = vsel %vm1749, %v5266, %v4718
        %v5340 = vsel %vm1749, %v5268, %v4720
        %v5342 = vsel %vm1749, %v5270, %v4722
        %v5344 = vsel %vm1749, %v5272, %v4724
        %v5346 = vsel %vm1749, %v5274, %v4726
        %v5348 = vsel %vm1749, %v5276, %v4728
        %v5350 = vsel %vm1749, %v5278, %v4730
        %v5352 = vsel %vm1749, %v5280, %v4732
        %v5354 = vsel %vm1749, %v5282, %v4734
        %v5356 = vsel %vm1749, %v5284, %v4736
        %v5358 = vsel %vm1749, %v5286, %v4738
        %v5360 = vsel %vm1749, %v5288, %v4740
        %v5362 = vsel %vm1749, %v5290, %v4742
        %v5364 = vsel %vm1749, %v5292, %v4744
        %v5366 = vsel %vm1749, %v5294, %v4746
        %v5368 = vsel %vm1749, %v5296, %v4748
        %v5370 = vsel %vm1749, %v5298, %v4750
        %v5372 = vsel %vm1749, %v5300, %v4752
        %v5374 = vsel %vm1749, %v5302, %v4754
        %v5376 = vsel %vm1749, %v5304, %v4756
        %v5378 = vsel %vm1749, %v5306, %v4758
        %v5380 = vsel %vm1749, %v5308, %v4760
        %v5382 = vsel %vm1749, %v5310, %v4762
        %v5384 = vsel %vm1749, %v5312, %v4764
        %v5386 = vsel %vm1830, %v5314, %v4781
        %v5388 = vsel %vm1830, %v5316, %v4783
        %v5390 = vsel %vm1830, %v5318, %v4785
        %v5392 = vsel %vm1830, %v5320, %v4787
        %v5394 = vsel %vm1830, %v5322, %v4789
        %v5396 = vsel %vm1830, %v5324, %v4791
        %v5398 = vsel %vm1830, %v5326, %v4793
        %v5400 = vsel %vm1830, %v5328, %v4795
        %v5402 = vsel %vm1830, %v5330, %v4797
        %v5404 = vsel %vm1830, %v5332, %v4799
        %v5406 = vsel %vm1830, %v5334, %v4801
        %v5408 = vsel %vm1830, %v5336, %v4803
        %v5410 = vsel %vm1830, %v5338, %v4805
        %v5412 = vsel %vm1830, %v5340, %v4807
        %v5414 = vsel %vm1830, %v5342, %v4809
        %v5416 = vsel %vm1830, %v5344, %v4811
        %v5418 = vsel %vm1830, %v5346, %v4813
        %v5420 = vsel %vm1830, %v5348, %v4815
        %v5422 = vsel %vm1830, %v5350, %v4817
        %v5424 = vsel %vm1830, %v5352, %v4819
        %v5426 = vsel %vm1830, %v5354, %v4821
        %v5428 = vsel %vm1830, %v5356, %v4823
        %v5430 = vsel %vm1830, %v5358, %v4825
        %v5432 = vsel %vm1830, %v5360, %v4827
        %v5434 = vsel %vm1830, %v5362, %v4829
        %v5436 = vsel %vm1830, %v5364, %v4831
        %v5438 = vsel %vm1830, %v5366, %v4833
        %v5440 = vsel %vm1830, %v5368, %v4835
        %v5442 = vsel %vm1830, %v5370, %v4837
        %v5444 = vsel %vm1830, %v5372, %v4839
        %v5446 = vsel %vm1830, %v5374, %v4841
        %v5448 = vsel %vm1830, %v5376, %v4843
        %v5450 = vsel %vm1830, %v5378, %v4845
        %v5452 = vsel %vm1830, %v5380, %v4847
        %v5454 = vsel %vm1830, %v5382, %v4849
        %v5456 = vsel %vm1830, %v5384, %v4851
        %v5458 = vsel %vm1911, %v5386, %v4856
        %v5460 = vsel %vm1911, %v5388, %v4858
        %v5462 = vsel %vm1911, %v5390, %v4860
        %v5464 = vsel %vm1911, %v5392, %v4862
        %v5466 = vsel %vm1911, %v5394, %v4864
        %v5468 = vsel %vm1911, %v5396, %v4866
        %v5470 = vsel %vm1911, %v5398, %v4868
        %v5472 = vsel %vm1911, %v5400, %v4870
        %v5474 = vsel %vm1911, %v5402, %v4872
        %v5476 = vsel %vm1911, %v5404, %v4874
        %v5478 = vsel %vm1911, %v5406, %v4876
        %v5480 = vsel %vm1911, %v5408, %v4878
        %v5482 = vsel %vm1911, %v5410, %v4880
        %v5484 = vsel %vm1911, %v5412, %v4882
        %v5486 = vsel %vm1911, %v5414, %v4884
        %v5488 = vsel %vm1911, %v5416, %v4886
        %v5490 = vsel %vm1911, %v5418, %v4888
        %v5492 = vsel %vm1911, %v5420, %v4890
        %v5494 = vsel %vm1911, %v5422, %v4892
        %v5496 = vsel %vm1911, %v5424, %v4894
        %v5498 = vsel %vm1911, %v5426, %v4896
        %v5500 = vsel %vm1911, %v5428, %v4898
        %v5502 = vsel %vm1911, %v5430, %v4900
        %v5504 = vsel %vm1911, %v5432, %v4902
        %v5506 = vsel %vm1911, %v5434, %v4904
        %v5508 = vsel %vm1911, %v5436, %v4906
        %v5510 = vsel %vm1911, %v5438, %v4908
        %v5512 = vsel %vm1911, %v5440, %v4910
        %v5514 = vsel %vm1911, %v5442, %v4912
        %v5516 = vsel %vm1911, %v5444, %v4914
        %v5518 = vsel %vm1911, %v5446, %v4916
        %v5520 = vsel %vm1911, %v5448, %v4918
        %v5522 = vsel %vm1911, %v5450, %v4920
        %v5524 = vsel %vm1911, %v5452, %v4922
        %v5526 = vsel %vm1911, %v5454, %v4924
        %v5528 = vsel %vm1911, %v5456, %v4926
        %v5530 = vsel %vm1992, %v5458, %v4936
        %v5532 = vsel %vm1992, %v5460, %v4938
        %v5534 = vsel %vm1992, %v5462, %v4940
        %v5536 = vsel %vm1992, %v5464, %v4942
        %v5538 = vsel %vm1992, %v5466, %v4944
        %v5540 = vsel %vm1992, %v5468, %v4946
        %v5542 = vsel %vm1992, %v5470, %v4948
        %v5544 = vsel %vm1992, %v5472, %v4950
        %v5546 = vsel %vm1992, %v5474, %v4952
        %v5548 = vsel %vm1992, %v5476, %v4954
        %v5550 = vsel %vm1992, %v5478, %v4956
        %v5552 = vsel %vm1992, %v5480, %v4958
        %v5554 = vsel %vm1992, %v5482, %v4960
        %v5556 = vsel %vm1992, %v5484, %v4962
        %v5558 = vsel %vm1992, %v5486, %v4964
        %v5560 = vsel %vm1992, %v5488, %v4966
        %v5562 = vsel %vm1992, %v5490, %v4968
        %v5564 = vsel %vm1992, %v5492, %v4970
        %v5566 = vsel %vm1992, %v5494, %v4972
        %v5568 = vsel %vm1992, %v5496, %v4974
        %v5570 = vsel %vm1992, %v5498, %v4976
        %v5572 = vsel %vm1992, %v5500, %v4978
        %v5574 = vsel %vm1992, %v5502, %v4980
        %v5576 = vsel %vm1992, %v5504, %v4982
        %v5578 = vsel %vm1992, %v5506, %v4984
        %v5580 = vsel %vm1992, %v5508, %v4986
        %v5582 = vsel %vm1992, %v5510, %v4988
        %v5584 = vsel %vm1992, %v5512, %v4990
        %v5586 = vsel %vm1992, %v5514, %v4992
        %v5588 = vsel %vm1992, %v5516, %v4994
        %v5590 = vsel %vm1992, %v5518, %v4996
        %v5592 = vsel %vm1992, %v5520, %v4998
        %v5594 = vsel %vm1992, %v5522, %v5000
        %v5596 = vsel %vm1992, %v5524, %v5002
        %v5598 = vsel %vm1992, %v5526, %v5004
        %v5600 = vsel %vm1992, %v5528, %v5006
        %v5602 = vsel %vm2073, %v5530, %v5023
        %v5604 = vsel %vm2073, %v5532, %v5025
        %v5606 = vsel %vm2073, %v5534, %v5027
        %v5608 = vsel %vm2073, %v5536, %v5029
        %v5610 = vsel %vm2073, %v5538, %v5031
        %v5612 = vsel %vm2073, %v5540, %v5033
        %v5614 = vsel %vm2073, %v5542, %v5035
        %v5616 = vsel %vm2073, %v5544, %v5037
        %v5618 = vsel %vm2073, %v5546, %v5039
        %v5620 = vsel %vm2073, %v5548, %v5041
        %v5622 = vsel %vm2073, %v5550, %v5043
        %v5624 = vsel %vm2073, %v5552, %v5045
        %v5626 = vsel %vm2073, %v5554, %v5047
        %v5628 = vsel %vm2073, %v5556, %v5049
        %v5630 = vsel %vm2073, %v5558, %v5051
        %v5632 = vsel %vm2073, %v5560, %v5053
        %v5634 = vsel %vm2073, %v5562, %v5055
        %v5636 = vsel %vm2073, %v5564, %v5057
        %v5638 = vsel %vm2073, %v5566, %v5059
        %v5640 = vsel %vm2073, %v5568, %v5061
        %v5642 = vsel %vm2073, %v5570, %v5063
        %v5644 = vsel %vm2073, %v5572, %v5065
        %v5646 = vsel %vm2073, %v5574, %v5067
        %v5648 = vsel %vm2073, %v5576, %v5069
        %v5650 = vsel %vm2073, %v5578, %v5071
        %v5652 = vsel %vm2073, %v5580, %v5073
        %v5654 = vsel %vm2073, %v5582, %v5075
        %v5656 = vsel %vm2073, %v5584, %v5077
        %v5658 = vsel %vm2073, %v5586, %v5079
        %v5660 = vsel %vm2073, %v5588, %v5081
        %v5662 = vsel %vm2073, %v5590, %v5083
        %v5664 = vsel %vm2073, %v5592, %v5085
        %v5666 = vsel %vm2073, %v5594, %v5087
        %v5668 = vsel %vm2073, %v5596, %v5089
        %v5670 = vsel %vm2073, %v5598, %v5091
        %v5672 = vsel %vm2073, %v5600, %v5093
        %v5674 = vsel %vm2154, %v5602, %v5098
        %v5676 = vsel %vm2154, %v5604, %v5100
        %v5678 = vsel %vm2154, %v5606, %v5102
        %v5680 = vsel %vm2154, %v5608, %v5104
        %v5682 = vsel %vm2154, %v5610, %v5106
        %v5684 = vsel %vm2154, %v5612, %v5108
        %v5686 = vsel %vm2154, %v5614, %v5110
        %v5688 = vsel %vm2154, %v5616, %v5112
        %v5690 = vsel %vm2154, %v5618, %v5114
        %v5692 = vsel %vm2154, %v5620, %v5116
        %v5694 = vsel %vm2154, %v5622, %v5118
        %v5696 = vsel %vm2154, %v5624, %v5120
        %v5698 = vsel %vm2154, %v5626, %v5122
        %v5700 = vsel %vm2154, %v5628, %v5124
        %v5702 = vsel %vm2154, %v5630, %v5126
        %v5704 = vsel %vm2154, %v5632, %v5128
        %v5706 = vsel %vm2154, %v5634, %v5130
        %v5708 = vsel %vm2154, %v5636, %v5132
        %v5710 = vsel %vm2154, %v5638, %v5134
        %v5712 = vsel %vm2154, %v5640, %v5136
        %v5714 = vsel %vm2154, %v5642, %v5138
        %v5716 = vsel %vm2154, %v5644, %v5140
        %v5718 = vsel %vm2154, %v5646, %v5142
        %v5720 = vsel %vm2154, %v5648, %v5144
        %v5722 = vsel %vm2154, %v5650, %v5146
        %v5724 = vsel %vm2154, %v5652, %v5148
        %v5726 = vsel %vm2154, %v5654, %v5150
        %v5728 = vsel %vm2154, %v5656, %v5152
        %v5730 = vsel %vm2154, %v5658, %v5154
        %v5732 = vsel %vm2154, %v5660, %v5156
        %v5734 = vsel %vm2154, %v5662, %v5158
        %v5736 = vsel %vm2154, %v5664, %v5160
        %v5738 = vsel %vm2154, %v5666, %v5162
        %v5740 = vsel %vm2154, %v5668, %v5164
        %v5742 = vsel %vm2154, %v5670, %v5166
        %v5744 = vsel %vm2154, %v5672, %v5168
        %v5763 = vrot.slane %v5674, 1
        %v5764 = vrot.slane %v5674, 2
        %v5765 = vrot.slane %v5674, 3
        %v5766 = vrot.slane %v5674, 4
        %v5767 = vrot.slane %v5674, 5
        %v5768 = vrot.slane %v5674, 6
        %v5769 = vrot.slane %v5674, 7
        %v5770 = vrot.slane %v5678, 1
        %v5771 = vrot.slane %v5678, 2
        %v5772 = vrot.slane %v5678, 3
        %v5773 = vrot.slane %v5678, 4
        %v5774 = vrot.slane %v5678, 5
        %v5775 = vrot.slane %v5678, 6
        %v5776 = vrot.slane %v5678, 7
        %v5777 = vrot.slane %v5682, 1
        %v5778 = vrot.slane %v5682, 2
        %v5779 = vrot.slane %v5682, 3
        %v5780 = vrot.slane %v5682, 4
        %v5781 = vrot.slane %v5682, 5
        %v5782 = vrot.slane %v5682, 6
        %v5783 = vrot.slane %v5682, 7
        %v5784 = vrot.slane %v5686, 1
        %v5785 = vrot.slane %v5686, 2
        %v5786 = vrot.slane %v5686, 3
        %v5787 = vrot.slane %v5686, 4
        %v5788 = vrot.slane %v5686, 5
        %v5789 = vrot.slane %v5686, 6
        %v5790 = vrot.slane %v5686, 7
        %v5791 = vrot.slane %v5690, 1
        %v5792 = vrot.slane %v5690, 2
        %v5793 = vrot.slane %v5690, 3
        %v5794 = vrot.slane %v5690, 4
        %v5795 = vrot.slane %v5690, 5
        %v5796 = vrot.slane %v5690, 6
        %v5797 = vrot.slane %v5690, 7
        %v5798 = vrot.slane %v5694, 1
        %v5799 = vrot.slane %v5694, 2
        %v5800 = vrot.slane %v5694, 3
        %v5801 = vrot.slane %v5694, 4
        %v5802 = vrot.slane %v5694, 5
        %v5803 = vrot.slane %v5694, 6
        %v5804 = vrot.slane %v5694, 7
        %v5805 = vrot.slane %v5698, 1
        %v5806 = vrot.slane %v5698, 2
        %v5807 = vrot.slane %v5698, 3
        %v5808 = vrot.slane %v5698, 4
        %v5809 = vrot.slane %v5698, 5
        %v5810 = vrot.slane %v5698, 6
        %v5811 = vrot.slane %v5698, 7
        %v5812 = vrot.slane %v5702, 1
        %v5813 = vrot.slane %v5702, 2
        %v5814 = vrot.slane %v5702, 3
        %v5815 = vrot.slane %v5702, 4
        %v5816 = vrot.slane %v5702, 5
        %v5817 = vrot.slane %v5702, 6
        %v5818 = vrot.slane %v5702, 7
        %v5819 = vrot.slane %v5706, 1
        %v5820 = vrot.slane %v5706, 2
        %v5821 = vrot.slane %v5706, 3
        %v5822 = vrot.slane %v5706, 4
        %v5823 = vrot.slane %v5706, 5
        %v5824 = vrot.slane %v5706, 6
        %v5825 = vrot.slane %v5706, 7
        %v5826 = vrot.slane %v5710, 1
        %v5827 = vrot.slane %v5710, 2
        %v5828 = vrot.slane %v5710, 3
        %v5829 = vrot.slane %v5710, 4
        %v5830 = vrot.slane %v5710, 5
        %v5831 = vrot.slane %v5710, 6
        %v5832 = vrot.slane %v5710, 7
        %v5833 = vrot.slane %v5714, 1
        %v5834 = vrot.slane %v5714, 2
        %v5835 = vrot.slane %v5714, 3
        %v5836 = vrot.slane %v5714, 4
        %v5837 = vrot.slane %v5714, 5
        %v5838 = vrot.slane %v5714, 6
        %v5839 = vrot.slane %v5714, 7
        %v5840 = vrot.slane %v5718, 1
        %v5841 = vrot.slane %v5718, 2
        %v5842 = vrot.slane %v5718, 3
        %v5843 = vrot.slane %v5718, 4
        %v5844 = vrot.slane %v5718, 5
        %v5845 = vrot.slane %v5718, 6
        %v5846 = vrot.slane %v5718, 7
        %v5847 = vrot.slane %v5722, 1
        %v5848 = vrot.slane %v5722, 2
        %v5849 = vrot.slane %v5722, 3
        %v5850 = vrot.slane %v5722, 4
        %v5851 = vrot.slane %v5722, 5
        %v5852 = vrot.slane %v5722, 6
        %v5853 = vrot.slane %v5722, 7
        %v5854 = vrot.slane %v5726, 1
        %v5855 = vrot.slane %v5726, 2
        %v5856 = vrot.slane %v5726, 3
        %v5857 = vrot.slane %v5726, 4
        %v5858 = vrot.slane %v5726, 5
        %v5859 = vrot.slane %v5726, 6
        %v5860 = vrot.slane %v5726, 7
        %v5861 = vrot.slane %v5730, 1
        %v5862 = vrot.slane %v5730, 2
        %v5863 = vrot.slane %v5730, 3
        %v5864 = vrot.slane %v5730, 4
        %v5865 = vrot.slane %v5730, 5
        %v5866 = vrot.slane %v5730, 6
        %v5867 = vrot.slane %v5730, 7
        %v5868 = vrot.slane %v5734, 1
        %v5869 = vrot.slane %v5734, 2
        %v5870 = vrot.slane %v5734, 3
        %v5871 = vrot.slane %v5734, 4
        %v5872 = vrot.slane %v5734, 5
        %v5873 = vrot.slane %v5734, 6
        %v5874 = vrot.slane %v5734, 7
        %v5875 = vrot.slane %v5738, 1
        %v5876 = vrot.slane %v5738, 2
        %v5877 = vrot.slane %v5738, 3
        %v5878 = vrot.slane %v5738, 4
        %v5879 = vrot.slane %v5738, 5
        %v5880 = vrot.slane %v5738, 6
        %v5881 = vrot.slane %v5738, 7
        %v5882 = vrot.slane %v5742, 1
        %v5883 = vrot.slane %v5742, 2
        %v5884 = vrot.slane %v5742, 3
        %v5885 = vrot.slane %v5742, 4
        %v5886 = vrot.slane %v5742, 5
        %v5887 = vrot.slane %v5742, 6
        %v5888 = vrot.slane %v5742, 7
        %v5890 = vperm.slane %v4072, 0
        %5892 = vst [vmem:[#allocation1] ss:$9 sm:$0xff] %v5674
        %s5894 = scalar_lea.vmem [#allocation1], 1
        %5895 = vst [vmem:[%s5894] ss:$9 sm:$0xff] %v5763
        %s5897 = scalar_lea.vmem [#allocation1], 2
        %5898 = vst [vmem:[%s5897] ss:$9 sm:$0xff] %v5764
        %s5900 = scalar_lea.vmem [#allocation1], 3
        %5901 = vst [vmem:[%s5900] ss:$9 sm:$0xff] %v5765
        %s5903 = scalar_lea.vmem [#allocation1], 4
        %5904 = vst [vmem:[%s5903] ss:$9 sm:$0xff] %v5766
        %s5906 = scalar_lea.vmem [#allocation1], 5
        %5907 = vst [vmem:[%s5906] ss:$9 sm:$0xff] %v5767
        %s5909 = scalar_lea.vmem [#allocation1], 6
        %5910 = vst [vmem:[%s5909] ss:$9 sm:$0xff] %v5768
        %s5912 = scalar_lea.vmem [#allocation1], 7
        %5913 = vst [vmem:[%s5912] ss:$9 sm:$0xff] %v5769
        %v5914 = vld [vmem:[#allocation1] sm:$0xff]
        %5915 = vst [vmem:[#allocation1] ss:$9 sm:$0xff] %v5676
        %5916 = vst [vmem:[%s5894] ss:$9 sm:$0xff] %v5678
        %5918 = vst [vmem:[%s5897] ss:$9 sm:$0xff] %v5770
        %5920 = vst [vmem:[%s5900] ss:$9 sm:$0xff] %v5771
        %5922 = vst [vmem:[%s5903] ss:$9 sm:$0xff] %v5772
        %5924 = vst [vmem:[%s5906] ss:$9 sm:$0xff] %v5773
        %5926 = vst [vmem:[%s5909] ss:$9 sm:$0xff] %v5774
        %5928 = vst [vmem:[%s5912] ss:$9 sm:$0xff] %v5775
        %v5929 = vld [vmem:[#allocation1] sm:$0xff]
        %5931 = vst [vmem:[#allocation1] ss:$9 sm:$0xff] %v5776
        %5932 = vst [vmem:[%s5894] ss:$9 sm:$0xff] %v5680
        %5933 = vst [vmem:[%s5897] ss:$9 sm:$0xff] %v5682
        %5935 = vst [vmem:[%s5900] ss:$9 sm:$0xff] %v5777
        %5937 = vst [vmem:[%s5903] ss:$9 sm:$0xff] %v5778
        %5939 = vst [vmem:[%s5906] ss:$9 sm:$0xff] %v5779
        %5941 = vst [vmem:[%s5909] ss:$9 sm:$0xff] %v5780
        %5943 = vst [vmem:[%s5912] ss:$9 sm:$0xff] %v5781
        %v5944 = vld [vmem:[#allocation1] sm:$0xff]
        %5946 = vst [vmem:[#allocation1] ss:$9 sm:$0xff] %v5782
        %5948 = vst [vmem:[%s5894] ss:$9 sm:$0xff] %v5783
        %5949 = vst [vmem:[%s5897] ss:$9 sm:$0xff] %v5684
        %5950 = vst [vmem:[%s5900] ss:$9 sm:$0xff] %v5686
        %5952 = vst [vmem:[%s5903] ss:$9 sm:$0xff] %v5784
        %5954 = vst [vmem:[%s5906] ss:$9 sm:$0xff] %v5785
        %5956 = vst [vmem:[%s5909] ss:$9 sm:$0xff] %v5786
        %5958 = vst [vmem:[%s5912] ss:$9 sm:$0xff] %v5787
        %v5959 = vld [vmem:[#allocation1] sm:$0xff]
        %5961 = vst [vmem:[#allocation1] ss:$9 sm:$0xff] %v5788
        %5963 = vst [vmem:[%s5894] ss:$9 sm:$0xff] %v5789
        %5965 = vst [vmem:[%s5897] ss:$9 sm:$0xff] %v5790
        %5966 = vst [vmem:[%s5900] ss:$9 sm:$0xff] %v5688
        %5967 = vst [vmem:[%s5903] ss:$9 sm:$0xff] %v5690
        %5969 = vst [vmem:[%s5906] ss:$9 sm:$0xff] %v5791
        %5971 = vst [vmem:[%s5909] ss:$9 sm:$0xff] %v5792
        %5973 = vst [vmem:[%s5912] ss:$9 sm:$0xff] %v5793
        %v5974 = vld [vmem:[#allocation1] sm:$0xff]
        %5976 = vst [vmem:[#allocation1] ss:$9 sm:$0xff] %v5794
        %5978 = vst [vmem:[%s5894] ss:$9 sm:$0xff] %v5795
        %5980 = vst [vmem:[%s5897] ss:$9 sm:$0xff] %v5796
        %5982 = vst [vmem:[%s5900] ss:$9 sm:$0xff] %v5797
        %5983 = vst [vmem:[%s5903] ss:$9 sm:$0xff] %v5692
        %5984 = vst [vmem:[%s5906] ss:$9 sm:$0xff] %v5694
        %5986 = vst [vmem:[%s5909] ss:$9 sm:$0xff] %v5798
        %5988 = vst [vmem:[%s5912] ss:$9 sm:$0xff] %v5799
        %v5989 = vld [vmem:[#allocation1] sm:$0xff]
        %5991 = vst [vmem:[#allocation1] ss:$9 sm:$0xff] %v5800
        %5993 = vst [vmem:[%s5894] ss:$9 sm:$0xff] %v5801
        %5995 = vst [vmem:[%s5897] ss:$9 sm:$0xff] %v5802
        %5997 = vst [vmem:[%s5900] ss:$9 sm:$0xff] %v5803
        %5999 = vst [vmem:[%s5903] ss:$9 sm:$0xff] %v5804
        %6000 = vst [vmem:[%s5906] ss:$9 sm:$0xff] %v5696
        %6001 = vst [vmem:[%s5909] ss:$9 sm:$0xff] %v5698
        %6003 = vst [vmem:[%s5912] ss:$9 sm:$0xff] %v5805
        %v6004 = vld [vmem:[#allocation1] sm:$0xff]
        %6006 = vst [vmem:[#allocation1] ss:$9 sm:$0xff] %v5806
        %6008 = vst [vmem:[%s5894] ss:$9 sm:$0xff] %v5807
        %6010 = vst [vmem:[%s5897] ss:$9 sm:$0xff] %v5808
        %6012 = vst [vmem:[%s5900] ss:$9 sm:$0xff] %v5809
        %6014 = vst [vmem:[%s5903] ss:$9 sm:$0xff] %v5810
        %6016 = vst [vmem:[%s5906] ss:$9 sm:$0xff] %v5811
        %6017 = vst [vmem:[%s5909] ss:$9 sm:$0xff] %v5700
        %6018 = vst [vmem:[%s5912] ss:$9 sm:$0xff] %v5702
        %v6019 = vld [vmem:[#allocation1] sm:$0xff]
        %6021 = vst [vmem:[#allocation1] ss:$9 sm:$0xff] %v5812
        %6023 = vst [vmem:[%s5894] ss:$9 sm:$0xff] %v5813
        %6025 = vst [vmem:[%s5897] ss:$9 sm:$0xff] %v5814
        %6027 = vst [vmem:[%s5900] ss:$9 sm:$0xff] %v5815
        %6029 = vst [vmem:[%s5903] ss:$9 sm:$0xff] %v5816
        %6031 = vst [vmem:[%s5906] ss:$9 sm:$0xff] %v5817
        %6033 = vst [vmem:[%s5909] ss:$9 sm:$0xff] %v5818
        %6034 = vst [vmem:[%s5912] ss:$9 sm:$0xff] %v5704
        %v6035 = vld [vmem:[#allocation1] sm:$0xff]
        %6036 = vst [vmem:[#allocation1] ss:$9 sm:$0xff] %v5706
        %6038 = vst [vmem:[%s5894] ss:$9 sm:$0xff] %v5819
        %6040 = vst [vmem:[%s5897] ss:$9 sm:$0xff] %v5820
        %6042 = vst [vmem:[%s5900] ss:$9 sm:$0xff] %v5821
        %6044 = vst [vmem:[%s5903] ss:$9 sm:$0xff] %v5822
        %6046 = vst [vmem:[%s5906] ss:$9 sm:$0xff] %v5823
        %6048 = vst [vmem:[%s5909] ss:$9 sm:$0xff] %v5824
        %6050 = vst [vmem:[%s5912] ss:$9 sm:$0xff] %v5825
        %v6051 = vld [vmem:[#allocation1] sm:$0xff]
        %6052 = vst [vmem:[#allocation1] ss:$9 sm:$0xff] %v5708
        %6053 = vst [vmem:[%s5894] ss:$9 sm:$0xff] %v5710
        %6055 = vst [vmem:[%s5897] ss:$9 sm:$0xff] %v5826
        %6057 = vst [vmem:[%s5900] ss:$9 sm:$0xff] %v5827
        %6059 = vst [vmem:[%s5903] ss:$9 sm:$0xff] %v5828
        %6061 = vst [vmem:[%s5906] ss:$9 sm:$0xff] %v5829
        %6063 = vst [vmem:[%s5909] ss:$9 sm:$0xff] %v5830
        %6065 = vst [vmem:[%s5912] ss:$9 sm:$0xff] %v5831
        %v6066 = vld [vmem:[#allocation1] sm:$0xff]
        %6068 = vst [vmem:[#allocation1] ss:$9 sm:$0xff] %v5832
        %6069 = vst [vmem:[%s5894] ss:$9 sm:$0xff] %v5712
        %6070 = vst [vmem:[%s5897] ss:$9 sm:$0xff] %v5714
        %6072 = vst [vmem:[%s5900] ss:$9 sm:$0xff] %v5833
        %6074 = vst [vmem:[%s5903] ss:$9 sm:$0xff] %v5834
        %6076 = vst [vmem:[%s5906] ss:$9 sm:$0xff] %v5835
        %6078 = vst [vmem:[%s5909] ss:$9 sm:$0xff] %v5836
        %6080 = vst [vmem:[%s5912] ss:$9 sm:$0xff] %v5837
        %v6081 = vld [vmem:[#allocation1] sm:$0xff]
        %6083 = vst [vmem:[#allocation1] ss:$9 sm:$0xff] %v5838
        %6085 = vst [vmem:[%s5894] ss:$9 sm:$0xff] %v5839
        %6086 = vst [vmem:[%s5897] ss:$9 sm:$0xff] %v5716
        %6087 = vst [vmem:[%s5900] ss:$9 sm:$0xff] %v5718
        %6089 = vst [vmem:[%s5903] ss:$9 sm:$0xff] %v5840
        %6091 = vst [vmem:[%s5906] ss:$9 sm:$0xff] %v5841
        %6093 = vst [vmem:[%s5909] ss:$9 sm:$0xff] %v5842
        %6095 = vst [vmem:[%s5912] ss:$9 sm:$0xff] %v5843
        %v6096 = vld [vmem:[#allocation1] sm:$0xff]
        %6098 = vst [vmem:[#allocation1] ss:$9 sm:$0xff] %v5844
        %6100 = vst [vmem:[%s5894] ss:$9 sm:$0xff] %v5845
        %6102 = vst [vmem:[%s5897] ss:$9 sm:$0xff] %v5846
        %6103 = vst [vmem:[%s5900] ss:$9 sm:$0xff] %v5720
        %6104 = vst [vmem:[%s5903] ss:$9 sm:$0xff] %v5722
        %6106 = vst [vmem:[%s5906] ss:$9 sm:$0xff] %v5847
        %6108 = vst [vmem:[%s5909] ss:$9 sm:$0xff] %v5848
        %6110 = vst [vmem:[%s5912] ss:$9 sm:$0xff] %v5849
        %v6111 = vld [vmem:[#allocation1] sm:$0xff]
        %6113 = vst [vmem:[#allocation1] ss:$9 sm:$0xff] %v5850
        %6115 = vst [vmem:[%s5894] ss:$9 sm:$0xff] %v5851
        %6117 = vst [vmem:[%s5897] ss:$9 sm:$0xff] %v5852
        %6119 = vst [vmem:[%s5900] ss:$9 sm:$0xff] %v5853
        %6120 = vst [vmem:[%s5903] ss:$9 sm:$0xff] %v5724
        %6121 = vst [vmem:[%s5906] ss:$9 sm:$0xff] %v5726
        %6123 = vst [vmem:[%s5909] ss:$9 sm:$0xff] %v5854
        %6125 = vst [vmem:[%s5912] ss:$9 sm:$0xff] %v5855
        %v6126 = vld [vmem:[#allocation1] sm:$0xff]
        %6128 = vst [vmem:[#allocation1] ss:$9 sm:$0xff] %v5856
        %6130 = vst [vmem:[%s5894] ss:$9 sm:$0xff] %v5857
        %6132 = vst [vmem:[%s5897] ss:$9 sm:$0xff] %v5858
        %6134 = vst [vmem:[%s5900] ss:$9 sm:$0xff] %v5859
        %6136 = vst [vmem:[%s5903] ss:$9 sm:$0xff] %v5860
        %6137 = vst [vmem:[%s5906] ss:$9 sm:$0xff] %v5728
        %6138 = vst [vmem:[%s5909] ss:$9 sm:$0xff] %v5730
        %6140 = vst [vmem:[%s5912] ss:$9 sm:$0xff] %v5861
        %v6141 = vld [vmem:[#allocation1] sm:$0xff]
        %6143 = vst [vmem:[#allocation1] ss:$9 sm:$0xff] %v5862
        %6145 = vst [vmem:[%s5894] ss:$9 sm:$0xff] %v5863
        %6147 = vst [vmem:[%s5897] ss:$9 sm:$0xff] %v5864
        %6149 = vst [vmem:[%s5900] ss:$9 sm:$0xff] %v5865
        %6151 = vst [vmem:[%s5903] ss:$9 sm:$0xff] %v5866
        %6153 = vst [vmem:[%s5906] ss:$9 sm:$0xff] %v5867
        %6154 = vst [vmem:[%s5909] ss:$9 sm:$0xff] %v5732
        %6155 = vst [vmem:[%s5912] ss:$9 sm:$0xff] %v5734
        %v6156 = vld [vmem:[#allocation1] sm:$0xff]
        %6158 = vst [vmem:[#allocation1] ss:$9 sm:$0xff] %v5868
        %6160 = vst [vmem:[%s5894] ss:$9 sm:$0xff] %v5869
        %6162 = vst [vmem:[%s5897] ss:$9 sm:$0xff] %v5870
        %6164 = vst [vmem:[%s5900] ss:$9 sm:$0xff] %v5871
        %6166 = vst [vmem:[%s5903] ss:$9 sm:$0xff] %v5872
        %6168 = vst [vmem:[%s5906] ss:$9 sm:$0xff] %v5873
        %6170 = vst [vmem:[%s5909] ss:$9 sm:$0xff] %v5874
        %6171 = vst [vmem:[%s5912] ss:$9 sm:$0xff] %v5736
        %v6172 = vld [vmem:[#allocation1] sm:$0xff]
        %6173 = vst [vmem:[#allocation1] ss:$9 sm:$0xff] %v5738
        %6175 = vst [vmem:[%s5894] ss:$9 sm:$0xff] %v5875
        %6177 = vst [vmem:[%s5897] ss:$9 sm:$0xff] %v5876
        %6179 = vst [vmem:[%s5900] ss:$9 sm:$0xff] %v5877
        %6181 = vst [vmem:[%s5903] ss:$9 sm:$0xff] %v5878
        %6183 = vst [vmem:[%s5906] ss:$9 sm:$0xff] %v5879
        %6185 = vst [vmem:[%s5909] ss:$9 sm:$0xff] %v5880
        %6187 = vst [vmem:[%s5912] ss:$9 sm:$0xff] %v5881
        %v6188 = vld [vmem:[#allocation1] sm:$0xff]
        %6189 = vst [vmem:[#allocation1] ss:$9 sm:$0xff] %v5740
        %6190 = vst [vmem:[%s5894] ss:$9 sm:$0xff] %v5742
        %6192 = vst [vmem:[%s5897] ss:$9 sm:$0xff] %v5882
        %6194 = vst [vmem:[%s5900] ss:$9 sm:$0xff] %v5883
        %6196 = vst [vmem:[%s5903] ss:$9 sm:$0xff] %v5884
        %6198 = vst [vmem:[%s5906] ss:$9 sm:$0xff] %v5885
        %6200 = vst [vmem:[%s5909] ss:$9 sm:$0xff] %v5886
        %6202 = vst [vmem:[%s5912] ss:$9 sm:$0xff] %v5887
        %v6203 = vld [vmem:[#allocation1] sm:$0xff]
        %6205 = vst [vmem:[#allocation1] ss:$9 sm:$0xff] %v5888
        %6206 = vst [vmem:[%s5894] ss:$9 sm:$0xff] %v5744
        %v6207 = vld [vmem:[#allocation1] sm:$0xff]
        %v6217 = vunpack.c.l.b16 %v4063
        %v6218 = vunpack.c.l.b16 %v4064
        %v6219 = vunpack.c.l.b16 %v4065
        %v6220 = vunpack.c.l.b16 %v4066
        %v6221 = vunpack.c.l.b16 %v4067
        %v6222 = vunpack.c.l.b16 %v4068
        %v6223 = vunpack.c.l.b16 %v4069
        %v6224 = vunpack.c.l.b16 %v4070
        %v6225 = vunpack.c.l.b16 %v4071
        %v6226 = vpack.c.b16 %v6218, %v6217
        %v6227 = vpack.c.b16 %v6220, %v6219
        %v6228 = vpack.c.b16 %v6222, %v6221
        %v6229 = vpack.c.b16 %v6224, %v6223
        %v6230 = vpack.c.b16 %v6225, %v6225
        %v6235 = vsel %vm2537, %v5914, 0
        %v6237 = vsel %vm2537, %v5929, 0
        %v6239 = vsel %vm2537, %v5944, 0
        %v6241 = vsel %vm2537, %v5959, 0
        %v6243 = vsel %vm2537, %v5974, 0
        %v6245 = vsel %vm2537, %v5989, 0
        %v6247 = vsel %vm2537, %v6004, 0
        %v6249 = vsel %vm2537, %v6019, 0
        %v6251 = vsel %vm2537, %v6035, 0
        %v6253 = vsel %vm2537, %v6051, 0
        %v6255 = vsel %vm2537, %v6066, 0
        %v6257 = vsel %vm2537, %v6081, 0
        %v6259 = vsel %vm2537, %v6096, 0
        %v6261 = vsel %vm2537, %v6111, 0
        %v6263 = vsel %vm2537, %v6126, 0
        %v6265 = vsel %vm2537, %v6141, 0
        %v6267 = vsel %vm2537, %v6156, 0
        %v6269 = vsel %vm2537, %v6172, 0
        %v6271 = vsel %vm2537, %v6188, 0
        %v6273 = vsel %vm2537, %v6203, 0
        %v6275 = vsel %vm2537, %v6207, 0
        %v6278 = vsel %vm2588, %v6230, 0
        %6280 = vmatpush.bf16.msra.mxu0 0
        %6281 = vmatpush.bf16.msra.mxu0 0
        %6282 = vmatpush.bf16.msra.mxu0 0
        %6283 = vmatpush.bf16.msra.mxu0 %v6278
        %6284 = vmatpush.bf16.msra.mxu0 %v6229
        %6285 = vmatpush.bf16.msra.mxu0 %v6228
        %6286 = vmatpush.bf16.msra.mxu0 %v6227
        %6287 = vmatpush.bf16.msra.mxu0 %v6226
        %6288 = vmatmul.bf16.gmra.mxu0 %v6235
        %v6289 = vpop.f32.mrf.mxu0
        %v6290 = vadd.f32 %v5890, %v6289
        %v6291 = vpop.f32.mrf.mxu0
        %v6292 = vadd.f32 %v5890, %v6291
        %6293 = vmatmul.bf16.gmra.mxu0 %v6237
        %v6294 = vpop.f32.mrf.mxu0
        %v6295 = vadd.f32 %v5890, %v6294
        %v6296 = vpop.f32.mrf.mxu0
        %v6297 = vadd.f32 %v5890, %v6296
        %6298 = vmatmul.bf16.gmra.mxu0 %v6239
        %v6299 = vpop.f32.mrf.mxu0
        %v6300 = vadd.f32 %v5890, %v6299
        %v6301 = vpop.f32.mrf.mxu0
        %v6302 = vadd.f32 %v5890, %v6301
        %6303 = vmatmul.bf16.gmra.mxu0 %v6241
        %v6304 = vpop.f32.mrf.mxu0
        %v6305 = vadd.f32 %v5890, %v6304
        %v6306 = vpop.f32.mrf.mxu0
        %v6307 = vadd.f32 %v5890, %v6306
        %6308 = vmatmul.bf16.gmra.mxu0 %v6243
        %v6309 = vpop.f32.mrf.mxu0
        %v6310 = vadd.f32 %v5890, %v6309
        %v6311 = vpop.f32.mrf.mxu0
        %v6312 = vadd.f32 %v5890, %v6311
        %6313 = vmatmul.bf16.gmra.mxu0 %v6245
        %v6314 = vpop.f32.mrf.mxu0
        %v6315 = vadd.f32 %v5890, %v6314
        %v6316 = vpop.f32.mrf.mxu0
        %v6317 = vadd.f32 %v5890, %v6316
        %6318 = vmatmul.bf16.gmra.mxu0 %v6247
        %v6319 = vpop.f32.mrf.mxu0
        %v6320 = vadd.f32 %v5890, %v6319
        %v6321 = vpop.f32.mrf.mxu0
        %v6322 = vadd.f32 %v5890, %v6321
        %6323 = vmatmul.bf16.gmra.mxu0 %v6249
        %v6324 = vpop.f32.mrf.mxu0
        %v6325 = vadd.f32 %v5890, %v6324
        %v6326 = vpop.f32.mrf.mxu0
        %v6327 = vadd.f32 %v5890, %v6326
        %6328 = vmatmul.bf16.gmra.mxu0 %v6251
        %v6329 = vpop.f32.mrf.mxu0
        %v6330 = vadd.f32 %v5890, %v6329
        %v6331 = vpop.f32.mrf.mxu0
        %v6332 = vadd.f32 %v5890, %v6331
        %6333 = vmatmul.bf16.gmra.mxu0 %v6253
        %v6334 = vpop.f32.mrf.mxu0
        %v6335 = vadd.f32 %v5890, %v6334
        %v6336 = vpop.f32.mrf.mxu0
        %v6337 = vadd.f32 %v5890, %v6336
        %6338 = vmatmul.bf16.gmra.mxu0 %v6255
        %v6339 = vpop.f32.mrf.mxu0
        %v6340 = vadd.f32 %v5890, %v6339
        %v6341 = vpop.f32.mrf.mxu0
        %v6342 = vadd.f32 %v5890, %v6341
        %6343 = vmatmul.bf16.gmra.mxu0 %v6257
        %v6344 = vpop.f32.mrf.mxu0
        %v6345 = vadd.f32 %v5890, %v6344
        %v6346 = vpop.f32.mrf.mxu0
        %v6347 = vadd.f32 %v5890, %v6346
        %6348 = vmatmul.bf16.gmra.mxu0 %v6259
        %v6349 = vpop.f32.mrf.mxu0
        %v6350 = vadd.f32 %v5890, %v6349
        %v6351 = vpop.f32.mrf.mxu0
        %v6352 = vadd.f32 %v5890, %v6351
        %6353 = vmatmul.bf16.gmra.mxu0 %v6261
        %v6354 = vpop.f32.mrf.mxu0
        %v6355 = vadd.f32 %v5890, %v6354
        %v6356 = vpop.f32.mrf.mxu0
        %v6357 = vadd.f32 %v5890, %v6356
        %6358 = vmatmul.bf16.gmra.mxu0 %v6263
        %v6359 = vpop.f32.mrf.mxu0
        %v6360 = vadd.f32 %v5890, %v6359
        %v6361 = vpop.f32.mrf.mxu0
        %v6362 = vadd.f32 %v5890, %v6361
        %6363 = vmatmul.bf16.gmra.mxu0 %v6265
        %v6364 = vpop.f32.mrf.mxu0
        %v6365 = vadd.f32 %v5890, %v6364
        %v6366 = vpop.f32.mrf.mxu0
        %v6367 = vadd.f32 %v5890, %v6366
        %6368 = vmatmul.bf16.gmra.mxu0 %v6267
        %v6369 = vpop.f32.mrf.mxu0
        %v6370 = vadd.f32 %v5890, %v6369
        %v6371 = vpop.f32.mrf.mxu0
        %v6372 = vadd.f32 %v5890, %v6371
        %6373 = vmatmul.bf16.gmra.mxu0 %v6269
        %v6374 = vpop.f32.mrf.mxu0
        %v6375 = vadd.f32 %v5890, %v6374
        %v6376 = vpop.f32.mrf.mxu0
        %v6377 = vadd.f32 %v5890, %v6376
        %6378 = vmatmul.bf16.gmra.mxu0 %v6271
        %v6379 = vpop.f32.mrf.mxu0
        %v6380 = vadd.f32 %v5890, %v6379
        %v6381 = vpop.f32.mrf.mxu0
        %v6382 = vadd.f32 %v5890, %v6381
        %6383 = vmatmul.bf16.gmra.mxu0 %v6273
        %v6384 = vpop.f32.mrf.mxu0
        %v6385 = vadd.f32 %v5890, %v6384
        %v6386 = vpop.f32.mrf.mxu0
        %v6387 = vadd.f32 %v5890, %v6386
        %6388 = vmatmul.bf16.gmra.mxu0 %v6275
        %v6389 = vpop.f32.mrf.mxu0
        %v6390 = vadd.f32 %v5890, %v6389
        %v6391 = vpop.f32.mrf.mxu0
        %6392 = vdwg.mxu0
        %v6434 = vrot.slane %v6290, 2
        %v6435 = vrot.slane %v6290, 4
        %v6436 = vrot.slane %v6290, 6
        %v6437 = vrot.slane %v6292, 2
        %v6438 = vrot.slane %v6292, 4
        %v6439 = vrot.slane %v6292, 6
        %v6440 = vrot.slane %v6295, 2
        %v6441 = vrot.slane %v6295, 4
        %v6442 = vrot.slane %v6295, 6
        %v6443 = vrot.slane %v6297, 2
        %v6444 = vrot.slane %v6297, 4
        %v6445 = vrot.slane %v6297, 6
        %v6446 = vrot.slane %v6300, 2
        %v6447 = vrot.slane %v6300, 4
        %v6448 = vrot.slane %v6300, 6
        %v6449 = vrot.slane %v6302, 2
        %v6450 = vrot.slane %v6302, 4
        %v6451 = vrot.slane %v6302, 6
        %v6452 = vrot.slane %v6305, 2
        %v6453 = vrot.slane %v6305, 4
        %v6454 = vrot.slane %v6305, 6
        %v6455 = vrot.slane %v6307, 2
        %v6456 = vrot.slane %v6307, 4
        %v6457 = vrot.slane %v6307, 6
        %v6458 = vrot.slane %v6310, 2
        %v6459 = vrot.slane %v6310, 4
        %v6460 = vrot.slane %v6310, 6
        %v6461 = vrot.slane %v6312, 2
        %v6462 = vrot.slane %v6312, 4
        %v6463 = vrot.slane %v6312, 6
        %v6464 = vrot.slane %v6315, 2
        %v6465 = vrot.slane %v6315, 4
        %v6466 = vrot.slane %v6315, 6
        %v6467 = vrot.slane %v6317, 2
        %v6468 = vrot.slane %v6317, 4
        %v6469 = vrot.slane %v6317, 6
        %v6470 = vrot.slane %v6320, 2
        %v6471 = vrot.slane %v6320, 4
        %v6472 = vrot.slane %v6320, 6
        %v6473 = vrot.slane %v6322, 2
        %v6474 = vrot.slane %v6322, 4
        %v6475 = vrot.slane %v6322, 6
        %v6476 = vrot.slane %v6325, 2
        %v6477 = vrot.slane %v6325, 4
        %v6478 = vrot.slane %v6325, 6
        %v6479 = vrot.slane %v6327, 2
        %v6480 = vrot.slane %v6327, 4
        %v6481 = vrot.slane %v6327, 6
        %v6482 = vrot.slane %v6330, 2
        %v6483 = vrot.slane %v6330, 4
        %v6484 = vrot.slane %v6330, 6
        %v6485 = vrot.slane %v6332, 2
        %v6486 = vrot.slane %v6332, 4
        %v6487 = vrot.slane %v6332, 6
        %v6488 = vrot.slane %v6335, 2
        %v6489 = vrot.slane %v6335, 4
        %v6490 = vrot.slane %v6335, 6
        %v6491 = vrot.slane %v6337, 2
        %v6492 = vrot.slane %v6337, 4
        %v6493 = vrot.slane %v6337, 6
        %v6494 = vrot.slane %v6340, 2
        %v6495 = vrot.slane %v6340, 4
        %v6496 = vrot.slane %v6340, 6
        %v6497 = vrot.slane %v6342, 2
        %v6498 = vrot.slane %v6342, 4
        %v6499 = vrot.slane %v6342, 6
        %v6500 = vrot.slane %v6345, 2
        %v6501 = vrot.slane %v6345, 4
        %v6502 = vrot.slane %v6345, 6
        %v6503 = vrot.slane %v6347, 2
        %v6504 = vrot.slane %v6347, 4
        %v6505 = vrot.slane %v6347, 6
        %v6506 = vrot.slane %v6350, 2
        %v6507 = vrot.slane %v6350, 4
        %v6508 = vrot.slane %v6350, 6
        %v6509 = vrot.slane %v6352, 2
        %v6510 = vrot.slane %v6352, 4
        %v6511 = vrot.slane %v6352, 6
        %v6512 = vrot.slane %v6355, 2
        %v6513 = vrot.slane %v6355, 4
        %v6514 = vrot.slane %v6355, 6
        %v6515 = vrot.slane %v6357, 2
        %v6516 = vrot.slane %v6357, 4
        %v6517 = vrot.slane %v6357, 6
        %v6518 = vrot.slane %v6360, 2
        %v6519 = vrot.slane %v6360, 4
        %v6520 = vrot.slane %v6360, 6
        %v6521 = vrot.slane %v6362, 2
        %v6522 = vrot.slane %v6362, 4
        %v6523 = vrot.slane %v6362, 6
        %v6524 = vrot.slane %v6365, 2
        %v6525 = vrot.slane %v6365, 4
        %v6526 = vrot.slane %v6365, 6
        %v6527 = vrot.slane %v6367, 2
        %v6528 = vrot.slane %v6367, 4
        %v6529 = vrot.slane %v6367, 6
        %v6530 = vrot.slane %v6370, 2
        %v6531 = vrot.slane %v6370, 4
        %v6532 = vrot.slane %v6370, 6
        %v6533 = vrot.slane %v6372, 2
        %v6534 = vrot.slane %v6372, 4
        %v6535 = vrot.slane %v6372, 6
        %v6536 = vrot.slane %v6375, 2
        %v6537 = vrot.slane %v6375, 4
        %v6538 = vrot.slane %v6375, 6
        %v6539 = vrot.slane %v6377, 2
        %v6540 = vrot.slane %v6377, 4
        %v6541 = vrot.slane %v6377, 6
        %v6542 = vrot.slane %v6380, 2
        %v6543 = vrot.slane %v6380, 4
        %v6544 = vrot.slane %v6380, 6
        %v6545 = vrot.slane %v6382, 2
        %v6546 = vrot.slane %v6382, 4
        %v6547 = vrot.slane %v6382, 6
        %v6548 = vrot.slane %v6385, 2
        %v6549 = vrot.slane %v6385, 4
        %v6550 = vrot.slane %v6385, 6
        %v6551 = vrot.slane %v6387, 2
        %v6552 = vrot.slane %v6387, 4
        %v6553 = vrot.slane %v6387, 6
        %v6554 = vrot.slane %v6390, 2
        %vm6676 = vcmp.ge.f32.partialorder %v6290, 0.0
        %vm6677 = vcmp.ge.f32.partialorder %v6434, 0.0
        %vm6678 = vcmp.ge.f32.partialorder %v6435, 0.0
        %vm6679 = vcmp.ge.f32.partialorder %v6436, 0.0
        %vm6680 = vcmp.ge.f32.partialorder %v6292, 0.0
        %vm6681 = vcmp.ge.f32.partialorder %v6437, 0.0
        %vm6682 = vcmp.ge.f32.partialorder %v6438, 0.0
        %vm6683 = vcmp.ge.f32.partialorder %v6439, 0.0
        %vm6684 = vcmp.ge.f32.partialorder %v6295, 0.0
        %vm6685 = vcmp.ge.f32.partialorder %v6440, 0.0
        %vm6686 = vcmp.ge.f32.partialorder %v6441, 0.0
        %vm6687 = vcmp.ge.f32.partialorder %v6442, 0.0
        %vm6688 = vcmp.ge.f32.partialorder %v6297, 0.0
        %vm6689 = vcmp.ge.f32.partialorder %v6443, 0.0
        %vm6690 = vcmp.ge.f32.partialorder %v6444, 0.0
        %vm6691 = vcmp.ge.f32.partialorder %v6445, 0.0
        %vm6692 = vcmp.ge.f32.partialorder %v6300, 0.0
        %vm6693 = vcmp.ge.f32.partialorder %v6446, 0.0
        %vm6694 = vcmp.ge.f32.partialorder %v6447, 0.0
        %vm6695 = vcmp.ge.f32.partialorder %v6448, 0.0
        %vm6696 = vcmp.ge.f32.partialorder %v6302, 0.0
        %vm6697 = vcmp.ge.f32.partialorder %v6449, 0.0
        %vm6698 = vcmp.ge.f32.partialorder %v6450, 0.0
        %vm6699 = vcmp.ge.f32.partialorder %v6451, 0.0
        %vm6700 = vcmp.ge.f32.partialorder %v6305, 0.0
        %vm6701 = vcmp.ge.f32.partialorder %v6452, 0.0
        %vm6702 = vcmp.ge.f32.partialorder %v6453, 0.0
        %vm6703 = vcmp.ge.f32.partialorder %v6454, 0.0
        %vm6704 = vcmp.ge.f32.partialorder %v6307, 0.0
        %vm6705 = vcmp.ge.f32.partialorder %v6455, 0.0
        %vm6706 = vcmp.ge.f32.partialorder %v6456, 0.0
        %vm6707 = vcmp.ge.f32.partialorder %v6457, 0.0
        %vm6708 = vcmp.ge.f32.partialorder %v6310, 0.0
        %vm6709 = vcmp.ge.f32.partialorder %v6458, 0.0
        %vm6710 = vcmp.ge.f32.partialorder %v6459, 0.0
        %vm6711 = vcmp.ge.f32.partialorder %v6460, 0.0
        %vm6712 = vcmp.ge.f32.partialorder %v6312, 0.0
        %vm6713 = vcmp.ge.f32.partialorder %v6461, 0.0
        %vm6714 = vcmp.ge.f32.partialorder %v6462, 0.0
        %vm6715 = vcmp.ge.f32.partialorder %v6463, 0.0
        %vm6716 = vcmp.ge.f32.partialorder %v6315, 0.0
        %vm6717 = vcmp.ge.f32.partialorder %v6464, 0.0
        %vm6718 = vcmp.ge.f32.partialorder %v6465, 0.0
        %vm6719 = vcmp.ge.f32.partialorder %v6466, 0.0
        %vm6720 = vcmp.ge.f32.partialorder %v6317, 0.0
        %vm6721 = vcmp.ge.f32.partialorder %v6467, 0.0
        %vm6722 = vcmp.ge.f32.partialorder %v6468, 0.0
        %vm6723 = vcmp.ge.f32.partialorder %v6469, 0.0
        %vm6724 = vcmp.ge.f32.partialorder %v6320, 0.0
        %vm6725 = vcmp.ge.f32.partialorder %v6470, 0.0
        %vm6726 = vcmp.ge.f32.partialorder %v6471, 0.0
        %vm6727 = vcmp.ge.f32.partialorder %v6472, 0.0
        %vm6728 = vcmp.ge.f32.partialorder %v6322, 0.0
        %vm6729 = vcmp.ge.f32.partialorder %v6473, 0.0
        %vm6730 = vcmp.ge.f32.partialorder %v6474, 0.0
        %vm6731 = vcmp.ge.f32.partialorder %v6475, 0.0
        %vm6732 = vcmp.ge.f32.partialorder %v6325, 0.0
        %vm6733 = vcmp.ge.f32.partialorder %v6476, 0.0
        %vm6734 = vcmp.ge.f32.partialorder %v6477, 0.0
        %vm6735 = vcmp.ge.f32.partialorder %v6478, 0.0
        %vm6736 = vcmp.ge.f32.partialorder %v6327, 0.0
        %vm6737 = vcmp.ge.f32.partialorder %v6479, 0.0
        %vm6738 = vcmp.ge.f32.partialorder %v6480, 0.0
        %vm6739 = vcmp.ge.f32.partialorder %v6481, 0.0
        %vm6740 = vcmp.ge.f32.partialorder %v6330, 0.0
        %vm6741 = vcmp.ge.f32.partialorder %v6482, 0.0
        %vm6742 = vcmp.ge.f32.partialorder %v6483, 0.0
        %vm6743 = vcmp.ge.f32.partialorder %v6484, 0.0
        %vm6744 = vcmp.ge.f32.partialorder %v6332, 0.0
        %vm6745 = vcmp.ge.f32.partialorder %v6485, 0.0
        %vm6746 = vcmp.ge.f32.partialorder %v6486, 0.0
        %vm6747 = vcmp.ge.f32.partialorder %v6487, 0.0
        %vm6748 = vcmp.ge.f32.partialorder %v6335, 0.0
        %vm6749 = vcmp.ge.f32.partialorder %v6488, 0.0
        %vm6750 = vcmp.ge.f32.partialorder %v6489, 0.0
        %vm6751 = vcmp.ge.f32.partialorder %v6490, 0.0
        %vm6752 = vcmp.ge.f32.partialorder %v6337, 0.0
        %vm6753 = vcmp.ge.f32.partialorder %v6491, 0.0
        %vm6754 = vcmp.ge.f32.partialorder %v6492, 0.0
        %vm6755 = vcmp.ge.f32.partialorder %v6493, 0.0
        %vm6756 = vcmp.ge.f32.partialorder %v6340, 0.0
        %vm6757 = vcmp.ge.f32.partialorder %v6494, 0.0
        %vm6758 = vcmp.ge.f32.partialorder %v6495, 0.0
        %vm6759 = vcmp.ge.f32.partialorder %v6496, 0.0
        %vm6760 = vcmp.ge.f32.partialorder %v6342, 0.0
        %vm6761 = vcmp.ge.f32.partialorder %v6497, 0.0
        %vm6762 = vcmp.ge.f32.partialorder %v6498, 0.0
        %vm6763 = vcmp.ge.f32.partialorder %v6499, 0.0
        %vm6764 = vcmp.ge.f32.partialorder %v6345, 0.0
        %vm6765 = vcmp.ge.f32.partialorder %v6500, 0.0
        %vm6766 = vcmp.ge.f32.partialorder %v6501, 0.0
        %vm6767 = vcmp.ge.f32.partialorder %v6502, 0.0
        %vm6768 = vcmp.ge.f32.partialorder %v6347, 0.0
        %vm6769 = vcmp.ge.f32.partialorder %v6503, 0.0
        %vm6770 = vcmp.ge.f32.partialorder %v6504, 0.0
        %vm6771 = vcmp.ge.f32.partialorder %v6505, 0.0
        %vm6772 = vcmp.ge.f32.partialorder %v6350, 0.0
        %vm6773 = vcmp.ge.f32.partialorder %v6506, 0.0
        %vm6774 = vcmp.ge.f32.partialorder %v6507, 0.0
        %vm6775 = vcmp.ge.f32.partialorder %v6508, 0.0
        %vm6776 = vcmp.ge.f32.partialorder %v6352, 0.0
        %vm6777 = vcmp.ge.f32.partialorder %v6509, 0.0
        %vm6778 = vcmp.ge.f32.partialorder %v6510, 0.0
        %vm6779 = vcmp.ge.f32.partialorder %v6511, 0.0
        %vm6780 = vcmp.ge.f32.partialorder %v6355, 0.0
        %vm6781 = vcmp.ge.f32.partialorder %v6512, 0.0
        %vm6782 = vcmp.ge.f32.partialorder %v6513, 0.0
        %vm6783 = vcmp.ge.f32.partialorder %v6514, 0.0
        %vm6784 = vcmp.ge.f32.partialorder %v6357, 0.0
        %vm6785 = vcmp.ge.f32.partialorder %v6515, 0.0
        %vm6786 = vcmp.ge.f32.partialorder %v6516, 0.0
        %vm6787 = vcmp.ge.f32.partialorder %v6517, 0.0
        %vm6788 = vcmp.ge.f32.partialorder %v6360, 0.0
        %vm6789 = vcmp.ge.f32.partialorder %v6518, 0.0
        %vm6790 = vcmp.ge.f32.partialorder %v6519, 0.0
        %vm6791 = vcmp.ge.f32.partialorder %v6520, 0.0
        %vm6792 = vcmp.ge.f32.partialorder %v6362, 0.0
        %vm6793 = vcmp.ge.f32.partialorder %v6521, 0.0
        %vm6794 = vcmp.ge.f32.partialorder %v6522, 0.0
        %vm6795 = vcmp.ge.f32.partialorder %v6523, 0.0
        %vm6796 = vcmp.ge.f32.partialorder %v6365, 0.0
        %vm6797 = vcmp.ge.f32.partialorder %v6524, 0.0
        %vm6798 = vcmp.ge.f32.partialorder %v6525, 0.0
        %vm6799 = vcmp.ge.f32.partialorder %v6526, 0.0
        %vm6800 = vcmp.ge.f32.partialorder %v6367, 0.0
        %vm6801 = vcmp.ge.f32.partialorder %v6527, 0.0
        %vm6802 = vcmp.ge.f32.partialorder %v6528, 0.0
        %vm6803 = vcmp.ge.f32.partialorder %v6529, 0.0
        %vm6804 = vcmp.ge.f32.partialorder %v6370, 0.0
        %vm6805 = vcmp.ge.f32.partialorder %v6530, 0.0
        %vm6806 = vcmp.ge.f32.partialorder %v6531, 0.0
        %vm6807 = vcmp.ge.f32.partialorder %v6532, 0.0
        %vm6808 = vcmp.ge.f32.partialorder %v6372, 0.0
        %vm6809 = vcmp.ge.f32.partialorder %v6533, 0.0
        %vm6810 = vcmp.ge.f32.partialorder %v6534, 0.0
        %vm6811 = vcmp.ge.f32.partialorder %v6535, 0.0
        %vm6812 = vcmp.ge.f32.partialorder %v6375, 0.0
        %vm6813 = vcmp.ge.f32.partialorder %v6536, 0.0
        %vm6814 = vcmp.ge.f32.partialorder %v6537, 0.0
        %vm6815 = vcmp.ge.f32.partialorder %v6538, 0.0
        %vm6816 = vcmp.ge.f32.partialorder %v6377, 0.0
        %vm6817 = vcmp.ge.f32.partialorder %v6539, 0.0
        %vm6818 = vcmp.ge.f32.partialorder %v6540, 0.0
        %vm6819 = vcmp.ge.f32.partialorder %v6541, 0.0
        %vm6820 = vcmp.ge.f32.partialorder %v6380, 0.0
        %vm6821 = vcmp.ge.f32.partialorder %v6542, 0.0
        %vm6822 = vcmp.ge.f32.partialorder %v6543, 0.0
        %vm6823 = vcmp.ge.f32.partialorder %v6544, 0.0
        %vm6824 = vcmp.ge.f32.partialorder %v6382, 0.0
        %vm6825 = vcmp.ge.f32.partialorder %v6545, 0.0
        %vm6826 = vcmp.ge.f32.partialorder %v6546, 0.0
        %vm6827 = vcmp.ge.f32.partialorder %v6547, 0.0
        %vm6828 = vcmp.ge.f32.partialorder %v6385, 0.0
        %vm6829 = vcmp.ge.f32.partialorder %v6548, 0.0
        %vm6830 = vcmp.ge.f32.partialorder %v6549, 0.0
        %vm6831 = vcmp.ge.f32.partialorder %v6550, 0.0
        %vm6832 = vcmp.ge.f32.partialorder %v6387, 0.0
        %vm6833 = vcmp.ge.f32.partialorder %v6551, 0.0
        %vm6834 = vcmp.ge.f32.partialorder %v6552, 0.0
        %vm6835 = vcmp.ge.f32.partialorder %v6553, 0.0
        %vm6836 = vcmp.ge.f32.partialorder %v6390, 0.0
        %vm6837 = vcmp.ge.f32.partialorder %v6554, 0.0
        %v6838 = vmul.f32 %v6290, 0.1
        %v6839 = vmul.f32 %v6434, 0.1
        %v6840 = vmul.f32 %v6435, 0.1
        %v6841 = vmul.f32 %v6436, 0.1
        %v6842 = vmul.f32 %v6292, 0.1
        %v6843 = vmul.f32 %v6437, 0.1
        %v6844 = vmul.f32 %v6438, 0.1
        %v6845 = vmul.f32 %v6439, 0.1
        %v6846 = vmul.f32 %v6295, 0.1
        %v6847 = vmul.f32 %v6440, 0.1
        %v6848 = vmul.f32 %v6441, 0.1
        %v6849 = vmul.f32 %v6442, 0.1
        %v6850 = vmul.f32 %v6297, 0.1
        %v6851 = vmul.f32 %v6443, 0.1
        %v6852 = vmul.f32 %v6444, 0.1
        %v6853 = vmul.f32 %v6445, 0.1
        %v6854 = vmul.f32 %v6300, 0.1
        %v6855 = vmul.f32 %v6446, 0.1
        %v6856 = vmul.f32 %v6447, 0.1
        %v6857 = vmul.f32 %v6448, 0.1
        %v6858 = vmul.f32 %v6302, 0.1
        %v6859 = vmul.f32 %v6449, 0.1
        %v6860 = vmul.f32 %v6450, 0.1
        %v6861 = vmul.f32 %v6451, 0.1
        %v6862 = vmul.f32 %v6305, 0.1
        %v6863 = vmul.f32 %v6452, 0.1
        %v6864 = vmul.f32 %v6453, 0.1
        %v6865 = vmul.f32 %v6454, 0.1
        %v6866 = vmul.f32 %v6307, 0.1
        %v6867 = vmul.f32 %v6455, 0.1
        %v6868 = vmul.f32 %v6456, 0.1
        %v6869 = vmul.f32 %v6457, 0.1
        %v6870 = vmul.f32 %v6310, 0.1
        %v6871 = vmul.f32 %v6458, 0.1
        %v6872 = vmul.f32 %v6459, 0.1
        %v6873 = vmul.f32 %v6460, 0.1
        %v6874 = vmul.f32 %v6312, 0.1
        %v6875 = vmul.f32 %v6461, 0.1
        %v6876 = vmul.f32 %v6462, 0.1
        %v6877 = vmul.f32 %v6463, 0.1
        %v6878 = vmul.f32 %v6315, 0.1
        %v6879 = vmul.f32 %v6464, 0.1
        %v6880 = vmul.f32 %v6465, 0.1
        %v6881 = vmul.f32 %v6466, 0.1
        %v6882 = vmul.f32 %v6317, 0.1
        %v6883 = vmul.f32 %v6467, 0.1
        %v6884 = vmul.f32 %v6468, 0.1
        %v6885 = vmul.f32 %v6469, 0.1
        %v6886 = vmul.f32 %v6320, 0.1
        %v6887 = vmul.f32 %v6470, 0.1
        %v6888 = vmul.f32 %v6471, 0.1
        %v6889 = vmul.f32 %v6472, 0.1
        %v6890 = vmul.f32 %v6322, 0.1
        %v6891 = vmul.f32 %v6473, 0.1
        %v6892 = vmul.f32 %v6474, 0.1
        %v6893 = vmul.f32 %v6475, 0.1
        %v6894 = vmul.f32 %v6325, 0.1
        %v6895 = vmul.f32 %v6476, 0.1
        %v6896 = vmul.f32 %v6477, 0.1
        %v6897 = vmul.f32 %v6478, 0.1
        %v6898 = vmul.f32 %v6327, 0.1
        %v6899 = vmul.f32 %v6479, 0.1
        %v6900 = vmul.f32 %v6480, 0.1
        %v6901 = vmul.f32 %v6481, 0.1
        %v6902 = vmul.f32 %v6330, 0.1
        %v6903 = vmul.f32 %v6482, 0.1
        %v6904 = vmul.f32 %v6483, 0.1
        %v6905 = vmul.f32 %v6484, 0.1
        %v6906 = vmul.f32 %v6332, 0.1
        %v6907 = vmul.f32 %v6485, 0.1
        %v6908 = vmul.f32 %v6486, 0.1
        %v6909 = vmul.f32 %v6487, 0.1
        %v6910 = vmul.f32 %v6335, 0.1
        %v6911 = vmul.f32 %v6488, 0.1
        %v6912 = vmul.f32 %v6489, 0.1
        %v6913 = vmul.f32 %v6490, 0.1
        %v6914 = vmul.f32 %v6337, 0.1
        %v6915 = vmul.f32 %v6491, 0.1
        %v6916 = vmul.f32 %v6492, 0.1
        %v6917 = vmul.f32 %v6493, 0.1
        %v6918 = vmul.f32 %v6340, 0.1
        %v6919 = vmul.f32 %v6494, 0.1
        %v6920 = vmul.f32 %v6495, 0.1
        %v6921 = vmul.f32 %v6496, 0.1
        %v6922 = vmul.f32 %v6342, 0.1
        %v6923 = vmul.f32 %v6497, 0.1
        %v6924 = vmul.f32 %v6498, 0.1
        %v6925 = vmul.f32 %v6499, 0.1
        %v6926 = vmul.f32 %v6345, 0.1
        %v6927 = vmul.f32 %v6500, 0.1
        %v6928 = vmul.f32 %v6501, 0.1
        %v6929 = vmul.f32 %v6502, 0.1
        %v6930 = vmul.f32 %v6347, 0.1
        %v6931 = vmul.f32 %v6503, 0.1
        %v6932 = vmul.f32 %v6504, 0.1
        %v6933 = vmul.f32 %v6505, 0.1
        %v6934 = vmul.f32 %v6350, 0.1
        %v6935 = vmul.f32 %v6506, 0.1
        %v6936 = vmul.f32 %v6507, 0.1
        %v6937 = vmul.f32 %v6508, 0.1
        %v6938 = vmul.f32 %v6352, 0.1
        %v6939 = vmul.f32 %v6509, 0.1
        %v6940 = vmul.f32 %v6510, 0.1
        %v6941 = vmul.f32 %v6511, 0.1
        %v6942 = vmul.f32 %v6355, 0.1
        %v6943 = vmul.f32 %v6512, 0.1
        %v6944 = vmul.f32 %v6513, 0.1
        %v6945 = vmul.f32 %v6514, 0.1
        %v6946 = vmul.f32 %v6357, 0.1
        %v6947 = vmul.f32 %v6515, 0.1
        %v6948 = vmul.f32 %v6516, 0.1
        %v6949 = vmul.f32 %v6517, 0.1
        %v6950 = vmul.f32 %v6360, 0.1
        %v6951 = vmul.f32 %v6518, 0.1
        %v6952 = vmul.f32 %v6519, 0.1
        %v6953 = vmul.f32 %v6520, 0.1
        %v6954 = vmul.f32 %v6362, 0.1
        %v6955 = vmul.f32 %v6521, 0.1
        %v6956 = vmul.f32 %v6522, 0.1
        %v6957 = vmul.f32 %v6523, 0.1
        %v6958 = vmul.f32 %v6365, 0.1
        %v6959 = vmul.f32 %v6524, 0.1
        %v6960 = vmul.f32 %v6525, 0.1
        %v6961 = vmul.f32 %v6526, 0.1
        %v6962 = vmul.f32 %v6367, 0.1
        %v6963 = vmul.f32 %v6527, 0.1
        %v6964 = vmul.f32 %v6528, 0.1
        %v6965 = vmul.f32 %v6529, 0.1
        %v6966 = vmul.f32 %v6370, 0.1
        %v6967 = vmul.f32 %v6530, 0.1
        %v6968 = vmul.f32 %v6531, 0.1
        %v6969 = vmul.f32 %v6532, 0.1
        %v6970 = vmul.f32 %v6372, 0.1
        %v6971 = vmul.f32 %v6533, 0.1
        %v6972 = vmul.f32 %v6534, 0.1
        %v6973 = vmul.f32 %v6535, 0.1
        %v6974 = vmul.f32 %v6375, 0.1
        %v6975 = vmul.f32 %v6536, 0.1
        %v6976 = vmul.f32 %v6537, 0.1
        %v6977 = vmul.f32 %v6538, 0.1
        %v6978 = vmul.f32 %v6377, 0.1
        %v6979 = vmul.f32 %v6539, 0.1
        %v6980 = vmul.f32 %v6540, 0.1
        %v6981 = vmul.f32 %v6541, 0.1
        %v6982 = vmul.f32 %v6380, 0.1
        %v6983 = vmul.f32 %v6542, 0.1
        %v6984 = vmul.f32 %v6543, 0.1
        %v6985 = vmul.f32 %v6544, 0.1
        %v6986 = vmul.f32 %v6382, 0.1
        %v6987 = vmul.f32 %v6545, 0.1
        %v6988 = vmul.f32 %v6546, 0.1
        %v6989 = vmul.f32 %v6547, 0.1
        %v6990 = vmul.f32 %v6385, 0.1
        %v6991 = vmul.f32 %v6548, 0.1
        %v6992 = vmul.f32 %v6549, 0.1
        %v6993 = vmul.f32 %v6550, 0.1
        %v6994 = vmul.f32 %v6387, 0.1
        %v6995 = vmul.f32 %v6551, 0.1
        %v6996 = vmul.f32 %v6552, 0.1
        %v6997 = vmul.f32 %v6553, 0.1
        %v6998 = vmul.f32 %v6390, 0.1
        %v6999 = vmul.f32 %v6554, 0.1
        %v7000 = vsel %vm6676, %v6290, %v6838
        %v7001 = vsel %vm6677, %v6434, %v6839
        %v7002 = vsel %vm6678, %v6435, %v6840
        %v7003 = vsel %vm6679, %v6436, %v6841
        %v7004 = vsel %vm6680, %v6292, %v6842
        %v7005 = vsel %vm6681, %v6437, %v6843
        %v7006 = vsel %vm6682, %v6438, %v6844
        %v7007 = vsel %vm6683, %v6439, %v6845
        %v7008 = vsel %vm6684, %v6295, %v6846
        %v7009 = vsel %vm6685, %v6440, %v6847
        %v7010 = vsel %vm6686, %v6441, %v6848
        %v7011 = vsel %vm6687, %v6442, %v6849
        %v7012 = vsel %vm6688, %v6297, %v6850
        %v7013 = vsel %vm6689, %v6443, %v6851
        %v7014 = vsel %vm6690, %v6444, %v6852
        %v7015 = vsel %vm6691, %v6445, %v6853
        %v7016 = vsel %vm6692, %v6300, %v6854
        %v7017 = vsel %vm6693, %v6446, %v6855
        %v7018 = vsel %vm6694, %v6447, %v6856
        %v7019 = vsel %vm6695, %v6448, %v6857
        %v7020 = vsel %vm6696, %v6302, %v6858
        %v7021 = vsel %vm6697, %v6449, %v6859
        %v7022 = vsel %vm6698, %v6450, %v6860
        %v7023 = vsel %vm6699, %v6451, %v6861
        %v7024 = vsel %vm6700, %v6305, %v6862
        %v7025 = vsel %vm6701, %v6452, %v6863
        %v7026 = vsel %vm6702, %v6453, %v6864
        %v7027 = vsel %vm6703, %v6454, %v6865
        %v7028 = vsel %vm6704, %v6307, %v6866
        %v7029 = vsel %vm6705, %v6455, %v6867
        %v7030 = vsel %vm6706, %v6456, %v6868
        %v7031 = vsel %vm6707, %v6457, %v6869
        %v7032 = vsel %vm6708, %v6310, %v6870
        %v7033 = vsel %vm6709, %v6458, %v6871
        %v7034 = vsel %vm6710, %v6459, %v6872
        %v7035 = vsel %vm6711, %v6460, %v6873
        %v7036 = vsel %vm6712, %v6312, %v6874
        %v7037 = vsel %vm6713, %v6461, %v6875
        %v7038 = vsel %vm6714, %v6462, %v6876
        %v7039 = vsel %vm6715, %v6463, %v6877
        %v7040 = vsel %vm6716, %v6315, %v6878
        %v7041 = vsel %vm6717, %v6464, %v6879
        %v7042 = vsel %vm6718, %v6465, %v6880
        %v7043 = vsel %vm6719, %v6466, %v6881
        %v7044 = vsel %vm6720, %v6317, %v6882
        %v7045 = vsel %vm6721, %v6467, %v6883
        %v7046 = vsel %vm6722, %v6468, %v6884
        %v7047 = vsel %vm6723, %v6469, %v6885
        %v7048 = vsel %vm6724, %v6320, %v6886
        %v7049 = vsel %vm6725, %v6470, %v6887
        %v7050 = vsel %vm6726, %v6471, %v6888
        %v7051 = vsel %vm6727, %v6472, %v6889
        %v7052 = vsel %vm6728, %v6322, %v6890
        %v7053 = vsel %vm6729, %v6473, %v6891
        %v7054 = vsel %vm6730, %v6474, %v6892
        %v7055 = vsel %vm6731, %v6475, %v6893
        %v7056 = vsel %vm6732, %v6325, %v6894
        %v7057 = vsel %vm6733, %v6476, %v6895
        %v7058 = vsel %vm6734, %v6477, %v6896
        %v7059 = vsel %vm6735, %v6478, %v6897
        %v7060 = vsel %vm6736, %v6327, %v6898
        %v7061 = vsel %vm6737, %v6479, %v6899
        %v7062 = vsel %vm6738, %v6480, %v6900
        %v7063 = vsel %vm6739, %v6481, %v6901
        %v7064 = vsel %vm6740, %v6330, %v6902
        %v7065 = vsel %vm6741, %v6482, %v6903
        %v7066 = vsel %vm6742, %v6483, %v6904
        %v7067 = vsel %vm6743, %v6484, %v6905
        %v7068 = vsel %vm6744, %v6332, %v6906
        %v7069 = vsel %vm6745, %v6485, %v6907
        %v7070 = vsel %vm6746, %v6486, %v6908
        %v7071 = vsel %vm6747, %v6487, %v6909
        %v7072 = vsel %vm6748, %v6335, %v6910
        %v7073 = vsel %vm6749, %v6488, %v6911
        %v7074 = vsel %vm6750, %v6489, %v6912
        %v7075 = vsel %vm6751, %v6490, %v6913
        %v7076 = vsel %vm6752, %v6337, %v6914
        %v7077 = vsel %vm6753, %v6491, %v6915
        %v7078 = vsel %vm6754, %v6492, %v6916
        %v7079 = vsel %vm6755, %v6493, %v6917
        %v7080 = vsel %vm6756, %v6340, %v6918
        %v7081 = vsel %vm6757, %v6494, %v6919
        %v7082 = vsel %vm6758, %v6495, %v6920
        %v7083 = vsel %vm6759, %v6496, %v6921
        %v7084 = vsel %vm6760, %v6342, %v6922
        %v7085 = vsel %vm6761, %v6497, %v6923
        %v7086 = vsel %vm6762, %v6498, %v6924
        %v7087 = vsel %vm6763, %v6499, %v6925
        %v7088 = vsel %vm6764, %v6345, %v6926
        %v7089 = vsel %vm6765, %v6500, %v6927
        %v7090 = vsel %vm6766, %v6501, %v6928
        %v7091 = vsel %vm6767, %v6502, %v6929
        %v7092 = vsel %vm6768, %v6347, %v6930
        %v7093 = vsel %vm6769, %v6503, %v6931
        %v7094 = vsel %vm6770, %v6504, %v6932
        %v7095 = vsel %vm6771, %v6505, %v6933
        %v7096 = vsel %vm6772, %v6350, %v6934
        %v7097 = vsel %vm6773, %v6506, %v6935
        %v7098 = vsel %vm6774, %v6507, %v6936
        %v7099 = vsel %vm6775, %v6508, %v6937
        %v7100 = vsel %vm6776, %v6352, %v6938
        %v7101 = vsel %vm6777, %v6509, %v6939
        %v7102 = vsel %vm6778, %v6510, %v6940
        %v7103 = vsel %vm6779, %v6511, %v6941
        %v7104 = vsel %vm6780, %v6355, %v6942
        %v7105 = vsel %vm6781, %v6512, %v6943
        %v7106 = vsel %vm6782, %v6513, %v6944
        %v7107 = vsel %vm6783, %v6514, %v6945
        %v7108 = vsel %vm6784, %v6357, %v6946
        %v7109 = vsel %vm6785, %v6515, %v6947
        %v7110 = vsel %vm6786, %v6516, %v6948
        %v7111 = vsel %vm6787, %v6517, %v6949
        %v7112 = vsel %vm6788, %v6360, %v6950
        %v7113 = vsel %vm6789, %v6518, %v6951
        %v7114 = vsel %vm6790, %v6519, %v6952
        %v7115 = vsel %vm6791, %v6520, %v6953
        %v7116 = vsel %vm6792, %v6362, %v6954
        %v7117 = vsel %vm6793, %v6521, %v6955
        %v7118 = vsel %vm6794, %v6522, %v6956
        %v7119 = vsel %vm6795, %v6523, %v6957
        %v7120 = vsel %vm6796, %v6365, %v6958
        %v7121 = vsel %vm6797, %v6524, %v6959
        %v7122 = vsel %vm6798, %v6525, %v6960
        %v7123 = vsel %vm6799, %v6526, %v6961
        %v7124 = vsel %vm6800, %v6367, %v6962
        %v7125 = vsel %vm6801, %v6527, %v6963
        %v7126 = vsel %vm6802, %v6528, %v6964
        %v7127 = vsel %vm6803, %v6529, %v6965
        %v7128 = vsel %vm6804, %v6370, %v6966
        %v7129 = vsel %vm6805, %v6530, %v6967
        %v7130 = vsel %vm6806, %v6531, %v6968
        %v7131 = vsel %vm6807, %v6532, %v6969
        %v7132 = vsel %vm6808, %v6372, %v6970
        %v7133 = vsel %vm6809, %v6533, %v6971
        %v7134 = vsel %vm6810, %v6534, %v6972
        %v7135 = vsel %vm6811, %v6535, %v6973
        %v7136 = vsel %vm6812, %v6375, %v6974
        %v7137 = vsel %vm6813, %v6536, %v6975
        %v7138 = vsel %vm6814, %v6537, %v6976
        %v7139 = vsel %vm6815, %v6538, %v6977
        %v7140 = vsel %vm6816, %v6377, %v6978
        %v7141 = vsel %vm6817, %v6539, %v6979
        %v7142 = vsel %vm6818, %v6540, %v6980
        %v7143 = vsel %vm6819, %v6541, %v6981
        %v7144 = vsel %vm6820, %v6380, %v6982
        %v7145 = vsel %vm6821, %v6542, %v6983
        %v7146 = vsel %vm6822, %v6543, %v6984
        %v7147 = vsel %vm6823, %v6544, %v6985
        %v7148 = vsel %vm6824, %v6382, %v6986
        %v7149 = vsel %vm6825, %v6545, %v6987
        %v7150 = vsel %vm6826, %v6546, %v6988
        %v7151 = vsel %vm6827, %v6547, %v6989
        %v7152 = vsel %vm6828, %v6385, %v6990
        %v7153 = vsel %vm6829, %v6548, %v6991
        %v7154 = vsel %vm6830, %v6549, %v6992
        %v7155 = vsel %vm6831, %v6550, %v6993
        %v7156 = vsel %vm6832, %v6387, %v6994
        %v7157 = vsel %vm6833, %v6551, %v6995
        %v7158 = vsel %vm6834, %v6552, %v6996
        %v7159 = vsel %vm6835, %v6553, %v6997
        %v7160 = vsel %vm6836, %v6390, %v6998
        %v7161 = vsel %vm6837, %v6554, %v6999
        %vm7162 = vcmp.ge.s32.totalorder %v3177, 1
        %vm7163 = vcmp.ge.s32.totalorder %v3178, 1
        %vm7164 = vcmp.ge.s32.totalorder %v3179, 1
        %vm7165 = vcmp.lt.s32.totalorder %v3177, 17
        %vm7166 = vcmp.lt.s32.totalorder %v3178, 17
        %vm7167 = vcmp.lt.s32.totalorder %v3179, 17
        %vm7168 = vmand %vm7162, %vm7165
        %vm7169 = vmand %vm7163, %vm7166
        %vm7170 = vmand %vm7164, %vm7167
        %s7171 = ssub.s32 %s293, 1
        %v7172 = vstv %s7171
        %v7173 = vadd.s32 %v7172, 1
        %v7174 = vadd.s32 %v7172, 2
        %v7175 = vadd.s32 %v7172, 3
        %v7176 = vadd.s32 %v7172, 4
        %v7177 = vadd.s32 %v7172, 5
        %v7178 = vadd.s32 %v7172, 6
        %v7179 = vadd.s32 %v7172, 7
        %v7180 = vadd.s32 %v7172, 8
        %v7181 = vadd.s32 %v7172, 9
        %v7182 = vadd.s32 %v7172, 10
        %v7183 = vadd.s32 %v7172, 11
        %v7184 = vadd.s32 %v7172, 12
        %v7185 = vadd.s32 %v7172, 13
        %v7186 = vadd.s32 %v7172, 14
        %v7187 = vadd.s32 %v7172, 15
        %v7188 = vadd.s32 %v7172, 16
        %v7189 = vadd.s32 %v7172, 17
        %vm7190 = vcmp.ge.s32.totalorder %v7172, 0
        %vm7191 = vcmp.ge.s32.totalorder %v7173, 0
        %vm7192 = vcmp.ge.s32.totalorder %v7174, 0
        %vm7193 = vcmp.ge.s32.totalorder %v7175, 0
        %vm7194 = vcmp.ge.s32.totalorder %v7176, 0
        %vm7195 = vcmp.ge.s32.totalorder %v7177, 0
        %vm7196 = vcmp.ge.s32.totalorder %v7178, 0
        %vm7197 = vcmp.ge.s32.totalorder %v7179, 0
        %vm7198 = vcmp.ge.s32.totalorder %v7180, 0
        %vm7199 = vcmp.ge.s32.totalorder %v7181, 0
        %vm7200 = vcmp.ge.s32.totalorder %v7182, 0
        %vm7201 = vcmp.ge.s32.totalorder %v7183, 0
        %vm7202 = vcmp.ge.s32.totalorder %v7184, 0
        %vm7203 = vcmp.ge.s32.totalorder %v7185, 0
        %vm7204 = vcmp.ge.s32.totalorder %v7186, 0
        %vm7205 = vcmp.ge.s32.totalorder %v7187, 0
        %vm7206 = vcmp.ge.s32.totalorder %v7188, 0
        %vm7207 = vcmp.ge.s32.totalorder %v7189, 0
        %vm7208 = vcmp.lt.s32.totalorder %v7172, 16
        %vm7209 = vcmp.lt.s32.totalorder %v7173, 16
        %vm7210 = vcmp.lt.s32.totalorder %v7174, 16
        %vm7211 = vcmp.lt.s32.totalorder %v7175, 16
        %vm7212 = vcmp.lt.s32.totalorder %v7176, 16
        %vm7213 = vcmp.lt.s32.totalorder %v7177, 16
        %vm7214 = vcmp.lt.s32.totalorder %v7178, 16
        %vm7215 = vcmp.lt.s32.totalorder %v7179, 16
        %vm7216 = vcmp.lt.s32.totalorder %v7180, 16
        %vm7217 = vcmp.lt.s32.totalorder %v7181, 16
        %vm7218 = vcmp.lt.s32.totalorder %v7182, 16
        %vm7219 = vcmp.lt.s32.totalorder %v7183, 16
        %vm7220 = vcmp.lt.s32.totalorder %v7184, 16
        %vm7221 = vcmp.lt.s32.totalorder %v7185, 16
        %vm7222 = vcmp.lt.s32.totalorder %v7186, 16
        %vm7223 = vcmp.lt.s32.totalorder %v7187, 16
        %vm7224 = vcmp.lt.s32.totalorder %v7188, 16
        %vm7225 = vcmp.lt.s32.totalorder %v7189, 16
        %vm7226 = vmand %vm7190, %vm7208
        %vm7227 = vmand %vm7191, %vm7209
        %vm7228 = vmand %vm7192, %vm7210
        %vm7229 = vmand %vm7193, %vm7211
        %vm7230 = vmand %vm7194, %vm7212
        %vm7231 = vmand %vm7195, %vm7213
        %vm7232 = vmand %vm7196, %vm7214
        %vm7233 = vmand %vm7197, %vm7215
        %vm7234 = vmand %vm7198, %vm7216
        %vm7235 = vmand %vm7199, %vm7217
        %vm7236 = vmand %vm7200, %vm7218
        %vm7237 = vmand %vm7201, %vm7219
        %vm7238 = vmand %vm7202, %vm7220
        %vm7239 = vmand %vm7203, %vm7221
        %vm7240 = vmand %vm7204, %vm7222
        %vm7241 = vmand %vm7205, %vm7223
        %vm7242 = vmand %vm7206, %vm7224
        %vm7243 = vmand %vm7207, %vm7225
        %v7244 = vsel %vm7168, 1, 0
        %v7245 = vsel %vm7169, 1, 0
        %v7246 = vsel %vm7170, 1, 0
        %vm7247 = vcmp.eq.s32.totalorder %v7244, 1
        %vm7248 = vcmp.eq.s32.totalorder %v7245, 1
        %vm7249 = vcmp.eq.s32.totalorder %v7246, 1
        %v7250 = vsel %vm7226, 1, 0
        %v7251 = vsel %vm7227, 1, 0
        %v7252 = vsel %vm7228, 1, 0
        %v7253 = vsel %vm7229, 1, 0
        %v7254 = vsel %vm7230, 1, 0
        %v7255 = vsel %vm7231, 1, 0
        %v7256 = vsel %vm7232, 1, 0
        %v7257 = vsel %vm7233, 1, 0
        %v7258 = vsel %vm7234, 1, 0
        %v7259 = vsel %vm7235, 1, 0
        %v7260 = vsel %vm7236, 1, 0
        %v7261 = vsel %vm7237, 1, 0
        %v7262 = vsel %vm7238, 1, 0
        %v7263 = vsel %vm7239, 1, 0
        %v7264 = vsel %vm7240, 1, 0
        %v7265 = vsel %vm7241, 1, 0
        %v7266 = vsel %vm7242, 1, 0
        %v7267 = vsel %vm7243, 1, 0
        %vm7268 = vcmp.eq.s32.totalorder %v7250, 1
        %vm7269 = vcmp.eq.s32.totalorder %v7251, 1
        %vm7270 = vcmp.eq.s32.totalorder %v7252, 1
        %vm7271 = vcmp.eq.s32.totalorder %v7253, 1
        %vm7272 = vcmp.eq.s32.totalorder %v7254, 1
        %vm7273 = vcmp.eq.s32.totalorder %v7255, 1
        %vm7274 = vcmp.eq.s32.totalorder %v7256, 1
        %vm7275 = vcmp.eq.s32.totalorder %v7257, 1
        %vm7276 = vcmp.eq.s32.totalorder %v7258, 1
        %vm7277 = vcmp.eq.s32.totalorder %v7259, 1
        %vm7278 = vcmp.eq.s32.totalorder %v7260, 1
        %vm7279 = vcmp.eq.s32.totalorder %v7261, 1
        %vm7280 = vcmp.eq.s32.totalorder %v7262, 1
        %vm7281 = vcmp.eq.s32.totalorder %v7263, 1
        %vm7282 = vcmp.eq.s32.totalorder %v7264, 1
        %vm7283 = vcmp.eq.s32.totalorder %v7265, 1
        %vm7284 = vcmp.eq.s32.totalorder %v7266, 1
        %vm7285 = vcmp.eq.s32.totalorder %v7267, 1
        %vm7286 = vmand %vm7247, %vm7268
        %vm7287 = vmand %vm7248, %vm7268
        %vm7288 = vmand %vm7249, %vm7268
        %vm7289 = vmand %vm7247, %vm7269
        %vm7290 = vmand %vm7248, %vm7269
        %vm7291 = vmand %vm7249, %vm7269
        %vm7292 = vmand %vm7247, %vm7270
        %vm7293 = vmand %vm7248, %vm7270
        %vm7294 = vmand %vm7249, %vm7270
        %vm7295 = vmand %vm7247, %vm7271
        %vm7296 = vmand %vm7248, %vm7271
        %vm7297 = vmand %vm7249, %vm7271
        %vm7298 = vmand %vm7247, %vm7272
        %vm7299 = vmand %vm7248, %vm7272
        %vm7300 = vmand %vm7249, %vm7272
        %vm7301 = vmand %vm7247, %vm7273
        %vm7302 = vmand %vm7248, %vm7273
        %vm7303 = vmand %vm7249, %vm7273
        %vm7304 = vmand %vm7247, %vm7274
        %vm7305 = vmand %vm7248, %vm7274
        %vm7306 = vmand %vm7249, %vm7274
        %vm7307 = vmand %vm7247, %vm7275
        %vm7308 = vmand %vm7248, %vm7275
        %vm7309 = vmand %vm7249, %vm7275
        %vm7310 = vmand %vm7247, %vm7276
        %vm7311 = vmand %vm7248, %vm7276
        %vm7312 = vmand %vm7249, %vm7276
        %vm7313 = vmand %vm7247, %vm7277
        %vm7314 = vmand %vm7248, %vm7277
        %vm7315 = vmand %vm7249, %vm7277
        %vm7316 = vmand %vm7247, %vm7278
        %vm7317 = vmand %vm7248, %vm7278
        %vm7318 = vmand %vm7249, %vm7278
        %vm7319 = vmand %vm7247, %vm7279
        %vm7320 = vmand %vm7248, %vm7279
        %vm7321 = vmand %vm7249, %vm7279
        %vm7322 = vmand %vm7247, %vm7280
        %vm7323 = vmand %vm7248, %vm7280
        %vm7324 = vmand %vm7249, %vm7280
        %vm7325 = vmand %vm7247, %vm7281
        %vm7326 = vmand %vm7248, %vm7281
        %vm7327 = vmand %vm7249, %vm7281
        %vm7328 = vmand %vm7247, %vm7282
        %vm7329 = vmand %vm7248, %vm7282
        %vm7330 = vmand %vm7249, %vm7282
        %vm7331 = vmand %vm7247, %vm7283
        %vm7332 = vmand %vm7248, %vm7283
        %vm7333 = vmand %vm7249, %vm7283
        %vm7334 = vmand %vm7247, %vm7284
        %vm7335 = vmand %vm7248, %vm7284
        %vm7336 = vmand %vm7249, %vm7284
        %vm7337 = vmand %vm7247, %vm7285
        %vm7338 = vmand %vm7248, %vm7285
        %vm7339 = vmand %vm7249, %vm7285
        %v7340 = vsel %vm7286, 1, 0
        %v7341 = vsel %vm7287, 1, 0
        %v7342 = vsel %vm7288, 1, 0
        %v7343 = vsel %vm7289, 1, 0
        %v7344 = vsel %vm7290, 1, 0
        %v7345 = vsel %vm7291, 1, 0
        %v7346 = vsel %vm7292, 1, 0
        %v7347 = vsel %vm7293, 1, 0
        %v7348 = vsel %vm7294, 1, 0
        %v7349 = vsel %vm7295, 1, 0
        %v7350 = vsel %vm7296, 1, 0
        %v7351 = vsel %vm7297, 1, 0
        %v7352 = vsel %vm7298, 1, 0
        %v7353 = vsel %vm7299, 1, 0
        %v7354 = vsel %vm7300, 1, 0
        %v7355 = vsel %vm7301, 1, 0
        %v7356 = vsel %vm7302, 1, 0
        %v7357 = vsel %vm7303, 1, 0
        %v7358 = vsel %vm7304, 1, 0
        %v7359 = vsel %vm7305, 1, 0
        %v7360 = vsel %vm7306, 1, 0
        %v7361 = vsel %vm7307, 1, 0
        %v7362 = vsel %vm7308, 1, 0
        %v7363 = vsel %vm7309, 1, 0
        %v7364 = vsel %vm7310, 1, 0
        %v7365 = vsel %vm7311, 1, 0
        %v7366 = vsel %vm7312, 1, 0
        %v7367 = vsel %vm7313, 1, 0
        %v7368 = vsel %vm7314, 1, 0
        %v7369 = vsel %vm7315, 1, 0
        %v7370 = vsel %vm7316, 1, 0
        %v7371 = vsel %vm7317, 1, 0
        %v7372 = vsel %vm7318, 1, 0
        %v7373 = vsel %vm7319, 1, 0
        %v7374 = vsel %vm7320, 1, 0
        %v7375 = vsel %vm7321, 1, 0
        %v7376 = vsel %vm7322, 1, 0
        %v7377 = vsel %vm7323, 1, 0
        %v7378 = vsel %vm7324, 1, 0
        %v7379 = vsel %vm7325, 1, 0
        %v7380 = vsel %vm7326, 1, 0
        %v7381 = vsel %vm7327, 1, 0
        %v7382 = vsel %vm7328, 1, 0
        %v7383 = vsel %vm7329, 1, 0
        %v7384 = vsel %vm7330, 1, 0
        %v7385 = vsel %vm7331, 1, 0
        %v7386 = vsel %vm7332, 1, 0
        %v7387 = vsel %vm7333, 1, 0
        %v7388 = vsel %vm7334, 1, 0
        %v7389 = vsel %vm7335, 1, 0
        %v7390 = vsel %vm7336, 1, 0
        %v7391 = vsel %vm7337, 1, 0
        %v7392 = vsel %vm7338, 1, 0
        %v7393 = vsel %vm7339, 1, 0
        %vm7394 = vcmp.eq.s32.totalorder %v7340, 1
        %vm7395 = vcmp.eq.s32.totalorder %v7341, 1
        %vm7396 = vcmp.eq.s32.totalorder %v7342, 1
        %vm7397 = vcmp.eq.s32.totalorder %v7343, 1
        %vm7398 = vcmp.eq.s32.totalorder %v7344, 1
        %vm7399 = vcmp.eq.s32.totalorder %v7345, 1
        %vm7400 = vcmp.eq.s32.totalorder %v7346, 1
        %vm7401 = vcmp.eq.s32.totalorder %v7347, 1
        %vm7402 = vcmp.eq.s32.totalorder %v7348, 1
        %vm7403 = vcmp.eq.s32.totalorder %v7349, 1
        %vm7404 = vcmp.eq.s32.totalorder %v7350, 1
        %vm7405 = vcmp.eq.s32.totalorder %v7351, 1
        %vm7406 = vcmp.eq.s32.totalorder %v7352, 1
        %vm7407 = vcmp.eq.s32.totalorder %v7353, 1
        %vm7408 = vcmp.eq.s32.totalorder %v7354, 1
        %vm7409 = vcmp.eq.s32.totalorder %v7355, 1
        %vm7410 = vcmp.eq.s32.totalorder %v7356, 1
        %vm7411 = vcmp.eq.s32.totalorder %v7357, 1
        %vm7412 = vcmp.eq.s32.totalorder %v7358, 1
        %vm7413 = vcmp.eq.s32.totalorder %v7359, 1
        %vm7414 = vcmp.eq.s32.totalorder %v7360, 1
        %vm7415 = vcmp.eq.s32.totalorder %v7361, 1
        %vm7416 = vcmp.eq.s32.totalorder %v7362, 1
        %vm7417 = vcmp.eq.s32.totalorder %v7363, 1
        %vm7418 = vcmp.eq.s32.totalorder %v7364, 1
        %vm7419 = vcmp.eq.s32.totalorder %v7365, 1
        %vm7420 = vcmp.eq.s32.totalorder %v7366, 1
        %vm7421 = vcmp.eq.s32.totalorder %v7367, 1
        %vm7422 = vcmp.eq.s32.totalorder %v7368, 1
        %vm7423 = vcmp.eq.s32.totalorder %v7369, 1
        %vm7424 = vcmp.eq.s32.totalorder %v7370, 1
        %vm7425 = vcmp.eq.s32.totalorder %v7371, 1
        %vm7426 = vcmp.eq.s32.totalorder %v7372, 1
        %vm7427 = vcmp.eq.s32.totalorder %v7373, 1
        %vm7428 = vcmp.eq.s32.totalorder %v7374, 1
        %vm7429 = vcmp.eq.s32.totalorder %v7375, 1
        %vm7430 = vcmp.eq.s32.totalorder %v7376, 1
        %vm7431 = vcmp.eq.s32.totalorder %v7377, 1
        %vm7432 = vcmp.eq.s32.totalorder %v7378, 1
        %vm7433 = vcmp.eq.s32.totalorder %v7379, 1
        %vm7434 = vcmp.eq.s32.totalorder %v7380, 1
        %vm7435 = vcmp.eq.s32.totalorder %v7381, 1
        %vm7436 = vcmp.eq.s32.totalorder %v7382, 1
        %vm7437 = vcmp.eq.s32.totalorder %v7383, 1
        %vm7438 = vcmp.eq.s32.totalorder %v7384, 1
        %vm7439 = vcmp.eq.s32.totalorder %v7385, 1
        %vm7440 = vcmp.eq.s32.totalorder %v7386, 1
        %vm7441 = vcmp.eq.s32.totalorder %v7387, 1
        %vm7442 = vcmp.eq.s32.totalorder %v7388, 1
        %vm7443 = vcmp.eq.s32.totalorder %v7389, 1
        %vm7444 = vcmp.eq.s32.totalorder %v7390, 1
        %vm7445 = vcmp.eq.s32.totalorder %v7391, 1
        %vm7446 = vcmp.eq.s32.totalorder %v7392, 1
        %vm7447 = vcmp.eq.s32.totalorder %v7393, 1
        %7610 = vst [vmem:[#allocation1] ss:$4 sm:$0xff] %v7000
        %s7611 = scalar_lea.vmem [#allocation1], 1
        %7612 = vst [vmem:[%s7611] ss:$4 sm:$0xff] %v7001
        %s7613 = scalar_lea.vmem [#allocation1], 2
        %7614 = vst [vmem:[%s7613] ss:$4 sm:$0xff] %v7002
        %s7615 = scalar_lea.vmem [#allocation1], 3
        %7616 = vst [vmem:[%s7615] ss:$4 sm:$0xff] %v7003
        %s7617 = scalar_lea.vmem [#allocation1], 32
        %7618 = vst [vmem:[%s7617] ss:$4 sm:$0xff] %v7004
        %s7619 = scalar_lea.vmem [#allocation1], 33
        %7620 = vst [vmem:[%s7619] ss:$4 sm:$0xff] %v7005
        %s7621 = scalar_lea.vmem [#allocation1], 34
        %7622 = vst [vmem:[%s7621] ss:$4 sm:$0xff] %v7006
        %s7623 = scalar_lea.vmem [#allocation1], 35
        %7624 = vst [vmem:[%s7623] ss:$4 sm:$0xff] %v7007
        %v7625 = vld.sshfl [vmem:[#allocation1] sm:$0xff pattern:$0x73625140]
        %v7626 = vld.sshfl [vmem:[#allocation1 + $0x20] sm:$0xff pattern:$0x73625140]
        %7627 = vst [vmem:[#allocation1] ss:$4 sm:$0xff] %v7008
        %v7628 = vld.sshfl [vmem:[#allocation1] sm:$0xff pattern:$0x73625140]
        %7629 = vst [vmem:[%s7617] ss:$4 sm:$0xff] %v7009
        %7630 = vst [vmem:[%s7619] ss:$4 sm:$0xff] %v7010
        %7631 = vst [vmem:[%s7621] ss:$4 sm:$0xff] %v7011
        %7632 = vst [vmem:[%s7623] ss:$4 sm:$0xff] %v7012
        %v7633 = vld.sshfl [vmem:[#allocation1 + $0x20] sm:$0xff pattern:$0x73625140]
        %7634 = vst [vmem:[#allocation1] ss:$4 sm:$0xff] %v7013
        %7635 = vst [vmem:[%s7611] ss:$4 sm:$0xff] %v7014
        %7636 = vst [vmem:[%s7613] ss:$4 sm:$0xff] %v7015
        %7637 = vst [vmem:[%s7615] ss:$4 sm:$0xff] %v7016
        %7638 = vst [vmem:[%s7617] ss:$4 sm:$0xff] %v7017
        %v7639 = vld.sshfl [vmem:[#allocation1] sm:$0xff pattern:$0x73625140]
        %v7640 = vld.sshfl [vmem:[#allocation1 + $0x20] sm:$0xff pattern:$0x73625140]
        %7641 = vst [vmem:[#allocation1] ss:$4 sm:$0xff] %v7018
        %7642 = vst [vmem:[%s7611] ss:$4 sm:$0xff] %v7019
        %7643 = vst [vmem:[%s7613] ss:$4 sm:$0xff] %v7020
        %7644 = vst [vmem:[%s7615] ss:$4 sm:$0xff] %v7021
        %7645 = vst [vmem:[%s7617] ss:$4 sm:$0xff] %v7022
        %7646 = vst [vmem:[%s7619] ss:$4 sm:$0xff] %v7023
        %7647 = vst [vmem:[%s7621] ss:$4 sm:$0xff] %v7024
        %7648 = vst [vmem:[%s7623] ss:$4 sm:$0xff] %v7025
        %v7649 = vld.sshfl [vmem:[#allocation1] sm:$0xff pattern:$0x73625140]
        %v7650 = vld.sshfl [vmem:[#allocation1 + $0x20] sm:$0xff pattern:$0x73625140]
        %7651 = vst [vmem:[#allocation1] ss:$4 sm:$0xff] %v7026
        %v7652 = vld.sshfl [vmem:[#allocation1] sm:$0xff pattern:$0x73625140]
        %7653 = vst [vmem:[%s7617] ss:$4 sm:$0xff] %v7027
        %7654 = vst [vmem:[%s7619] ss:$4 sm:$0xff] %v7028
        %7655 = vst [vmem:[%s7621] ss:$4 sm:$0xff] %v7029
        %7656 = vst [vmem:[%s7623] ss:$4 sm:$0xff] %v7030
        %v7657 = vld.sshfl [vmem:[#allocation1 + $0x20] sm:$0xff pattern:$0x73625140]
        %7658 = vst [vmem:[#allocation1] ss:$4 sm:$0xff] %v7031
        %7659 = vst [vmem:[%s7611] ss:$4 sm:$0xff] %v7032
        %7660 = vst [vmem:[%s7613] ss:$4 sm:$0xff] %v7033
        %7661 = vst [vmem:[%s7615] ss:$4 sm:$0xff] %v7034
        %7662 = vst [vmem:[%s7617] ss:$4 sm:$0xff] %v7035
        %v7663 = vld.sshfl [vmem:[#allocation1] sm:$0xff pattern:$0x73625140]
        %v7664 = vld.sshfl [vmem:[#allocation1 + $0x20] sm:$0xff pattern:$0x73625140]
        %7665 = vst [vmem:[#allocation1] ss:$4 sm:$0xff] %v7036
        %7666 = vst [vmem:[%s7611] ss:$4 sm:$0xff] %v7037
        %7667 = vst [vmem:[%s7613] ss:$4 sm:$0xff] %v7038
        %7668 = vst [vmem:[%s7615] ss:$4 sm:$0xff] %v7039
        %7669 = vst [vmem:[%s7617] ss:$4 sm:$0xff] %v7040
        %7670 = vst [vmem:[%s7619] ss:$4 sm:$0xff] %v7041
        %7671 = vst [vmem:[%s7621] ss:$4 sm:$0xff] %v7042
        %7672 = vst [vmem:[%s7623] ss:$4 sm:$0xff] %v7043
        %v7673 = vld.sshfl [vmem:[#allocation1] sm:$0xff pattern:$0x73625140]
        %v7674 = vld.sshfl [vmem:[#allocation1 + $0x20] sm:$0xff pattern:$0x73625140]
        %7675 = vst [vmem:[#allocation1] ss:$4 sm:$0xff] %v7044
        %v7676 = vld.sshfl [vmem:[#allocation1] sm:$0xff pattern:$0x73625140]
        %7677 = vst [vmem:[%s7617] ss:$4 sm:$0xff] %v7045
        %7678 = vst [vmem:[%s7619] ss:$4 sm:$0xff] %v7046
        %7679 = vst [vmem:[%s7621] ss:$4 sm:$0xff] %v7047
        %7680 = vst [vmem:[%s7623] ss:$4 sm:$0xff] %v7048
        %v7681 = vld.sshfl [vmem:[#allocation1 + $0x20] sm:$0xff pattern:$0x73625140]
        %7682 = vst [vmem:[#allocation1] ss:$4 sm:$0xff] %v7049
        %7683 = vst [vmem:[%s7611] ss:$4 sm:$0xff] %v7050
        %7684 = vst [vmem:[%s7613] ss:$4 sm:$0xff] %v7051
        %7685 = vst [vmem:[%s7615] ss:$4 sm:$0xff] %v7052
        %7686 = vst [vmem:[%s7617] ss:$4 sm:$0xff] %v7053
        %v7687 = vld.sshfl [vmem:[#allocation1] sm:$0xff pattern:$0x73625140]
        %v7688 = vld.sshfl [vmem:[#allocation1 + $0x20] sm:$0xff pattern:$0x73625140]
        %7689 = vst [vmem:[#allocation1] ss:$4 sm:$0xff] %v7054
        %7690 = vst [vmem:[%s7611] ss:$4 sm:$0xff] %v7055
        %7691 = vst [vmem:[%s7613] ss:$4 sm:$0xff] %v7056
        %7692 = vst [vmem:[%s7615] ss:$4 sm:$0xff] %v7057
        %7693 = vst [vmem:[%s7617] ss:$4 sm:$0xff] %v7058
        %7694 = vst [vmem:[%s7619] ss:$4 sm:$0xff] %v7059
        %7695 = vst [vmem:[%s7621] ss:$4 sm:$0xff] %v7060
        %7696 = vst [vmem:[%s7623] ss:$4 sm:$0xff] %v7061
        %v7697 = vld.sshfl [vmem:[#allocation1] sm:$0xff pattern:$0x73625140]
        %v7698 = vld.sshfl [vmem:[#allocation1 + $0x20] sm:$0xff pattern:$0x73625140]
        %7699 = vst [vmem:[#allocation1] ss:$4 sm:$0xff] %v7062
        %v7700 = vld.sshfl [vmem:[#allocation1] sm:$0xff pattern:$0x73625140]
        %7701 = vst [vmem:[%s7617] ss:$4 sm:$0xff] %v7063
        %7702 = vst [vmem:[%s7619] ss:$4 sm:$0xff] %v7064
        %7703 = vst [vmem:[%s7621] ss:$4 sm:$0xff] %v7065
        %7704 = vst [vmem:[%s7623] ss:$4 sm:$0xff] %v7066
        %v7705 = vld.sshfl [vmem:[#allocation1 + $0x20] sm:$0xff pattern:$0x73625140]
        %7706 = vst [vmem:[#allocation1] ss:$4 sm:$0xff] %v7067
        %7707 = vst [vmem:[%s7611] ss:$4 sm:$0xff] %v7068
        %7708 = vst [vmem:[%s7613] ss:$4 sm:$0xff] %v7069
        %7709 = vst [vmem:[%s7615] ss:$4 sm:$0xff] %v7070
        %7710 = vst [vmem:[%s7617] ss:$4 sm:$0xff] %v7071
        %v7711 = vld.sshfl [vmem:[#allocation1] sm:$0xff pattern:$0x73625140]
        %v7712 = vld.sshfl [vmem:[#allocation1 + $0x20] sm:$0xff pattern:$0x73625140]
        %7713 = vst [vmem:[#allocation1] ss:$4 sm:$0xff] %v7072
        %7714 = vst [vmem:[%s7611] ss:$4 sm:$0xff] %v7073
        %7715 = vst [vmem:[%s7613] ss:$4 sm:$0xff] %v7074
        %7716 = vst [vmem:[%s7615] ss:$4 sm:$0xff] %v7075
        %7717 = vst [vmem:[%s7617] ss:$4 sm:$0xff] %v7076
        %7718 = vst [vmem:[%s7619] ss:$4 sm:$0xff] %v7077
        %7719 = vst [vmem:[%s7621] ss:$4 sm:$0xff] %v7078
        %7720 = vst [vmem:[%s7623] ss:$4 sm:$0xff] %v7079
        %v7721 = vld.sshfl [vmem:[#allocation1] sm:$0xff pattern:$0x73625140]
        %v7722 = vld.sshfl [vmem:[#allocation1 + $0x20] sm:$0xff pattern:$0x73625140]
        %7723 = vst [vmem:[#allocation1] ss:$4 sm:$0xff] %v7080
        %v7724 = vld.sshfl [vmem:[#allocation1] sm:$0xff pattern:$0x73625140]
        %7725 = vst [vmem:[%s7617] ss:$4 sm:$0xff] %v7081
        %7726 = vst [vmem:[%s7619] ss:$4 sm:$0xff] %v7082
        %7727 = vst [vmem:[%s7621] ss:$4 sm:$0xff] %v7083
        %7728 = vst [vmem:[%s7623] ss:$4 sm:$0xff] %v7084
        %v7729 = vld.sshfl [vmem:[#allocation1 + $0x20] sm:$0xff pattern:$0x73625140]
        %7730 = vst [vmem:[#allocation1] ss:$4 sm:$0xff] %v7085
        %7731 = vst [vmem:[%s7611] ss:$4 sm:$0xff] %v7086
        %7732 = vst [vmem:[%s7613] ss:$4 sm:$0xff] %v7087
        %7733 = vst [vmem:[%s7615] ss:$4 sm:$0xff] %v7088
        %7734 = vst [vmem:[%s7617] ss:$4 sm:$0xff] %v7089
        %v7735 = vld.sshfl [vmem:[#allocation1] sm:$0xff pattern:$0x73625140]
        %v7736 = vld.sshfl [vmem:[#allocation1 + $0x20] sm:$0xff pattern:$0x73625140]
        %7737 = vst [vmem:[#allocation1] ss:$4 sm:$0xff] %v7090
        %7738 = vst [vmem:[%s7611] ss:$4 sm:$0xff] %v7091
        %7739 = vst [vmem:[%s7613] ss:$4 sm:$0xff] %v7092
        %7740 = vst [vmem:[%s7615] ss:$4 sm:$0xff] %v7093
        %7741 = vst [vmem:[%s7617] ss:$4 sm:$0xff] %v7094
        %7742 = vst [vmem:[%s7619] ss:$4 sm:$0xff] %v7095
        %7743 = vst [vmem:[%s7621] ss:$4 sm:$0xff] %v7096
        %7744 = vst [vmem:[%s7623] ss:$4 sm:$0xff] %v7097
        %v7745 = vld.sshfl [vmem:[#allocation1] sm:$0xff pattern:$0x73625140]
        %v7746 = vld.sshfl [vmem:[#allocation1 + $0x20] sm:$0xff pattern:$0x73625140]
        %7747 = vst [vmem:[#allocation1] ss:$4 sm:$0xff] %v7098
        %v7748 = vld.sshfl [vmem:[#allocation1] sm:$0xff pattern:$0x73625140]
        %7749 = vst [vmem:[%s7617] ss:$4 sm:$0xff] %v7099
        %7750 = vst [vmem:[%s7619] ss:$4 sm:$0xff] %v7100
        %7751 = vst [vmem:[%s7621] ss:$4 sm:$0xff] %v7101
        %7752 = vst [vmem:[%s7623] ss:$4 sm:$0xff] %v7102
        %v7753 = vld.sshfl [vmem:[#allocation1 + $0x20] sm:$0xff pattern:$0x73625140]
        %7754 = vst [vmem:[#allocation1] ss:$4 sm:$0xff] %v7103
        %7755 = vst [vmem:[%s7611] ss:$4 sm:$0xff] %v7104
        %7756 = vst [vmem:[%s7613] ss:$4 sm:$0xff] %v7105
        %7757 = vst [vmem:[%s7615] ss:$4 sm:$0xff] %v7106
        %7758 = vst [vmem:[%s7617] ss:$4 sm:$0xff] %v7107
        %v7759 = vld.sshfl [vmem:[#allocation1] sm:$0xff pattern:$0x73625140]
        %v7760 = vld.sshfl [vmem:[#allocation1 + $0x20] sm:$0xff pattern:$0x73625140]
        %7761 = vst [vmem:[#allocation1] ss:$4 sm:$0xff] %v7108
        %7762 = vst [vmem:[%s7611] ss:$4 sm:$0xff] %v7109
        %7763 = vst [vmem:[%s7613] ss:$4 sm:$0xff] %v7110
        %7764 = vst [vmem:[%s7615] ss:$4 sm:$0xff] %v7111
        %7765 = vst [vmem:[%s7617] ss:$4 sm:$0xff] %v7112
        %7766 = vst [vmem:[%s7619] ss:$4 sm:$0xff] %v7113
        %7767 = vst [vmem:[%s7621] ss:$4 sm:$0xff] %v7114
        %7768 = vst [vmem:[%s7623] ss:$4 sm:$0xff] %v7115
        %v7769 = vld.sshfl [vmem:[#allocation1] sm:$0xff pattern:$0x73625140]
        %v7770 = vld.sshfl [vmem:[#allocation1 + $0x20] sm:$0xff pattern:$0x73625140]
        %7771 = vst [vmem:[#allocation1] ss:$4 sm:$0xff] %v7116
        %v7772 = vld.sshfl [vmem:[#allocation1] sm:$0xff pattern:$0x73625140]
        %7773 = vst [vmem:[%s7617] ss:$4 sm:$0xff] %v7117
        %7774 = vst [vmem:[%s7619] ss:$4 sm:$0xff] %v7118
        %7775 = vst [vmem:[%s7621] ss:$4 sm:$0xff] %v7119
        %7776 = vst [vmem:[%s7623] ss:$4 sm:$0xff] %v7120
        %v7777 = vld.sshfl [vmem:[#allocation1 + $0x20] sm:$0xff pattern:$0x73625140]
        %7778 = vst [vmem:[#allocation1] ss:$4 sm:$0xff] %v7121
        %7779 = vst [vmem:[%s7611] ss:$4 sm:$0xff] %v7122
        %7780 = vst [vmem:[%s7613] ss:$4 sm:$0xff] %v7123
        %7781 = vst [vmem:[%s7615] ss:$4 sm:$0xff] %v7124
        %7782 = vst [vmem:[%s7617] ss:$4 sm:$0xff] %v7125
        %v7783 = vld.sshfl [vmem:[#allocation1] sm:$0xff pattern:$0x73625140]
        %v7784 = vld.sshfl [vmem:[#allocation1 + $0x20] sm:$0xff pattern:$0x73625140]
        %7785 = vst [vmem:[#allocation1] ss:$4 sm:$0xff] %v7126
        %7786 = vst [vmem:[%s7611] ss:$4 sm:$0xff] %v7127
        %7787 = vst [vmem:[%s7613] ss:$4 sm:$0xff] %v7128
        %7788 = vst [vmem:[%s7615] ss:$4 sm:$0xff] %v7129
        %7789 = vst [vmem:[%s7617] ss:$4 sm:$0xff] %v7130
        %7790 = vst [vmem:[%s7619] ss:$4 sm:$0xff] %v7131
        %7791 = vst [vmem:[%s7621] ss:$4 sm:$0xff] %v7132
        %7792 = vst [vmem:[%s7623] ss:$4 sm:$0xff] %v7133
        %v7793 = vld.sshfl [vmem:[#allocation1] sm:$0xff pattern:$0x73625140]
        %v7794 = vld.sshfl [vmem:[#allocation1 + $0x20] sm:$0xff pattern:$0x73625140]
        %7795 = vst [vmem:[#allocation1] ss:$4 sm:$0xff] %v7134
        %v7796 = vld.sshfl [vmem:[#allocation1] sm:$0xff pattern:$0x73625140]
        %7797 = vst [vmem:[%s7617] ss:$4 sm:$0xff] %v7135
        %7798 = vst [vmem:[%s7619] ss:$4 sm:$0xff] %v7136
        %7799 = vst [vmem:[%s7621] ss:$4 sm:$0xff] %v7137
        %7800 = vst [vmem:[%s7623] ss:$4 sm:$0xff] %v7138
        %v7801 = vld.sshfl [vmem:[#allocation1 + $0x20] sm:$0xff pattern:$0x73625140]
        %7802 = vst [vmem:[#allocation1] ss:$4 sm:$0xff] %v7139
        %7803 = vst [vmem:[%s7611] ss:$4 sm:$0xff] %v7140
        %7804 = vst [vmem:[%s7613] ss:$4 sm:$0xff] %v7141
        %7805 = vst [vmem:[%s7615] ss:$4 sm:$0xff] %v7142
        %7806 = vst [vmem:[%s7617] ss:$4 sm:$0xff] %v7143
        %v7807 = vld.sshfl [vmem:[#allocation1] sm:$0xff pattern:$0x73625140]
        %v7808 = vld.sshfl [vmem:[#allocation1 + $0x20] sm:$0xff pattern:$0x73625140]
        %7809 = vst [vmem:[#allocation1] ss:$4 sm:$0xff] %v7144
        %7810 = vst [vmem:[%s7611] ss:$4 sm:$0xff] %v7145
        %7811 = vst [vmem:[%s7613] ss:$4 sm:$0xff] %v7146
        %7812 = vst [vmem:[%s7615] ss:$4 sm:$0xff] %v7147
        %7813 = vst [vmem:[%s7617] ss:$4 sm:$0xff] %v7148
        %7814 = vst [vmem:[%s7619] ss:$4 sm:$0xff] %v7149
        %7815 = vst [vmem:[%s7621] ss:$4 sm:$0xff] %v7150
        %7816 = vst [vmem:[%s7623] ss:$4 sm:$0xff] %v7151
        %v7817 = vld.sshfl [vmem:[#allocation1] sm:$0xff pattern:$0x73625140]
        %v7818 = vld.sshfl [vmem:[#allocation1 + $0x20] sm:$0xff pattern:$0x73625140]
        %7819 = vst [vmem:[#allocation1] ss:$4 sm:$0xff] %v7152
        %v7820 = vld.sshfl [vmem:[#allocation1] sm:$0xff pattern:$0x73625140]
        %7821 = vst [vmem:[%s7617] ss:$4 sm:$0xff] %v7153
        %7822 = vst [vmem:[%s7619] ss:$4 sm:$0xff] %v7154
        %7823 = vst [vmem:[%s7621] ss:$4 sm:$0xff] %v7155
        %7824 = vst [vmem:[%s7623] ss:$4 sm:$0xff] %v7156
        %v7825 = vld.sshfl [vmem:[#allocation1 + $0x20] sm:$0xff pattern:$0x73625140]
        %7826 = vst [vmem:[#allocation1] ss:$4 sm:$0xff] %v7157
        %7827 = vst [vmem:[%s7611] ss:$4 sm:$0xff] %v7158
        %7828 = vst [vmem:[%s7613] ss:$4 sm:$0xff] %v7159
        %7829 = vst [vmem:[%s7615] ss:$4 sm:$0xff] %v7160
        %7830 = vst [vmem:[%s7617] ss:$4 sm:$0xff] %v7161
        %v7831 = vld.sshfl [vmem:[#allocation1] sm:$0xff pattern:$0x73625140]
        %v7832 = vld.sshfl [vmem:[#allocation1 + $0x20] sm:$0xff pattern:$0x73625140]
        %7833 = vrot.lane.b32.xlu0 %v7625, 120
        %v7834 = vpop.permute.xlu0 %7833
        %7835 = vrot.lane.b32.xlu0 %v7626, 120
        %v7836 = vpop.permute.xlu0 %7835
        %7837 = vrot.lane.b32.xlu0 %v7628, 120
        %v7838 = vpop.permute.xlu0 %7837
        %7839 = vrot.lane.b32.xlu0 %v7633, 120
        %v7840 = vpop.permute.xlu0 %7839
        %7841 = vrot.lane.b32.xlu0 %v7639, 120
        %v7842 = vpop.permute.xlu0 %7841
        %7843 = vrot.lane.b32.xlu0 %v7640, 120
        %v7844 = vpop.permute.xlu0 %7843
        %7845 = vrot.lane.b32.xlu0 %v7649, 120
        %v7846 = vpop.permute.xlu0 %7845
        %7847 = vrot.lane.b32.xlu0 %v7650, 120
        %v7848 = vpop.permute.xlu0 %7847
        %7849 = vrot.lane.b32.xlu0 %v7652, 120
        %v7850 = vpop.permute.xlu0 %7849
        %7851 = vrot.lane.b32.xlu0 %v7657, 120
        %v7852 = vpop.permute.xlu0 %7851
        %7853 = vrot.lane.b32.xlu0 %v7663, 120
        %v7854 = vpop.permute.xlu0 %7853
        %7855 = vrot.lane.b32.xlu0 %v7664, 120
        %v7856 = vpop.permute.xlu0 %7855
        %7857 = vrot.lane.b32.xlu0 %v7673, 120
        %v7858 = vpop.permute.xlu0 %7857
        %7859 = vrot.lane.b32.xlu0 %v7674, 120
        %v7860 = vpop.permute.xlu0 %7859
        %7861 = vrot.lane.b32.xlu0 %v7676, 120
        %v7862 = vpop.permute.xlu0 %7861
        %7863 = vrot.lane.b32.xlu0 %v7681, 120
        %v7864 = vpop.permute.xlu0 %7863
        %7865 = vrot.lane.b32.xlu0 %v7687, 120
        %v7866 = vpop.permute.xlu0 %7865
        %7867 = vrot.lane.b32.xlu0 %v7688, 120
        %v7868 = vpop.permute.xlu0 %7867
        %7869 = vrot.lane.b32.xlu0 %v7697, 120
        %v7870 = vpop.permute.xlu0 %7869
        %7871 = vrot.lane.b32.xlu0 %v7698, 120
        %v7872 = vpop.permute.xlu0 %7871
        %7873 = vrot.lane.b32.xlu0 %v7700, 120
        %v7874 = vpop.permute.xlu0 %7873
        %7875 = vrot.lane.b32.xlu0 %v7705, 120
        %v7876 = vpop.permute.xlu0 %7875
        %7877 = vrot.lane.b32.xlu0 %v7711, 120
        %v7878 = vpop.permute.xlu0 %7877
        %7879 = vrot.lane.b32.xlu0 %v7712, 120
        %v7880 = vpop.permute.xlu0 %7879
        %7881 = vrot.lane.b32.xlu0 %v7721, 120
        %v7882 = vpop.permute.xlu0 %7881
        %7883 = vrot.lane.b32.xlu0 %v7722, 120
        %v7884 = vpop.permute.xlu0 %7883
        %7885 = vrot.lane.b32.xlu0 %v7724, 120
        %v7886 = vpop.permute.xlu0 %7885
        %7887 = vrot.lane.b32.xlu0 %v7729, 120
        %v7888 = vpop.permute.xlu0 %7887
        %7889 = vrot.lane.b32.xlu0 %v7735, 120
        %v7890 = vpop.permute.xlu0 %7889
        %7891 = vrot.lane.b32.xlu0 %v7736, 120
        %v7892 = vpop.permute.xlu0 %7891
        %7893 = vrot.lane.b32.xlu0 %v7745, 120
        %v7894 = vpop.permute.xlu0 %7893
        %7895 = vrot.lane.b32.xlu0 %v7746, 120
        %v7896 = vpop.permute.xlu0 %7895
        %7897 = vrot.lane.b32.xlu0 %v7748, 120
        %v7898 = vpop.permute.xlu0 %7897
        %7899 = vrot.lane.b32.xlu0 %v7753, 120
        %v7900 = vpop.permute.xlu0 %7899
        %7901 = vrot.lane.b32.xlu0 %v7759, 120
        %v7902 = vpop.permute.xlu0 %7901
        %7903 = vrot.lane.b32.xlu0 %v7760, 120
        %v7904 = vpop.permute.xlu0 %7903
        %7905 = vrot.lane.b32.xlu0 %v7769, 120
        %v7906 = vpop.permute.xlu0 %7905
        %7907 = vrot.lane.b32.xlu0 %v7770, 120
        %v7908 = vpop.permute.xlu0 %7907
        %7909 = vrot.lane.b32.xlu0 %v7772, 120
        %v7910 = vpop.permute.xlu0 %7909
        %7911 = vrot.lane.b32.xlu0 %v7777, 120
        %v7912 = vpop.permute.xlu0 %7911
        %7913 = vrot.lane.b32.xlu0 %v7783, 120
        %v7914 = vpop.permute.xlu0 %7913
        %7915 = vrot.lane.b32.xlu0 %v7784, 120
        %v7916 = vpop.permute.xlu0 %7915
        %7917 = vrot.lane.b32.xlu0 %v7793, 120
        %v7918 = vpop.permute.xlu0 %7917
        %7919 = vrot.lane.b32.xlu0 %v7794, 120
        %v7920 = vpop.permute.xlu0 %7919
        %7921 = vrot.lane.b32.xlu0 %v7796, 120
        %v7922 = vpop.permute.xlu0 %7921
        %7923 = vrot.lane.b32.xlu0 %v7801, 120
        %v7924 = vpop.permute.xlu0 %7923
        %7925 = vrot.lane.b32.xlu0 %v7807, 120
        %v7926 = vpop.permute.xlu0 %7925
        %7927 = vrot.lane.b32.xlu0 %v7808, 120
        %v7928 = vpop.permute.xlu0 %7927
        %7929 = vrot.lane.b32.xlu0 %v7817, 120
        %v7930 = vpop.permute.xlu0 %7929
        %7931 = vrot.lane.b32.xlu0 %v7818, 120
        %v7932 = vpop.permute.xlu0 %7931
        %7933 = vrot.lane.b32.xlu0 %v7820, 120
        %v7934 = vpop.permute.xlu0 %7933
        %7935 = vrot.lane.b32.xlu0 %v7825, 120
        %v7936 = vpop.permute.xlu0 %7935
        %7937 = vrot.lane.b32.xlu0 %v7831, 120
        %v7938 = vpop.permute.xlu0 %7937
        %7939 = vrot.lane.b32.xlu0 %v7832, 120
        %v7940 = vpop.permute.xlu0 %7939
        %v7995 = vsel %vm7394, %v7834, 0.0
        %v7996 = vsel %vm7395, %v7836, 0.0
        %v7997 = vsel %vm7396, %v7838, 0.0
        %v7998 = vsel %vm7397, %v7840, 0.0
        %v7999 = vsel %vm7398, %v7842, 0.0
        %v8000 = vsel %vm7399, %v7844, 0.0
        %v8001 = vsel %vm7400, %v7846, 0.0
        %v8002 = vsel %vm7401, %v7848, 0.0
        %v8003 = vsel %vm7402, %v7850, 0.0
        %v8004 = vsel %vm7403, %v7852, 0.0
        %v8005 = vsel %vm7404, %v7854, 0.0
        %v8006 = vsel %vm7405, %v7856, 0.0
        %v8007 = vsel %vm7406, %v7858, 0.0
        %v8008 = vsel %vm7407, %v7860, 0.0
        %v8009 = vsel %vm7408, %v7862, 0.0
        %v8010 = vsel %vm7409, %v7864, 0.0
        %v8011 = vsel %vm7410, %v7866, 0.0
        %v8012 = vsel %vm7411, %v7868, 0.0
        %v8013 = vsel %vm7412, %v7870, 0.0
        %v8014 = vsel %vm7413, %v7872, 0.0
        %v8015 = vsel %vm7414, %v7874, 0.0
        %v8016 = vsel %vm7415, %v7876, 0.0
        %v8017 = vsel %vm7416, %v7878, 0.0
        %v8018 = vsel %vm7417, %v7880, 0.0
        %v8019 = vsel %vm7418, %v7882, 0.0
        %v8020 = vsel %vm7419, %v7884, 0.0
        %v8021 = vsel %vm7420, %v7886, 0.0
        %v8022 = vsel %vm7421, %v7888, 0.0
        %v8023 = vsel %vm7422, %v7890, 0.0
        %v8024 = vsel %vm7423, %v7892, 0.0
        %v8025 = vsel %vm7424, %v7894, 0.0
        %v8026 = vsel %vm7425, %v7896, 0.0
        %v8027 = vsel %vm7426, %v7898, 0.0
        %v8028 = vsel %vm7427, %v7900, 0.0
        %v8029 = vsel %vm7428, %v7902, 0.0
        %v8030 = vsel %vm7429, %v7904, 0.0
        %v8031 = vsel %vm7430, %v7906, 0.0
        %v8032 = vsel %vm7431, %v7908, 0.0
        %v8033 = vsel %vm7432, %v7910, 0.0
        %v8034 = vsel %vm7433, %v7912, 0.0
        %v8035 = vsel %vm7434, %v7914, 0.0
        %v8036 = vsel %vm7435, %v7916, 0.0
        %v8037 = vsel %vm7436, %v7918, 0.0
        %v8038 = vsel %vm7437, %v7920, 0.0
        %v8039 = vsel %vm7438, %v7922, 0.0
        %v8040 = vsel %vm7439, %v7924, 0.0
        %v8041 = vsel %vm7440, %v7926, 0.0
        %v8042 = vsel %vm7441, %v7928, 0.0
        %v8043 = vsel %vm7442, %v7930, 0.0
        %v8044 = vsel %vm7443, %v7932, 0.0
        %v8045 = vsel %vm7444, %v7934, 0.0
        %v8046 = vsel %vm7445, %v7936, 0.0
        %v8047 = vsel %vm7446, %v7938, 0.0
        %v8048 = vsel %vm7447, %v7940, 0.0
        %v8049 = vpack.c.bf16 %v7995, %v7995
        %v8050 = vpack.c.bf16 %v7996, %v7996
        %v8051 = vpack.c.bf16 %v7997, %v7997
        %v8052 = vpack.c.bf16 %v7998, %v7998
        %v8053 = vpack.c.bf16 %v7999, %v7999
        %v8054 = vpack.c.bf16 %v8000, %v8000
        %v8055 = vpack.c.bf16 %v8001, %v8001
        %v8056 = vpack.c.bf16 %v8002, %v8002
        %v8057 = vpack.c.bf16 %v8003, %v8003
        %v8058 = vpack.c.bf16 %v8004, %v8004
        %v8059 = vpack.c.bf16 %v8005, %v8005
        %v8060 = vpack.c.bf16 %v8006, %v8006
        %v8061 = vpack.c.bf16 %v8007, %v8007
        %v8062 = vpack.c.bf16 %v8008, %v8008
        %v8063 = vpack.c.bf16 %v8009, %v8009
        %v8064 = vpack.c.bf16 %v8010, %v8010
        %v8065 = vpack.c.bf16 %v8011, %v8011
        %v8066 = vpack.c.bf16 %v8012, %v8012
        %v8067 = vpack.c.bf16 %v8013, %v8013
        %v8068 = vpack.c.bf16 %v8014, %v8014
        %v8069 = vpack.c.bf16 %v8015, %v8015
        %v8070 = vpack.c.bf16 %v8016, %v8016
        %v8071 = vpack.c.bf16 %v8017, %v8017
        %v8072 = vpack.c.bf16 %v8018, %v8018
        %v8073 = vpack.c.bf16 %v8019, %v8019
        %v8074 = vpack.c.bf16 %v8020, %v8020
        %v8075 = vpack.c.bf16 %v8021, %v8021
        %v8076 = vpack.c.bf16 %v8022, %v8022
        %v8077 = vpack.c.bf16 %v8023, %v8023
        %v8078 = vpack.c.bf16 %v8024, %v8024
        %v8079 = vpack.c.bf16 %v8025, %v8025
        %v8080 = vpack.c.bf16 %v8026, %v8026
        %v8081 = vpack.c.bf16 %v8027, %v8027
        %v8082 = vpack.c.bf16 %v8028, %v8028
        %v8083 = vpack.c.bf16 %v8029, %v8029
        %v8084 = vpack.c.bf16 %v8030, %v8030
        %v8085 = vpack.c.bf16 %v8031, %v8031
        %v8086 = vpack.c.bf16 %v8032, %v8032
        %v8087 = vpack.c.bf16 %v8033, %v8033
        %v8088 = vpack.c.bf16 %v8034, %v8034
        %v8089 = vpack.c.bf16 %v8035, %v8035
        %v8090 = vpack.c.bf16 %v8036, %v8036
        %v8091 = vpack.c.bf16 %v8037, %v8037
        %v8092 = vpack.c.bf16 %v8038, %v8038
        %v8093 = vpack.c.bf16 %v8039, %v8039
        %v8094 = vpack.c.bf16 %v8040, %v8040
        %v8095 = vpack.c.bf16 %v8041, %v8041
        %v8096 = vpack.c.bf16 %v8042, %v8042
        %v8097 = vpack.c.bf16 %v8043, %v8043
        %v8098 = vpack.c.bf16 %v8044, %v8044
        %v8099 = vpack.c.bf16 %v8045, %v8045
        %v8100 = vpack.c.bf16 %v8046, %v8046
        %v8101 = vpack.c.bf16 %v8047, %v8047
        %v8102 = vpack.c.bf16 %v8048, %v8048
        %v8103 = vld [vmem:[%s5] sm:$0xf]
        %v8104 = vld [vmem:[%s5 + $0x4] sm:$0xf]
        %v8105 = vld [vmem:[%s5 + $0x8] sm:$0xf]
        %v8106 = vld [vmem:[%s5 + $0xc] sm:$0xf]
        %v8107 = vld [vmem:[%s5 + $0x10] sm:$0xf]
        %v8108 = vld [vmem:[%s5 + $0x14] sm:$0xf]
        %v8109 = vld [vmem:[%s5 + $0x18] sm:$0xf]
        %v8110 = vld [vmem:[%s5 + $0x1c] sm:$0xf]
        %v8111 = vld [vmem:[%s5 + $0x20] sm:$0xf]
        %v8112 = vld [vmem:[%s6] sm:$0x1]
        %v8145 = vunpack.c.l.b16 %v8049
        %v8146 = vunpack.c.l.b16 %v8050
        %v8147 = vunpack.c.l.b16 %v8052
        %v8148 = vunpack.c.l.b16 %v8053
        %v8149 = vunpack.c.l.b16 %v8055
        %v8150 = vunpack.c.l.b16 %v8056
        %v8151 = vunpack.c.l.b16 %v8058
        %v8152 = vunpack.c.l.b16 %v8059
        %v8153 = vunpack.c.l.b16 %v8061
        %v8154 = vunpack.c.l.b16 %v8062
        %v8155 = vunpack.c.l.b16 %v8064
        %v8156 = vunpack.c.l.b16 %v8065
        %v8157 = vunpack.c.l.b16 %v8067
        %v8158 = vunpack.c.l.b16 %v8068
        %v8159 = vunpack.c.l.b16 %v8070
        %v8160 = vunpack.c.l.b16 %v8071
        %v8161 = vunpack.c.l.b16 %v8073
        %v8162 = vunpack.c.l.b16 %v8074
        %v8163 = vunpack.c.l.b16 %v8076
        %v8164 = vunpack.c.l.b16 %v8077
        %v8165 = vunpack.c.l.b16 %v8079
        %v8166 = vunpack.c.l.b16 %v8080
        %v8167 = vunpack.c.l.b16 %v8082
        %v8168 = vunpack.c.l.b16 %v8083
        %v8169 = vunpack.c.l.b16 %v8085
        %v8170 = vunpack.c.l.b16 %v8086
        %v8171 = vunpack.c.l.b16 %v8088
        %v8172 = vunpack.c.l.b16 %v8089
        %v8173 = vunpack.c.l.b16 %v8091
        %v8174 = vunpack.c.l.b16 %v8092
        %v8175 = vunpack.c.l.b16 %v8094
        %v8176 = vunpack.c.l.b16 %v8095
        %v8177 = vpack.c.b16 %v8146, %v8145
        %v8178 = vpack.c.b16 %v8148, %v8147
        %v8179 = vpack.c.b16 %v8150, %v8149
        %v8180 = vpack.c.b16 %v8152, %v8151
        %v8181 = vpack.c.b16 %v8154, %v8153
        %v8182 = vpack.c.b16 %v8156, %v8155
        %v8183 = vpack.c.b16 %v8158, %v8157
        %v8184 = vpack.c.b16 %v8160, %v8159
        %v8185 = vpack.c.b16 %v8162, %v8161
        %v8186 = vpack.c.b16 %v8164, %v8163
        %v8187 = vpack.c.b16 %v8166, %v8165
        %v8188 = vpack.c.b16 %v8168, %v8167
        %v8189 = vpack.c.b16 %v8170, %v8169
        %v8190 = vpack.c.b16 %v8172, %v8171
        %v8191 = vpack.c.b16 %v8174, %v8173
        %v8192 = vpack.c.b16 %v8176, %v8175
        %v8209 = vunpack.c.l.b16 %v8051
        %v8210 = vunpack.c.l.b16 %v8054
        %v8211 = vunpack.c.l.b16 %v8057
        %v8212 = vunpack.c.l.b16 %v8060
        %v8213 = vunpack.c.l.b16 %v8063
        %v8214 = vunpack.c.l.b16 %v8066
        %v8215 = vunpack.c.l.b16 %v8069
        %v8216 = vunpack.c.l.b16 %v8072
        %v8217 = vunpack.c.l.b16 %v8075
        %v8218 = vunpack.c.l.b16 %v8078
        %v8219 = vunpack.c.l.b16 %v8081
        %v8220 = vunpack.c.l.b16 %v8084
        %v8221 = vunpack.c.l.b16 %v8087
        %v8222 = vunpack.c.l.b16 %v8090
        %v8223 = vunpack.c.l.b16 %v8093
        %v8224 = vunpack.c.l.b16 %v8096
        %v8225 = vpack.c.b16 %v8209, %v8209
        %v8226 = vpack.c.b16 %v8210, %v8210
        %v8227 = vpack.c.b16 %v8211, %v8211
        %v8228 = vpack.c.b16 %v8212, %v8212
        %v8229 = vpack.c.b16 %v8213, %v8213
        %v8230 = vpack.c.b16 %v8214, %v8214
        %v8231 = vpack.c.b16 %v8215, %v8215
        %v8232 = vpack.c.b16 %v8216, %v8216
        %v8233 = vpack.c.b16 %v8217, %v8217
        %v8234 = vpack.c.b16 %v8218, %v8218
        %v8235 = vpack.c.b16 %v8219, %v8219
        %v8236 = vpack.c.b16 %v8220, %v8220
        %v8237 = vpack.c.b16 %v8221, %v8221
        %v8238 = vpack.c.b16 %v8222, %v8222
        %v8239 = vpack.c.b16 %v8223, %v8223
        %v8240 = vpack.c.b16 %v8224, %v8224
        %v8242 = vshrl.u32 %v8177, 16
        %v8244 = vshll.u32 %v8177, 16
        %v8246 = vrot.slane %v8244, 1
        %v8247 = vor.u32 %v8242, %v8246
        %v8249 = vshll.u32 %v8225, 16
        %v8251 = vrot.slane %v8249, 1
        %v8252 = vsel %vm533, %v8247, %v8251
        %v8254 = vshrl.u32 %v8178, 16
        %v8256 = vshll.u32 %v8178, 16
        %v8258 = vrot.slane %v8256, 1
        %v8259 = vor.u32 %v8254, %v8258
        %v8261 = vshll.u32 %v8226, 16
        %v8263 = vrot.slane %v8261, 1
        %v8264 = vsel %vm533, %v8259, %v8263
        %v8266 = vshrl.u32 %v8179, 16
        %v8268 = vshll.u32 %v8179, 16
        %v8270 = vrot.slane %v8268, 1
        %v8271 = vor.u32 %v8266, %v8270
        %v8273 = vshll.u32 %v8227, 16
        %v8275 = vrot.slane %v8273, 1
        %v8276 = vsel %vm533, %v8271, %v8275
        %v8278 = vshrl.u32 %v8180, 16
        %v8280 = vshll.u32 %v8180, 16
        %v8282 = vrot.slane %v8280, 1
        %v8283 = vor.u32 %v8278, %v8282
        %v8285 = vshll.u32 %v8228, 16
        %v8287 = vrot.slane %v8285, 1
        %v8288 = vsel %vm533, %v8283, %v8287
        %v8290 = vshrl.u32 %v8181, 16
        %v8292 = vshll.u32 %v8181, 16
        %v8294 = vrot.slane %v8292, 1
        %v8295 = vor.u32 %v8290, %v8294
        %v8297 = vshll.u32 %v8229, 16
        %v8299 = vrot.slane %v8297, 1
        %v8300 = vsel %vm533, %v8295, %v8299
        %v8302 = vshrl.u32 %v8182, 16
        %v8304 = vshll.u32 %v8182, 16
        %v8306 = vrot.slane %v8304, 1
        %v8307 = vor.u32 %v8302, %v8306
        %v8309 = vshll.u32 %v8230, 16
        %v8311 = vrot.slane %v8309, 1
        %v8312 = vsel %vm533, %v8307, %v8311
        %v8314 = vshrl.u32 %v8183, 16
        %v8316 = vshll.u32 %v8183, 16
        %v8318 = vrot.slane %v8316, 1
        %v8319 = vor.u32 %v8314, %v8318
        %v8321 = vshll.u32 %v8231, 16
        %v8323 = vrot.slane %v8321, 1
        %v8324 = vsel %vm533, %v8319, %v8323
        %v8326 = vshrl.u32 %v8184, 16
        %v8328 = vshll.u32 %v8184, 16
        %v8330 = vrot.slane %v8328, 1
        %v8331 = vor.u32 %v8326, %v8330
        %v8333 = vshll.u32 %v8232, 16
        %v8335 = vrot.slane %v8333, 1
        %v8336 = vsel %vm533, %v8331, %v8335
        %v8338 = vshrl.u32 %v8185, 16
        %v8340 = vshll.u32 %v8185, 16
        %v8342 = vrot.slane %v8340, 1
        %v8343 = vor.u32 %v8338, %v8342
        %v8345 = vshll.u32 %v8233, 16
        %v8347 = vrot.slane %v8345, 1
        %v8348 = vsel %vm533, %v8343, %v8347
        %v8350 = vshrl.u32 %v8186, 16
        %v8352 = vshll.u32 %v8186, 16
        %v8354 = vrot.slane %v8352, 1
        %v8355 = vor.u32 %v8350, %v8354
        %v8357 = vshll.u32 %v8234, 16
        %v8359 = vrot.slane %v8357, 1
        %v8360 = vsel %vm533, %v8355, %v8359
        %v8362 = vshrl.u32 %v8187, 16
        %v8364 = vshll.u32 %v8187, 16
        %v8366 = vrot.slane %v8364, 1
        %v8367 = vor.u32 %v8362, %v8366
        %v8369 = vshll.u32 %v8235, 16
        %v8371 = vrot.slane %v8369, 1
        %v8372 = vsel %vm533, %v8367, %v8371
        %v8374 = vshrl.u32 %v8188, 16
        %v8376 = vshll.u32 %v8188, 16
        %v8378 = vrot.slane %v8376, 1
        %v8379 = vor.u32 %v8374, %v8378
        %v8381 = vshll.u32 %v8236, 16
        %v8383 = vrot.slane %v8381, 1
        %v8384 = vsel %vm533, %v8379, %v8383
        %v8386 = vshrl.u32 %v8189, 16
        %v8388 = vshll.u32 %v8189, 16
        %v8390 = vrot.slane %v8388, 1
        %v8391 = vor.u32 %v8386, %v8390
        %v8393 = vshll.u32 %v8237, 16
        %v8395 = vrot.slane %v8393, 1
        %v8396 = vsel %vm533, %v8391, %v8395
        %v8398 = vshrl.u32 %v8190, 16
        %v8400 = vshll.u32 %v8190, 16
        %v8402 = vrot.slane %v8400, 1
        %v8403 = vor.u32 %v8398, %v8402
        %v8405 = vshll.u32 %v8238, 16
        %v8407 = vrot.slane %v8405, 1
        %v8408 = vsel %vm533, %v8403, %v8407
        %v8410 = vshrl.u32 %v8191, 16
        %v8412 = vshll.u32 %v8191, 16
        %v8414 = vrot.slane %v8412, 1
        %v8415 = vor.u32 %v8410, %v8414
        %v8417 = vshll.u32 %v8239, 16
        %v8419 = vrot.slane %v8417, 1
        %v8420 = vsel %vm533, %v8415, %v8419
        %v8422 = vshrl.u32 %v8192, 16
        %v8424 = vshll.u32 %v8192, 16
        %v8426 = vrot.slane %v8424, 1
        %v8427 = vor.u32 %v8422, %v8426
        %v8429 = vshll.u32 %v8240, 16
        %v8431 = vrot.slane %v8429, 1
        %v8432 = vsel %vm533, %v8427, %v8431
        %8433 = vrot.lane.b32.xlu0 %v8252, 8
        %v8434 = vpop.permute.xlu0 %8433
        %8435 = vrot.lane.b32.xlu0 %v8264, 8
        %v8436 = vpop.permute.xlu0 %8435
        %8437 = vrot.lane.b32.xlu0 %v8276, 8
        %v8438 = vpop.permute.xlu0 %8437
        %8439 = vrot.lane.b32.xlu0 %v8288, 8
        %v8440 = vpop.permute.xlu0 %8439
        %8441 = vrot.lane.b32.xlu0 %v8300, 8
        %v8442 = vpop.permute.xlu0 %8441
        %8443 = vrot.lane.b32.xlu0 %v8312, 8
        %v8444 = vpop.permute.xlu0 %8443
        %8445 = vrot.lane.b32.xlu0 %v8324, 8
        %v8446 = vpop.permute.xlu0 %8445
        %8447 = vrot.lane.b32.xlu0 %v8336, 8
        %v8448 = vpop.permute.xlu0 %8447
        %8449 = vrot.lane.b32.xlu0 %v8348, 8
        %v8450 = vpop.permute.xlu0 %8449
        %8451 = vrot.lane.b32.xlu0 %v8360, 8
        %v8452 = vpop.permute.xlu0 %8451
        %8453 = vrot.lane.b32.xlu0 %v8372, 8
        %v8454 = vpop.permute.xlu0 %8453
        %8455 = vrot.lane.b32.xlu0 %v8384, 8
        %v8456 = vpop.permute.xlu0 %8455
        %8457 = vrot.lane.b32.xlu0 %v8396, 8
        %v8458 = vpop.permute.xlu0 %8457
        %8459 = vrot.lane.b32.xlu0 %v8408, 8
        %v8460 = vpop.permute.xlu0 %8459
        %8461 = vrot.lane.b32.xlu0 %v8420, 8
        %v8462 = vpop.permute.xlu0 %8461
        %8463 = vrot.lane.b32.xlu0 %v8432, 8
        %v8464 = vpop.permute.xlu0 %8463
        %v8465 = vrot.slane %v8177, 1
        %v8466 = vrot.slane %v8225, 1
        %v8467 = vsel %vm914, %v8465, %v8466
        %v8468 = vrot.slane %v8178, 1
        %v8469 = vrot.slane %v8226, 1
        %v8470 = vsel %vm914, %v8468, %v8469
        %v8471 = vrot.slane %v8179, 1
        %v8472 = vrot.slane %v8227, 1
        %v8473 = vsel %vm914, %v8471, %v8472
        %v8474 = vrot.slane %v8180, 1
        %v8475 = vrot.slane %v8228, 1
        %v8476 = vsel %vm914, %v8474, %v8475
        %v8477 = vrot.slane %v8181, 1
        %v8478 = vrot.slane %v8229, 1
        %v8479 = vsel %vm914, %v8477, %v8478
        %v8480 = vrot.slane %v8182, 1
        %v8481 = vrot.slane %v8230, 1
        %v8482 = vsel %vm914, %v8480, %v8481
        %v8483 = vrot.slane %v8183, 1
        %v8484 = vrot.slane %v8231, 1
        %v8485 = vsel %vm914, %v8483, %v8484
        %v8486 = vrot.slane %v8184, 1
        %v8487 = vrot.slane %v8232, 1
        %v8488 = vsel %vm914, %v8486, %v8487
        %v8489 = vrot.slane %v8185, 1
        %v8490 = vrot.slane %v8233, 1
        %v8491 = vsel %vm914, %v8489, %v8490
        %v8492 = vrot.slane %v8186, 1
        %v8493 = vrot.slane %v8234, 1
        %v8494 = vsel %vm914, %v8492, %v8493
        %v8495 = vrot.slane %v8187, 1
        %v8496 = vrot.slane %v8235, 1
        %v8497 = vsel %vm914, %v8495, %v8496
        %v8498 = vrot.slane %v8188, 1
        %v8499 = vrot.slane %v8236, 1
        %v8500 = vsel %vm914, %v8498, %v8499
        %v8501 = vrot.slane %v8189, 1
        %v8502 = vrot.slane %v8237, 1
        %v8503 = vsel %vm914, %v8501, %v8502
        %v8504 = vrot.slane %v8190, 1
        %v8505 = vrot.slane %v8238, 1
        %v8506 = vsel %vm914, %v8504, %v8505
        %v8507 = vrot.slane %v8191, 1
        %v8508 = vrot.slane %v8239, 1
        %v8509 = vsel %vm914, %v8507, %v8508
        %v8510 = vrot.slane %v8192, 1
        %v8511 = vrot.slane %v8240, 1
        %v8512 = vsel %vm914, %v8510, %v8511
        %8513 = vrot.lane.b32.xlu0 %v8467, 16
        %v8514 = vpop.permute.xlu0 %8513
        %8515 = vrot.lane.b32.xlu0 %v8470, 16
        %v8516 = vpop.permute.xlu0 %8515
        %8517 = vrot.lane.b32.xlu0 %v8473, 16
        %v8518 = vpop.permute.xlu0 %8517
        %8519 = vrot.lane.b32.xlu0 %v8476, 16
        %v8520 = vpop.permute.xlu0 %8519
        %8521 = vrot.lane.b32.xlu0 %v8479, 16
        %v8522 = vpop.permute.xlu0 %8521
        %8523 = vrot.lane.b32.xlu0 %v8482, 16
        %v8524 = vpop.permute.xlu0 %8523
        %8525 = vrot.lane.b32.xlu0 %v8485, 16
        %v8526 = vpop.permute.xlu0 %8525
        %8527 = vrot.lane.b32.xlu0 %v8488, 16
        %v8528 = vpop.permute.xlu0 %8527
        %8529 = vrot.lane.b32.xlu0 %v8491, 16
        %v8530 = vpop.permute.xlu0 %8529
        %8531 = vrot.lane.b32.xlu0 %v8494, 16
        %v8532 = vpop.permute.xlu0 %8531
        %8533 = vrot.lane.b32.xlu0 %v8497, 16
        %v8534 = vpop.permute.xlu0 %8533
        %8535 = vrot.lane.b32.xlu0 %v8500, 16
        %v8536 = vpop.permute.xlu0 %8535
        %8537 = vrot.lane.b32.xlu0 %v8503, 16
        %v8538 = vpop.permute.xlu0 %8537
        %8539 = vrot.lane.b32.xlu0 %v8506, 16
        %v8540 = vpop.permute.xlu0 %8539
        %8541 = vrot.lane.b32.xlu0 %v8509, 16
        %v8542 = vpop.permute.xlu0 %8541
        %8543 = vrot.lane.b32.xlu0 %v8512, 16
        %v8544 = vpop.permute.xlu0 %8543
        %v8547 = vunpack.c.l.b16 %v8097
        %v8548 = vunpack.c.l.b16 %v8098
        %v8549 = vpack.c.b16 %v8548, %v8547
        %8550 = vrot.lane.b32.xlu0 %v8178, 24
        %v8551 = vpop.permute.xlu0 %8550
        %8552 = vrot.lane.b32.xlu0 %v8179, 24
        %v8553 = vpop.permute.xlu0 %8552
        %8554 = vrot.lane.b32.xlu0 %v8180, 24
        %v8555 = vpop.permute.xlu0 %8554
        %8556 = vrot.lane.b32.xlu0 %v8181, 24
        %v8557 = vpop.permute.xlu0 %8556
        %8558 = vrot.lane.b32.xlu0 %v8182, 24
        %v8559 = vpop.permute.xlu0 %8558
        %8560 = vrot.lane.b32.xlu0 %v8183, 24
        %v8561 = vpop.permute.xlu0 %8560
        %8562 = vrot.lane.b32.xlu0 %v8184, 24
        %v8563 = vpop.permute.xlu0 %8562
        %8564 = vrot.lane.b32.xlu0 %v8185, 24
        %v8565 = vpop.permute.xlu0 %8564
        %8566 = vrot.lane.b32.xlu0 %v8186, 24
        %v8567 = vpop.permute.xlu0 %8566
        %8568 = vrot.lane.b32.xlu0 %v8187, 24
        %v8569 = vpop.permute.xlu0 %8568
        %8570 = vrot.lane.b32.xlu0 %v8188, 24
        %v8571 = vpop.permute.xlu0 %8570
        %8572 = vrot.lane.b32.xlu0 %v8189, 24
        %v8573 = vpop.permute.xlu0 %8572
        %8574 = vrot.lane.b32.xlu0 %v8190, 24
        %v8575 = vpop.permute.xlu0 %8574
        %8576 = vrot.lane.b32.xlu0 %v8191, 24
        %v8577 = vpop.permute.xlu0 %8576
        %8578 = vrot.lane.b32.xlu0 %v8192, 24
        %v8579 = vpop.permute.xlu0 %8578
        %8580 = vrot.lane.b32.xlu0 %v8549, 24
        %v8581 = vpop.permute.xlu0 %8580
        %v8583 = vunpack.c.l.b16 %v8099
        %v8584 = vpack.c.b16 %v8583, %v8583
        %v8586 = vshrl.u32 %v8549, 16
        %v8588 = vshll.u32 %v8549, 16
        %v8590 = vrot.slane %v8588, 1
        %v8591 = vor.u32 %v8586, %v8590
        %v8593 = vshll.u32 %v8584, 16
        %v8595 = vrot.slane %v8593, 1
        %v8596 = vsel %vm533, %v8591, %v8595
        %8597 = vrot.lane.b32.xlu0 %v8264, 32
        %v8598 = vpop.permute.xlu0 %8597
        %8599 = vrot.lane.b32.xlu0 %v8276, 32
        %v8600 = vpop.permute.xlu0 %8599
        %8601 = vrot.lane.b32.xlu0 %v8288, 32
        %v8602 = vpop.permute.xlu0 %8601
        %8603 = vrot.lane.b32.xlu0 %v8300, 32
        %v8604 = vpop.permute.xlu0 %8603
        %8605 = vrot.lane.b32.xlu0 %v8312, 32
        %v8606 = vpop.permute.xlu0 %8605
        %8607 = vrot.lane.b32.xlu0 %v8324, 32
        %v8608 = vpop.permute.xlu0 %8607
        %8609 = vrot.lane.b32.xlu0 %v8336, 32
        %v8610 = vpop.permute.xlu0 %8609
        %8611 = vrot.lane.b32.xlu0 %v8348, 32
        %v8612 = vpop.permute.xlu0 %8611
        %8613 = vrot.lane.b32.xlu0 %v8360, 32
        %v8614 = vpop.permute.xlu0 %8613
        %8615 = vrot.lane.b32.xlu0 %v8372, 32
        %v8616 = vpop.permute.xlu0 %8615
        %8617 = vrot.lane.b32.xlu0 %v8384, 32
        %v8618 = vpop.permute.xlu0 %8617
        %8619 = vrot.lane.b32.xlu0 %v8396, 32
        %v8620 = vpop.permute.xlu0 %8619
        %8621 = vrot.lane.b32.xlu0 %v8408, 32
        %v8622 = vpop.permute.xlu0 %8621
        %8623 = vrot.lane.b32.xlu0 %v8420, 32
        %v8624 = vpop.permute.xlu0 %8623
        %8625 = vrot.lane.b32.xlu0 %v8432, 32
        %v8626 = vpop.permute.xlu0 %8625
        %8627 = vrot.lane.b32.xlu0 %v8596, 32
        %v8628 = vpop.permute.xlu0 %8627
        %v8629 = vrot.slane %v8549, 1
        %v8630 = vrot.slane %v8584, 1
        %v8631 = vsel %vm914, %v8629, %v8630
        %8632 = vrot.lane.b32.xlu0 %v8470, 40
        %v8633 = vpop.permute.xlu0 %8632
        %8634 = vrot.lane.b32.xlu0 %v8473, 40
        %v8635 = vpop.permute.xlu0 %8634
        %8636 = vrot.lane.b32.xlu0 %v8476, 40
        %v8637 = vpop.permute.xlu0 %8636
        %8638 = vrot.lane.b32.xlu0 %v8479, 40
        %v8639 = vpop.permute.xlu0 %8638
        %8640 = vrot.lane.b32.xlu0 %v8482, 40
        %v8641 = vpop.permute.xlu0 %8640
        %8642 = vrot.lane.b32.xlu0 %v8485, 40
        %v8643 = vpop.permute.xlu0 %8642
        %8644 = vrot.lane.b32.xlu0 %v8488, 40
        %v8645 = vpop.permute.xlu0 %8644
        %8646 = vrot.lane.b32.xlu0 %v8491, 40
        %v8647 = vpop.permute.xlu0 %8646
        %8648 = vrot.lane.b32.xlu0 %v8494, 40
        %v8649 = vpop.permute.xlu0 %8648
        %8650 = vrot.lane.b32.xlu0 %v8497, 40
        %v8651 = vpop.permute.xlu0 %8650
        %8652 = vrot.lane.b32.xlu0 %v8500, 40
        %v8653 = vpop.permute.xlu0 %8652
        %8654 = vrot.lane.b32.xlu0 %v8503, 40
        %v8655 = vpop.permute.xlu0 %8654
        %8656 = vrot.lane.b32.xlu0 %v8506, 40
        %v8657 = vpop.permute.xlu0 %8656
        %8658 = vrot.lane.b32.xlu0 %v8509, 40
        %v8659 = vpop.permute.xlu0 %8658
        %8660 = vrot.lane.b32.xlu0 %v8512, 40
        %v8661 = vpop.permute.xlu0 %8660
        %8662 = vrot.lane.b32.xlu0 %v8631, 40
        %v8663 = vpop.permute.xlu0 %8662
        %v8666 = vunpack.c.l.b16 %v8100
        %v8667 = vunpack.c.l.b16 %v8101
        %v8668 = vpack.c.b16 %v8667, %v8666
        %8669 = vrot.lane.b32.xlu0 %v8179, 48
        %v8670 = vpop.permute.xlu0 %8669
        %8671 = vrot.lane.b32.xlu0 %v8180, 48
        %v8672 = vpop.permute.xlu0 %8671
        %8673 = vrot.lane.b32.xlu0 %v8181, 48
        %v8674 = vpop.permute.xlu0 %8673
        %8675 = vrot.lane.b32.xlu0 %v8182, 48
        %v8676 = vpop.permute.xlu0 %8675
        %8677 = vrot.lane.b32.xlu0 %v8183, 48
        %v8678 = vpop.permute.xlu0 %8677
        %8679 = vrot.lane.b32.xlu0 %v8184, 48
        %v8680 = vpop.permute.xlu0 %8679
        %8681 = vrot.lane.b32.xlu0 %v8185, 48
        %v8682 = vpop.permute.xlu0 %8681
        %8683 = vrot.lane.b32.xlu0 %v8186, 48
        %v8684 = vpop.permute.xlu0 %8683
        %8685 = vrot.lane.b32.xlu0 %v8187, 48
        %v8686 = vpop.permute.xlu0 %8685
        %8687 = vrot.lane.b32.xlu0 %v8188, 48
        %v8688 = vpop.permute.xlu0 %8687
        %8689 = vrot.lane.b32.xlu0 %v8189, 48
        %v8690 = vpop.permute.xlu0 %8689
        %8691 = vrot.lane.b32.xlu0 %v8190, 48
        %v8692 = vpop.permute.xlu0 %8691
        %8693 = vrot.lane.b32.xlu0 %v8191, 48
        %v8694 = vpop.permute.xlu0 %8693
        %8695 = vrot.lane.b32.xlu0 %v8192, 48
        %v8696 = vpop.permute.xlu0 %8695
        %8697 = vrot.lane.b32.xlu0 %v8549, 48
        %v8698 = vpop.permute.xlu0 %8697
        %8699 = vrot.lane.b32.xlu0 %v8668, 48
        %v8700 = vpop.permute.xlu0 %8699
        %v8702 = vunpack.c.l.b16 %v8102
        %v8703 = vpack.c.b16 %v8702, %v8702
        %v8705 = vshrl.u32 %v8668, 16
        %v8707 = vshll.u32 %v8668, 16
        %v8709 = vrot.slane %v8707, 1
        %v8710 = vor.u32 %v8705, %v8709
        %v8712 = vshll.u32 %v8703, 16
        %v8714 = vrot.slane %v8712, 1
        %v8715 = vsel %vm533, %v8710, %v8714
        %8716 = vrot.lane.b32.xlu0 %v8276, 56
        %v8717 = vpop.permute.xlu0 %8716
        %8718 = vrot.lane.b32.xlu0 %v8288, 56
        %v8719 = vpop.permute.xlu0 %8718
        %8720 = vrot.lane.b32.xlu0 %v8300, 56
        %v8721 = vpop.permute.xlu0 %8720
        %8722 = vrot.lane.b32.xlu0 %v8312, 56
        %v8723 = vpop.permute.xlu0 %8722
        %8724 = vrot.lane.b32.xlu0 %v8324, 56
        %v8725 = vpop.permute.xlu0 %8724
        %8726 = vrot.lane.b32.xlu0 %v8336, 56
        %v8727 = vpop.permute.xlu0 %8726
        %8728 = vrot.lane.b32.xlu0 %v8348, 56
        %v8729 = vpop.permute.xlu0 %8728
        %8730 = vrot.lane.b32.xlu0 %v8360, 56
        %v8731 = vpop.permute.xlu0 %8730
        %8732 = vrot.lane.b32.xlu0 %v8372, 56
        %v8733 = vpop.permute.xlu0 %8732
        %8734 = vrot.lane.b32.xlu0 %v8384, 56
        %v8735 = vpop.permute.xlu0 %8734
        %8736 = vrot.lane.b32.xlu0 %v8396, 56
        %v8737 = vpop.permute.xlu0 %8736
        %8738 = vrot.lane.b32.xlu0 %v8408, 56
        %v8739 = vpop.permute.xlu0 %8738
        %8740 = vrot.lane.b32.xlu0 %v8420, 56
        %v8741 = vpop.permute.xlu0 %8740
        %8742 = vrot.lane.b32.xlu0 %v8432, 56
        %v8743 = vpop.permute.xlu0 %8742
        %8744 = vrot.lane.b32.xlu0 %v8596, 56
        %v8745 = vpop.permute.xlu0 %8744
        %8746 = vrot.lane.b32.xlu0 %v8715, 56
        %v8747 = vpop.permute.xlu0 %8746
        %v8748 = vrot.slane %v8668, 1
        %v8749 = vrot.slane %v8703, 1
        %v8750 = vsel %vm914, %v8748, %v8749
        %8751 = vrot.lane.b32.xlu0 %v8473, 64
        %v8752 = vpop.permute.xlu0 %8751
        %8753 = vrot.lane.b32.xlu0 %v8476, 64
        %v8754 = vpop.permute.xlu0 %8753
        %8755 = vrot.lane.b32.xlu0 %v8479, 64
        %v8756 = vpop.permute.xlu0 %8755
        %8757 = vrot.lane.b32.xlu0 %v8482, 64
        %v8758 = vpop.permute.xlu0 %8757
        %8759 = vrot.lane.b32.xlu0 %v8485, 64
        %v8760 = vpop.permute.xlu0 %8759
        %8761 = vrot.lane.b32.xlu0 %v8488, 64
        %v8762 = vpop.permute.xlu0 %8761
        %8763 = vrot.lane.b32.xlu0 %v8491, 64
        %v8764 = vpop.permute.xlu0 %8763
        %8765 = vrot.lane.b32.xlu0 %v8494, 64
        %v8766 = vpop.permute.xlu0 %8765
        %8767 = vrot.lane.b32.xlu0 %v8497, 64
        %v8768 = vpop.permute.xlu0 %8767
        %8769 = vrot.lane.b32.xlu0 %v8500, 64
        %v8770 = vpop.permute.xlu0 %8769
        %8771 = vrot.lane.b32.xlu0 %v8503, 64
        %v8772 = vpop.permute.xlu0 %8771
        %8773 = vrot.lane.b32.xlu0 %v8506, 64
        %v8774 = vpop.permute.xlu0 %8773
        %8775 = vrot.lane.b32.xlu0 %v8509, 64
        %v8776 = vpop.permute.xlu0 %8775
        %8777 = vrot.lane.b32.xlu0 %v8512, 64
        %v8778 = vpop.permute.xlu0 %8777
        %8779 = vrot.lane.b32.xlu0 %v8631, 64
        %v8780 = vpop.permute.xlu0 %8779
        %8781 = vrot.lane.b32.xlu0 %v8750, 64
        %v8782 = vpop.permute.xlu0 %8781
        %v8784 = vsel %vm1587, %v8177, %v8434
        %v8786 = vsel %vm1587, %v8178, %v8436
        %v8788 = vsel %vm1587, %v8179, %v8438
        %v8790 = vsel %vm1587, %v8180, %v8440
        %v8792 = vsel %vm1587, %v8181, %v8442
        %v8794 = vsel %vm1587, %v8182, %v8444
        %v8796 = vsel %vm1587, %v8183, %v8446
        %v8798 = vsel %vm1587, %v8184, %v8448
        %v8800 = vsel %vm1587, %v8185, %v8450
        %v8802 = vsel %vm1587, %v8186, %v8452
        %v8804 = vsel %vm1587, %v8187, %v8454
        %v8806 = vsel %vm1587, %v8188, %v8456
        %v8808 = vsel %vm1587, %v8189, %v8458
        %v8810 = vsel %vm1587, %v8190, %v8460
        %v8812 = vsel %vm1587, %v8191, %v8462
        %v8814 = vsel %vm1587, %v8192, %v8464
        %v8816 = vsel %vm1668, %v8784, %v8514
        %v8818 = vsel %vm1668, %v8786, %v8516
        %v8820 = vsel %vm1668, %v8788, %v8518
        %v8822 = vsel %vm1668, %v8790, %v8520
        %v8824 = vsel %vm1668, %v8792, %v8522
        %v8826 = vsel %vm1668, %v8794, %v8524
        %v8828 = vsel %vm1668, %v8796, %v8526
        %v8830 = vsel %vm1668, %v8798, %v8528
        %v8832 = vsel %vm1668, %v8800, %v8530
        %v8834 = vsel %vm1668, %v8802, %v8532
        %v8836 = vsel %vm1668, %v8804, %v8534
        %v8838 = vsel %vm1668, %v8806, %v8536
        %v8840 = vsel %vm1668, %v8808, %v8538
        %v8842 = vsel %vm1668, %v8810, %v8540
        %v8844 = vsel %vm1668, %v8812, %v8542
        %v8846 = vsel %vm1668, %v8814, %v8544
        %v8848 = vsel %vm1749, %v8816, %v8551
        %v8850 = vsel %vm1749, %v8818, %v8553
        %v8852 = vsel %vm1749, %v8820, %v8555
        %v8854 = vsel %vm1749, %v8822, %v8557
        %v8856 = vsel %vm1749, %v8824, %v8559
        %v8858 = vsel %vm1749, %v8826, %v8561
        %v8860 = vsel %vm1749, %v8828, %v8563
        %v8862 = vsel %vm1749, %v8830, %v8565
        %v8864 = vsel %vm1749, %v8832, %v8567
        %v8866 = vsel %vm1749, %v8834, %v8569
        %v8868 = vsel %vm1749, %v8836, %v8571
        %v8870 = vsel %vm1749, %v8838, %v8573
        %v8872 = vsel %vm1749, %v8840, %v8575
        %v8874 = vsel %vm1749, %v8842, %v8577
        %v8876 = vsel %vm1749, %v8844, %v8579
        %v8878 = vsel %vm1749, %v8846, %v8581
        %v8880 = vsel %vm1830, %v8848, %v8598
        %v8882 = vsel %vm1830, %v8850, %v8600
        %v8884 = vsel %vm1830, %v8852, %v8602
        %v8886 = vsel %vm1830, %v8854, %v8604
        %v8888 = vsel %vm1830, %v8856, %v8606
        %v8890 = vsel %vm1830, %v8858, %v8608
        %v8892 = vsel %vm1830, %v8860, %v8610
        %v8894 = vsel %vm1830, %v8862, %v8612
        %v8896 = vsel %vm1830, %v8864, %v8614
        %v8898 = vsel %vm1830, %v8866, %v8616
        %v8900 = vsel %vm1830, %v8868, %v8618
        %v8902 = vsel %vm1830, %v8870, %v8620
        %v8904 = vsel %vm1830, %v8872, %v8622
        %v8906 = vsel %vm1830, %v8874, %v8624
        %v8908 = vsel %vm1830, %v8876, %v8626
        %v8910 = vsel %vm1830, %v8878, %v8628
        %v8912 = vsel %vm1911, %v8880, %v8633
        %v8914 = vsel %vm1911, %v8882, %v8635
        %v8916 = vsel %vm1911, %v8884, %v8637
        %v8918 = vsel %vm1911, %v8886, %v8639
        %v8920 = vsel %vm1911, %v8888, %v8641
        %v8922 = vsel %vm1911, %v8890, %v8643
        %v8924 = vsel %vm1911, %v8892, %v8645
        %v8926 = vsel %vm1911, %v8894, %v8647
        %v8928 = vsel %vm1911, %v8896, %v8649
        %v8930 = vsel %vm1911, %v8898, %v8651
        %v8932 = vsel %vm1911, %v8900, %v8653
        %v8934 = vsel %vm1911, %v8902, %v8655
        %v8936 = vsel %vm1911, %v8904, %v8657
        %v8938 = vsel %vm1911, %v8906, %v8659
        %v8940 = vsel %vm1911, %v8908, %v8661
        %v8942 = vsel %vm1911, %v8910, %v8663
        %v8944 = vsel %vm1992, %v8912, %v8670
        %v8946 = vsel %vm1992, %v8914, %v8672
        %v8948 = vsel %vm1992, %v8916, %v8674
        %v8950 = vsel %vm1992, %v8918, %v8676
        %v8952 = vsel %vm1992, %v8920, %v8678
        %v8954 = vsel %vm1992, %v8922, %v8680
        %v8956 = vsel %vm1992, %v8924, %v8682
        %v8958 = vsel %vm1992, %v8926, %v8684
        %v8960 = vsel %vm1992, %v8928, %v8686
        %v8962 = vsel %vm1992, %v8930, %v8688
        %v8964 = vsel %vm1992, %v8932, %v8690
        %v8966 = vsel %vm1992, %v8934, %v8692
        %v8968 = vsel %vm1992, %v8936, %v8694
        %v8970 = vsel %vm1992, %v8938, %v8696
        %v8972 = vsel %vm1992, %v8940, %v8698
        %v8974 = vsel %vm1992, %v8942, %v8700
        %v8976 = vsel %vm2073, %v8944, %v8717
        %v8978 = vsel %vm2073, %v8946, %v8719
        %v8980 = vsel %vm2073, %v8948, %v8721
        %v8982 = vsel %vm2073, %v8950, %v8723
        %v8984 = vsel %vm2073, %v8952, %v8725
        %v8986 = vsel %vm2073, %v8954, %v8727
        %v8988 = vsel %vm2073, %v8956, %v8729
        %v8990 = vsel %vm2073, %v8958, %v8731
        %v8992 = vsel %vm2073, %v8960, %v8733
        %v8994 = vsel %vm2073, %v8962, %v8735
        %v8996 = vsel %vm2073, %v8964, %v8737
        %v8998 = vsel %vm2073, %v8966, %v8739
        %v9000 = vsel %vm2073, %v8968, %v8741
        %v9002 = vsel %vm2073, %v8970, %v8743
        %v9004 = vsel %vm2073, %v8972, %v8745
        %v9006 = vsel %vm2073, %v8974, %v8747
        %v9008 = vsel %vm2154, %v8976, %v8752
        %v9010 = vsel %vm2154, %v8978, %v8754
        %v9012 = vsel %vm2154, %v8980, %v8756
        %v9014 = vsel %vm2154, %v8982, %v8758
        %v9016 = vsel %vm2154, %v8984, %v8760
        %v9018 = vsel %vm2154, %v8986, %v8762
        %v9020 = vsel %vm2154, %v8988, %v8764
        %v9022 = vsel %vm2154, %v8990, %v8766
        %v9024 = vsel %vm2154, %v8992, %v8768
        %v9026 = vsel %vm2154, %v8994, %v8770
        %v9028 = vsel %vm2154, %v8996, %v8772
        %v9030 = vsel %vm2154, %v8998, %v8774
        %v9032 = vsel %vm2154, %v9000, %v8776
        %v9034 = vsel %vm2154, %v9002, %v8778
        %v9036 = vsel %vm2154, %v9004, %v8780
        %v9038 = vsel %vm2154, %v9006, %v8782
        %v9040 = vperm.slane %v8112, 0
        %v9051 = vunpack.c.l.b16 %v8103
        %v9052 = vunpack.c.l.b16 %v8104
        %v9053 = vunpack.c.l.b16 %v8105
        %v9054 = vunpack.c.l.b16 %v8106
        %v9055 = vunpack.c.l.b16 %v8107
        %v9056 = vunpack.c.l.b16 %v8108
        %v9057 = vunpack.c.l.b16 %v8109
        %v9058 = vunpack.c.l.b16 %v8110
        %v9059 = vunpack.c.l.b16 %v8111
        %v9060 = vpack.c.b16 %v9052, %v9051
        %v9061 = vpack.c.b16 %v9054, %v9053
        %v9062 = vpack.c.b16 %v9056, %v9055
        %v9063 = vpack.c.b16 %v9058, %v9057
        %v9064 = vpack.c.b16 %v9059, %v9059
        %v9069 = vsel %vm2537, %v9008, 0
        %v9071 = vsel %vm2537, %v9010, 0
        %v9073 = vsel %vm2537, %v9012, 0
        %v9075 = vsel %vm2537, %v9014, 0
        %v9077 = vsel %vm2537, %v9016, 0
        %v9079 = vsel %vm2537, %v9018, 0
        %v9081 = vsel %vm2537, %v9020, 0
        %v9083 = vsel %vm2537, %v9022, 0
        %v9085 = vsel %vm2537, %v9024, 0
        %v9087 = vsel %vm2537, %v9026, 0
        %v9089 = vsel %vm2537, %v9028, 0
        %v9091 = vsel %vm2537, %v9030, 0
        %v9093 = vsel %vm2537, %v9032, 0
        %v9095 = vsel %vm2537, %v9034, 0
        %v9097 = vsel %vm2537, %v9036, 0
        %v9099 = vsel %vm2537, %v9038, 0
        %v9102 = vsel %vm2588, %v9064, 0
        %9104 = vmatpush.bf16.msra.mxu0 0
        %9105 = vmatpush.bf16.msra.mxu0 0
        %9106 = vmatpush.bf16.msra.mxu0 0
        %9107 = vmatpush.bf16.msra.mxu0 %v9102
        %9108 = vmatpush.bf16.msra.mxu0 %v9063
        %9109 = vmatpush.bf16.msra.mxu0 %v9062
        %9110 = vmatpush.bf16.msra.mxu0 %v9061
        %9111 = vmatpush.bf16.msra.mxu0 %v9060
        %9112 = vmatmul.bf16.gmra.mxu0 %v9069
        %v9113 = vpop.f32.mrf.mxu0
        %v9114 = vadd.f32 %v9040, %v9113
        %v9115 = vpop.f32.mrf.mxu0
        %v9116 = vadd.f32 %v9040, %v9115
        %9117 = vmatmul.bf16.gmra.mxu0 %v9071
        %v9118 = vpop.f32.mrf.mxu0
        %v9119 = vadd.f32 %v9040, %v9118
        %v9120 = vpop.f32.mrf.mxu0
        %v9121 = vadd.f32 %v9040, %v9120
        %9122 = vmatmul.bf16.gmra.mxu0 %v9073
        %v9123 = vpop.f32.mrf.mxu0
        %v9124 = vadd.f32 %v9040, %v9123
        %v9125 = vpop.f32.mrf.mxu0
        %v9126 = vadd.f32 %v9040, %v9125
        %9127 = vmatmul.bf16.gmra.mxu0 %v9075
        %v9128 = vpop.f32.mrf.mxu0
        %v9129 = vadd.f32 %v9040, %v9128
        %v9130 = vpop.f32.mrf.mxu0
        %v9131 = vadd.f32 %v9040, %v9130
        %9132 = vmatmul.bf16.gmra.mxu0 %v9077
        %v9133 = vpop.f32.mrf.mxu0
        %v9134 = vadd.f32 %v9040, %v9133
        %v9135 = vpop.f32.mrf.mxu0
        %v9136 = vadd.f32 %v9040, %v9135
        %9137 = vmatmul.bf16.gmra.mxu0 %v9079
        %v9138 = vpop.f32.mrf.mxu0
        %v9139 = vadd.f32 %v9040, %v9138
        %v9140 = vpop.f32.mrf.mxu0
        %v9141 = vadd.f32 %v9040, %v9140
        %9142 = vmatmul.bf16.gmra.mxu0 %v9081
        %v9143 = vpop.f32.mrf.mxu0
        %v9144 = vadd.f32 %v9040, %v9143
        %v9145 = vpop.f32.mrf.mxu0
        %v9146 = vadd.f32 %v9040, %v9145
        %9147 = vmatmul.bf16.gmra.mxu0 %v9083
        %v9148 = vpop.f32.mrf.mxu0
        %v9149 = vadd.f32 %v9040, %v9148
        %v9150 = vpop.f32.mrf.mxu0
        %v9151 = vadd.f32 %v9040, %v9150
        %9152 = vmatmul.bf16.gmra.mxu0 %v9085
        %v9153 = vpop.f32.mrf.mxu0
        %v9154 = vadd.f32 %v9040, %v9153
        %v9155 = vpop.f32.mrf.mxu0
        %v9156 = vadd.f32 %v9040, %v9155
        %9157 = vmatmul.bf16.gmra.mxu0 %v9087
        %v9158 = vpop.f32.mrf.mxu0
        %v9159 = vadd.f32 %v9040, %v9158
        %v9160 = vpop.f32.mrf.mxu0
        %v9161 = vadd.f32 %v9040, %v9160
        %9162 = vmatmul.bf16.gmra.mxu0 %v9089
        %v9163 = vpop.f32.mrf.mxu0
        %v9164 = vadd.f32 %v9040, %v9163
        %v9165 = vpop.f32.mrf.mxu0
        %v9166 = vadd.f32 %v9040, %v9165
        %9167 = vmatmul.bf16.gmra.mxu0 %v9091
        %v9168 = vpop.f32.mrf.mxu0
        %v9169 = vadd.f32 %v9040, %v9168
        %v9170 = vpop.f32.mrf.mxu0
        %v9171 = vadd.f32 %v9040, %v9170
        %9172 = vmatmul.bf16.gmra.mxu0 %v9093
        %v9173 = vpop.f32.mrf.mxu0
        %v9174 = vadd.f32 %v9040, %v9173
        %v9175 = vpop.f32.mrf.mxu0
        %v9176 = vadd.f32 %v9040, %v9175
        %9177 = vmatmul.bf16.gmra.mxu0 %v9095
        %v9178 = vpop.f32.mrf.mxu0
        %v9179 = vadd.f32 %v9040, %v9178
        %v9180 = vpop.f32.mrf.mxu0
        %v9181 = vadd.f32 %v9040, %v9180
        %9182 = vmatmul.bf16.gmra.mxu0 %v9097
        %v9183 = vpop.f32.mrf.mxu0
        %v9184 = vadd.f32 %v9040, %v9183
        %v9185 = vpop.f32.mrf.mxu0
        %v9186 = vadd.f32 %v9040, %v9185
        %9187 = vmatmul.bf16.gmra.mxu0 %v9099
        %v9188 = vpop.f32.mrf.mxu0
        %v9189 = vadd.f32 %v9040, %v9188
        %v9190 = vpop.f32.mrf.mxu0
        %v9191 = vadd.f32 %v9040, %v9190
        %9192 = vdwg.mxu0
        %9193 = vst [vmem:[#allocation1] ss:$2 sm:$0xff] %v2614
        %s9194 = scalar_lea.vmem [#allocation1], 1
        %9195 = vst [vmem:[%s9194] ss:$2 sm:$0xff] %v2781
        %s9196 = scalar_lea.vmem [#allocation1], 16
        %9197 = vst [vmem:[%s9196] ss:$2 sm:$0xff] %v2617
        %s9198 = scalar_lea.vmem [#allocation1], 17
        %9199 = vst [vmem:[%s9198] ss:$2 sm:$0xff] %v2782
        %s9200 = scalar_lea.vmem [#allocation1], 32
        %9201 = vst [vmem:[%s9200] ss:$2 sm:$0xff] %v2619
        %v9202 = vld.sshfl [vmem:[#allocation1] sm:$0xff pattern:$0x75316420]
        %v9203 = vld.sshfl [vmem:[#allocation1 + $0x10] sm:$0xff pattern:$0x75316420]
        %v9204 = vld.sshfl [vmem:[#allocation1 + $0x20] sm:$0xff pattern:$0x75316420]
        %s9205 = scalar_lea.vmem [#allocation1], 48
        %9206 = vst [vmem:[%s9205] ss:$2 sm:$0xff] %v2783
        %s9207 = scalar_lea.vmem [#allocation1], 49
        %9208 = vst [vmem:[%s9207] ss:$2 sm:$0xff] %v2622
        %v9209 = vld.sshfl [vmem:[#allocation1 + $0x30] sm:$0xff pattern:$0x75316420]
        %9210 = vst [vmem:[#allocation1] ss:$2 sm:$0xff] %v2784
        %9211 = vst [vmem:[%s9194] ss:$2 sm:$0xff] %v2624
        %9212 = vst [vmem:[%s9196] ss:$2 sm:$0xff] %v2785
        %v9213 = vld.sshfl [vmem:[#allocation1] sm:$0xff pattern:$0x75316420]
        %v9214 = vld.sshfl [vmem:[#allocation1 + $0x10] sm:$0xff pattern:$0x75316420]
        %9215 = vst [vmem:[%s9200] ss:$2 sm:$0xff] %v2627
        %s9216 = scalar_lea.vmem [#allocation1], 33
        %9217 = vst [vmem:[%s9216] ss:$2 sm:$0xff] %v2786
        %9218 = vst [vmem:[%s9205] ss:$2 sm:$0xff] %v2629
        %9219 = vst [vmem:[%s9207] ss:$2 sm:$0xff] %v2787
        %v9220 = vld.sshfl [vmem:[#allocation1 + $0x20] sm:$0xff pattern:$0x75316420]
        %v9221 = vld.sshfl [vmem:[#allocation1 + $0x30] sm:$0xff pattern:$0x75316420]
        %9222 = vst [vmem:[#allocation1] ss:$2 sm:$0xff] %v2632
        %v9223 = vld.sshfl [vmem:[#allocation1] sm:$0xff pattern:$0x75316420]
        %9224 = vst [vmem:[%s9196] ss:$2 sm:$0xff] %v2788
        %9225 = vst [vmem:[%s9198] ss:$2 sm:$0xff] %v2634
        %9226 = vst [vmem:[%s9200] ss:$2 sm:$0xff] %v2789
        %9227 = vst [vmem:[%s9216] ss:$2 sm:$0xff] %v2637
        %9228 = vst [vmem:[%s9205] ss:$2 sm:$0xff] %v2790
        %v9229 = vld.sshfl [vmem:[#allocation1 + $0x10] sm:$0xff pattern:$0x75316420]
        %v9230 = vld.sshfl [vmem:[#allocation1 + $0x20] sm:$0xff pattern:$0x75316420]
        %v9231 = vld.sshfl [vmem:[#allocation1 + $0x30] sm:$0xff pattern:$0x75316420]
        %9232 = vst [vmem:[#allocation1] ss:$2 sm:$0xff] %v2639
        %9233 = vst [vmem:[%s9194] ss:$2 sm:$0xff] %v2791
        %9234 = vst [vmem:[%s9196] ss:$2 sm:$0xff] %v2642
        %9235 = vst [vmem:[%s9198] ss:$2 sm:$0xff] %v2792
        %9236 = vst [vmem:[%s9200] ss:$2 sm:$0xff] %v2644
        %v9237 = vld.sshfl [vmem:[#allocation1] sm:$0xff pattern:$0x75316420]
        %v9238 = vld.sshfl [vmem:[#allocation1 + $0x10] sm:$0xff pattern:$0x75316420]
        %v9239 = vld.sshfl [vmem:[#allocation1 + $0x20] sm:$0xff pattern:$0x75316420]
        %9240 = vst [vmem:[%s9205] ss:$2 sm:$0xff] %v2793
        %9241 = vst [vmem:[%s9207] ss:$2 sm:$0xff] %v2647
        %v9242 = vld.sshfl [vmem:[#allocation1 + $0x30] sm:$0xff pattern:$0x75316420]
        %9243 = vst [vmem:[#allocation1] ss:$2 sm:$0xff] %v2794
        %9244 = vst [vmem:[%s9194] ss:$2 sm:$0xff] %v2649
        %9245 = vst [vmem:[%s9196] ss:$2 sm:$0xff] %v2795
        %v9246 = vld.sshfl [vmem:[#allocation1] sm:$0xff pattern:$0x75316420]
        %v9247 = vld.sshfl [vmem:[#allocation1 + $0x10] sm:$0xff pattern:$0x75316420]
        %9248 = vst [vmem:[%s9200] ss:$2 sm:$0xff] %v2652
        %9249 = vst [vmem:[%s9216] ss:$2 sm:$0xff] %v2796
        %9250 = vst [vmem:[%s9205] ss:$2 sm:$0xff] %v2654
        %9251 = vst [vmem:[%s9207] ss:$2 sm:$0xff] %v2797
        %v9252 = vld.sshfl [vmem:[#allocation1 + $0x20] sm:$0xff pattern:$0x75316420]
        %v9253 = vld.sshfl [vmem:[#allocation1 + $0x30] sm:$0xff pattern:$0x75316420]
        %9254 = vst [vmem:[#allocation1] ss:$2 sm:$0xff] %v2657
        %v9255 = vld.sshfl [vmem:[#allocation1] sm:$0xff pattern:$0x75316420]
        %9256 = vst [vmem:[%s9196] ss:$2 sm:$0xff] %v2798
        %9257 = vst [vmem:[%s9198] ss:$2 sm:$0xff] %v2659
        %9258 = vst [vmem:[%s9200] ss:$2 sm:$0xff] %v2799
        %9259 = vst [vmem:[%s9216] ss:$2 sm:$0xff] %v2662
        %9260 = vst [vmem:[%s9205] ss:$2 sm:$0xff] %v2800
        %v9261 = vld.sshfl [vmem:[#allocation1 + $0x10] sm:$0xff pattern:$0x75316420]
        %v9262 = vld.sshfl [vmem:[#allocation1 + $0x20] sm:$0xff pattern:$0x75316420]
        %v9263 = vld.sshfl [vmem:[#allocation1 + $0x30] sm:$0xff pattern:$0x75316420]
        %9264 = vst [vmem:[#allocation1] ss:$2 sm:$0xff] %v2664
        %9265 = vst [vmem:[%s9194] ss:$2 sm:$0xff] %v2801
        %9266 = vst [vmem:[%s9196] ss:$2 sm:$0xff] %v2667
        %9267 = vst [vmem:[%s9198] ss:$2 sm:$0xff] %v2802
        %9268 = vst [vmem:[%s9200] ss:$2 sm:$0xff] %v2669
        %v9269 = vld.sshfl [vmem:[#allocation1] sm:$0xff pattern:$0x75316420]
        %v9270 = vld.sshfl [vmem:[#allocation1 + $0x10] sm:$0xff pattern:$0x75316420]
        %v9271 = vld.sshfl [vmem:[#allocation1 + $0x20] sm:$0xff pattern:$0x75316420]
        %9272 = vst [vmem:[%s9205] ss:$2 sm:$0xff] %v2803
        %9273 = vst [vmem:[%s9207] ss:$2 sm:$0xff] %v2672
        %v9274 = vld.sshfl [vmem:[#allocation1 + $0x30] sm:$0xff pattern:$0x75316420]
        %9275 = vst [vmem:[#allocation1] ss:$2 sm:$0xff] %v2804
        %9276 = vst [vmem:[%s9194] ss:$2 sm:$0xff] %v2674
        %9277 = vst [vmem:[%s9196] ss:$2 sm:$0xff] %v2805
        %v9278 = vld.sshfl [vmem:[#allocation1] sm:$0xff pattern:$0x75316420]
        %v9279 = vld.sshfl [vmem:[#allocation1 + $0x10] sm:$0xff pattern:$0x75316420]
        %9280 = vst [vmem:[%s9200] ss:$2 sm:$0xff] %v2677
        %9281 = vst [vmem:[%s9216] ss:$2 sm:$0xff] %v2806
        %9282 = vst [vmem:[%s9205] ss:$2 sm:$0xff] %v2679
        %9283 = vst [vmem:[%s9207] ss:$2 sm:$0xff] %v2807
        %v9284 = vld.sshfl [vmem:[#allocation1 + $0x20] sm:$0xff pattern:$0x75316420]
        %v9285 = vld.sshfl [vmem:[#allocation1 + $0x30] sm:$0xff pattern:$0x75316420]
        %9286 = vst [vmem:[#allocation1] ss:$2 sm:$0xff] %v2682
        %v9287 = vld.sshfl [vmem:[#allocation1] sm:$0xff pattern:$0x75316420]
        %9288 = vst [vmem:[%s9196] ss:$2 sm:$0xff] %v2808
        %9289 = vst [vmem:[%s9198] ss:$2 sm:$0xff] %v2684
        %9290 = vst [vmem:[%s9200] ss:$2 sm:$0xff] %v2809
        %9291 = vst [vmem:[%s9216] ss:$2 sm:$0xff] %v2687
        %9292 = vst [vmem:[%s9205] ss:$2 sm:$0xff] %v2810
        %v9293 = vld.sshfl [vmem:[#allocation1 + $0x10] sm:$0xff pattern:$0x75316420]
        %v9294 = vld.sshfl [vmem:[#allocation1 + $0x20] sm:$0xff pattern:$0x75316420]
        %v9295 = vld.sshfl [vmem:[#allocation1 + $0x30] sm:$0xff pattern:$0x75316420]
        %9296 = vst [vmem:[#allocation1] ss:$2 sm:$0xff] %v2689
        %9297 = vst [vmem:[%s9194] ss:$2 sm:$0xff] %v2811
        %9298 = vst [vmem:[%s9196] ss:$2 sm:$0xff] %v2692
        %9299 = vst [vmem:[%s9198] ss:$2 sm:$0xff] %v2812
        %9300 = vst [vmem:[%s9200] ss:$2 sm:$0xff] %v2694
        %v9301 = vld.sshfl [vmem:[#allocation1] sm:$0xff pattern:$0x75316420]
        %v9302 = vld.sshfl [vmem:[#allocation1 + $0x10] sm:$0xff pattern:$0x75316420]
        %v9303 = vld.sshfl [vmem:[#allocation1 + $0x20] sm:$0xff pattern:$0x75316420]
        %9304 = vst [vmem:[%s9205] ss:$2 sm:$0xff] %v2813
        %9305 = vst [vmem:[%s9207] ss:$2 sm:$0xff] %v2697
        %v9306 = vld.sshfl [vmem:[#allocation1 + $0x30] sm:$0xff pattern:$0x75316420]
        %9307 = vst [vmem:[#allocation1] ss:$2 sm:$0xff] %v2814
        %9308 = vst [vmem:[%s9194] ss:$2 sm:$0xff] %v2699
        %9309 = vst [vmem:[%s9196] ss:$2 sm:$0xff] %v2815
        %v9310 = vld.sshfl [vmem:[#allocation1] sm:$0xff pattern:$0x75316420]
        %v9311 = vld.sshfl [vmem:[#allocation1 + $0x10] sm:$0xff pattern:$0x75316420]
        %9312 = vst [vmem:[%s9200] ss:$2 sm:$0xff] %v2702
        %9313 = vst [vmem:[%s9216] ss:$2 sm:$0xff] %v2816
        %9314 = vst [vmem:[%s9205] ss:$2 sm:$0xff] %v2704
        %9315 = vst [vmem:[%s9207] ss:$2 sm:$0xff] %v2817
        %v9316 = vld.sshfl [vmem:[#allocation1 + $0x20] sm:$0xff pattern:$0x75316420]
        %v9317 = vld.sshfl [vmem:[#allocation1 + $0x30] sm:$0xff pattern:$0x75316420]
        %9318 = vst [vmem:[#allocation1] ss:$2 sm:$0xff] %v2707
        %v9319 = vld.sshfl [vmem:[#allocation1] sm:$0xff pattern:$0x75316420]
        %9320 = vst [vmem:[%s9196] ss:$2 sm:$0xff] %v2818
        %9321 = vst [vmem:[%s9198] ss:$2 sm:$0xff] %v2709
        %9322 = vst [vmem:[%s9200] ss:$2 sm:$0xff] %v2819
        %9323 = vst [vmem:[%s9216] ss:$2 sm:$0xff] %v2712
        %9324 = vst [vmem:[%s9205] ss:$2 sm:$0xff] %v2820
        %v9325 = vld.sshfl [vmem:[#allocation1 + $0x10] sm:$0xff pattern:$0x75316420]
        %v9326 = vld.sshfl [vmem:[#allocation1 + $0x20] sm:$0xff pattern:$0x75316420]
        %v9327 = vld.sshfl [vmem:[#allocation1 + $0x30] sm:$0xff pattern:$0x75316420]
        %9376 = vst [vmem:[#allocation1] ss:$4 sm:$0xff] %v6440
        %s9377 = scalar_lea.vmem [#allocation1], 1
        %9378 = vst [vmem:[%s9377] ss:$4 sm:$0xff] %v6441
        %s9379 = scalar_lea.vmem [#allocation1], 2
        %9380 = vst [vmem:[%s9379] ss:$4 sm:$0xff] %v6442
        %s9381 = scalar_lea.vmem [#allocation1], 3
        %9382 = vst [vmem:[%s9381] ss:$4 sm:$0xff] %v6297
        %s9383 = scalar_lea.vmem [#allocation1], 32
        %9384 = vst [vmem:[%s9383] ss:$4 sm:$0xff] %v6443
        %s9385 = scalar_lea.vmem [#allocation1], 33
        %9386 = vst [vmem:[%s9385] ss:$4 sm:$0xff] %v6444
        %s9387 = scalar_lea.vmem [#allocation1], 34
        %9388 = vst [vmem:[%s9387] ss:$4 sm:$0xff] %v6445
        %s9389 = scalar_lea.vmem [#allocation1], 35
        %9390 = vst [vmem:[%s9389] ss:$4 sm:$0xff] %v6300
        %v9391 = vld.sshfl [vmem:[#allocation1] sm:$0xff pattern:$0x73625140]
        %v9392 = vld.sshfl [vmem:[#allocation1 + $0x20] sm:$0xff pattern:$0x73625140]
        %9393 = vst [vmem:[#allocation1] ss:$4 sm:$0xff] %v6446
        %v9394 = vld.sshfl [vmem:[#allocation1] sm:$0xff pattern:$0x73625140]
        %9395 = vst [vmem:[%s9383] ss:$4 sm:$0xff] %v6447
        %9396 = vst [vmem:[%s9385] ss:$4 sm:$0xff] %v6448
        %9397 = vst [vmem:[%s9387] ss:$4 sm:$0xff] %v6302
        %9398 = vst [vmem:[%s9389] ss:$4 sm:$0xff] %v6449
        %v9399 = vld.sshfl [vmem:[#allocation1 + $0x20] sm:$0xff pattern:$0x73625140]
        %9400 = vst [vmem:[#allocation1] ss:$4 sm:$0xff] %v6450
        %9401 = vst [vmem:[%s9377] ss:$4 sm:$0xff] %v6451
        %9402 = vst [vmem:[%s9379] ss:$4 sm:$0xff] %v6305
        %9403 = vst [vmem:[%s9381] ss:$4 sm:$0xff] %v6452
        %9404 = vst [vmem:[%s9383] ss:$4 sm:$0xff] %v6453
        %v9405 = vld.sshfl [vmem:[#allocation1] sm:$0xff pattern:$0x73625140]
        %v9406 = vld.sshfl [vmem:[#allocation1 + $0x20] sm:$0xff pattern:$0x73625140]
        %9407 = vst [vmem:[#allocation1] ss:$4 sm:$0xff] %v6454
        %9408 = vst [vmem:[%s9377] ss:$4 sm:$0xff] %v6307
        %9409 = vst [vmem:[%s9379] ss:$4 sm:$0xff] %v6455
        %9410 = vst [vmem:[%s9381] ss:$4 sm:$0xff] %v6456
        %9411 = vst [vmem:[%s9383] ss:$4 sm:$0xff] %v6457
        %9412 = vst [vmem:[%s9385] ss:$4 sm:$0xff] %v6310
        %9413 = vst [vmem:[%s9387] ss:$4 sm:$0xff] %v6458
        %9414 = vst [vmem:[%s9389] ss:$4 sm:$0xff] %v6459
        %v9415 = vld.sshfl [vmem:[#allocation1] sm:$0xff pattern:$0x73625140]
        %v9416 = vld.sshfl [vmem:[#allocation1 + $0x20] sm:$0xff pattern:$0x73625140]
        %9417 = vst [vmem:[#allocation1] ss:$4 sm:$0xff] %v6460
        %v9418 = vld.sshfl [vmem:[#allocation1] sm:$0xff pattern:$0x73625140]
        %9419 = vst [vmem:[%s9383] ss:$4 sm:$0xff] %v6312
        %9420 = vst [vmem:[%s9385] ss:$4 sm:$0xff] %v6461
        %9421 = vst [vmem:[%s9387] ss:$4 sm:$0xff] %v6462
        %9422 = vst [vmem:[%s9389] ss:$4 sm:$0xff] %v6463
        %v9423 = vld.sshfl [vmem:[#allocation1 + $0x20] sm:$0xff pattern:$0x73625140]
        %9424 = vst [vmem:[#allocation1] ss:$4 sm:$0xff] %v6315
        %9425 = vst [vmem:[%s9377] ss:$4 sm:$0xff] %v6464
        %9426 = vst [vmem:[%s9379] ss:$4 sm:$0xff] %v6465
        %9427 = vst [vmem:[%s9381] ss:$4 sm:$0xff] %v6466
        %9428 = vst [vmem:[%s9383] ss:$4 sm:$0xff] %v6317
        %v9429 = vld.sshfl [vmem:[#allocation1] sm:$0xff pattern:$0x73625140]
        %v9430 = vld.sshfl [vmem:[#allocation1 + $0x20] sm:$0xff pattern:$0x73625140]
        %9431 = vst [vmem:[#allocation1] ss:$4 sm:$0xff] %v6467
        %9432 = vst [vmem:[%s9377] ss:$4 sm:$0xff] %v6468
        %9433 = vst [vmem:[%s9379] ss:$4 sm:$0xff] %v6469
        %9434 = vst [vmem:[%s9381] ss:$4 sm:$0xff] %v6320
        %9435 = vst [vmem:[%s9383] ss:$4 sm:$0xff] %v6470
        %9436 = vst [vmem:[%s9385] ss:$4 sm:$0xff] %v6471
        %9437 = vst [vmem:[%s9387] ss:$4 sm:$0xff] %v6472
        %9438 = vst [vmem:[%s9389] ss:$4 sm:$0xff] %v6322
        %v9439 = vld.sshfl [vmem:[#allocation1] sm:$0xff pattern:$0x73625140]
        %v9440 = vld.sshfl [vmem:[#allocation1 + $0x20] sm:$0xff pattern:$0x73625140]
        %9441 = vst [vmem:[#allocation1] ss:$4 sm:$0xff] %v6473
        %v9442 = vld.sshfl [vmem:[#allocation1] sm:$0xff pattern:$0x73625140]
        %9443 = vst [vmem:[%s9383] ss:$4 sm:$0xff] %v6474
        %9444 = vst [vmem:[%s9385] ss:$4 sm:$0xff] %v6475
        %9445 = vst [vmem:[%s9387] ss:$4 sm:$0xff] %v6325
        %9446 = vst [vmem:[%s9389] ss:$4 sm:$0xff] %v6476
        %v9447 = vld.sshfl [vmem:[#allocation1 + $0x20] sm:$0xff pattern:$0x73625140]
        %9448 = vst [vmem:[#allocation1] ss:$4 sm:$0xff] %v6477
        %9449 = vst [vmem:[%s9377] ss:$4 sm:$0xff] %v6478
        %9450 = vst [vmem:[%s9379] ss:$4 sm:$0xff] %v6327
        %9451 = vst [vmem:[%s9381] ss:$4 sm:$0xff] %v6479
        %9452 = vst [vmem:[%s9383] ss:$4 sm:$0xff] %v6480
        %v9453 = vld.sshfl [vmem:[#allocation1] sm:$0xff pattern:$0x73625140]
        %v9454 = vld.sshfl [vmem:[#allocation1 + $0x20] sm:$0xff pattern:$0x73625140]
        %9455 = vst [vmem:[#allocation1] ss:$4 sm:$0xff] %v6481
        %9456 = vst [vmem:[%s9377] ss:$4 sm:$0xff] %v6330
        %9457 = vst [vmem:[%s9379] ss:$4 sm:$0xff] %v6482
        %9458 = vst [vmem:[%s9381] ss:$4 sm:$0xff] %v6483
        %9459 = vst [vmem:[%s9383] ss:$4 sm:$0xff] %v6484
        %9460 = vst [vmem:[%s9385] ss:$4 sm:$0xff] %v6332
        %9461 = vst [vmem:[%s9387] ss:$4 sm:$0xff] %v6485
        %9462 = vst [vmem:[%s9389] ss:$4 sm:$0xff] %v6486
        %v9463 = vld.sshfl [vmem:[#allocation1] sm:$0xff pattern:$0x73625140]
        %v9464 = vld.sshfl [vmem:[#allocation1 + $0x20] sm:$0xff pattern:$0x73625140]
        %9465 = vst [vmem:[#allocation1] ss:$4 sm:$0xff] %v6487
        %v9466 = vld.sshfl [vmem:[#allocation1] sm:$0xff pattern:$0x73625140]
        %9467 = vst [vmem:[%s9383] ss:$4 sm:$0xff] %v6335
        %9468 = vst [vmem:[%s9385] ss:$4 sm:$0xff] %v6488
        %9469 = vst [vmem:[%s9387] ss:$4 sm:$0xff] %v6489
        %9470 = vst [vmem:[%s9389] ss:$4 sm:$0xff] %v6490
        %v9471 = vld.sshfl [vmem:[#allocation1 + $0x20] sm:$0xff pattern:$0x73625140]
        %9472 = vst [vmem:[#allocation1] ss:$4 sm:$0xff] %v6337
        %9473 = vst [vmem:[%s9377] ss:$4 sm:$0xff] %v6491
        %9474 = vst [vmem:[%s9379] ss:$4 sm:$0xff] %v6492
        %9475 = vst [vmem:[%s9381] ss:$4 sm:$0xff] %v6493
        %9476 = vst [vmem:[%s9383] ss:$4 sm:$0xff] %v6340
        %v9477 = vld.sshfl [vmem:[#allocation1] sm:$0xff pattern:$0x73625140]
        %v9478 = vld.sshfl [vmem:[#allocation1 + $0x20] sm:$0xff pattern:$0x73625140]
        %9479 = vst [vmem:[#allocation1] ss:$4 sm:$0xff] %v6494
        %9480 = vst [vmem:[%s9377] ss:$4 sm:$0xff] %v6495
        %9481 = vst [vmem:[%s9379] ss:$4 sm:$0xff] %v6496
        %9482 = vst [vmem:[%s9381] ss:$4 sm:$0xff] %v6342
        %9483 = vst [vmem:[%s9383] ss:$4 sm:$0xff] %v6497
        %9484 = vst [vmem:[%s9385] ss:$4 sm:$0xff] %v6498
        %9485 = vst [vmem:[%s9387] ss:$4 sm:$0xff] %v6499
        %9486 = vst [vmem:[%s9389] ss:$4 sm:$0xff] %v6345
        %v9487 = vld.sshfl [vmem:[#allocation1] sm:$0xff pattern:$0x73625140]
        %v9488 = vld.sshfl [vmem:[#allocation1 + $0x20] sm:$0xff pattern:$0x73625140]
        %9489 = vst [vmem:[#allocation1] ss:$4 sm:$0xff] %v6500
        %v9490 = vld.sshfl [vmem:[#allocation1] sm:$0xff pattern:$0x73625140]
        %9491 = vst [vmem:[%s9383] ss:$4 sm:$0xff] %v6501
        %9492 = vst [vmem:[%s9385] ss:$4 sm:$0xff] %v6502
        %9493 = vst [vmem:[%s9387] ss:$4 sm:$0xff] %v6347
        %9494 = vst [vmem:[%s9389] ss:$4 sm:$0xff] %v6503
        %v9495 = vld.sshfl [vmem:[#allocation1 + $0x20] sm:$0xff pattern:$0x73625140]
        %9496 = vst [vmem:[#allocation1] ss:$4 sm:$0xff] %v6504
        %9497 = vst [vmem:[%s9377] ss:$4 sm:$0xff] %v6505
        %9498 = vst [vmem:[%s9379] ss:$4 sm:$0xff] %v6350
        %9499 = vst [vmem:[%s9381] ss:$4 sm:$0xff] %v6506
        %9500 = vst [vmem:[%s9383] ss:$4 sm:$0xff] %v6507
        %v9501 = vld.sshfl [vmem:[#allocation1] sm:$0xff pattern:$0x73625140]
        %v9502 = vld.sshfl [vmem:[#allocation1 + $0x20] sm:$0xff pattern:$0x73625140]
        %9503 = vst [vmem:[#allocation1] ss:$4 sm:$0xff] %v6508
        %9504 = vst [vmem:[%s9377] ss:$4 sm:$0xff] %v6352
        %9505 = vst [vmem:[%s9379] ss:$4 sm:$0xff] %v6509
        %9506 = vst [vmem:[%s9381] ss:$4 sm:$0xff] %v6510
        %9507 = vst [vmem:[%s9383] ss:$4 sm:$0xff] %v6511
        %9508 = vst [vmem:[%s9385] ss:$4 sm:$0xff] %v6355
        %9509 = vst [vmem:[%s9387] ss:$4 sm:$0xff] %v6512
        %9510 = vst [vmem:[%s9389] ss:$4 sm:$0xff] %v6513
        %v9511 = vld.sshfl [vmem:[#allocation1] sm:$0xff pattern:$0x73625140]
        %v9512 = vld.sshfl [vmem:[#allocation1 + $0x20] sm:$0xff pattern:$0x73625140]
        %9513 = vst [vmem:[#allocation1] ss:$4 sm:$0xff] %v6514
        %v9514 = vld.sshfl [vmem:[#allocation1] sm:$0xff pattern:$0x73625140]
        %9515 = vst [vmem:[%s9383] ss:$4 sm:$0xff] %v6357
        %9516 = vst [vmem:[%s9385] ss:$4 sm:$0xff] %v6515
        %9517 = vst [vmem:[%s9387] ss:$4 sm:$0xff] %v6516
        %9518 = vst [vmem:[%s9389] ss:$4 sm:$0xff] %v6517
        %v9519 = vld.sshfl [vmem:[#allocation1 + $0x20] sm:$0xff pattern:$0x73625140]
        %9520 = vst [vmem:[#allocation1] ss:$4 sm:$0xff] %v6360
        %9521 = vst [vmem:[%s9377] ss:$4 sm:$0xff] %v6518
        %9522 = vst [vmem:[%s9379] ss:$4 sm:$0xff] %v6519
        %9523 = vst [vmem:[%s9381] ss:$4 sm:$0xff] %v6520
        %9524 = vst [vmem:[%s9383] ss:$4 sm:$0xff] %v6362
        %v9525 = vld.sshfl [vmem:[#allocation1] sm:$0xff pattern:$0x73625140]
        %v9526 = vld.sshfl [vmem:[#allocation1 + $0x20] sm:$0xff pattern:$0x73625140]
        %9527 = vst [vmem:[#allocation1] ss:$4 sm:$0xff] %v6521
        %9528 = vst [vmem:[%s9377] ss:$4 sm:$0xff] %v6522
        %9529 = vst [vmem:[%s9379] ss:$4 sm:$0xff] %v6523
        %9530 = vst [vmem:[%s9381] ss:$4 sm:$0xff] %v6365
        %9531 = vst [vmem:[%s9383] ss:$4 sm:$0xff] %v6524
        %9532 = vst [vmem:[%s9385] ss:$4 sm:$0xff] %v6525
        %9533 = vst [vmem:[%s9387] ss:$4 sm:$0xff] %v6526
        %9534 = vst [vmem:[%s9389] ss:$4 sm:$0xff] %v6367
        %v9535 = vld.sshfl [vmem:[#allocation1] sm:$0xff pattern:$0x73625140]
        %v9536 = vld.sshfl [vmem:[#allocation1 + $0x20] sm:$0xff pattern:$0x73625140]
        %9537 = vst [vmem:[#allocation1] ss:$4 sm:$0xff] %v6527
        %v9538 = vld.sshfl [vmem:[#allocation1] sm:$0xff pattern:$0x73625140]
        %9539 = vst [vmem:[%s9383] ss:$4 sm:$0xff] %v6528
        %9540 = vst [vmem:[%s9385] ss:$4 sm:$0xff] %v6529
        %9541 = vst [vmem:[%s9387] ss:$4 sm:$0xff] %v6370
        %9542 = vst [vmem:[%s9389] ss:$4 sm:$0xff] %v6530
        %v9543 = vld.sshfl [vmem:[#allocation1 + $0x20] sm:$0xff pattern:$0x73625140]
        %9544 = vst [vmem:[#allocation1] ss:$4 sm:$0xff] %v6531
        %9545 = vst [vmem:[%s9377] ss:$4 sm:$0xff] %v6532
        %9546 = vst [vmem:[%s9379] ss:$4 sm:$0xff] %v6372
        %9547 = vst [vmem:[%s9381] ss:$4 sm:$0xff] %v6533
        %9548 = vst [vmem:[%s9383] ss:$4 sm:$0xff] %v6534
        %v9549 = vld.sshfl [vmem:[#allocation1] sm:$0xff pattern:$0x73625140]
        %v9550 = vld.sshfl [vmem:[#allocation1 + $0x20] sm:$0xff pattern:$0x73625140]
        %9551 = vst [vmem:[#allocation1] ss:$4 sm:$0xff] %v6535
        %9552 = vst [vmem:[%s9377] ss:$4 sm:$0xff] %v6375
        %9553 = vst [vmem:[%s9379] ss:$4 sm:$0xff] %v6536
        %9554 = vst [vmem:[%s9381] ss:$4 sm:$0xff] %v6537
        %9555 = vst [vmem:[%s9383] ss:$4 sm:$0xff] %v6538
        %9556 = vst [vmem:[%s9385] ss:$4 sm:$0xff] %v6377
        %9557 = vst [vmem:[%s9387] ss:$4 sm:$0xff] %v6539
        %9558 = vst [vmem:[%s9389] ss:$4 sm:$0xff] %v6540
        %v9559 = vld.sshfl [vmem:[#allocation1] sm:$0xff pattern:$0x73625140]
        %v9560 = vld.sshfl [vmem:[#allocation1 + $0x20] sm:$0xff pattern:$0x73625140]
        %9561 = vst [vmem:[#allocation1] ss:$4 sm:$0xff] %v6541
        %v9562 = vld.sshfl [vmem:[#allocation1] sm:$0xff pattern:$0x73625140]
        %9563 = vst [vmem:[%s9383] ss:$4 sm:$0xff] %v6380
        %9564 = vst [vmem:[%s9385] ss:$4 sm:$0xff] %v6542
        %9565 = vst [vmem:[%s9387] ss:$4 sm:$0xff] %v6543
        %9566 = vst [vmem:[%s9389] ss:$4 sm:$0xff] %v6544
        %v9567 = vld.sshfl [vmem:[#allocation1 + $0x20] sm:$0xff pattern:$0x73625140]
        %9568 = vst [vmem:[#allocation1] ss:$4 sm:$0xff] %v6382
        %9569 = vst [vmem:[%s9377] ss:$4 sm:$0xff] %v6545
        %9570 = vst [vmem:[%s9379] ss:$4 sm:$0xff] %v6546
        %9571 = vst [vmem:[%s9381] ss:$4 sm:$0xff] %v6547
        %9572 = vst [vmem:[%s9383] ss:$4 sm:$0xff] %v6385
        %v9573 = vld.sshfl [vmem:[#allocation1] sm:$0xff pattern:$0x73625140]
        %v9574 = vld.sshfl [vmem:[#allocation1 + $0x20] sm:$0xff pattern:$0x73625140]
        %vm9575 = vcmask 1040384
        %v9576 = vrot.slane %v9391, 7
        %v9577 = vrot.slane %v9392, 7
        %v9578 = vsel %vm9575, %v9576, %v9577
        %v9579 = vrot.slane %v9394, 7
        %v9580 = vsel %vm9575, %v9577, %v9579
        %v9581 = vrot.slane %v9399, 7
        %v9582 = vrot.slane %v9405, 7
        %v9583 = vsel %vm9575, %v9581, %v9582
        %v9584 = vrot.slane %v9406, 7
        %v9585 = vsel %vm9575, %v9582, %v9584
        %v9586 = vrot.slane %v9415, 7
        %v9587 = vrot.slane %v9416, 7
        %v9588 = vsel %vm9575, %v9586, %v9587
        %v9589 = vrot.slane %v9418, 7
        %v9590 = vsel %vm9575, %v9587, %v9589
        %v9591 = vrot.slane %v9423, 7
        %v9592 = vrot.slane %v9429, 7
        %v9593 = vsel %vm9575, %v9591, %v9592
        %v9594 = vrot.slane %v9430, 7
        %v9595 = vsel %vm9575, %v9592, %v9594
        %v9596 = vrot.slane %v9439, 7
        %v9597 = vrot.slane %v9440, 7
        %v9598 = vsel %vm9575, %v9596, %v9597
        %v9599 = vrot.slane %v9442, 7
        %v9600 = vsel %vm9575, %v9597, %v9599
        %v9601 = vrot.slane %v9447, 7
        %v9602 = vrot.slane %v9453, 7
        %v9603 = vsel %vm9575, %v9601, %v9602
        %v9604 = vrot.slane %v9454, 7
        %v9605 = vsel %vm9575, %v9602, %v9604
        %v9606 = vrot.slane %v9463, 7
        %v9607 = vrot.slane %v9464, 7
        %v9608 = vsel %vm9575, %v9606, %v9607
        %v9609 = vrot.slane %v9466, 7
        %v9610 = vsel %vm9575, %v9607, %v9609
        %v9611 = vrot.slane %v9471, 7
        %v9612 = vrot.slane %v9477, 7
        %v9613 = vsel %vm9575, %v9611, %v9612
        %v9614 = vrot.slane %v9478, 7
        %v9615 = vsel %vm9575, %v9612, %v9614
        %v9616 = vrot.slane %v9487, 7
        %v9617 = vrot.slane %v9488, 7
        %v9618 = vsel %vm9575, %v9616, %v9617
        %v9619 = vrot.slane %v9490, 7
        %v9620 = vsel %vm9575, %v9617, %v9619
        %v9621 = vrot.slane %v9495, 7
        %v9622 = vrot.slane %v9501, 7
        %v9623 = vsel %vm9575, %v9621, %v9622
        %v9624 = vrot.slane %v9502, 7
        %v9625 = vsel %vm9575, %v9622, %v9624
        %v9626 = vrot.slane %v9511, 7
        %v9627 = vrot.slane %v9512, 7
        %v9628 = vsel %vm9575, %v9626, %v9627
        %v9629 = vrot.slane %v9514, 7
        %v9630 = vsel %vm9575, %v9627, %v9629
        %v9631 = vrot.slane %v9519, 7
        %v9632 = vrot.slane %v9525, 7
        %v9633 = vsel %vm9575, %v9631, %v9632
        %v9634 = vrot.slane %v9526, 7
        %v9635 = vsel %vm9575, %v9632, %v9634
        %v9636 = vrot.slane %v9535, 7
        %v9637 = vrot.slane %v9536, 7
        %v9638 = vsel %vm9575, %v9636, %v9637
        %v9639 = vrot.slane %v9538, 7
        %v9640 = vsel %vm9575, %v9637, %v9639
        %v9641 = vrot.slane %v9543, 7
        %v9642 = vrot.slane %v9549, 7
        %v9643 = vsel %vm9575, %v9641, %v9642
        %v9644 = vrot.slane %v9550, 7
        %v9645 = vsel %vm9575, %v9642, %v9644
        %v9646 = vrot.slane %v9559, 7
        %v9647 = vrot.slane %v9560, 7
        %v9648 = vsel %vm9575, %v9646, %v9647
        %v9649 = vrot.slane %v9562, 7
        %v9650 = vsel %vm9575, %v9647, %v9649
        %v9651 = vrot.slane %v9567, 7
        %v9652 = vrot.slane %v9573, 7
        %v9653 = vsel %vm9575, %v9651, %v9652
        %v9654 = vrot.slane %v9574, 7
        %v9655 = vsel %vm9575, %v9652, %v9654
        %9656 = vrot.lane.b32.xlu0 %v9576, 16
        %v9657 = vpop.permute.xlu0 %9656
        %9658 = vrot.lane.b32.xlu0 %v9578, 16
        %v9659 = vpop.permute.xlu0 %9658
        %9660 = vrot.lane.b32.xlu0 %v9580, 16
        %v9661 = vpop.permute.xlu0 %9660
        %9662 = vrot.lane.b32.xlu0 %v9581, 16
        %v9663 = vpop.permute.xlu0 %9662
        %9664 = vrot.lane.b32.xlu0 %v9583, 16
        %v9665 = vpop.permute.xlu0 %9664
        %9666 = vrot.lane.b32.xlu0 %v9585, 16
        %v9667 = vpop.permute.xlu0 %9666
        %9668 = vrot.lane.b32.xlu0 %v9586, 16
        %v9669 = vpop.permute.xlu0 %9668
        %9670 = vrot.lane.b32.xlu0 %v9588, 16
        %v9671 = vpop.permute.xlu0 %9670
        %9672 = vrot.lane.b32.xlu0 %v9590, 16
        %v9673 = vpop.permute.xlu0 %9672
        %9674 = vrot.lane.b32.xlu0 %v9591, 16
        %v9675 = vpop.permute.xlu0 %9674
        %9676 = vrot.lane.b32.xlu0 %v9593, 16
        %v9677 = vpop.permute.xlu0 %9676
        %9678 = vrot.lane.b32.xlu0 %v9595, 16
        %v9679 = vpop.permute.xlu0 %9678
        %9680 = vrot.lane.b32.xlu0 %v9596, 16
        %v9681 = vpop.permute.xlu0 %9680
        %9682 = vrot.lane.b32.xlu0 %v9598, 16
        %v9683 = vpop.permute.xlu0 %9682
        %9684 = vrot.lane.b32.xlu0 %v9600, 16
        %v9685 = vpop.permute.xlu0 %9684
        %9686 = vrot.lane.b32.xlu0 %v9601, 16
        %v9687 = vpop.permute.xlu0 %9686
        %9688 = vrot.lane.b32.xlu0 %v9603, 16
        %v9689 = vpop.permute.xlu0 %9688
        %9690 = vrot.lane.b32.xlu0 %v9605, 16
        %v9691 = vpop.permute.xlu0 %9690
        %9692 = vrot.lane.b32.xlu0 %v9606, 16
        %v9693 = vpop.permute.xlu0 %9692
        %9694 = vrot.lane.b32.xlu0 %v9608, 16
        %v9695 = vpop.permute.xlu0 %9694
        %9696 = vrot.lane.b32.xlu0 %v9610, 16
        %v9697 = vpop.permute.xlu0 %9696
        %9698 = vrot.lane.b32.xlu0 %v9611, 16
        %v9699 = vpop.permute.xlu0 %9698
        %9700 = vrot.lane.b32.xlu0 %v9613, 16
        %v9701 = vpop.permute.xlu0 %9700
        %9702 = vrot.lane.b32.xlu0 %v9615, 16
        %v9703 = vpop.permute.xlu0 %9702
        %9704 = vrot.lane.b32.xlu0 %v9616, 16
        %v9705 = vpop.permute.xlu0 %9704
        %9706 = vrot.lane.b32.xlu0 %v9618, 16
        %v9707 = vpop.permute.xlu0 %9706
        %9708 = vrot.lane.b32.xlu0 %v9620, 16
        %v9709 = vpop.permute.xlu0 %9708
        %9710 = vrot.lane.b32.xlu0 %v9621, 16
        %v9711 = vpop.permute.xlu0 %9710
        %9712 = vrot.lane.b32.xlu0 %v9623, 16
        %v9713 = vpop.permute.xlu0 %9712
        %9714 = vrot.lane.b32.xlu0 %v9625, 16
        %v9715 = vpop.permute.xlu0 %9714
        %9716 = vrot.lane.b32.xlu0 %v9626, 16
        %v9717 = vpop.permute.xlu0 %9716
        %9718 = vrot.lane.b32.xlu0 %v9628, 16
        %v9719 = vpop.permute.xlu0 %9718
        %9720 = vrot.lane.b32.xlu0 %v9630, 16
        %v9721 = vpop.permute.xlu0 %9720
        %9722 = vrot.lane.b32.xlu0 %v9631, 16
        %v9723 = vpop.permute.xlu0 %9722
        %9724 = vrot.lane.b32.xlu0 %v9633, 16
        %v9725 = vpop.permute.xlu0 %9724
        %9726 = vrot.lane.b32.xlu0 %v9635, 16
        %v9727 = vpop.permute.xlu0 %9726
        %9728 = vrot.lane.b32.xlu0 %v9636, 16
        %v9729 = vpop.permute.xlu0 %9728
        %9730 = vrot.lane.b32.xlu0 %v9638, 16
        %v9731 = vpop.permute.xlu0 %9730
        %9732 = vrot.lane.b32.xlu0 %v9640, 16
        %v9733 = vpop.permute.xlu0 %9732
        %9734 = vrot.lane.b32.xlu0 %v9641, 16
        %v9735 = vpop.permute.xlu0 %9734
        %9736 = vrot.lane.b32.xlu0 %v9643, 16
        %v9737 = vpop.permute.xlu0 %9736
        %9738 = vrot.lane.b32.xlu0 %v9645, 16
        %v9739 = vpop.permute.xlu0 %9738
        %9740 = vrot.lane.b32.xlu0 %v9646, 16
        %v9741 = vpop.permute.xlu0 %9740
        %9742 = vrot.lane.b32.xlu0 %v9648, 16
        %v9743 = vpop.permute.xlu0 %9742
        %9744 = vrot.lane.b32.xlu0 %v9650, 16
        %v9745 = vpop.permute.xlu0 %9744
        %9746 = vrot.lane.b32.xlu0 %v9651, 16
        %v9747 = vpop.permute.xlu0 %9746
        %9748 = vrot.lane.b32.xlu0 %v9653, 16
        %v9749 = vpop.permute.xlu0 %9748
        %9750 = vrot.lane.b32.xlu0 %v9655, 16
        %v9751 = vpop.permute.xlu0 %9750
        %vm9832 = vcmask 1041408
        %v9833 = vrot.slane %v9114, 6
        %v9834 = vrot.slane %v9116, 6
        %v9835 = vsel %vm9832, %v9833, %v9834
        %v9836 = vrot.slane %v9119, 6
        %v9837 = vrot.slane %v9121, 6
        %v9838 = vsel %vm9832, %v9836, %v9837
        %v9839 = vrot.slane %v9124, 6
        %v9840 = vrot.slane %v9126, 6
        %v9841 = vsel %vm9832, %v9839, %v9840
        %v9842 = vrot.slane %v9129, 6
        %v9843 = vrot.slane %v9131, 6
        %v9844 = vsel %vm9832, %v9842, %v9843
        %v9845 = vrot.slane %v9134, 6
        %v9846 = vrot.slane %v9136, 6
        %v9847 = vsel %vm9832, %v9845, %v9846
        %v9848 = vrot.slane %v9139, 6
        %v9849 = vrot.slane %v9141, 6
        %v9850 = vsel %vm9832, %v9848, %v9849
        %v9851 = vrot.slane %v9144, 6
        %v9852 = vrot.slane %v9146, 6
        %v9853 = vsel %vm9832, %v9851, %v9852
        %v9854 = vrot.slane %v9149, 6
        %v9855 = vrot.slane %v9151, 6
        %v9856 = vsel %vm9832, %v9854, %v9855
        %v9857 = vrot.slane %v9154, 6
        %v9858 = vrot.slane %v9156, 6
        %v9859 = vsel %vm9832, %v9857, %v9858
        %v9860 = vrot.slane %v9159, 6
        %v9861 = vrot.slane %v9161, 6
        %v9862 = vsel %vm9832, %v9860, %v9861
        %v9863 = vrot.slane %v9164, 6
        %v9864 = vrot.slane %v9166, 6
        %v9865 = vsel %vm9832, %v9863, %v9864
        %v9866 = vrot.slane %v9169, 6
        %v9867 = vrot.slane %v9171, 6
        %v9868 = vsel %vm9832, %v9866, %v9867
        %v9869 = vrot.slane %v9174, 6
        %v9870 = vrot.slane %v9176, 6
        %v9871 = vsel %vm9832, %v9869, %v9870
        %v9872 = vrot.slane %v9179, 6
        %v9873 = vrot.slane %v9181, 6
        %v9874 = vsel %vm9832, %v9872, %v9873
        %v9875 = vrot.slane %v9184, 6
        %v9876 = vrot.slane %v9186, 6
        %v9877 = vsel %vm9832, %v9875, %v9876
        %v9878 = vrot.slane %v9189, 6
        %v9879 = vrot.slane %v9191, 6
        %v9880 = vsel %vm9832, %v9878, %v9879
        %9881 = vrot.lane.b32.xlu0 %v9833, 24
        %v9882 = vpop.permute.xlu0 %9881
        %9883 = vrot.lane.b32.xlu0 %v9835, 24
        %v9884 = vpop.permute.xlu0 %9883
        %9885 = vrot.lane.b32.xlu0 %v9834, 24
        %v9886 = vpop.permute.xlu0 %9885
        %9887 = vrot.lane.b32.xlu0 %v9836, 24
        %v9888 = vpop.permute.xlu0 %9887
        %9889 = vrot.lane.b32.xlu0 %v9838, 24
        %v9890 = vpop.permute.xlu0 %9889
        %9891 = vrot.lane.b32.xlu0 %v9837, 24
        %v9892 = vpop.permute.xlu0 %9891
        %9893 = vrot.lane.b32.xlu0 %v9839, 24
        %v9894 = vpop.permute.xlu0 %9893
        %9895 = vrot.lane.b32.xlu0 %v9841, 24
        %v9896 = vpop.permute.xlu0 %9895
        %9897 = vrot.lane.b32.xlu0 %v9840, 24
        %v9898 = vpop.permute.xlu0 %9897
        %9899 = vrot.lane.b32.xlu0 %v9842, 24
        %v9900 = vpop.permute.xlu0 %9899
        %9901 = vrot.lane.b32.xlu0 %v9844, 24
        %v9902 = vpop.permute.xlu0 %9901
        %9903 = vrot.lane.b32.xlu0 %v9843, 24
        %v9904 = vpop.permute.xlu0 %9903
        %9905 = vrot.lane.b32.xlu0 %v9845, 24
        %v9906 = vpop.permute.xlu0 %9905
        %9907 = vrot.lane.b32.xlu0 %v9847, 24
        %v9908 = vpop.permute.xlu0 %9907
        %9909 = vrot.lane.b32.xlu0 %v9846, 24
        %v9910 = vpop.permute.xlu0 %9909
        %9911 = vrot.lane.b32.xlu0 %v9848, 24
        %v9912 = vpop.permute.xlu0 %9911
        %9913 = vrot.lane.b32.xlu0 %v9850, 24
        %v9914 = vpop.permute.xlu0 %9913
        %9915 = vrot.lane.b32.xlu0 %v9849, 24
        %v9916 = vpop.permute.xlu0 %9915
        %9917 = vrot.lane.b32.xlu0 %v9851, 24
        %v9918 = vpop.permute.xlu0 %9917
        %9919 = vrot.lane.b32.xlu0 %v9853, 24
        %v9920 = vpop.permute.xlu0 %9919
        %9921 = vrot.lane.b32.xlu0 %v9852, 24
        %v9922 = vpop.permute.xlu0 %9921
        %9923 = vrot.lane.b32.xlu0 %v9854, 24
        %v9924 = vpop.permute.xlu0 %9923
        %9925 = vrot.lane.b32.xlu0 %v9856, 24
        %v9926 = vpop.permute.xlu0 %9925
        %9927 = vrot.lane.b32.xlu0 %v9855, 24
        %v9928 = vpop.permute.xlu0 %9927
        %9929 = vrot.lane.b32.xlu0 %v9857, 24
        %v9930 = vpop.permute.xlu0 %9929
        %9931 = vrot.lane.b32.xlu0 %v9859, 24
        %v9932 = vpop.permute.xlu0 %9931
        %9933 = vrot.lane.b32.xlu0 %v9858, 24
        %v9934 = vpop.permute.xlu0 %9933
        %9935 = vrot.lane.b32.xlu0 %v9860, 24
        %v9936 = vpop.permute.xlu0 %9935
        %9937 = vrot.lane.b32.xlu0 %v9862, 24
        %v9938 = vpop.permute.xlu0 %9937
        %9939 = vrot.lane.b32.xlu0 %v9861, 24
        %v9940 = vpop.permute.xlu0 %9939
        %9941 = vrot.lane.b32.xlu0 %v9863, 24
        %v9942 = vpop.permute.xlu0 %9941
        %9943 = vrot.lane.b32.xlu0 %v9865, 24
        %v9944 = vpop.permute.xlu0 %9943
        %9945 = vrot.lane.b32.xlu0 %v9864, 24
        %v9946 = vpop.permute.xlu0 %9945
        %9947 = vrot.lane.b32.xlu0 %v9866, 24
        %v9948 = vpop.permute.xlu0 %9947
        %9949 = vrot.lane.b32.xlu0 %v9868, 24
        %v9950 = vpop.permute.xlu0 %9949
        %9951 = vrot.lane.b32.xlu0 %v9867, 24
        %v9952 = vpop.permute.xlu0 %9951
        %9953 = vrot.lane.b32.xlu0 %v9869, 24
        %v9954 = vpop.permute.xlu0 %9953
        %9955 = vrot.lane.b32.xlu0 %v9871, 24
        %v9956 = vpop.permute.xlu0 %9955
        %9957 = vrot.lane.b32.xlu0 %v9870, 24
        %v9958 = vpop.permute.xlu0 %9957
        %9959 = vrot.lane.b32.xlu0 %v9872, 24
        %v9960 = vpop.permute.xlu0 %9959
        %9961 = vrot.lane.b32.xlu0 %v9874, 24
        %v9962 = vpop.permute.xlu0 %9961
        %9963 = vrot.lane.b32.xlu0 %v9873, 24
        %v9964 = vpop.permute.xlu0 %9963
        %9965 = vrot.lane.b32.xlu0 %v9875, 24
        %v9966 = vpop.permute.xlu0 %9965
        %9967 = vrot.lane.b32.xlu0 %v9877, 24
        %v9968 = vpop.permute.xlu0 %9967
        %9969 = vrot.lane.b32.xlu0 %v9876, 24
        %v9970 = vpop.permute.xlu0 %9969
        %9971 = vrot.lane.b32.xlu0 %v9878, 24
        %v9972 = vpop.permute.xlu0 %9971
        %9973 = vrot.lane.b32.xlu0 %v9880, 24
        %v9974 = vpop.permute.xlu0 %9973
        %9975 = vrot.lane.b32.xlu0 %v9879, 24
        %v9976 = vpop.permute.xlu0 %9975
        %v10025 = vsel %vm1668, %v9202, %v9657
        %v10026 = vsel %vm1668, %v9203, %v9659
        %v10027 = vsel %vm1668, %v9204, %v9661
        %v10028 = vsel %vm1668, %v9209, %v9663
        %v10029 = vsel %vm1668, %v9213, %v9665
        %v10030 = vsel %vm1668, %v9214, %v9667
        %v10031 = vsel %vm1668, %v9220, %v9669
        %v10032 = vsel %vm1668, %v9221, %v9671
        %v10033 = vsel %vm1668, %v9223, %v9673
        %v10034 = vsel %vm1668, %v9229, %v9675
        %v10035 = vsel %vm1668, %v9230, %v9677
        %v10036 = vsel %vm1668, %v9231, %v9679
        %v10037 = vsel %vm1668, %v9237, %v9681
        %v10038 = vsel %vm1668, %v9238, %v9683
        %v10039 = vsel %vm1668, %v9239, %v9685
        %v10040 = vsel %vm1668, %v9242, %v9687
        %v10041 = vsel %vm1668, %v9246, %v9689
        %v10042 = vsel %vm1668, %v9247, %v9691
        %v10043 = vsel %vm1668, %v9252, %v9693
        %v10044 = vsel %vm1668, %v9253, %v9695
        %v10045 = vsel %vm1668, %v9255, %v9697
        %v10046 = vsel %vm1668, %v9261, %v9699
        %v10047 = vsel %vm1668, %v9262, %v9701
        %v10048 = vsel %vm1668, %v9263, %v9703
        %v10049 = vsel %vm1668, %v9269, %v9705
        %v10050 = vsel %vm1668, %v9270, %v9707
        %v10051 = vsel %vm1668, %v9271, %v9709
        %v10052 = vsel %vm1668, %v9274, %v9711
        %v10053 = vsel %vm1668, %v9278, %v9713
        %v10054 = vsel %vm1668, %v9279, %v9715
        %v10055 = vsel %vm1668, %v9284, %v9717
        %v10056 = vsel %vm1668, %v9285, %v9719
        %v10057 = vsel %vm1668, %v9287, %v9721
        %v10058 = vsel %vm1668, %v9293, %v9723
        %v10059 = vsel %vm1668, %v9294, %v9725
        %v10060 = vsel %vm1668, %v9295, %v9727
        %v10061 = vsel %vm1668, %v9301, %v9729
        %v10062 = vsel %vm1668, %v9302, %v9731
        %v10063 = vsel %vm1668, %v9303, %v9733
        %v10064 = vsel %vm1668, %v9306, %v9735
        %v10065 = vsel %vm1668, %v9310, %v9737
        %v10066 = vsel %vm1668, %v9311, %v9739
        %v10067 = vsel %vm1668, %v9316, %v9741
        %v10068 = vsel %vm1668, %v9317, %v9743
        %v10069 = vsel %vm1668, %v9319, %v9745
        %v10070 = vsel %vm1668, %v9325, %v9747
        %v10071 = vsel %vm1668, %v9326, %v9749
        %v10072 = vsel %vm1668, %v9327, %v9751
        %v10073 = vsel %vm1749, %v10025, %v9882
        %v10074 = vsel %vm1749, %v10026, %v9884
        %v10075 = vsel %vm1749, %v10027, %v9886
        %v10076 = vsel %vm1749, %v10028, %v9888
        %v10077 = vsel %vm1749, %v10029, %v9890
        %v10078 = vsel %vm1749, %v10030, %v9892
        %v10079 = vsel %vm1749, %v10031, %v9894
        %v10080 = vsel %vm1749, %v10032, %v9896
        %v10081 = vsel %vm1749, %v10033, %v9898
        %v10082 = vsel %vm1749, %v10034, %v9900
        %v10083 = vsel %vm1749, %v10035, %v9902
        %v10084 = vsel %vm1749, %v10036, %v9904
        %v10085 = vsel %vm1749, %v10037, %v9906
        %v10086 = vsel %vm1749, %v10038, %v9908
        %v10087 = vsel %vm1749, %v10039, %v9910
        %v10088 = vsel %vm1749, %v10040, %v9912
        %v10089 = vsel %vm1749, %v10041, %v9914
        %v10090 = vsel %vm1749, %v10042, %v9916
        %v10091 = vsel %vm1749, %v10043, %v9918
        %v10092 = vsel %vm1749, %v10044, %v9920
        %v10093 = vsel %vm1749, %v10045, %v9922
        %v10094 = vsel %vm1749, %v10046, %v9924
        %v10095 = vsel %vm1749, %v10047, %v9926
        %v10096 = vsel %vm1749, %v10048, %v9928
        %v10097 = vsel %vm1749, %v10049, %v9930
        %v10098 = vsel %vm1749, %v10050, %v9932
        %v10099 = vsel %vm1749, %v10051, %v9934
        %v10100 = vsel %vm1749, %v10052, %v9936
        %v10101 = vsel %vm1749, %v10053, %v9938
        %v10102 = vsel %vm1749, %v10054, %v9940
        %v10103 = vsel %vm1749, %v10055, %v9942
        %v10104 = vsel %vm1749, %v10056, %v9944
        %v10105 = vsel %vm1749, %v10057, %v9946
        %v10106 = vsel %vm1749, %v10058, %v9948
        %v10107 = vsel %vm1749, %v10059, %v9950
        %v10108 = vsel %vm1749, %v10060, %v9952
        %v10109 = vsel %vm1749, %v10061, %v9954
        %v10110 = vsel %vm1749, %v10062, %v9956
        %v10111 = vsel %vm1749, %v10063, %v9958
        %v10112 = vsel %vm1749, %v10064, %v9960
        %v10113 = vsel %vm1749, %v10065, %v9962
        %v10114 = vsel %vm1749, %v10066, %v9964
        %v10115 = vsel %vm1749, %v10067, %v9966
        %v10116 = vsel %vm1749, %v10068, %v9968
        %v10117 = vsel %vm1749, %v10069, %v9970
        %v10118 = vsel %vm1749, %v10070, %v9972
        %v10119 = vsel %vm1749, %v10071, %v9974
        %v10120 = vsel %vm1749, %v10072, %v9976
        %v10121 = vmax.f32 %v10073, 0.0
        %v10122 = vmax.f32 %v10074, 0.0
        %v10123 = vmax.f32 %v10075, 0.0
        %v10124 = vmax.f32 %v10076, 0.0
        %v10125 = vmax.f32 %v10077, 0.0
        %v10126 = vmax.f32 %v10078, 0.0
        %v10127 = vmax.f32 %v10079, 0.0
        %v10128 = vmax.f32 %v10080, 0.0
        %v10129 = vmax.f32 %v10081, 0.0
        %v10130 = vmax.f32 %v10082, 0.0
        %v10131 = vmax.f32 %v10083, 0.0
        %v10132 = vmax.f32 %v10084, 0.0
        %v10133 = vmax.f32 %v10085, 0.0
        %v10134 = vmax.f32 %v10086, 0.0
        %v10135 = vmax.f32 %v10087, 0.0
        %v10136 = vmax.f32 %v10088, 0.0
        %v10137 = vmax.f32 %v10089, 0.0
        %v10138 = vmax.f32 %v10090, 0.0
        %v10139 = vmax.f32 %v10091, 0.0
        %v10140 = vmax.f32 %v10092, 0.0
        %v10141 = vmax.f32 %v10093, 0.0
        %v10142 = vmax.f32 %v10094, 0.0
        %v10143 = vmax.f32 %v10095, 0.0
        %v10144 = vmax.f32 %v10096, 0.0
        %v10145 = vmax.f32 %v10097, 0.0
        %v10146 = vmax.f32 %v10098, 0.0
        %v10147 = vmax.f32 %v10099, 0.0
        %v10148 = vmax.f32 %v10100, 0.0
        %v10149 = vmax.f32 %v10101, 0.0
        %v10150 = vmax.f32 %v10102, 0.0
        %v10151 = vmax.f32 %v10103, 0.0
        %v10152 = vmax.f32 %v10104, 0.0
        %v10153 = vmax.f32 %v10105, 0.0
        %v10154 = vmax.f32 %v10106, 0.0
        %v10155 = vmax.f32 %v10107, 0.0
        %v10156 = vmax.f32 %v10108, 0.0
        %v10157 = vmax.f32 %v10109, 0.0
        %v10158 = vmax.f32 %v10110, 0.0
        %v10159 = vmax.f32 %v10111, 0.0
        %v10160 = vmax.f32 %v10112, 0.0
        %v10161 = vmax.f32 %v10113, 0.0
        %v10162 = vmax.f32 %v10114, 0.0
        %v10163 = vmax.f32 %v10115, 0.0
        %v10164 = vmax.f32 %v10116, 0.0
        %v10165 = vmax.f32 %v10117, 0.0
        %v10166 = vmax.f32 %v10118, 0.0
        %v10167 = vmax.f32 %v10119, 0.0
        %v10168 = vmax.f32 %v10120, 0.0
        %v10169 = vpack.c.bf16 %v10121, %v10121
        %v10170 = vpack.c.bf16 %v10122, %v10122
        %v10171 = vpack.c.bf16 %v10123, %v10123
        %v10172 = vpack.c.bf16 %v10124, %v10124
        %v10173 = vpack.c.bf16 %v10125, %v10125
        %v10174 = vpack.c.bf16 %v10126, %v10126
        %v10175 = vpack.c.bf16 %v10127, %v10127
        %v10176 = vpack.c.bf16 %v10128, %v10128
        %v10177 = vpack.c.bf16 %v10129, %v10129
        %v10178 = vpack.c.bf16 %v10130, %v10130
        %v10179 = vpack.c.bf16 %v10131, %v10131
        %v10180 = vpack.c.bf16 %v10132, %v10132
        %v10181 = vpack.c.bf16 %v10133, %v10133
        %v10182 = vpack.c.bf16 %v10134, %v10134
        %v10183 = vpack.c.bf16 %v10135, %v10135
        %v10184 = vpack.c.bf16 %v10136, %v10136
        %v10185 = vpack.c.bf16 %v10137, %v10137
        %v10186 = vpack.c.bf16 %v10138, %v10138
        %v10187 = vpack.c.bf16 %v10139, %v10139
        %v10188 = vpack.c.bf16 %v10140, %v10140
        %v10189 = vpack.c.bf16 %v10141, %v10141
        %v10190 = vpack.c.bf16 %v10142, %v10142
        %v10191 = vpack.c.bf16 %v10143, %v10143
        %v10192 = vpack.c.bf16 %v10144, %v10144
        %v10193 = vpack.c.bf16 %v10145, %v10145
        %v10194 = vpack.c.bf16 %v10146, %v10146
        %v10195 = vpack.c.bf16 %v10147, %v10147
        %v10196 = vpack.c.bf16 %v10148, %v10148
        %v10197 = vpack.c.bf16 %v10149, %v10149
        %v10198 = vpack.c.bf16 %v10150, %v10150
        %v10199 = vpack.c.bf16 %v10151, %v10151
        %v10200 = vpack.c.bf16 %v10152, %v10152
        %v10201 = vpack.c.bf16 %v10153, %v10153
        %v10202 = vpack.c.bf16 %v10154, %v10154
        %v10203 = vpack.c.bf16 %v10155, %v10155
        %v10204 = vpack.c.bf16 %v10156, %v10156
        %v10205 = vpack.c.bf16 %v10157, %v10157
        %v10206 = vpack.c.bf16 %v10158, %v10158
        %v10207 = vpack.c.bf16 %v10159, %v10159
        %v10208 = vpack.c.bf16 %v10160, %v10160
        %v10209 = vpack.c.bf16 %v10161, %v10161
        %v10210 = vpack.c.bf16 %v10162, %v10162
        %v10211 = vpack.c.bf16 %v10163, %v10163
        %v10212 = vpack.c.bf16 %v10164, %v10164
        %v10213 = vpack.c.bf16 %v10165, %v10165
        %v10214 = vpack.c.bf16 %v10166, %v10166
        %v10215 = vpack.c.bf16 %v10167, %v10167
        %v10216 = vpack.c.bf16 %v10168, %v10168
        %vm10265 = vcmask 1042432
        %vm10266 = vcmask 1046532
        %vm10267 = vmor %vm10265, %vm10266
        %v10268 = vrot.slane %v10169, 5
        %v10269 = vrot.slane %v10268, 4
        %v10270 = vrot.slane %v10170, 5
        %v10271 = vsel %vm10267, %v10269, %v10270
        %v10272 = vrot.slane %v10270, 4
        %v10273 = vrot.slane %v10171, 5
        %v10274 = vsel %vm10267, %v10272, %v10273
        %v10275 = vrot.slane %v10172, 5
        %v10276 = vrot.slane %v10275, 4
        %v10277 = vrot.slane %v10173, 5
        %v10278 = vsel %vm10267, %v10276, %v10277
        %v10279 = vrot.slane %v10277, 4
        %v10280 = vrot.slane %v10174, 5
        %v10281 = vsel %vm10267, %v10279, %v10280
        %v10282 = vrot.slane %v10175, 5
        %v10283 = vrot.slane %v10282, 4
        %v10284 = vrot.slane %v10176, 5
        %v10285 = vsel %vm10267, %v10283, %v10284
        %v10286 = vrot.slane %v10284, 4
        %v10287 = vrot.slane %v10177, 5
        %v10288 = vsel %vm10267, %v10286, %v10287
        %v10289 = vrot.slane %v10178, 5
        %v10290 = vrot.slane %v10289, 4
        %v10291 = vrot.slane %v10179, 5
        %v10292 = vsel %vm10267, %v10290, %v10291
        %v10293 = vrot.slane %v10291, 4
        %v10294 = vrot.slane %v10180, 5
        %v10295 = vsel %vm10267, %v10293, %v10294
        %v10296 = vrot.slane %v10181, 5
        %v10297 = vrot.slane %v10296, 4
        %v10298 = vrot.slane %v10182, 5
        %v10299 = vsel %vm10267, %v10297, %v10298
        %v10300 = vrot.slane %v10298, 4
        %v10301 = vrot.slane %v10183, 5
        %v10302 = vsel %vm10267, %v10300, %v10301
        %v10303 = vrot.slane %v10184, 5
        %v10304 = vrot.slane %v10303, 4
        %v10305 = vrot.slane %v10185, 5
        %v10306 = vsel %vm10267, %v10304, %v10305
        %v10307 = vrot.slane %v10305, 4
        %v10308 = vrot.slane %v10186, 5
        %v10309 = vsel %vm10267, %v10307, %v10308
        %v10310 = vrot.slane %v10187, 5
        %v10311 = vrot.slane %v10310, 4
        %v10312 = vrot.slane %v10188, 5
        %v10313 = vsel %vm10267, %v10311, %v10312
        %v10314 = vrot.slane %v10312, 4
        %v10315 = vrot.slane %v10189, 5
        %v10316 = vsel %vm10267, %v10314, %v10315
        %v10317 = vrot.slane %v10190, 5
        %v10318 = vrot.slane %v10317, 4
        %v10319 = vrot.slane %v10191, 5
        %v10320 = vsel %vm10267, %v10318, %v10319
        %v10321 = vrot.slane %v10319, 4
        %v10322 = vrot.slane %v10192, 5
        %v10323 = vsel %vm10267, %v10321, %v10322
        %v10324 = vrot.slane %v10193, 5
        %v10325 = vrot.slane %v10324, 4
        %v10326 = vrot.slane %v10194, 5
        %v10327 = vsel %vm10267, %v10325, %v10326
        %v10328 = vrot.slane %v10326, 4
        %v10329 = vrot.slane %v10195, 5
        %v10330 = vsel %vm10267, %v10328, %v10329
        %v10331 = vrot.slane %v10196, 5
        %v10332 = vrot.slane %v10331, 4
        %v10333 = vrot.slane %v10197, 5
        %v10334 = vsel %vm10267, %v10332, %v10333
        %v10335 = vrot.slane %v10333, 4
        %v10336 = vrot.slane %v10198, 5
        %v10337 = vsel %vm10267, %v10335, %v10336
        %v10338 = vrot.slane %v10199, 5
        %v10339 = vrot.slane %v10338, 4
        %v10340 = vrot.slane %v10200, 5
        %v10341 = vsel %vm10267, %v10339, %v10340
        %v10342 = vrot.slane %v10340, 4
        %v10343 = vrot.slane %v10201, 5
        %v10344 = vsel %vm10267, %v10342, %v10343
        %v10345 = vrot.slane %v10202, 5
        %v10346 = vrot.slane %v10345, 4
        %v10347 = vrot.slane %v10203, 5
        %v10348 = vsel %vm10267, %v10346, %v10347
        %v10349 = vrot.slane %v10347, 4
        %v10350 = vrot.slane %v10204, 5
        %v10351 = vsel %vm10267, %v10349, %v10350
        %v10352 = vrot.slane %v10205, 5
        %v10353 = vrot.slane %v10352, 4
        %v10354 = vrot.slane %v10206, 5
        %v10355 = vsel %vm10267, %v10353, %v10354
        %v10356 = vrot.slane %v10354, 4
        %v10357 = vrot.slane %v10207, 5
        %v10358 = vsel %vm10267, %v10356, %v10357
        %v10359 = vrot.slane %v10208, 5
        %v10360 = vrot.slane %v10359, 4
        %v10361 = vrot.slane %v10209, 5
        %v10362 = vsel %vm10267, %v10360, %v10361
        %v10363 = vrot.slane %v10361, 4
        %v10364 = vrot.slane %v10210, 5
        %v10365 = vsel %vm10267, %v10363, %v10364
        %v10366 = vrot.slane %v10211, 5
        %v10367 = vrot.slane %v10366, 4
        %v10368 = vrot.slane %v10212, 5
        %v10369 = vsel %vm10267, %v10367, %v10368
        %v10370 = vrot.slane %v10368, 4
        %v10371 = vrot.slane %v10213, 5
        %v10372 = vsel %vm10267, %v10370, %v10371
        %v10373 = vrot.slane %v10214, 5
        %v10374 = vrot.slane %v10373, 4
        %v10375 = vrot.slane %v10215, 5
        %v10376 = vsel %vm10267, %v10374, %v10375
        %v10377 = vrot.slane %v10375, 4
        %v10378 = vrot.slane %v10216, 5
        %v10379 = vsel %vm10267, %v10377, %v10378
        %vm10412 = vcmask 257024
        %10413 = vst.msk [vmem:[%s285] sm:$0xf] %vm10412, %v10271
        %10414 = vst.msk [vmem:[%s285 + $0x4] sm:$0xf] %vm10412, %v10274
        %10415 = vst.msk [vmem:[%s285 + $0x8] sm:$0xf] %vm10412, %v10278
        %10416 = vst.msk [vmem:[%s285 + $0xc] sm:$0xf] %vm10412, %v10281
        %10417 = vst.msk [vmem:[%s285 + $0x10] sm:$0xf] %vm10412, %v10285
        %10418 = vst.msk [vmem:[%s285 + $0x14] sm:$0xf] %vm10412, %v10288
        %10419 = vst.msk [vmem:[%s285 + $0x18] sm:$0xf] %vm10412, %v10292
        %10420 = vst.msk [vmem:[%s285 + $0x1c] sm:$0xf] %vm10412, %v10295
        %10421 = vst.msk [vmem:[%s285 + $0x20] sm:$0xf] %vm10412, %v10299
        %10422 = vst.msk [vmem:[%s285 + $0x24] sm:$0xf] %vm10412, %v10302
        %10423 = vst.msk [vmem:[%s285 + $0x28] sm:$0xf] %vm10412, %v10306
        %10424 = vst.msk [vmem:[%s285 + $0x2c] sm:$0xf] %vm10412, %v10309
        %10425 = vst.msk [vmem:[%s285 + $0x30] sm:$0xf] %vm10412, %v10313
        %10426 = vst.msk [vmem:[%s285 + $0x34] sm:$0xf] %vm10412, %v10316
        %10427 = vst.msk [vmem:[%s285 + $0x38] sm:$0xf] %vm10412, %v10320
        %10428 = vst.msk [vmem:[%s285 + $0x3c] sm:$0xf] %vm10412, %v10323
        %10429 = vst.msk [vmem:[%s285 + $0x40] sm:$0xf] %vm10412, %v10327
        %10430 = vst.msk [vmem:[%s285 + $0x44] sm:$0xf] %vm10412, %v10330
        %10431 = vst.msk [vmem:[%s285 + $0x48] sm:$0xf] %vm10412, %v10334
        %10432 = vst.msk [vmem:[%s285 + $0x4c] sm:$0xf] %vm10412, %v10337
        %10433 = vst.msk [vmem:[%s285 + $0x50] sm:$0xf] %vm10412, %v10341
        %10434 = vst.msk [vmem:[%s285 + $0x54] sm:$0xf] %vm10412, %v10344
        %10435 = vst.msk [vmem:[%s285 + $0x58] sm:$0xf] %vm10412, %v10348
        %10436 = vst.msk [vmem:[%s285 + $0x5c] sm:$0xf] %vm10412, %v10351
        %10437 = vst.msk [vmem:[%s285 + $0x60] sm:$0xf] %vm10412, %v10355
        %10438 = vst.msk [vmem:[%s285 + $0x64] sm:$0xf] %vm10412, %v10358
        %10439 = vst.msk [vmem:[%s285 + $0x68] sm:$0xf] %vm10412, %v10362
        %10440 = vst.msk [vmem:[%s285 + $0x6c] sm:$0xf] %vm10412, %v10365
        %10441 = vst.msk [vmem:[%s285 + $0x70] sm:$0xf] %vm10412, %v10369
        %10442 = vst.msk [vmem:[%s285 + $0x74] sm:$0xf] %vm10412, %v10372
        %10443 = vst.msk [vmem:[%s285 + $0x78] sm:$0xf] %vm10412, %v10376
        %10444 = vst.msk [vmem:[%s285 + $0x7c] sm:$0xf] %vm10412, %v10379
        %s10445 = sand.u32 %s195, 1
        %s10446 = scalar_lea.sflag [#allocation3], %s10445
        %s10447 = sand.u32 %s195, 1
        %s10448 = smul.addr %s10447, 128
        %s10449 = scalar_lea.vmem [#allocation2], %s10448
        // Predicated region
        $region49: #{tpu_custom_call.1} parent=47 // pred_check
          %p10450 = pneg %p205
        $region50: #{tpu_custom_call.1} parent=47 // pred_check_branch
          %10452 = sbr.rel (%p10450) target = $region52
        $region51: #{tpu_custom_call.1} parent=47 // pred_region
          %s10453 = smul.u32 16, %s26
          %10455 = vsyncadd %s10446, 0
          %s10456 = smul.addr %s10453, 2
          %s10457 = smul.addr %s25, 32
          %s10458 = sadd.s32 %s10456, %s10457
          %s10459 = smul.addr %s10458, 4
          %s10460 = scalar_lea.hbm %s7, %s10459
          %s10461 = sshll.u32 %s10449, 4
          %s10462 = int_to_ptr.vmem [resolvable:$true] %s10461
          %s10463 = sshll.u32 %s10460, 4
          %s10464 = int_to_ptr.hbm [resolvable:$true] %s10463
          %10469 = dma.vmem_to_hbm [thread:$0]  %s10462, 2048, %s10464, %s10446, 64, 64, 4
        $region52: #{tpu_custom_call.1} parent=47 // pred_fallthru
          _
      $region48: #{tpu_custom_call.1} parent=5 // pred_fallthru
        _
      %p10470 = scmp.le.s32.totalorder 2, %s16
      // Predicated region
      $region53: #{tpu_custom_call.1} parent=5 // pred_check
        %p10471 = pneg %p10470
      $region54: #{tpu_custom_call.1} parent=5 // pred_check_branch
        %10473 = sbr.rel (%p10471) target = $region56
      $region55: #{tpu_custom_call.1} parent=5 // pred_region
        %s10474 = ssub.s32 %s16, 2
        // Predicated region
        $region57: #{tpu_custom_call.1} parent=55 // pred_check
          %p10475 = pneg %p211
        $region58: #{tpu_custom_call.1} parent=55 // pred_check_branch
          %10477 = sbr.rel (%p10475) target = $region60
        $region59: #{tpu_custom_call.1} parent=55 // pred_region
          %s10478 = sand.u32 %s196, 1
          %s10479 = scalar_lea.sflag [#allocation3], %s10478
          %s10480 = sand.u32 %s196, 1
          %s10481 = smul.addr %s10480, 128
          %s10482 = scalar_lea.vmem [#allocation2], %s10481
          %10484 = dma.done %s10479, 2048
        $region60: #{tpu_custom_call.1} parent=55 // pred_fallthru
          _
      $region56: #{tpu_custom_call.1} parent=5 // pred_fallthru
        _
    $region6: #{tpu_custom_call.1} parent=1 // loop_footer
      %s20 = sadd.s32 1, %s16
    $region7: #{tpu_custom_call.1} parent=1 // loop_footer_branch
      %15 = sbr.rel target = $region3
    $region8: #{tpu_custom_call.1} parent=1 // loop_exit
      _
    %10485 = vsyncpa [#allocation3], 1
    %s10486 = scalar_lea.sflag [#allocation3], 1
    %10487 = vsyncpa %s10486, 1

</llo_original>
